<compile_context>
chip_gen: v7x
topology: tpu7x:2x2x1
jax: 0.10.0
libtpu: 0.0.40
codegen_flags: <defaults>
</compile_context>

<pallas_src>
import functools

import jax
import jax.numpy as jnp
from jax.experimental import pallas as pl
from jax.experimental.pallas import tpu as pltpu

H = 64  # LSTM hidden size


def _round_up(x, m):
    return ((x + m - 1) // m) * m


# --------------------------------------------------------------------------
# Kernel
# --------------------------------------------------------------------------
def inertial_encoder_kernel(x_ref,
                            w1_ref, b1_ref, w2_ref, b2_ref, w3_ref, b3_ref,
                            wih0_ref, whh0_ref, lb0_ref,
                            wih1_ref, whh1_ref, lb1_ref,
                            wl_ref, bl_ref,
                            out_ref,
                            gx_ref, pad2_ref, pad3_ref,
                            *, TB, L):
    f32 = jnp.float32
    rows = L * TB

    def leaky(v):
        return jnp.where(v > 0, v, 0.1 * v)   # nn.LeakyReLU(0.1); Dropout = identity (eval)

    # ---- conv1: wrapper already did the im2col (rows = t*TB + b, cols = [prev|cur|next]) ----
    h = leaky(jnp.dot(x_ref[...], w1_ref[...], preferred_element_type=f32)
              + b1_ref[...])                                        # (L*TB, 64)

    # ---- conv2 / conv3: row-padded scratch + 3 accumulating K=Cin matmuls ----
    # (replaces shifted copies + 3*Cin lane concat; all offsets are static)
    def conv_pad(h_in, pad_ref, w_ref, b_ref, cin):
        pad_ref[pl.ds(0, TB), :] = jnp.zeros((TB, cin), f32)          # x[-1] border
        pad_ref[pl.ds(TB + rows, TB), :] = jnp.zeros((TB, cin), f32)  # x[L]  border
        pad_ref[pl.ds(TB, rows), :] = h_in
        y = jnp.dot(pad_ref[pl.ds(0, rows), :], w_ref[0:cin, :],
                    preferred_element_type=f32)                       # tap k=0 -> x[t-1]
        y = y + jnp.dot(pad_ref[pl.ds(TB, rows), :], w_ref[cin:2 * cin, :],
                        preferred_element_type=f32)                   # tap k=1 -> x[t]
        y = y + jnp.dot(pad_ref[pl.ds(2 * TB, rows), :], w_ref[2 * cin:3 * cin, :],
                        preferred_element_type=f32)                   # tap k=2 -> x[t+1]
        return leaky(y + b_ref[...])

    h = conv_pad(h, pad2_ref, w2_ref, b2_ref, 64)                    # (L*TB, 128)
    h = conv_pad(h, pad3_ref, w3_ref, b3_ref, 128)                   # (L*TB, 256)

    # ---- hoisted LSTM layer-0 input projection for the whole sequence ----
    gx_ref[...] = (jnp.dot(h, wih0_ref[...], preferred_element_type=f32)
                   + lb0_ref[...])                                   # (L*TB, 4H)

    whh0 = whh0_ref[...]
    wih1 = wih1_ref[...]
    whh1 = whh1_ref[...]
    lb1 = jnp.broadcast_to(lb1_ref[...], (TB, 4 * H))                # hoisted out of step()

    def gate_act(g):
        # gate columns were reordered wrapper-side to [i, f, o, g]
        s = jax.nn.sigmoid(g[:, :3 * H])
        return s[:, :H], s[:, H:2 * H], s[:, 2 * H:3 * H], jnp.tanh(g[:, 3 * H:])

    def step(t, carry):
        h1, c1, h2, c2 = carry
        r0 = pl.multiple_of(t * TB, TB)
        # layer 0: input projection hoisted; only the (TB,64)@(64,256) recurrent matmul here.
        g0 = gx_ref[pl.ds(r0, TB), :] + jnp.dot(h1, whh0, preferred_element_type=f32)
        i0, f0, o0, gg0 = gate_act(g0)
        c1 = f0 * c1 + i0 * gg0
        h1 = o0 * jnp.tanh(c1)
        # layer 1: two K=64 matmuls (no per-step lane concat).
        g1 = (jnp.dot(h1, wih1, preferred_element_type=f32)
              + jnp.dot(h2, whh1, preferred_element_type=f32) + lb1)
        i1, f1, o1, gg1 = gate_act(g1)
        c2 = f1 * c2 + i1 * gg1
        h2 = o1 * jnp.tanh(c2)
        return (h1, c1, h2, c2)

    z = jnp.zeros((TB, H), f32)
    loop_unroll = True if L <= 32 else 2
    _, _, h2, _ = jax.lax.fori_loop(0, L, step, (z, z, z, z), unroll=loop_unroll)

    # ---- final Linear(64 -> 6), lane-dense (weights zero-padded to 128 cols) ----
    out_ref[...] = (jnp.dot(h2, wl_ref[...], preferred_element_type=f32)
                    + bl_ref[...]).astype(out_ref.dtype)


# --------------------------------------------------------------------------
# Parameters: raw (PyTorch layout) + packed (kernel layout)
# --------------------------------------------------------------------------
def init_raw_params(seed=1):
    key = jax.random.PRNGKey(seed)
    ks = iter(jax.random.split(key, 40))

    def nrm(shape, scale=0.1):
        return jax.random.normal(next(ks), shape, jnp.float32) * scale

    p = {}
    for i, (ci, co) in enumerate([(6, 64), (64, 128), (128, 256)], start=1):
        p[f'conv{i}_w'] = nrm((co, ci, 3))      # PyTorch Conv1d weight (Cout, Cin, K)
        p[f'conv{i}_b'] = nrm((co,))
        p[f'bn{i}_gamma'] = 1.0 + nrm((co,))
        p[f'bn{i}_beta'] = nrm((co,))
        p[f'bn{i}_mean'] = nrm((co,))
        p[f'bn{i}_var'] = jnp.abs(nrm((co,))) + 1.0
    for l, insz in ((0, 256), (1, H)):
        p[f'wih_l{l}'] = nrm((4 * H, insz))     # PyTorch gate row order [i, f, g, o]
        p[f'whh_l{l}'] = nrm((4 * H, H))
        p[f'bih_l{l}'] = nrm((4 * H,))
        p[f'bhh_l{l}'] = nrm((4 * H,))
    p['lin_w'] = nrm((6, H))
    p['lin_b'] = nrm((6,))
    return p


def pack_params(raw):
    """Fold eval-mode BN into conv weights, reorder LSTM gate columns, pad Linear to 128 lanes."""
    eps = 1e-5

    def fold_conv(i):
        w, b = raw[f'conv{i}_w'], raw[f'conv{i}_b']
        s = raw[f'bn{i}_gamma'] / jnp.sqrt(raw[f'bn{i}_var'] + eps)
        co, ci, _ = w.shape
        # (3, Cin, Cout) k-major, flattened to (3*Cin, Cout); kernel slices tap k rows.
        wf = (jnp.transpose(w, (2, 1, 0)) * s).reshape(3 * ci, co)
        bf = ((b - raw[f'bn{i}_mean']) * s + raw[f'bn{i}_beta'])[None, :]
        return wf, bf

    def reorder_gates(W):   # columns [i, f, g, o] -> [i, f, o, g] (lane-aligned activations)
        return jnp.concatenate([W[:, :2 * H], W[:, 3 * H:], W[:, 2 * H:3 * H]], axis=1)

    w1, b1 = fold_conv(1)
    w2, b2 = fold_conv(2)
    w3, b3 = fold_conv(3)

    wih0 = reorder_gates(raw['wih_l0'].T)                                    # (256, 4H)
    whh0 = reorder_gates(raw['whh_l0'].T)                                    # (64, 4H)
    lb0 = reorder_gates((raw['bih_l0'] + raw['bhh_l0'])[None, :])            # (1, 4H)
    wih1 = reorder_gates(raw['wih_l1'].T)                                    # (64, 4H)
    whh1 = reorder_gates(raw['whh_l1'].T)                                    # (64, 4H)
    lb1 = reorder_gates((raw['bih_l1'] + raw['bhh_l1'])[None, :])            # (1, 4H)

    # Lane-dense final Linear: zero-pad (64,6)->(64,128) and (6,)->(128,)
    wl = jnp.zeros((H, 128), jnp.float32).at[:, :6].set(raw['lin_w'].T)
    bl = jnp.zeros((1, 128), jnp.float32).at[:, :6].set(raw['lin_b'][None, :])

    return dict(w1=w1, b1=b1, w2=w2, b2=b2, w3=w3, b3=b3,
                wih0=wih0, whh0=whh0, lb0=lb0,
                wih1=wih1, whh1=whh1, lb1=lb1,
                wl=wl, bl=bl)


PARAM_ORDER = ['w1', 'b1', 'w2', 'b2', 'w3', 'b3',
               'wih0', 'whh0', 'lb0', 'wih1', 'whh1', 'lb1', 'wl', 'bl']


# --------------------------------------------------------------------------
# VMEM estimate (f32 everywhere) used to clamp TB and set vmem_limit_bytes
# --------------------------------------------------------------------------
def _vmem_estimate_bytes(L, TB, C):
    f = 4
    rows = L * TB
    x_in = 2 * rows * 3 * C * f                      # double-buffered input block
    gx = rows * 4 * H * f                            # hoisted layer-0 gate scratch
    pads = (L + 2) * TB * (64 + 128) * f             # conv row-padded scratch
    acts = rows * (64 + 128 + 256 + 256) * f         # transient conv activations (upper bound)
    weights = 2 * f * (3 * C * 64 + 64 + 192 * 128 + 128 + 384 * 256 + 256
                       + 256 * 256 + 3 * 64 * 256 + 3 * 256 + 64 * 128 + 128)
    out = 2 * TB * 128 * f
    return x_in + gx + pads + acts + weights + out


# --------------------------------------------------------------------------
# Wrapper
# --------------------------------------------------------------------------
def inertial_encoder_forward(x, kp, *, TB=None, vmem_budget_bytes=40 * (1 << 20)):
    """x: (B, L, 6) channels-last (layout the PyTorch module receives before permute)."""
    B, L, C = x.shape

    if TB is None:
        # Large tile so every serial LSTM step is a big-M matmul; clamp by VMEM
        # budget (conservative enough for v7x's 64 MiB physical VMEM per TC).
        TB = min(128, _round_up(max(B, 1), 8))
        while TB > 8 and _vmem_estimate_bytes(L, TB, C) > vmem_budget_bytes:
            TB = max(8, _round_up(TB // 2, 8))
    assert TB % 8 == 0, "batch tile must be a multiple of 8 sublanes"

    n_tiles = pl.cdiv(B, TB)
    B_pad = n_tiles * TB

    # Pad batch to a multiple of TB, im2col conv1 along time (zero boundaries),
    # then lay out time-major per batch tile: row r = t*TB + b.
    xp = jnp.pad(x.astype(jnp.float32), ((0, B_pad - B), (0, 0), (0, 0)))
    z = jnp.zeros((B_pad, 1, C), jnp.float32)
    x_prev = jnp.concatenate([z, xp[:, :-1]], axis=1)
    x_next = jnp.concatenate([xp[:, 1:], z], axis=1)
    x_cat = jnp.concatenate([x_prev, xp, x_next], axis=-1)            # (B_pad, L, 3C)
    x_in = (x_cat.reshape(n_tiles, TB, L, 3 * C)
                 .transpose(0, 2, 1, 3)                               # (n_tiles, L, TB, 3C)
                 .reshape(n_tiles, L * TB, 3 * C))

    in_specs = [pl.BlockSpec((None, L * TB, 3 * C), lambda i: (i, 0, 0))]
    args = [x_in]
    for name in PARAM_ORDER:
        arr = kp[name]
        # Constant index_map -> Pallas keeps the weight resident across grid steps.
        in_specs.append(pl.BlockSpec(arr.shape, lambda i, _n=arr.ndim: (0,) * _n))
        args.append(arr)

    # Raise the scoped-VMEM limit only when the tile actually needs it (leave headroom).
    est = _vmem_estimate_bytes(L, TB, C)
    cp_kwargs = dict(dimension_semantics=("parallel",))   # batch tiles shard across v7x's 2 TCs
    if est > 28 * (1 << 20):
        cp_kwargs["vmem_limit_bytes"] = int(min(est * 1.3, 98 * (1 << 20)))

    kernel = functools.partial(inertial_encoder_kernel, TB=TB, L=L)
    out = pl.pallas_call(
        kernel,
        out_shape=jax.ShapeDtypeStruct((n_tiles, TB, 128), jnp.float32),
        grid_spec=pltpu.PrefetchScalarGridSpec(
            num_scalar_prefetch=0,
            grid=(n_tiles,),
            in_specs=in_specs,
            out_specs=pl.BlockSpec((None, TB, 128), lambda i: (i, 0, 0)),
            scratch_shapes=[
                pltpu.VMEM((L * TB, 4 * H), jnp.float32),        # hoisted layer-0 gates
                pltpu.VMEM(((L + 2) * TB, 64), jnp.float32),     # conv2 row-padded input
                pltpu.VMEM(((L + 2) * TB, 128), jnp.float32),    # conv3 row-padded input
            ],
        ),
        compiler_params=pltpu.CompilerParams(**cp_kwargs),
    )(*args)
    return out.reshape(B_pad, 128)[:B, :6]


# --------------------------------------------------------------------------
# Pure-JAX reference (PyTorch semantics, eval mode) for validation
# --------------------------------------------------------------------------
def reference_forward(x, raw):
    with jax.default_matmul_precision("float32"):
        def leaky(v):
            return jnp.where(v > 0, v, 0.1 * v)

        h = x                                                 # (B, L, C)
        L = x.shape[1]
        for i in (1, 2, 3):
            w, b = raw[f'conv{i}_w'], raw[f'conv{i}_b']
            hp = jnp.pad(h, ((0, 0), (1, 1), (0, 0)))
            y = b + sum(jnp.einsum('blc,oc->blo', hp[:, k:k + L, :], w[:, :, k])
                        for k in range(3))
            s = raw[f'bn{i}_gamma'] / jnp.sqrt(raw[f'bn{i}_var'] + 1e-5)
            y = (y - raw[f'bn{i}_mean']) * s + raw[f'bn{i}_beta']
            h = leaky(y)                                      # Dropout identity in eval

        B = x.shape[0]

        def cell(x_t, hs, cs, wih, whh, bih, bhh):
            g = x_t @ wih.T + hs @ whh.T + bih + bhh          # gate order i, f, g, o
            i_ = jax.nn.sigmoid(g[:, :H])
            f_ = jax.nn.sigmoid(g[:, H:2 * H])
            g_ = jnp.tanh(g[:, 2 * H:3 * H])
            o_ = jax.nn.sigmoid(g[:, 3 * H:])
            c = f_ * cs + i_ * g_
            return o_ * jnp.tanh(c), c

        def scan_fn(carry, x_t):
            h1, c1, h2, c2 = carry
            h1, c1 = cell(x_t, h1, c1, raw['wih_l0'], raw['whh_l0'],
                          raw['bih_l0'], raw['bhh_l0'])
            h2, c2 = cell(h1, h2, c2, raw['wih_l1'], raw['whh_l1'],
                          raw['bih_l1'], raw['bhh_l1'])
            return (h1, c1, h2, c2), None

        z = jnp.zeros((B, H), jnp.float32)
        (_, _, h2, _), _ = jax.lax.scan(scan_fn, (z, z, z, z), jnp.swapaxes(h, 0, 1))
        return h2 @ raw['lin_w'].T + raw['lin_b']


if __name__ == "__main__":
    B, L, C = 2, 16, 6            # small shapes: batch=2, seq=16, IMU channels=6
    x = jax.random.normal(jax.random.PRNGKey(0), (B, L, C), jnp.float32)

    raw = init_raw_params(seed=1)
    kp = pack_params(raw)

    out = jax.block_until_ready(inertial_encoder_forward(x, kp))
    ref = jax.block_until_ready(reference_forward(x, raw))

    assert out.shape == (B, 6)
    # Kernel uses default MXU precision (bf16 multiply, f32 accumulate); reference forces f32.
    assert jnp.allclose(out, ref, atol=2e-3, rtol=2e-3), (out, ref)
    print("KERNEL_OK")
</pallas_src>

<mosaic_0001>
module attributes {stable_mosaic.version = 11 : i64} {
  func.func @inertial_encoder_kernel(%arg0: i32, %arg1: memref<1x128x18xf32, #tpu.memory_space<vmem>>, %arg2: memref<18x64xf32, #tpu.memory_space<vmem>>, %arg3: memref<1x64xf32, #tpu.memory_space<vmem>>, %arg4: memref<192x128xf32, #tpu.memory_space<vmem>>, %arg5: memref<1x128xf32, #tpu.memory_space<vmem>>, %arg6: memref<384x256xf32, #tpu.memory_space<vmem>>, %arg7: memref<1x256xf32, #tpu.memory_space<vmem>>, %arg8: memref<256x256xf32, #tpu.memory_space<vmem>>, %arg9: memref<64x256xf32, #tpu.memory_space<vmem>>, %arg10: memref<1x256xf32, #tpu.memory_space<vmem>>, %arg11: memref<64x256xf32, #tpu.memory_space<vmem>>, %arg12: memref<64x256xf32, #tpu.memory_space<vmem>>, %arg13: memref<1x256xf32, #tpu.memory_space<vmem>>, %arg14: memref<64x128xf32, #tpu.memory_space<vmem>>, %arg15: memref<1x128xf32, #tpu.memory_space<vmem>>, %arg16: memref<1x8x128xf32, #tpu.memory_space<vmem>>, %arg17: memref<128x256xf32, #tpu.memory_space<vmem>>, %arg18: memref<144x64xf32, #tpu.memory_space<vmem>>, %arg19: memref<144x128xf32, #tpu.memory_space<vmem>>) attributes {dimension_semantics = [#tpu.dimension_semantics<parallel>], iteration_bounds = array<i64: 1>, scalar_prefetch = 0 : i64, scratch_operands = 3 : i64, tpu.core_type = #tpu.core_type<tc>, window_params = [{transform_indices = @transform_0, window_bounds = array<i64: 1, 128, 18>}, {pipeline_mode = #tpu.pipeline_mode<synchronous>, transform_indices = @transform_1, window_bounds = array<i64: 18, 64>}, {pipeline_mode = #tpu.pipeline_mode<synchronous>, transform_indices = @transform_2, window_bounds = array<i64: 1, 64>}, {pipeline_mode = #tpu.pipeline_mode<synchronous>, transform_indices = @transform_3, window_bounds = array<i64: 192, 128>}, {pipeline_mode = #tpu.pipeline_mode<synchronous>, transform_indices = @transform_4, window_bounds = array<i64: 1, 128>}, {pipeline_mode = #tpu.pipeline_mode<synchronous>, transform_indices = @transform_5, window_bounds = array<i64: 384, 256>}, {pipeline_mode = #tpu.pipeline_mode<synchronous>, transform_indices = @transform_6, window_bounds = array<i64: 1, 256>}, {pipeline_mode = #tpu.pipeline_mode<synchronous>, transform_indices = @transform_7, window_bounds = array<i64: 256, 256>}, {pipeline_mode = #tpu.pipeline_mode<synchronous>, transform_indices = @transform_8, window_bounds = array<i64: 64, 256>}, {pipeline_mode = #tpu.pipeline_mode<synchronous>, transform_indices = @transform_9, window_bounds = array<i64: 1, 256>}, {pipeline_mode = #tpu.pipeline_mode<synchronous>, transform_indices = @transform_10, window_bounds = array<i64: 64, 256>}, {pipeline_mode = #tpu.pipeline_mode<synchronous>, transform_indices = @transform_11, window_bounds = array<i64: 64, 256>}, {pipeline_mode = #tpu.pipeline_mode<synchronous>, transform_indices = @transform_12, window_bounds = array<i64: 1, 256>}, {pipeline_mode = #tpu.pipeline_mode<synchronous>, transform_indices = @transform_13, window_bounds = array<i64: 64, 128>}, {pipeline_mode = #tpu.pipeline_mode<synchronous>, transform_indices = @transform_14, window_bounds = array<i64: 1, 128>}, {transform_indices = @transform_15, window_bounds = array<i64: 1, 8, 128>}]} {
    %c0 = arith.constant 0 : index
    %c0_0 = arith.constant 0 : index
    %c0_1 = arith.constant 0 : index
    %0 = vector.load %arg1[%c0, %c0_0, %c0_1] : memref<1x128x18xf32, #tpu.memory_space<vmem>>, vector<1x128x18xf32>
    %1 = vector.shape_cast %0 : vector<1x128x18xf32> to vector<128x18xf32>
    %c0_2 = arith.constant 0 : index
    %c0_3 = arith.constant 0 : index
    %2 = vector.load %arg2[%c0_2, %c0_3] : memref<18x64xf32, #tpu.memory_space<vmem>>, vector<18x64xf32>
    %cst = arith.constant dense<0.000000e+00> : vector<128x64xf32>
    %3 = tpu.matmul %1, %2, %cst {dimension_numbers = #tpu.dot_dimension_numbers<[1], [0], [0], [1], [0, 0, 1, 1], [], []>} : vector<128x18xf32>, vector<18x64xf32>, vector<128x64xf32> -> vector<128x64xf32>
    %c0_4 = arith.constant 0 : index
    %c0_5 = arith.constant 0 : index
    %4 = vector.load %arg3[%c0_4, %c0_5] : memref<1x64xf32, #tpu.memory_space<vmem>>, vector<1x64xf32>
    %5 = vector.broadcast %4 : vector<1x64xf32> to vector<128x64xf32>
    %6 = arith.addf %3, %5 : vector<128x64xf32>
    %cst_6 = arith.constant 0.000000e+00 : f32
    %7 = vector.broadcast %cst_6 : f32 to vector<128x64xf32>
    %8 = arith.cmpf ogt, %6, %7 : vector<128x64xf32>
    %cst_7 = arith.constant 1.000000e-01 : f32
    %9 = vector.broadcast %cst_7 : f32 to vector<128x64xf32>
    %10 = arith.mulf %9, %6 : vector<128x64xf32>
    %11 = arith.select %8, %6, %10 : vector<128x64xi1>, vector<128x64xf32>
    %cst_8 = arith.constant 0.000000e+00 : f32
    %12 = vector.broadcast %cst_8 : f32 to vector<8x64xf32>
    %c0_9 = arith.constant 0 : index
    %c0_10 = arith.constant 0 : index
    %13 = vector.load %arg18[%c0_9, %c0_10] : memref<144x64xf32, #tpu.memory_space<vmem>>, vector<8x64xf32>
    tpu.vector_store %arg18[%c0_9, %c0_10], %12 {strides = array<i32>} : memref<144x64xf32, #tpu.memory_space<vmem>>, vector<8x64xf32>,
    %cst_11 = arith.constant 0.000000e+00 : f32
    %14 = vector.broadcast %cst_11 : f32 to vector<8x64xf32>
    %c136 = arith.constant 136 : index
    %c0_12 = arith.constant 0 : index
    %15 = vector.load %arg18[%c136, %c0_12] : memref<144x64xf32, #tpu.memory_space<vmem>>, vector<8x64xf32>
    tpu.vector_store %arg18[%c136, %c0_12], %14 {strides = array<i32>} : memref<144x64xf32, #tpu.memory_space<vmem>>, vector<8x64xf32>,
    %c8 = arith.constant 8 : index
    %c0_13 = arith.constant 0 : index
    %16 = vector.load %arg18[%c8, %c0_13] : memref<144x64xf32, #tpu.memory_space<vmem>>, vector<128x64xf32>
    tpu.vector_store %arg18[%c8, %c0_13], %11 {strides = array<i32>} : memref<144x64xf32, #tpu.memory_space<vmem>>, vector<128x64xf32>,
    %c0_14 = arith.constant 0 : index
    %c0_15 = arith.constant 0 : index
    %17 = vector.load %arg18[%c0_14, %c0_15] : memref<144x64xf32, #tpu.memory_space<vmem>>, vector<128x64xf32>
    %c0_16 = arith.constant 0 : index
    %c0_17 = arith.constant 0 : index
    %18 = vector.load %arg4[%c0_16, %c0_17] : memref<192x128xf32, #tpu.memory_space<vmem>>, vector<64x128xf32>
    %cst_18 = arith.constant dense<0.000000e+00> : vector<128x128xf32>
    %19 = tpu.matmul %17, %18, %cst_18 {dimension_numbers = #tpu.dot_dimension_numbers<[1], [0], [0], [1], [0, 0, 1, 1], [], []>} : vector<128x64xf32>, vector<64x128xf32>, vector<128x128xf32> -> vector<128x128xf32>
    %c8_19 = arith.constant 8 : index
    %c0_20 = arith.constant 0 : index
    %20 = vector.load %arg18[%c8_19, %c0_20] : memref<144x64xf32, #tpu.memory_space<vmem>>, vector<128x64xf32>
    %c64 = arith.constant 64 : index
    %c0_21 = arith.constant 0 : index
    %21 = vector.load %arg4[%c64, %c0_21] : memref<192x128xf32, #tpu.memory_space<vmem>>, vector<64x128xf32>
    %cst_22 = arith.constant dense<0.000000e+00> : vector<128x128xf32>
    %22 = tpu.matmul %20, %21, %cst_22 {dimension_numbers = #tpu.dot_dimension_numbers<[1], [0], [0], [1], [0, 0, 1, 1], [], []>} : vector<128x64xf32>, vector<64x128xf32>, vector<128x128xf32> -> vector<128x128xf32>
    %23 = arith.addf %19, %22 : vector<128x128xf32>
    %c16 = arith.constant 16 : index
    %c0_23 = arith.constant 0 : index
    %24 = vector.load %arg18[%c16, %c0_23] : memref<144x64xf32, #tpu.memory_space<vmem>>, vector<128x64xf32>
    %c128 = arith.constant 128 : index
    %c0_24 = arith.constant 0 : index
    %25 = vector.load %arg4[%c128, %c0_24] : memref<192x128xf32, #tpu.memory_space<vmem>>, vector<64x128xf32>
    %cst_25 = arith.constant dense<0.000000e+00> : vector<128x128xf32>
    %26 = tpu.matmul %24, %25, %cst_25 {dimension_numbers = #tpu.dot_dimension_numbers<[1], [0], [0], [1], [0, 0, 1, 1], [], []>} : vector<128x64xf32>, vector<64x128xf32>, vector<128x128xf32> -> vector<128x128xf32>
    %27 = arith.addf %23, %26 : vector<128x128xf32>
    %c0_26 = arith.constant 0 : index
    %c0_27 = arith.constant 0 : index
    %28 = vector.load %arg5[%c0_26, %c0_27] : memref<1x128xf32, #tpu.memory_space<vmem>>, vector<1x128xf32>
    %29 = vector.broadcast %28 : vector<1x128xf32> to vector<128x128xf32>
    %30 = arith.addf %27, %29 : vector<128x128xf32>
    %cst_28 = arith.constant 0.000000e+00 : f32
    %31 = vector.broadcast %cst_28 : f32 to vector<128x128xf32>
    %32 = arith.cmpf ogt, %30, %31 : vector<128x128xf32>
    %cst_29 = arith.constant 1.000000e-01 : f32
    %33 = vector.broadcast %cst_29 : f32 to vector<128x128xf32>
    %34 = arith.mulf %33, %30 : vector<128x128xf32>
    %35 = arith.select %32, %30, %34 : vector<128x128xi1>, vector<128x128xf32>
    %cst_30 = arith.constant 0.000000e+00 : f32
    %36 = vector.broadcast %cst_30 : f32 to vector<8x128xf32>
    %c0_31 = arith.constant 0 : index
    %c0_32 = arith.constant 0 : index
    %37 = vector.load %arg19[%c0_31, %c0_32] : memref<144x128xf32, #tpu.memory_space<vmem>>, vector<8x128xf32>
    tpu.vector_store %arg19[%c0_31, %c0_32], %36 {strides = array<i32>} : memref<144x128xf32, #tpu.memory_space<vmem>>, vector<8x128xf32>,
    %cst_33 = arith.constant 0.000000e+00 : f32
    %38 = vector.broadcast %cst_33 : f32 to vector<8x128xf32>
    %c136_34 = arith.constant 136 : index
    %c0_35 = arith.constant 0 : index
    %39 = vector.load %arg19[%c136_34, %c0_35] : memref<144x128xf32, #tpu.memory_space<vmem>>, vector<8x128xf32>
    tpu.vector_store %arg19[%c136_34, %c0_35], %38 {strides = array<i32>} : memref<144x128xf32, #tpu.memory_space<vmem>>, vector<8x128xf32>,
    %c8_36 = arith.constant 8 : index
    %c0_37 = arith.constant 0 : index
    %40 = vector.load %arg19[%c8_36, %c0_37] : memref<144x128xf32, #tpu.memory_space<vmem>>, vector<128x128xf32>
    tpu.vector_store %arg19[%c8_36, %c0_37], %35 {strides = array<i32>} : memref<144x128xf32, #tpu.memory_space<vmem>>, vector<128x128xf32>,
    %c0_38 = arith.constant 0 : index
    %c0_39 = arith.constant 0 : index
    %41 = vector.load %arg19[%c0_38, %c0_39] : memref<144x128xf32, #tpu.memory_space<vmem>>, vector<128x128xf32>
    %c0_40 = arith.constant 0 : index
    %c0_41 = arith.constant 0 : index
    %42 = vector.load %arg6[%c0_40, %c0_41] : memref<384x256xf32, #tpu.memory_space<vmem>>, vector<128x256xf32>
    %cst_42 = arith.constant dense<0.000000e+00> : vector<128x256xf32>
    %43 = tpu.matmul %41, %42, %cst_42 {dimension_numbers = #tpu.dot_dimension_numbers<[1], [0], [0], [1], [0, 0, 1, 1], [], []>} : vector<128x128xf32>, vector<128x256xf32>, vector<128x256xf32> -> vector<128x256xf32>
    %c8_43 = arith.constant 8 : index
    %c0_44 = arith.constant 0 : index
    %44 = vector.load %arg19[%c8_43, %c0_44] : memref<144x128xf32, #tpu.memory_space<vmem>>, vector<128x128xf32>
    %c128_45 = arith.constant 128 : index
    %c0_46 = arith.constant 0 : index
    %45 = vector.load %arg6[%c128_45, %c0_46] : memref<384x256xf32, #tpu.memory_space<vmem>>, vector<128x256xf32>
    %cst_47 = arith.constant dense<0.000000e+00> : vector<128x256xf32>
    %46 = tpu.matmul %44, %45, %cst_47 {dimension_numbers = #tpu.dot_dimension_numbers<[1], [0], [0], [1], [0, 0, 1, 1], [], []>} : vector<128x128xf32>, vector<128x256xf32>, vector<128x256xf32> -> vector<128x256xf32>
    %47 = arith.addf %43, %46 : vector<128x256xf32>
    %c16_48 = arith.constant 16 : index
    %c0_49 = arith.constant 0 : index
    %48 = vector.load %arg19[%c16_48, %c0_49] : memref<144x128xf32, #tpu.memory_space<vmem>>, vector<128x128xf32>
    %c256 = arith.constant 256 : index
    %c0_50 = arith.constant 0 : index
    %49 = vector.load %arg6[%c256, %c0_50] : memref<384x256xf32, #tpu.memory_space<vmem>>, vector<128x256xf32>
    %cst_51 = arith.constant dense<0.000000e+00> : vector<128x256xf32>
    %50 = tpu.matmul %48, %49, %cst_51 {dimension_numbers = #tpu.dot_dimension_numbers<[1], [0], [0], [1], [0, 0, 1, 1], [], []>} : vector<128x128xf32>, vector<128x256xf32>, vector<128x256xf32> -> vector<128x256xf32>
    %51 = arith.addf %47, %50 : vector<128x256xf32>
    %c0_52 = arith.constant 0 : index
    %c0_53 = arith.constant 0 : index
    %52 = vector.load %arg7[%c0_52, %c0_53] : memref<1x256xf32, #tpu.memory_space<vmem>>, vector<1x256xf32>
    %53 = vector.broadcast %52 : vector<1x256xf32> to vector<128x256xf32>
    %54 = arith.addf %51, %53 : vector<128x256xf32>
    %cst_54 = arith.constant 0.000000e+00 : f32
    %55 = vector.broadcast %cst_54 : f32 to vector<128x256xf32>
    %56 = arith.cmpf ogt, %54, %55 : vector<128x256xf32>
    %cst_55 = arith.constant 1.000000e-01 : f32
    %57 = vector.broadcast %cst_55 : f32 to vector<128x256xf32>
    %58 = arith.mulf %57, %54 : vector<128x256xf32>
    %59 = arith.select %56, %54, %58 : vector<128x256xi1>, vector<128x256xf32>
    %c0_56 = arith.constant 0 : index
    %c0_57 = arith.constant 0 : index
    %60 = vector.load %arg8[%c0_56, %c0_57] : memref<256x256xf32, #tpu.memory_space<vmem>>, vector<256x256xf32>
    %cst_58 = arith.constant dense<0.000000e+00> : vector<128x256xf32>
    %61 = tpu.matmul %59, %60, %cst_58 {dimension_numbers = #tpu.dot_dimension_numbers<[1], [0], [0], [1], [0, 0, 1, 1], [], []>} : vector<128x256xf32>, vector<256x256xf32>, vector<128x256xf32> -> vector<128x256xf32>
    %c0_59 = arith.constant 0 : index
    %c0_60 = arith.constant 0 : index
    %62 = vector.load %arg10[%c0_59, %c0_60] : memref<1x256xf32, #tpu.memory_space<vmem>>, vector<1x256xf32>
    %63 = vector.broadcast %62 : vector<1x256xf32> to vector<128x256xf32>
    %64 = arith.addf %61, %63 : vector<128x256xf32>
    %c0_61 = arith.constant 0 : index
    %c0_62 = arith.constant 0 : index
    %65 = vector.load %arg17[%c0_61, %c0_62] : memref<128x256xf32, #tpu.memory_space<vmem>>, vector<128x256xf32>
    tpu.vector_store %arg17[%c0_61, %c0_62], %64 {strides = array<i32>} : memref<128x256xf32, #tpu.memory_space<vmem>>, vector<128x256xf32>,
    %c0_63 = arith.constant 0 : index
    %c0_64 = arith.constant 0 : index
    %66 = vector.load %arg9[%c0_63, %c0_64] : memref<64x256xf32, #tpu.memory_space<vmem>>, vector<64x256xf32>
    %c0_65 = arith.constant 0 : index
    %c0_66 = arith.constant 0 : index
    %67 = vector.load %arg11[%c0_65, %c0_66] : memref<64x256xf32, #tpu.memory_space<vmem>>, vector<64x256xf32>
    %c0_67 = arith.constant 0 : index
    %c0_68 = arith.constant 0 : index
    %68 = vector.load %arg12[%c0_67, %c0_68] : memref<64x256xf32, #tpu.memory_space<vmem>>, vector<64x256xf32>
    %c0_69 = arith.constant 0 : index
    %c0_70 = arith.constant 0 : index
    %69 = vector.load %arg13[%c0_69, %c0_70] : memref<1x256xf32, #tpu.memory_space<vmem>>, vector<1x256xf32>
    %70 = vector.shape_cast %69 : vector<1x256xf32> to vector<1x256xf32>
    %71 = vector.broadcast %70 : vector<1x256xf32> to vector<8x256xf32>
    %cst_71 = arith.constant 0.000000e+00 : f32
    %72 = vector.broadcast %cst_71 : f32 to vector<8x64xf32>
    %c0_i32 = arith.constant 0 : i32
    %c8_i32 = arith.constant 8 : i32
    %73 = arith.muli %c0_i32, %c8_i32 : i32
    %74 = tpu.assume_multiple %73, 8 : i32
    %75 = arith.index_cast %74 : i32 to index
    %c0_72 = arith.constant 0 : index
    %76 = vector.load %arg17[%75, %c0_72] : memref<128x256xf32, #tpu.memory_space<vmem>>, vector<8x256xf32>
    %cst_73 = arith.constant dense<0.000000e+00> : vector<8x256xf32>
    %77 = tpu.matmul %72, %66, %cst_73 {dimension_numbers = #tpu.dot_dimension_numbers<[1], [0], [0], [1], [0, 0, 1, 1], [], []>} : vector<8x64xf32>, vector<64x256xf32>, vector<8x256xf32> -> vector<8x256xf32>
    %78 = arith.addf %76, %77 : vector<8x256xf32>
    %79 = vector.extract_strided_slice %78 {offsets = [0, 0], sizes = [8, 192], strides = [1, 1]} : vector<8x256xf32> to vector<8x192xf32>
    %80 = arith.negf %79 : vector<8x192xf32>
    %81 = math.exp %80 : vector<8x192xf32>
    %cst_74 = arith.constant 1.000000e+00 : f32
    %82 = vector.broadcast %cst_74 : f32 to vector<8x192xf32>
    %83 = arith.addf %82, %81 : vector<8x192xf32>
    %84 = arith.divf %82, %83 : vector<8x192xf32>
    %85 = vector.extract_strided_slice %84 {offsets = [0, 0], sizes = [8, 64], strides = [1, 1]} : vector<8x192xf32> to vector<8x64xf32>
    %86 = vector.extract_strided_slice %84 {offsets = [0, 64], sizes = [8, 64], strides = [1, 1]} : vector<8x192xf32> to vector<8x64xf32>
    %87 = vector.extract_strided_slice %84 {offsets = [0, 128], sizes = [8, 64], strides = [1, 1]} : vector<8x192xf32> to vector<8x64xf32>
    %88 = vector.extract_strided_slice %78 {offsets = [0, 192], sizes = [8, 64], strides = [1, 1]} : vector<8x256xf32> to vector<8x64xf32>
    %89 = math.tanh %88 : vector<8x64xf32>
    %90 = arith.mulf %86, %72 : vector<8x64xf32>
    %91 = arith.mulf %85, %89 : vector<8x64xf32>
    %92 = arith.addf %90, %91 : vector<8x64xf32>
    %93 = math.tanh %92 : vector<8x64xf32>
    %94 = arith.mulf %87, %93 : vector<8x64xf32>
    %cst_75 = arith.constant dense<0.000000e+00> : vector<8x256xf32>
    %95 = tpu.matmul %94, %67, %cst_75 {dimension_numbers = #tpu.dot_dimension_numbers<[1], [0], [0], [1], [0, 0, 1, 1], [], []>} : vector<8x64xf32>, vector<64x256xf32>, vector<8x256xf32> -> vector<8x256xf32>
    %cst_76 = arith.constant dense<0.000000e+00> : vector<8x256xf32>
    %96 = tpu.matmul %72, %68, %cst_76 {dimension_numbers = #tpu.dot_dimension_numbers<[1], [0], [0], [1], [0, 0, 1, 1], [], []>} : vector<8x64xf32>, vector<64x256xf32>, vector<8x256xf32> -> vector<8x256xf32>
    %97 = arith.addf %95, %96 : vector<8x256xf32>
    %98 = arith.addf %97, %71 : vector<8x256xf32>
    %99 = vector.extract_strided_slice %98 {offsets = [0, 0], sizes = [8, 192], strides = [1, 1]} : vector<8x256xf32> to vector<8x192xf32>
    %100 = arith.negf %99 : vector<8x192xf32>
    %101 = math.exp %100 : vector<8x192xf32>
    %cst_77 = arith.constant 1.000000e+00 : f32
    %102 = vector.broadcast %cst_77 : f32 to vector<8x192xf32>
    %103 = arith.addf %102, %101 : vector<8x192xf32>
    %104 = arith.divf %102, %103 : vector<8x192xf32>
    %105 = vector.extract_strided_slice %104 {offsets = [0, 0], sizes = [8, 64], strides = [1, 1]} : vector<8x192xf32> to vector<8x64xf32>
    %106 = vector.extract_strided_slice %104 {offsets = [0, 64], sizes = [8, 64], strides = [1, 1]} : vector<8x192xf32> to vector<8x64xf32>
    %107 = vector.extract_strided_slice %104 {offsets = [0, 128], sizes = [8, 64], strides = [1, 1]} : vector<8x192xf32> to vector<8x64xf32>
    %108 = vector.extract_strided_slice %98 {offsets = [0, 192], sizes = [8, 64], strides = [1, 1]} : vector<8x256xf32> to vector<8x64xf32>
    %109 = math.tanh %108 : vector<8x64xf32>
    %110 = arith.mulf %106, %72 : vector<8x64xf32>
    %111 = arith.mulf %105, %109 : vector<8x64xf32>
    %112 = arith.addf %110, %111 : vector<8x64xf32>
    %113 = math.tanh %112 : vector<8x64xf32>
    %114 = arith.mulf %107, %113 : vector<8x64xf32>
    %c1_i32 = arith.constant 1 : i32
    %c8_i32_78 = arith.constant 8 : i32
    %115 = arith.muli %c1_i32, %c8_i32_78 : i32
    %116 = tpu.assume_multiple %115, 8 : i32
    %117 = arith.index_cast %116 : i32 to index
    %c0_79 = arith.constant 0 : index
    %118 = vector.load %arg17[%117, %c0_79] : memref<128x256xf32, #tpu.memory_space<vmem>>, vector<8x256xf32>
    %cst_80 = arith.constant dense<0.000000e+00> : vector<8x256xf32>
    %119 = tpu.matmul %94, %66, %cst_80 {dimension_numbers = #tpu.dot_dimension_numbers<[1], [0], [0], [1], [0, 0, 1, 1], [], []>} : vector<8x64xf32>, vector<64x256xf32>, vector<8x256xf32> -> vector<8x256xf32>
    %120 = arith.addf %118, %119 : vector<8x256xf32>
    %121 = vector.extract_strided_slice %120 {offsets = [0, 0], sizes = [8, 192], strides = [1, 1]} : vector<8x256xf32> to vector<8x192xf32>
    %122 = arith.negf %121 : vector<8x192xf32>
    %123 = math.exp %122 : vector<8x192xf32>
    %cst_81 = arith.constant 1.000000e+00 : f32
    %124 = vector.broadcast %cst_81 : f32 to vector<8x192xf32>
    %125 = arith.addf %124, %123 : vector<8x192xf32>
    %126 = arith.divf %124, %125 : vector<8x192xf32>
    %127 = vector.extract_strided_slice %126 {offsets = [0, 0], sizes = [8, 64], strides = [1, 1]} : vector<8x192xf32> to vector<8x64xf32>
    %128 = vector.extract_strided_slice %126 {offsets = [0, 64], sizes = [8, 64], strides = [1, 1]} : vector<8x192xf32> to vector<8x64xf32>
    %129 = vector.extract_strided_slice %126 {offsets = [0, 128], sizes = [8, 64], strides = [1, 1]} : vector<8x192xf32> to vector<8x64xf32>
    %130 = vector.extract_strided_slice %120 {offsets = [0, 192], sizes = [8, 64], strides = [1, 1]} : vector<8x256xf32> to vector<8x64xf32>
    %131 = math.tanh %130 : vector<8x64xf32>
    %132 = arith.mulf %128, %92 : vector<8x64xf32>
    %133 = arith.mulf %127, %131 : vector<8x64xf32>
    %134 = arith.addf %132, %133 : vector<8x64xf32>
    %135 = math.tanh %134 : vector<8x64xf32>
    %136 = arith.mulf %129, %135 : vector<8x64xf32>
    %cst_82 = arith.constant dense<0.000000e+00> : vector<8x256xf32>
    %137 = tpu.matmul %136, %67, %cst_82 {dimension_numbers = #tpu.dot_dimension_numbers<[1], [0], [0], [1], [0, 0, 1, 1], [], []>} : vector<8x64xf32>, vector<64x256xf32>, vector<8x256xf32> -> vector<8x256xf32>
    %cst_83 = arith.constant dense<0.000000e+00> : vector<8x256xf32>
    %138 = tpu.matmul %114, %68, %cst_83 {dimension_numbers = #tpu.dot_dimension_numbers<[1], [0], [0], [1], [0, 0, 1, 1], [], []>} : vector<8x64xf32>, vector<64x256xf32>, vector<8x256xf32> -> vector<8x256xf32>
    %139 = arith.addf %137, %138 : vector<8x256xf32>
    %140 = arith.addf %139, %71 : vector<8x256xf32>
    %141 = vector.extract_strided_slice %140 {offsets = [0, 0], sizes = [8, 192], strides = [1, 1]} : vector<8x256xf32> to vector<8x192xf32>
    %142 = arith.negf %141 : vector<8x192xf32>
    %143 = math.exp %142 : vector<8x192xf32>
    %cst_84 = arith.constant 1.000000e+00 : f32
    %144 = vector.broadcast %cst_84 : f32 to vector<8x192xf32>
    %145 = arith.addf %144, %143 : vector<8x192xf32>
    %146 = arith.divf %144, %145 : vector<8x192xf32>
    %147 = vector.extract_strided_slice %146 {offsets = [0, 0], sizes = [8, 64], strides = [1, 1]} : vector<8x192xf32> to vector<8x64xf32>
    %148 = vector.extract_strided_slice %146 {offsets = [0, 64], sizes = [8, 64], strides = [1, 1]} : vector<8x192xf32> to vector<8x64xf32>
    %149 = vector.extract_strided_slice %146 {offsets = [0, 128], sizes = [8, 64], strides = [1, 1]} : vector<8x192xf32> to vector<8x64xf32>
    %150 = vector.extract_strided_slice %140 {offsets = [0, 192], sizes = [8, 64], strides = [1, 1]} : vector<8x256xf32> to vector<8x64xf32>
    %151 = math.tanh %150 : vector<8x64xf32>
    %152 = arith.mulf %148, %112 : vector<8x64xf32>
    %153 = arith.mulf %147, %151 : vector<8x64xf32>
    %154 = arith.addf %152, %153 : vector<8x64xf32>
    %155 = math.tanh %154 : vector<8x64xf32>
    %156 = arith.mulf %149, %155 : vector<8x64xf32>
    %c2_i32 = arith.constant 2 : i32
    %c8_i32_85 = arith.constant 8 : i32
    %157 = arith.muli %c2_i32, %c8_i32_85 : i32
    %158 = tpu.assume_multiple %157, 8 : i32
    %159 = arith.index_cast %158 : i32 to index
    %c0_86 = arith.constant 0 : index
    %160 = vector.load %arg17[%159, %c0_86] : memref<128x256xf32, #tpu.memory_space<vmem>>, vector<8x256xf32>
    %cst_87 = arith.constant dense<0.000000e+00> : vector<8x256xf32>
    %161 = tpu.matmul %136, %66, %cst_87 {dimension_numbers = #tpu.dot_dimension_numbers<[1], [0], [0], [1], [0, 0, 1, 1], [], []>} : vector<8x64xf32>, vector<64x256xf32>, vector<8x256xf32> -> vector<8x256xf32>
    %162 = arith.addf %160, %161 : vector<8x256xf32>
    %163 = vector.extract_strided_slice %162 {offsets = [0, 0], sizes = [8, 192], strides = [1, 1]} : vector<8x256xf32> to vector<8x192xf32>
    %164 = arith.negf %163 : vector<8x192xf32>
    %165 = math.exp %164 : vector<8x192xf32>
    %cst_88 = arith.constant 1.000000e+00 : f32
    %166 = vector.broadcast %cst_88 : f32 to vector<8x192xf32>
    %167 = arith.addf %166, %165 : vector<8x192xf32>
    %168 = arith.divf %166, %167 : vector<8x192xf32>
    %169 = vector.extract_strided_slice %168 {offsets = [0, 0], sizes = [8, 64], strides = [1, 1]} : vector<8x192xf32> to vector<8x64xf32>
    %170 = vector.extract_strided_slice %168 {offsets = [0, 64], sizes = [8, 64], strides = [1, 1]} : vector<8x192xf32> to vector<8x64xf32>
    %171 = vector.extract_strided_slice %168 {offsets = [0, 128], sizes = [8, 64], strides = [1, 1]} : vector<8x192xf32> to vector<8x64xf32>
    %172 = vector.extract_strided_slice %162 {offsets = [0, 192], sizes = [8, 64], strides = [1, 1]} : vector<8x256xf32> to vector<8x64xf32>
    %173 = math.tanh %172 : vector<8x64xf32>
    %174 = arith.mulf %170, %134 : vector<8x64xf32>
    %175 = arith.mulf %169, %173 : vector<8x64xf32>
    %176 = arith.addf %174, %175 : vector<8x64xf32>
    %177 = math.tanh %176 : vector<8x64xf32>
    %178 = arith.mulf %171, %177 : vector<8x64xf32>
    %cst_89 = arith.constant dense<0.000000e+00> : vector<8x256xf32>
    %179 = tpu.matmul %178, %67, %cst_89 {dimension_numbers = #tpu.dot_dimension_numbers<[1], [0], [0], [1], [0, 0, 1, 1], [], []>} : vector<8x64xf32>, vector<64x256xf32>, vector<8x256xf32> -> vector<8x256xf32>
    %cst_90 = arith.constant dense<0.000000e+00> : vector<8x256xf32>
    %180 = tpu.matmul %156, %68, %cst_90 {dimension_numbers = #tpu.dot_dimension_numbers<[1], [0], [0], [1], [0, 0, 1, 1], [], []>} : vector<8x64xf32>, vector<64x256xf32>, vector<8x256xf32> -> vector<8x256xf32>
    %181 = arith.addf %179, %180 : vector<8x256xf32>
    %182 = arith.addf %181, %71 : vector<8x256xf32>
    %183 = vector.extract_strided_slice %182 {offsets = [0, 0], sizes = [8, 192], strides = [1, 1]} : vector<8x256xf32> to vector<8x192xf32>
    %184 = arith.negf %183 : vector<8x192xf32>
    %185 = math.exp %184 : vector<8x192xf32>
    %cst_91 = arith.constant 1.000000e+00 : f32
    %186 = vector.broadcast %cst_91 : f32 to vector<8x192xf32>
    %187 = arith.addf %186, %185 : vector<8x192xf32>
    %188 = arith.divf %186, %187 : vector<8x192xf32>
    %189 = vector.extract_strided_slice %188 {offsets = [0, 0], sizes = [8, 64], strides = [1, 1]} : vector<8x192xf32> to vector<8x64xf32>
    %190 = vector.extract_strided_slice %188 {offsets = [0, 64], sizes = [8, 64], strides = [1, 1]} : vector<8x192xf32> to vector<8x64xf32>
    %191 = vector.extract_strided_slice %188 {offsets = [0, 128], sizes = [8, 64], strides = [1, 1]} : vector<8x192xf32> to vector<8x64xf32>
    %192 = vector.extract_strided_slice %182 {offsets = [0, 192], sizes = [8, 64], strides = [1, 1]} : vector<8x256xf32> to vector<8x64xf32>
    %193 = math.tanh %192 : vector<8x64xf32>
    %194 = arith.mulf %190, %154 : vector<8x64xf32>
    %195 = arith.mulf %189, %193 : vector<8x64xf32>
    %196 = arith.addf %194, %195 : vector<8x64xf32>
    %197 = math.tanh %196 : vector<8x64xf32>
    %198 = arith.mulf %191, %197 : vector<8x64xf32>
    %c3_i32 = arith.constant 3 : i32
    %c8_i32_92 = arith.constant 8 : i32
    %199 = arith.muli %c3_i32, %c8_i32_92 : i32
    %200 = tpu.assume_multiple %199, 8 : i32
    %201 = arith.index_cast %200 : i32 to index
    %c0_93 = arith.constant 0 : index
    %202 = vector.load %arg17[%201, %c0_93] : memref<128x256xf32, #tpu.memory_space<vmem>>, vector<8x256xf32>
    %cst_94 = arith.constant dense<0.000000e+00> : vector<8x256xf32>
    %203 = tpu.matmul %178, %66, %cst_94 {dimension_numbers = #tpu.dot_dimension_numbers<[1], [0], [0], [1], [0, 0, 1, 1], [], []>} : vector<8x64xf32>, vector<64x256xf32>, vector<8x256xf32> -> vector<8x256xf32>
    %204 = arith.addf %202, %203 : vector<8x256xf32>
    %205 = vector.extract_strided_slice %204 {offsets = [0, 0], sizes = [8, 192], strides = [1, 1]} : vector<8x256xf32> to vector<8x192xf32>
    %206 = arith.negf %205 : vector<8x192xf32>
    %207 = math.exp %206 : vector<8x192xf32>
    %cst_95 = arith.constant 1.000000e+00 : f32
    %208 = vector.broadcast %cst_95 : f32 to vector<8x192xf32>
    %209 = arith.addf %208, %207 : vector<8x192xf32>
    %210 = arith.divf %208, %209 : vector<8x192xf32>
    %211 = vector.extract_strided_slice %210 {offsets = [0, 0], sizes = [8, 64], strides = [1, 1]} : vector<8x192xf32> to vector<8x64xf32>
    %212 = vector.extract_strided_slice %210 {offsets = [0, 64], sizes = [8, 64], strides = [1, 1]} : vector<8x192xf32> to vector<8x64xf32>
    %213 = vector.extract_strided_slice %210 {offsets = [0, 128], sizes = [8, 64], strides = [1, 1]} : vector<8x192xf32> to vector<8x64xf32>
    %214 = vector.extract_strided_slice %204 {offsets = [0, 192], sizes = [8, 64], strides = [1, 1]} : vector<8x256xf32> to vector<8x64xf32>
    %215 = math.tanh %214 : vector<8x64xf32>
    %216 = arith.mulf %212, %176 : vector<8x64xf32>
    %217 = arith.mulf %211, %215 : vector<8x64xf32>
    %218 = arith.addf %216, %217 : vector<8x64xf32>
    %219 = math.tanh %218 : vector<8x64xf32>
    %220 = arith.mulf %213, %219 : vector<8x64xf32>
    %cst_96 = arith.constant dense<0.000000e+00> : vector<8x256xf32>
    %221 = tpu.matmul %220, %67, %cst_96 {dimension_numbers = #tpu.dot_dimension_numbers<[1], [0], [0], [1], [0, 0, 1, 1], [], []>} : vector<8x64xf32>, vector<64x256xf32>, vector<8x256xf32> -> vector<8x256xf32>
    %cst_97 = arith.constant dense<0.000000e+00> : vector<8x256xf32>
    %222 = tpu.matmul %198, %68, %cst_97 {dimension_numbers = #tpu.dot_dimension_numbers<[1], [0], [0], [1], [0, 0, 1, 1], [], []>} : vector<8x64xf32>, vector<64x256xf32>, vector<8x256xf32> -> vector<8x256xf32>
    %223 = arith.addf %221, %222 : vector<8x256xf32>
    %224 = arith.addf %223, %71 : vector<8x256xf32>
    %225 = vector.extract_strided_slice %224 {offsets = [0, 0], sizes = [8, 192], strides = [1, 1]} : vector<8x256xf32> to vector<8x192xf32>
    %226 = arith.negf %225 : vector<8x192xf32>
    %227 = math.exp %226 : vector<8x192xf32>
    %cst_98 = arith.constant 1.000000e+00 : f32
    %228 = vector.broadcast %cst_98 : f32 to vector<8x192xf32>
    %229 = arith.addf %228, %227 : vector<8x192xf32>
    %230 = arith.divf %228, %229 : vector<8x192xf32>
    %231 = vector.extract_strided_slice %230 {offsets = [0, 0], sizes = [8, 64], strides = [1, 1]} : vector<8x192xf32> to vector<8x64xf32>
    %232 = vector.extract_strided_slice %230 {offsets = [0, 64], sizes = [8, 64], strides = [1, 1]} : vector<8x192xf32> to vector<8x64xf32>
    %233 = vector.extract_strided_slice %230 {offsets = [0, 128], sizes = [8, 64], strides = [1, 1]} : vector<8x192xf32> to vector<8x64xf32>
    %234 = vector.extract_strided_slice %224 {offsets = [0, 192], sizes = [8, 64], strides = [1, 1]} : vector<8x256xf32> to vector<8x64xf32>
    %235 = math.tanh %234 : vector<8x64xf32>
    %236 = arith.mulf %232, %196 : vector<8x64xf32>
    %237 = arith.mulf %231, %235 : vector<8x64xf32>
    %238 = arith.addf %236, %237 : vector<8x64xf32>
    %239 = math.tanh %238 : vector<8x64xf32>
    %240 = arith.mulf %233, %239 : vector<8x64xf32>
    %c4_i32 = arith.constant 4 : i32
    %c8_i32_99 = arith.constant 8 : i32
    %241 = arith.muli %c4_i32, %c8_i32_99 : i32
    %242 = tpu.assume_multiple %241, 8 : i32
    %243 = arith.index_cast %242 : i32 to index
    %c0_100 = arith.constant 0 : index
    %244 = vector.load %arg17[%243, %c0_100] : memref<128x256xf32, #tpu.memory_space<vmem>>, vector<8x256xf32>
    %cst_101 = arith.constant dense<0.000000e+00> : vector<8x256xf32>
    %245 = tpu.matmul %220, %66, %cst_101 {dimension_numbers = #tpu.dot_dimension_numbers<[1], [0], [0], [1], [0, 0, 1, 1], [], []>} : vector<8x64xf32>, vector<64x256xf32>, vector<8x256xf32> -> vector<8x256xf32>
    %246 = arith.addf %244, %245 : vector<8x256xf32>
    %247 = vector.extract_strided_slice %246 {offsets = [0, 0], sizes = [8, 192], strides = [1, 1]} : vector<8x256xf32> to vector<8x192xf32>
    %248 = arith.negf %247 : vector<8x192xf32>
    %249 = math.exp %248 : vector<8x192xf32>
    %cst_102 = arith.constant 1.000000e+00 : f32
    %250 = vector.broadcast %cst_102 : f32 to vector<8x192xf32>
    %251 = arith.addf %250, %249 : vector<8x192xf32>
    %252 = arith.divf %250, %251 : vector<8x192xf32>
    %253 = vector.extract_strided_slice %252 {offsets = [0, 0], sizes = [8, 64], strides = [1, 1]} : vector<8x192xf32> to vector<8x64xf32>
    %254 = vector.extract_strided_slice %252 {offsets = [0, 64], sizes = [8, 64], strides = [1, 1]} : vector<8x192xf32> to vector<8x64xf32>
    %255 = vector.extract_strided_slice %252 {offsets = [0, 128], sizes = [8, 64], strides = [1, 1]} : vector<8x192xf32> to vector<8x64xf32>
    %256 = vector.extract_strided_slice %246 {offsets = [0, 192], sizes = [8, 64], strides = [1, 1]} : vector<8x256xf32> to vector<8x64xf32>
    %257 = math.tanh %256 : vector<8x64xf32>
    %258 = arith.mulf %254, %218 : vector<8x64xf32>
    %259 = arith.mulf %253, %257 : vector<8x64xf32>
    %260 = arith.addf %258, %259 : vector<8x64xf32>
    %261 = math.tanh %260 : vector<8x64xf32>
    %262 = arith.mulf %255, %261 : vector<8x64xf32>
    %cst_103 = arith.constant dense<0.000000e+00> : vector<8x256xf32>
    %263 = tpu.matmul %262, %67, %cst_103 {dimension_numbers = #tpu.dot_dimension_numbers<[1], [0], [0], [1], [0, 0, 1, 1], [], []>} : vector<8x64xf32>, vector<64x256xf32>, vector<8x256xf32> -> vector<8x256xf32>
    %cst_104 = arith.constant dense<0.000000e+00> : vector<8x256xf32>
    %264 = tpu.matmul %240, %68, %cst_104 {dimension_numbers = #tpu.dot_dimension_numbers<[1], [0], [0], [1], [0, 0, 1, 1], [], []>} : vector<8x64xf32>, vector<64x256xf32>, vector<8x256xf32> -> vector<8x256xf32>
    %265 = arith.addf %263, %264 : vector<8x256xf32>
    %266 = arith.addf %265, %71 : vector<8x256xf32>
    %267 = vector.extract_strided_slice %266 {offsets = [0, 0], sizes = [8, 192], strides = [1, 1]} : vector<8x256xf32> to vector<8x192xf32>
    %268 = arith.negf %267 : vector<8x192xf32>
    %269 = math.exp %268 : vector<8x192xf32>
    %cst_105 = arith.constant 1.000000e+00 : f32
    %270 = vector.broadcast %cst_105 : f32 to vector<8x192xf32>
    %271 = arith.addf %270, %269 : vector<8x192xf32>
    %272 = arith.divf %270, %271 : vector<8x192xf32>
    %273 = vector.extract_strided_slice %272 {offsets = [0, 0], sizes = [8, 64], strides = [1, 1]} : vector<8x192xf32> to vector<8x64xf32>
    %274 = vector.extract_strided_slice %272 {offsets = [0, 64], sizes = [8, 64], strides = [1, 1]} : vector<8x192xf32> to vector<8x64xf32>
    %275 = vector.extract_strided_slice %272 {offsets = [0, 128], sizes = [8, 64], strides = [1, 1]} : vector<8x192xf32> to vector<8x64xf32>
    %276 = vector.extract_strided_slice %266 {offsets = [0, 192], sizes = [8, 64], strides = [1, 1]} : vector<8x256xf32> to vector<8x64xf32>
    %277 = math.tanh %276 : vector<8x64xf32>
    %278 = arith.mulf %274, %238 : vector<8x64xf32>
    %279 = arith.mulf %273, %277 : vector<8x64xf32>
    %280 = arith.addf %278, %279 : vector<8x64xf32>
    %281 = math.tanh %280 : vector<8x64xf32>
    %282 = arith.mulf %275, %281 : vector<8x64xf32>
    %c5_i32 = arith.constant 5 : i32
    %c8_i32_106 = arith.constant 8 : i32
    %283 = arith.muli %c5_i32, %c8_i32_106 : i32
    %284 = tpu.assume_multiple %283, 8 : i32
    %285 = arith.index_cast %284 : i32 to index
    %c0_107 = arith.constant 0 : index
    %286 = vector.load %arg17[%285, %c0_107] : memref<128x256xf32, #tpu.memory_space<vmem>>, vector<8x256xf32>
    %cst_108 = arith.constant dense<0.000000e+00> : vector<8x256xf32>
    %287 = tpu.matmul %262, %66, %cst_108 {dimension_numbers = #tpu.dot_dimension_numbers<[1], [0], [0], [1], [0, 0, 1, 1], [], []>} : vector<8x64xf32>, vector<64x256xf32>, vector<8x256xf32> -> vector<8x256xf32>
    %288 = arith.addf %286, %287 : vector<8x256xf32>
    %289 = vector.extract_strided_slice %288 {offsets = [0, 0], sizes = [8, 192], strides = [1, 1]} : vector<8x256xf32> to vector<8x192xf32>
    %290 = arith.negf %289 : vector<8x192xf32>
    %291 = math.exp %290 : vector<8x192xf32>
    %cst_109 = arith.constant 1.000000e+00 : f32
    %292 = vector.broadcast %cst_109 : f32 to vector<8x192xf32>
    %293 = arith.addf %292, %291 : vector<8x192xf32>
    %294 = arith.divf %292, %293 : vector<8x192xf32>
    %295 = vector.extract_strided_slice %294 {offsets = [0, 0], sizes = [8, 64], strides = [1, 1]} : vector<8x192xf32> to vector<8x64xf32>
    %296 = vector.extract_strided_slice %294 {offsets = [0, 64], sizes = [8, 64], strides = [1, 1]} : vector<8x192xf32> to vector<8x64xf32>
    %297 = vector.extract_strided_slice %294 {offsets = [0, 128], sizes = [8, 64], strides = [1, 1]} : vector<8x192xf32> to vector<8x64xf32>
    %298 = vector.extract_strided_slice %288 {offsets = [0, 192], sizes = [8, 64], strides = [1, 1]} : vector<8x256xf32> to vector<8x64xf32>
    %299 = math.tanh %298 : vector<8x64xf32>
    %300 = arith.mulf %296, %260 : vector<8x64xf32>
    %301 = arith.mulf %295, %299 : vector<8x64xf32>
    %302 = arith.addf %300, %301 : vector<8x64xf32>
    %303 = math.tanh %302 : vector<8x64xf32>
    %304 = arith.mulf %297, %303 : vector<8x64xf32>
    %cst_110 = arith.constant dense<0.000000e+00> : vector<8x256xf32>
    %305 = tpu.matmul %304, %67, %cst_110 {dimension_numbers = #tpu.dot_dimension_numbers<[1], [0], [0], [1], [0, 0, 1, 1], [], []>} : vector<8x64xf32>, vector<64x256xf32>, vector<8x256xf32> -> vector<8x256xf32>
    %cst_111 = arith.constant dense<0.000000e+00> : vector<8x256xf32>
    %306 = tpu.matmul %282, %68, %cst_111 {dimension_numbers = #tpu.dot_dimension_numbers<[1], [0], [0], [1], [0, 0, 1, 1], [], []>} : vector<8x64xf32>, vector<64x256xf32>, vector<8x256xf32> -> vector<8x256xf32>
    %307 = arith.addf %305, %306 : vector<8x256xf32>
    %308 = arith.addf %307, %71 : vector<8x256xf32>
    %309 = vector.extract_strided_slice %308 {offsets = [0, 0], sizes = [8, 192], strides = [1, 1]} : vector<8x256xf32> to vector<8x192xf32>
    %310 = arith.negf %309 : vector<8x192xf32>
    %311 = math.exp %310 : vector<8x192xf32>
    %cst_112 = arith.constant 1.000000e+00 : f32
    %312 = vector.broadcast %cst_112 : f32 to vector<8x192xf32>
    %313 = arith.addf %312, %311 : vector<8x192xf32>
    %314 = arith.divf %312, %313 : vector<8x192xf32>
    %315 = vector.extract_strided_slice %314 {offsets = [0, 0], sizes = [8, 64], strides = [1, 1]} : vector<8x192xf32> to vector<8x64xf32>
    %316 = vector.extract_strided_slice %314 {offsets = [0, 64], sizes = [8, 64], strides = [1, 1]} : vector<8x192xf32> to vector<8x64xf32>
    %317 = vector.extract_strided_slice %314 {offsets = [0, 128], sizes = [8, 64], strides = [1, 1]} : vector<8x192xf32> to vector<8x64xf32>
    %318 = vector.extract_strided_slice %308 {offsets = [0, 192], sizes = [8, 64], strides = [1, 1]} : vector<8x256xf32> to vector<8x64xf32>
    %319 = math.tanh %318 : vector<8x64xf32>
    %320 = arith.mulf %316, %280 : vector<8x64xf32>
    %321 = arith.mulf %315, %319 : vector<8x64xf32>
    %322 = arith.addf %320, %321 : vector<8x64xf32>
    %323 = math.tanh %322 : vector<8x64xf32>
    %324 = arith.mulf %317, %323 : vector<8x64xf32>
    %c6_i32 = arith.constant 6 : i32
    %c8_i32_113 = arith.constant 8 : i32
    %325 = arith.muli %c6_i32, %c8_i32_113 : i32
    %326 = tpu.assume_multiple %325, 8 : i32
    %327 = arith.index_cast %326 : i32 to index
    %c0_114 = arith.constant 0 : index
    %328 = vector.load %arg17[%327, %c0_114] : memref<128x256xf32, #tpu.memory_space<vmem>>, vector<8x256xf32>
    %cst_115 = arith.constant dense<0.000000e+00> : vector<8x256xf32>
    %329 = tpu.matmul %304, %66, %cst_115 {dimension_numbers = #tpu.dot_dimension_numbers<[1], [0], [0], [1], [0, 0, 1, 1], [], []>} : vector<8x64xf32>, vector<64x256xf32>, vector<8x256xf32> -> vector<8x256xf32>
    %330 = arith.addf %328, %329 : vector<8x256xf32>
    %331 = vector.extract_strided_slice %330 {offsets = [0, 0], sizes = [8, 192], strides = [1, 1]} : vector<8x256xf32> to vector<8x192xf32>
    %332 = arith.negf %331 : vector<8x192xf32>
    %333 = math.exp %332 : vector<8x192xf32>
    %cst_116 = arith.constant 1.000000e+00 : f32
    %334 = vector.broadcast %cst_116 : f32 to vector<8x192xf32>
    %335 = arith.addf %334, %333 : vector<8x192xf32>
    %336 = arith.divf %334, %335 : vector<8x192xf32>
    %337 = vector.extract_strided_slice %336 {offsets = [0, 0], sizes = [8, 64], strides = [1, 1]} : vector<8x192xf32> to vector<8x64xf32>
    %338 = vector.extract_strided_slice %336 {offsets = [0, 64], sizes = [8, 64], strides = [1, 1]} : vector<8x192xf32> to vector<8x64xf32>
    %339 = vector.extract_strided_slice %336 {offsets = [0, 128], sizes = [8, 64], strides = [1, 1]} : vector<8x192xf32> to vector<8x64xf32>
    %340 = vector.extract_strided_slice %330 {offsets = [0, 192], sizes = [8, 64], strides = [1, 1]} : vector<8x256xf32> to vector<8x64xf32>
    %341 = math.tanh %340 : vector<8x64xf32>
    %342 = arith.mulf %338, %302 : vector<8x64xf32>
    %343 = arith.mulf %337, %341 : vector<8x64xf32>
    %344 = arith.addf %342, %343 : vector<8x64xf32>
    %345 = math.tanh %344 : vector<8x64xf32>
    %346 = arith.mulf %339, %345 : vector<8x64xf32>
    %cst_117 = arith.constant dense<0.000000e+00> : vector<8x256xf32>
    %347 = tpu.matmul %346, %67, %cst_117 {dimension_numbers = #tpu.dot_dimension_numbers<[1], [0], [0], [1], [0, 0, 1, 1], [], []>} : vector<8x64xf32>, vector<64x256xf32>, vector<8x256xf32> -> vector<8x256xf32>
    %cst_118 = arith.constant dense<0.000000e+00> : vector<8x256xf32>
    %348 = tpu.matmul %324, %68, %cst_118 {dimension_numbers = #tpu.dot_dimension_numbers<[1], [0], [0], [1], [0, 0, 1, 1], [], []>} : vector<8x64xf32>, vector<64x256xf32>, vector<8x256xf32> -> vector<8x256xf32>
    %349 = arith.addf %347, %348 : vector<8x256xf32>
    %350 = arith.addf %349, %71 : vector<8x256xf32>
    %351 = vector.extract_strided_slice %350 {offsets = [0, 0], sizes = [8, 192], strides = [1, 1]} : vector<8x256xf32> to vector<8x192xf32>
    %352 = arith.negf %351 : vector<8x192xf32>
    %353 = math.exp %352 : vector<8x192xf32>
    %cst_119 = arith.constant 1.000000e+00 : f32
    %354 = vector.broadcast %cst_119 : f32 to vector<8x192xf32>
    %355 = arith.addf %354, %353 : vector<8x192xf32>
    %356 = arith.divf %354, %355 : vector<8x192xf32>
    %357 = vector.extract_strided_slice %356 {offsets = [0, 0], sizes = [8, 64], strides = [1, 1]} : vector<8x192xf32> to vector<8x64xf32>
    %358 = vector.extract_strided_slice %356 {offsets = [0, 64], sizes = [8, 64], strides = [1, 1]} : vector<8x192xf32> to vector<8x64xf32>
    %359 = vector.extract_strided_slice %356 {offsets = [0, 128], sizes = [8, 64], strides = [1, 1]} : vector<8x192xf32> to vector<8x64xf32>
    %360 = vector.extract_strided_slice %350 {offsets = [0, 192], sizes = [8, 64], strides = [1, 1]} : vector<8x256xf32> to vector<8x64xf32>
    %361 = math.tanh %360 : vector<8x64xf32>
    %362 = arith.mulf %358, %322 : vector<8x64xf32>
    %363 = arith.mulf %357, %361 : vector<8x64xf32>
    %364 = arith.addf %362, %363 : vector<8x64xf32>
    %365 = math.tanh %364 : vector<8x64xf32>
    %366 = arith.mulf %359, %365 : vector<8x64xf32>
    %c7_i32 = arith.constant 7 : i32
    %c8_i32_120 = arith.constant 8 : i32
    %367 = arith.muli %c7_i32, %c8_i32_120 : i32
    %368 = tpu.assume_multiple %367, 8 : i32
    %369 = arith.index_cast %368 : i32 to index
    %c0_121 = arith.constant 0 : index
    %370 = vector.load %arg17[%369, %c0_121] : memref<128x256xf32, #tpu.memory_space<vmem>>, vector<8x256xf32>
    %cst_122 = arith.constant dense<0.000000e+00> : vector<8x256xf32>
    %371 = tpu.matmul %346, %66, %cst_122 {dimension_numbers = #tpu.dot_dimension_numbers<[1], [0], [0], [1], [0, 0, 1, 1], [], []>} : vector<8x64xf32>, vector<64x256xf32>, vector<8x256xf32> -> vector<8x256xf32>
    %372 = arith.addf %370, %371 : vector<8x256xf32>
    %373 = vector.extract_strided_slice %372 {offsets = [0, 0], sizes = [8, 192], strides = [1, 1]} : vector<8x256xf32> to vector<8x192xf32>
    %374 = arith.negf %373 : vector<8x192xf32>
    %375 = math.exp %374 : vector<8x192xf32>
    %cst_123 = arith.constant 1.000000e+00 : f32
    %376 = vector.broadcast %cst_123 : f32 to vector<8x192xf32>
    %377 = arith.addf %376, %375 : vector<8x192xf32>
    %378 = arith.divf %376, %377 : vector<8x192xf32>
    %379 = vector.extract_strided_slice %378 {offsets = [0, 0], sizes = [8, 64], strides = [1, 1]} : vector<8x192xf32> to vector<8x64xf32>
    %380 = vector.extract_strided_slice %378 {offsets = [0, 64], sizes = [8, 64], strides = [1, 1]} : vector<8x192xf32> to vector<8x64xf32>
    %381 = vector.extract_strided_slice %378 {offsets = [0, 128], sizes = [8, 64], strides = [1, 1]} : vector<8x192xf32> to vector<8x64xf32>
    %382 = vector.extract_strided_slice %372 {offsets = [0, 192], sizes = [8, 64], strides = [1, 1]} : vector<8x256xf32> to vector<8x64xf32>
    %383 = math.tanh %382 : vector<8x64xf32>
    %384 = arith.mulf %380, %344 : vector<8x64xf32>
    %385 = arith.mulf %379, %383 : vector<8x64xf32>
    %386 = arith.addf %384, %385 : vector<8x64xf32>
    %387 = math.tanh %386 : vector<8x64xf32>
    %388 = arith.mulf %381, %387 : vector<8x64xf32>
    %cst_124 = arith.constant dense<0.000000e+00> : vector<8x256xf32>
    %389 = tpu.matmul %388, %67, %cst_124 {dimension_numbers = #tpu.dot_dimension_numbers<[1], [0], [0], [1], [0, 0, 1, 1], [], []>} : vector<8x64xf32>, vector<64x256xf32>, vector<8x256xf32> -> vector<8x256xf32>
    %cst_125 = arith.constant dense<0.000000e+00> : vector<8x256xf32>
    %390 = tpu.matmul %366, %68, %cst_125 {dimension_numbers = #tpu.dot_dimension_numbers<[1], [0], [0], [1], [0, 0, 1, 1], [], []>} : vector<8x64xf32>, vector<64x256xf32>, vector<8x256xf32> -> vector<8x256xf32>
    %391 = arith.addf %389, %390 : vector<8x256xf32>
    %392 = arith.addf %391, %71 : vector<8x256xf32>
    %393 = vector.extract_strided_slice %392 {offsets = [0, 0], sizes = [8, 192], strides = [1, 1]} : vector<8x256xf32> to vector<8x192xf32>
    %394 = arith.negf %393 : vector<8x192xf32>
    %395 = math.exp %394 : vector<8x192xf32>
    %cst_126 = arith.constant 1.000000e+00 : f32
    %396 = vector.broadcast %cst_126 : f32 to vector<8x192xf32>
    %397 = arith.addf %396, %395 : vector<8x192xf32>
    %398 = arith.divf %396, %397 : vector<8x192xf32>
    %399 = vector.extract_strided_slice %398 {offsets = [0, 0], sizes = [8, 64], strides = [1, 1]} : vector<8x192xf32> to vector<8x64xf32>
    %400 = vector.extract_strided_slice %398 {offsets = [0, 64], sizes = [8, 64], strides = [1, 1]} : vector<8x192xf32> to vector<8x64xf32>
    %401 = vector.extract_strided_slice %398 {offsets = [0, 128], sizes = [8, 64], strides = [1, 1]} : vector<8x192xf32> to vector<8x64xf32>
    %402 = vector.extract_strided_slice %392 {offsets = [0, 192], sizes = [8, 64], strides = [1, 1]} : vector<8x256xf32> to vector<8x64xf32>
    %403 = math.tanh %402 : vector<8x64xf32>
    %404 = arith.mulf %400, %364 : vector<8x64xf32>
    %405 = arith.mulf %399, %403 : vector<8x64xf32>
    %406 = arith.addf %404, %405 : vector<8x64xf32>
    %407 = math.tanh %406 : vector<8x64xf32>
    %408 = arith.mulf %401, %407 : vector<8x64xf32>
    %c8_i32_127 = arith.constant 8 : i32
    %c8_i32_128 = arith.constant 8 : i32
    %409 = arith.muli %c8_i32_127, %c8_i32_128 : i32
    %410 = tpu.assume_multiple %409, 8 : i32
    %411 = arith.index_cast %410 : i32 to index
    %c0_129 = arith.constant 0 : index
    %412 = vector.load %arg17[%411, %c0_129] : memref<128x256xf32, #tpu.memory_space<vmem>>, vector<8x256xf32>
    %cst_130 = arith.constant dense<0.000000e+00> : vector<8x256xf32>
    %413 = tpu.matmul %388, %66, %cst_130 {dimension_numbers = #tpu.dot_dimension_numbers<[1], [0], [0], [1], [0, 0, 1, 1], [], []>} : vector<8x64xf32>, vector<64x256xf32>, vector<8x256xf32> -> vector<8x256xf32>
    %414 = arith.addf %412, %413 : vector<8x256xf32>
    %415 = vector.extract_strided_slice %414 {offsets = [0, 0], sizes = [8, 192], strides = [1, 1]} : vector<8x256xf32> to vector<8x192xf32>
    %416 = arith.negf %415 : vector<8x192xf32>
    %417 = math.exp %416 : vector<8x192xf32>
    %cst_131 = arith.constant 1.000000e+00 : f32
    %418 = vector.broadcast %cst_131 : f32 to vector<8x192xf32>
    %419 = arith.addf %418, %417 : vector<8x192xf32>
    %420 = arith.divf %418, %419 : vector<8x192xf32>
    %421 = vector.extract_strided_slice %420 {offsets = [0, 0], sizes = [8, 64], strides = [1, 1]} : vector<8x192xf32> to vector<8x64xf32>
    %422 = vector.extract_strided_slice %420 {offsets = [0, 64], sizes = [8, 64], strides = [1, 1]} : vector<8x192xf32> to vector<8x64xf32>
    %423 = vector.extract_strided_slice %420 {offsets = [0, 128], sizes = [8, 64], strides = [1, 1]} : vector<8x192xf32> to vector<8x64xf32>
    %424 = vector.extract_strided_slice %414 {offsets = [0, 192], sizes = [8, 64], strides = [1, 1]} : vector<8x256xf32> to vector<8x64xf32>
    %425 = math.tanh %424 : vector<8x64xf32>
    %426 = arith.mulf %422, %386 : vector<8x64xf32>
    %427 = arith.mulf %421, %425 : vector<8x64xf32>
    %428 = arith.addf %426, %427 : vector<8x64xf32>
    %429 = math.tanh %428 : vector<8x64xf32>
    %430 = arith.mulf %423, %429 : vector<8x64xf32>
    %cst_132 = arith.constant dense<0.000000e+00> : vector<8x256xf32>
    %431 = tpu.matmul %430, %67, %cst_132 {dimension_numbers = #tpu.dot_dimension_numbers<[1], [0], [0], [1], [0, 0, 1, 1], [], []>} : vector<8x64xf32>, vector<64x256xf32>, vector<8x256xf32> -> vector<8x256xf32>
    %cst_133 = arith.constant dense<0.000000e+00> : vector<8x256xf32>
    %432 = tpu.matmul %408, %68, %cst_133 {dimension_numbers = #tpu.dot_dimension_numbers<[1], [0], [0], [1], [0, 0, 1, 1], [], []>} : vector<8x64xf32>, vector<64x256xf32>, vector<8x256xf32> -> vector<8x256xf32>
    %433 = arith.addf %431, %432 : vector<8x256xf32>
    %434 = arith.addf %433, %71 : vector<8x256xf32>
    %435 = vector.extract_strided_slice %434 {offsets = [0, 0], sizes = [8, 192], strides = [1, 1]} : vector<8x256xf32> to vector<8x192xf32>
    %436 = arith.negf %435 : vector<8x192xf32>
    %437 = math.exp %436 : vector<8x192xf32>
    %cst_134 = arith.constant 1.000000e+00 : f32
    %438 = vector.broadcast %cst_134 : f32 to vector<8x192xf32>
    %439 = arith.addf %438, %437 : vector<8x192xf32>
    %440 = arith.divf %438, %439 : vector<8x192xf32>
    %441 = vector.extract_strided_slice %440 {offsets = [0, 0], sizes = [8, 64], strides = [1, 1]} : vector<8x192xf32> to vector<8x64xf32>
    %442 = vector.extract_strided_slice %440 {offsets = [0, 64], sizes = [8, 64], strides = [1, 1]} : vector<8x192xf32> to vector<8x64xf32>
    %443 = vector.extract_strided_slice %440 {offsets = [0, 128], sizes = [8, 64], strides = [1, 1]} : vector<8x192xf32> to vector<8x64xf32>
    %444 = vector.extract_strided_slice %434 {offsets = [0, 192], sizes = [8, 64], strides = [1, 1]} : vector<8x256xf32> to vector<8x64xf32>
    %445 = math.tanh %444 : vector<8x64xf32>
    %446 = arith.mulf %442, %406 : vector<8x64xf32>
    %447 = arith.mulf %441, %445 : vector<8x64xf32>
    %448 = arith.addf %446, %447 : vector<8x64xf32>
    %449 = math.tanh %448 : vector<8x64xf32>
    %450 = arith.mulf %443, %449 : vector<8x64xf32>
    %c9_i32 = arith.constant 9 : i32
    %c8_i32_135 = arith.constant 8 : i32
    %451 = arith.muli %c9_i32, %c8_i32_135 : i32
    %452 = tpu.assume_multiple %451, 8 : i32
    %453 = arith.index_cast %452 : i32 to index
    %c0_136 = arith.constant 0 : index
    %454 = vector.load %arg17[%453, %c0_136] : memref<128x256xf32, #tpu.memory_space<vmem>>, vector<8x256xf32>
    %cst_137 = arith.constant dense<0.000000e+00> : vector<8x256xf32>
    %455 = tpu.matmul %430, %66, %cst_137 {dimension_numbers = #tpu.dot_dimension_numbers<[1], [0], [0], [1], [0, 0, 1, 1], [], []>} : vector<8x64xf32>, vector<64x256xf32>, vector<8x256xf32> -> vector<8x256xf32>
    %456 = arith.addf %454, %455 : vector<8x256xf32>
    %457 = vector.extract_strided_slice %456 {offsets = [0, 0], sizes = [8, 192], strides = [1, 1]} : vector<8x256xf32> to vector<8x192xf32>
    %458 = arith.negf %457 : vector<8x192xf32>
    %459 = math.exp %458 : vector<8x192xf32>
    %cst_138 = arith.constant 1.000000e+00 : f32
    %460 = vector.broadcast %cst_138 : f32 to vector<8x192xf32>
    %461 = arith.addf %460, %459 : vector<8x192xf32>
    %462 = arith.divf %460, %461 : vector<8x192xf32>
    %463 = vector.extract_strided_slice %462 {offsets = [0, 0], sizes = [8, 64], strides = [1, 1]} : vector<8x192xf32> to vector<8x64xf32>
    %464 = vector.extract_strided_slice %462 {offsets = [0, 64], sizes = [8, 64], strides = [1, 1]} : vector<8x192xf32> to vector<8x64xf32>
    %465 = vector.extract_strided_slice %462 {offsets = [0, 128], sizes = [8, 64], strides = [1, 1]} : vector<8x192xf32> to vector<8x64xf32>
    %466 = vector.extract_strided_slice %456 {offsets = [0, 192], sizes = [8, 64], strides = [1, 1]} : vector<8x256xf32> to vector<8x64xf32>
    %467 = math.tanh %466 : vector<8x64xf32>
    %468 = arith.mulf %464, %428 : vector<8x64xf32>
    %469 = arith.mulf %463, %467 : vector<8x64xf32>
    %470 = arith.addf %468, %469 : vector<8x64xf32>
    %471 = math.tanh %470 : vector<8x64xf32>
    %472 = arith.mulf %465, %471 : vector<8x64xf32>
    %cst_139 = arith.constant dense<0.000000e+00> : vector<8x256xf32>
    %473 = tpu.matmul %472, %67, %cst_139 {dimension_numbers = #tpu.dot_dimension_numbers<[1], [0], [0], [1], [0, 0, 1, 1], [], []>} : vector<8x64xf32>, vector<64x256xf32>, vector<8x256xf32> -> vector<8x256xf32>
    %cst_140 = arith.constant dense<0.000000e+00> : vector<8x256xf32>
    %474 = tpu.matmul %450, %68, %cst_140 {dimension_numbers = #tpu.dot_dimension_numbers<[1], [0], [0], [1], [0, 0, 1, 1], [], []>} : vector<8x64xf32>, vector<64x256xf32>, vector<8x256xf32> -> vector<8x256xf32>
    %475 = arith.addf %473, %474 : vector<8x256xf32>
    %476 = arith.addf %475, %71 : vector<8x256xf32>
    %477 = vector.extract_strided_slice %476 {offsets = [0, 0], sizes = [8, 192], strides = [1, 1]} : vector<8x256xf32> to vector<8x192xf32>
    %478 = arith.negf %477 : vector<8x192xf32>
    %479 = math.exp %478 : vector<8x192xf32>
    %cst_141 = arith.constant 1.000000e+00 : f32
    %480 = vector.broadcast %cst_141 : f32 to vector<8x192xf32>
    %481 = arith.addf %480, %479 : vector<8x192xf32>
    %482 = arith.divf %480, %481 : vector<8x192xf32>
    %483 = vector.extract_strided_slice %482 {offsets = [0, 0], sizes = [8, 64], strides = [1, 1]} : vector<8x192xf32> to vector<8x64xf32>
    %484 = vector.extract_strided_slice %482 {offsets = [0, 64], sizes = [8, 64], strides = [1, 1]} : vector<8x192xf32> to vector<8x64xf32>
    %485 = vector.extract_strided_slice %482 {offsets = [0, 128], sizes = [8, 64], strides = [1, 1]} : vector<8x192xf32> to vector<8x64xf32>
    %486 = vector.extract_strided_slice %476 {offsets = [0, 192], sizes = [8, 64], strides = [1, 1]} : vector<8x256xf32> to vector<8x64xf32>
    %487 = math.tanh %486 : vector<8x64xf32>
    %488 = arith.mulf %484, %448 : vector<8x64xf32>
    %489 = arith.mulf %483, %487 : vector<8x64xf32>
    %490 = arith.addf %488, %489 : vector<8x64xf32>
    %491 = math.tanh %490 : vector<8x64xf32>
    %492 = arith.mulf %485, %491 : vector<8x64xf32>
    %c10_i32 = arith.constant 10 : i32
    %c8_i32_142 = arith.constant 8 : i32
    %493 = arith.muli %c10_i32, %c8_i32_142 : i32
    %494 = tpu.assume_multiple %493, 8 : i32
    %495 = arith.index_cast %494 : i32 to index
    %c0_143 = arith.constant 0 : index
    %496 = vector.load %arg17[%495, %c0_143] : memref<128x256xf32, #tpu.memory_space<vmem>>, vector<8x256xf32>
    %cst_144 = arith.constant dense<0.000000e+00> : vector<8x256xf32>
    %497 = tpu.matmul %472, %66, %cst_144 {dimension_numbers = #tpu.dot_dimension_numbers<[1], [0], [0], [1], [0, 0, 1, 1], [], []>} : vector<8x64xf32>, vector<64x256xf32>, vector<8x256xf32> -> vector<8x256xf32>
    %498 = arith.addf %496, %497 : vector<8x256xf32>
    %499 = vector.extract_strided_slice %498 {offsets = [0, 0], sizes = [8, 192], strides = [1, 1]} : vector<8x256xf32> to vector<8x192xf32>
    %500 = arith.negf %499 : vector<8x192xf32>
    %501 = math.exp %500 : vector<8x192xf32>
    %cst_145 = arith.constant 1.000000e+00 : f32
    %502 = vector.broadcast %cst_145 : f32 to vector<8x192xf32>
    %503 = arith.addf %502, %501 : vector<8x192xf32>
    %504 = arith.divf %502, %503 : vector<8x192xf32>
    %505 = vector.extract_strided_slice %504 {offsets = [0, 0], sizes = [8, 64], strides = [1, 1]} : vector<8x192xf32> to vector<8x64xf32>
    %506 = vector.extract_strided_slice %504 {offsets = [0, 64], sizes = [8, 64], strides = [1, 1]} : vector<8x192xf32> to vector<8x64xf32>
    %507 = vector.extract_strided_slice %504 {offsets = [0, 128], sizes = [8, 64], strides = [1, 1]} : vector<8x192xf32> to vector<8x64xf32>
    %508 = vector.extract_strided_slice %498 {offsets = [0, 192], sizes = [8, 64], strides = [1, 1]} : vector<8x256xf32> to vector<8x64xf32>
    %509 = math.tanh %508 : vector<8x64xf32>
    %510 = arith.mulf %506, %470 : vector<8x64xf32>
    %511 = arith.mulf %505, %509 : vector<8x64xf32>
    %512 = arith.addf %510, %511 : vector<8x64xf32>
    %513 = math.tanh %512 : vector<8x64xf32>
    %514 = arith.mulf %507, %513 : vector<8x64xf32>
    %cst_146 = arith.constant dense<0.000000e+00> : vector<8x256xf32>
    %515 = tpu.matmul %514, %67, %cst_146 {dimension_numbers = #tpu.dot_dimension_numbers<[1], [0], [0], [1], [0, 0, 1, 1], [], []>} : vector<8x64xf32>, vector<64x256xf32>, vector<8x256xf32> -> vector<8x256xf32>
    %cst_147 = arith.constant dense<0.000000e+00> : vector<8x256xf32>
    %516 = tpu.matmul %492, %68, %cst_147 {dimension_numbers = #tpu.dot_dimension_numbers<[1], [0], [0], [1], [0, 0, 1, 1], [], []>} : vector<8x64xf32>, vector<64x256xf32>, vector<8x256xf32> -> vector<8x256xf32>
    %517 = arith.addf %515, %516 : vector<8x256xf32>
    %518 = arith.addf %517, %71 : vector<8x256xf32>
    %519 = vector.extract_strided_slice %518 {offsets = [0, 0], sizes = [8, 192], strides = [1, 1]} : vector<8x256xf32> to vector<8x192xf32>
    %520 = arith.negf %519 : vector<8x192xf32>
    %521 = math.exp %520 : vector<8x192xf32>
    %cst_148 = arith.constant 1.000000e+00 : f32
    %522 = vector.broadcast %cst_148 : f32 to vector<8x192xf32>
    %523 = arith.addf %522, %521 : vector<8x192xf32>
    %524 = arith.divf %522, %523 : vector<8x192xf32>
    %525 = vector.extract_strided_slice %524 {offsets = [0, 0], sizes = [8, 64], strides = [1, 1]} : vector<8x192xf32> to vector<8x64xf32>
    %526 = vector.extract_strided_slice %524 {offsets = [0, 64], sizes = [8, 64], strides = [1, 1]} : vector<8x192xf32> to vector<8x64xf32>
    %527 = vector.extract_strided_slice %524 {offsets = [0, 128], sizes = [8, 64], strides = [1, 1]} : vector<8x192xf32> to vector<8x64xf32>
    %528 = vector.extract_strided_slice %518 {offsets = [0, 192], sizes = [8, 64], strides = [1, 1]} : vector<8x256xf32> to vector<8x64xf32>
    %529 = math.tanh %528 : vector<8x64xf32>
    %530 = arith.mulf %526, %490 : vector<8x64xf32>
    %531 = arith.mulf %525, %529 : vector<8x64xf32>
    %532 = arith.addf %530, %531 : vector<8x64xf32>
    %533 = math.tanh %532 : vector<8x64xf32>
    %534 = arith.mulf %527, %533 : vector<8x64xf32>
    %c11_i32 = arith.constant 11 : i32
    %c8_i32_149 = arith.constant 8 : i32
    %535 = arith.muli %c11_i32, %c8_i32_149 : i32
    %536 = tpu.assume_multiple %535, 8 : i32
    %537 = arith.index_cast %536 : i32 to index
    %c0_150 = arith.constant 0 : index
    %538 = vector.load %arg17[%537, %c0_150] : memref<128x256xf32, #tpu.memory_space<vmem>>, vector<8x256xf32>
    %cst_151 = arith.constant dense<0.000000e+00> : vector<8x256xf32>
    %539 = tpu.matmul %514, %66, %cst_151 {dimension_numbers = #tpu.dot_dimension_numbers<[1], [0], [0], [1], [0, 0, 1, 1], [], []>} : vector<8x64xf32>, vector<64x256xf32>, vector<8x256xf32> -> vector<8x256xf32>
    %540 = arith.addf %538, %539 : vector<8x256xf32>
    %541 = vector.extract_strided_slice %540 {offsets = [0, 0], sizes = [8, 192], strides = [1, 1]} : vector<8x256xf32> to vector<8x192xf32>
    %542 = arith.negf %541 : vector<8x192xf32>
    %543 = math.exp %542 : vector<8x192xf32>
    %cst_152 = arith.constant 1.000000e+00 : f32
    %544 = vector.broadcast %cst_152 : f32 to vector<8x192xf32>
    %545 = arith.addf %544, %543 : vector<8x192xf32>
    %546 = arith.divf %544, %545 : vector<8x192xf32>
    %547 = vector.extract_strided_slice %546 {offsets = [0, 0], sizes = [8, 64], strides = [1, 1]} : vector<8x192xf32> to vector<8x64xf32>
    %548 = vector.extract_strided_slice %546 {offsets = [0, 64], sizes = [8, 64], strides = [1, 1]} : vector<8x192xf32> to vector<8x64xf32>
    %549 = vector.extract_strided_slice %546 {offsets = [0, 128], sizes = [8, 64], strides = [1, 1]} : vector<8x192xf32> to vector<8x64xf32>
    %550 = vector.extract_strided_slice %540 {offsets = [0, 192], sizes = [8, 64], strides = [1, 1]} : vector<8x256xf32> to vector<8x64xf32>
    %551 = math.tanh %550 : vector<8x64xf32>
    %552 = arith.mulf %548, %512 : vector<8x64xf32>
    %553 = arith.mulf %547, %551 : vector<8x64xf32>
    %554 = arith.addf %552, %553 : vector<8x64xf32>
    %555 = math.tanh %554 : vector<8x64xf32>
    %556 = arith.mulf %549, %555 : vector<8x64xf32>
    %cst_153 = arith.constant dense<0.000000e+00> : vector<8x256xf32>
    %557 = tpu.matmul %556, %67, %cst_153 {dimension_numbers = #tpu.dot_dimension_numbers<[1], [0], [0], [1], [0, 0, 1, 1], [], []>} : vector<8x64xf32>, vector<64x256xf32>, vector<8x256xf32> -> vector<8x256xf32>
    %cst_154 = arith.constant dense<0.000000e+00> : vector<8x256xf32>
    %558 = tpu.matmul %534, %68, %cst_154 {dimension_numbers = #tpu.dot_dimension_numbers<[1], [0], [0], [1], [0, 0, 1, 1], [], []>} : vector<8x64xf32>, vector<64x256xf32>, vector<8x256xf32> -> vector<8x256xf32>
    %559 = arith.addf %557, %558 : vector<8x256xf32>
    %560 = arith.addf %559, %71 : vector<8x256xf32>
    %561 = vector.extract_strided_slice %560 {offsets = [0, 0], sizes = [8, 192], strides = [1, 1]} : vector<8x256xf32> to vector<8x192xf32>
    %562 = arith.negf %561 : vector<8x192xf32>
    %563 = math.exp %562 : vector<8x192xf32>
    %cst_155 = arith.constant 1.000000e+00 : f32
    %564 = vector.broadcast %cst_155 : f32 to vector<8x192xf32>
    %565 = arith.addf %564, %563 : vector<8x192xf32>
    %566 = arith.divf %564, %565 : vector<8x192xf32>
    %567 = vector.extract_strided_slice %566 {offsets = [0, 0], sizes = [8, 64], strides = [1, 1]} : vector<8x192xf32> to vector<8x64xf32>
    %568 = vector.extract_strided_slice %566 {offsets = [0, 64], sizes = [8, 64], strides = [1, 1]} : vector<8x192xf32> to vector<8x64xf32>
    %569 = vector.extract_strided_slice %566 {offsets = [0, 128], sizes = [8, 64], strides = [1, 1]} : vector<8x192xf32> to vector<8x64xf32>
    %570 = vector.extract_strided_slice %560 {offsets = [0, 192], sizes = [8, 64], strides = [1, 1]} : vector<8x256xf32> to vector<8x64xf32>
    %571 = math.tanh %570 : vector<8x64xf32>
    %572 = arith.mulf %568, %532 : vector<8x64xf32>
    %573 = arith.mulf %567, %571 : vector<8x64xf32>
    %574 = arith.addf %572, %573 : vector<8x64xf32>
    %575 = math.tanh %574 : vector<8x64xf32>
    %576 = arith.mulf %569, %575 : vector<8x64xf32>
    %c12_i32 = arith.constant 12 : i32
    %c8_i32_156 = arith.constant 8 : i32
    %577 = arith.muli %c12_i32, %c8_i32_156 : i32
    %578 = tpu.assume_multiple %577, 8 : i32
    %579 = arith.index_cast %578 : i32 to index
    %c0_157 = arith.constant 0 : index
    %580 = vector.load %arg17[%579, %c0_157] : memref<128x256xf32, #tpu.memory_space<vmem>>, vector<8x256xf32>
    %cst_158 = arith.constant dense<0.000000e+00> : vector<8x256xf32>
    %581 = tpu.matmul %556, %66, %cst_158 {dimension_numbers = #tpu.dot_dimension_numbers<[1], [0], [0], [1], [0, 0, 1, 1], [], []>} : vector<8x64xf32>, vector<64x256xf32>, vector<8x256xf32> -> vector<8x256xf32>
    %582 = arith.addf %580, %581 : vector<8x256xf32>
    %583 = vector.extract_strided_slice %582 {offsets = [0, 0], sizes = [8, 192], strides = [1, 1]} : vector<8x256xf32> to vector<8x192xf32>
    %584 = arith.negf %583 : vector<8x192xf32>
    %585 = math.exp %584 : vector<8x192xf32>
    %cst_159 = arith.constant 1.000000e+00 : f32
    %586 = vector.broadcast %cst_159 : f32 to vector<8x192xf32>
    %587 = arith.addf %586, %585 : vector<8x192xf32>
    %588 = arith.divf %586, %587 : vector<8x192xf32>
    %589 = vector.extract_strided_slice %588 {offsets = [0, 0], sizes = [8, 64], strides = [1, 1]} : vector<8x192xf32> to vector<8x64xf32>
    %590 = vector.extract_strided_slice %588 {offsets = [0, 64], sizes = [8, 64], strides = [1, 1]} : vector<8x192xf32> to vector<8x64xf32>
    %591 = vector.extract_strided_slice %588 {offsets = [0, 128], sizes = [8, 64], strides = [1, 1]} : vector<8x192xf32> to vector<8x64xf32>
    %592 = vector.extract_strided_slice %582 {offsets = [0, 192], sizes = [8, 64], strides = [1, 1]} : vector<8x256xf32> to vector<8x64xf32>
    %593 = math.tanh %592 : vector<8x64xf32>
    %594 = arith.mulf %590, %554 : vector<8x64xf32>
    %595 = arith.mulf %589, %593 : vector<8x64xf32>
    %596 = arith.addf %594, %595 : vector<8x64xf32>
    %597 = math.tanh %596 : vector<8x64xf32>
    %598 = arith.mulf %591, %597 : vector<8x64xf32>
    %cst_160 = arith.constant dense<0.000000e+00> : vector<8x256xf32>
    %599 = tpu.matmul %598, %67, %cst_160 {dimension_numbers = #tpu.dot_dimension_numbers<[1], [0], [0], [1], [0, 0, 1, 1], [], []>} : vector<8x64xf32>, vector<64x256xf32>, vector<8x256xf32> -> vector<8x256xf32>
    %cst_161 = arith.constant dense<0.000000e+00> : vector<8x256xf32>
    %600 = tpu.matmul %576, %68, %cst_161 {dimension_numbers = #tpu.dot_dimension_numbers<[1], [0], [0], [1], [0, 0, 1, 1], [], []>} : vector<8x64xf32>, vector<64x256xf32>, vector<8x256xf32> -> vector<8x256xf32>
    %601 = arith.addf %599, %600 : vector<8x256xf32>
    %602 = arith.addf %601, %71 : vector<8x256xf32>
    %603 = vector.extract_strided_slice %602 {offsets = [0, 0], sizes = [8, 192], strides = [1, 1]} : vector<8x256xf32> to vector<8x192xf32>
    %604 = arith.negf %603 : vector<8x192xf32>
    %605 = math.exp %604 : vector<8x192xf32>
    %cst_162 = arith.constant 1.000000e+00 : f32
    %606 = vector.broadcast %cst_162 : f32 to vector<8x192xf32>
    %607 = arith.addf %606, %605 : vector<8x192xf32>
    %608 = arith.divf %606, %607 : vector<8x192xf32>
    %609 = vector.extract_strided_slice %608 {offsets = [0, 0], sizes = [8, 64], strides = [1, 1]} : vector<8x192xf32> to vector<8x64xf32>
    %610 = vector.extract_strided_slice %608 {offsets = [0, 64], sizes = [8, 64], strides = [1, 1]} : vector<8x192xf32> to vector<8x64xf32>
    %611 = vector.extract_strided_slice %608 {offsets = [0, 128], sizes = [8, 64], strides = [1, 1]} : vector<8x192xf32> to vector<8x64xf32>
    %612 = vector.extract_strided_slice %602 {offsets = [0, 192], sizes = [8, 64], strides = [1, 1]} : vector<8x256xf32> to vector<8x64xf32>
    %613 = math.tanh %612 : vector<8x64xf32>
    %614 = arith.mulf %610, %574 : vector<8x64xf32>
    %615 = arith.mulf %609, %613 : vector<8x64xf32>
    %616 = arith.addf %614, %615 : vector<8x64xf32>
    %617 = math.tanh %616 : vector<8x64xf32>
    %618 = arith.mulf %611, %617 : vector<8x64xf32>
    %c13_i32 = arith.constant 13 : i32
    %c8_i32_163 = arith.constant 8 : i32
    %619 = arith.muli %c13_i32, %c8_i32_163 : i32
    %620 = tpu.assume_multiple %619, 8 : i32
    %621 = arith.index_cast %620 : i32 to index
    %c0_164 = arith.constant 0 : index
    %622 = vector.load %arg17[%621, %c0_164] : memref<128x256xf32, #tpu.memory_space<vmem>>, vector<8x256xf32>
    %cst_165 = arith.constant dense<0.000000e+00> : vector<8x256xf32>
    %623 = tpu.matmul %598, %66, %cst_165 {dimension_numbers = #tpu.dot_dimension_numbers<[1], [0], [0], [1], [0, 0, 1, 1], [], []>} : vector<8x64xf32>, vector<64x256xf32>, vector<8x256xf32> -> vector<8x256xf32>
    %624 = arith.addf %622, %623 : vector<8x256xf32>
    %625 = vector.extract_strided_slice %624 {offsets = [0, 0], sizes = [8, 192], strides = [1, 1]} : vector<8x256xf32> to vector<8x192xf32>
    %626 = arith.negf %625 : vector<8x192xf32>
    %627 = math.exp %626 : vector<8x192xf32>
    %cst_166 = arith.constant 1.000000e+00 : f32
    %628 = vector.broadcast %cst_166 : f32 to vector<8x192xf32>
    %629 = arith.addf %628, %627 : vector<8x192xf32>
    %630 = arith.divf %628, %629 : vector<8x192xf32>
    %631 = vector.extract_strided_slice %630 {offsets = [0, 0], sizes = [8, 64], strides = [1, 1]} : vector<8x192xf32> to vector<8x64xf32>
    %632 = vector.extract_strided_slice %630 {offsets = [0, 64], sizes = [8, 64], strides = [1, 1]} : vector<8x192xf32> to vector<8x64xf32>
    %633 = vector.extract_strided_slice %630 {offsets = [0, 128], sizes = [8, 64], strides = [1, 1]} : vector<8x192xf32> to vector<8x64xf32>
    %634 = vector.extract_strided_slice %624 {offsets = [0, 192], sizes = [8, 64], strides = [1, 1]} : vector<8x256xf32> to vector<8x64xf32>
    %635 = math.tanh %634 : vector<8x64xf32>
    %636 = arith.mulf %632, %596 : vector<8x64xf32>
    %637 = arith.mulf %631, %635 : vector<8x64xf32>
    %638 = arith.addf %636, %637 : vector<8x64xf32>
    %639 = math.tanh %638 : vector<8x64xf32>
    %640 = arith.mulf %633, %639 : vector<8x64xf32>
    %cst_167 = arith.constant dense<0.000000e+00> : vector<8x256xf32>
    %641 = tpu.matmul %640, %67, %cst_167 {dimension_numbers = #tpu.dot_dimension_numbers<[1], [0], [0], [1], [0, 0, 1, 1], [], []>} : vector<8x64xf32>, vector<64x256xf32>, vector<8x256xf32> -> vector<8x256xf32>
    %cst_168 = arith.constant dense<0.000000e+00> : vector<8x256xf32>
    %642 = tpu.matmul %618, %68, %cst_168 {dimension_numbers = #tpu.dot_dimension_numbers<[1], [0], [0], [1], [0, 0, 1, 1], [], []>} : vector<8x64xf32>, vector<64x256xf32>, vector<8x256xf32> -> vector<8x256xf32>
    %643 = arith.addf %641, %642 : vector<8x256xf32>
    %644 = arith.addf %643, %71 : vector<8x256xf32>
    %645 = vector.extract_strided_slice %644 {offsets = [0, 0], sizes = [8, 192], strides = [1, 1]} : vector<8x256xf32> to vector<8x192xf32>
    %646 = arith.negf %645 : vector<8x192xf32>
    %647 = math.exp %646 : vector<8x192xf32>
    %cst_169 = arith.constant 1.000000e+00 : f32
    %648 = vector.broadcast %cst_169 : f32 to vector<8x192xf32>
    %649 = arith.addf %648, %647 : vector<8x192xf32>
    %650 = arith.divf %648, %649 : vector<8x192xf32>
    %651 = vector.extract_strided_slice %650 {offsets = [0, 0], sizes = [8, 64], strides = [1, 1]} : vector<8x192xf32> to vector<8x64xf32>
    %652 = vector.extract_strided_slice %650 {offsets = [0, 64], sizes = [8, 64], strides = [1, 1]} : vector<8x192xf32> to vector<8x64xf32>
    %653 = vector.extract_strided_slice %650 {offsets = [0, 128], sizes = [8, 64], strides = [1, 1]} : vector<8x192xf32> to vector<8x64xf32>
    %654 = vector.extract_strided_slice %644 {offsets = [0, 192], sizes = [8, 64], strides = [1, 1]} : vector<8x256xf32> to vector<8x64xf32>
    %655 = math.tanh %654 : vector<8x64xf32>
    %656 = arith.mulf %652, %616 : vector<8x64xf32>
    %657 = arith.mulf %651, %655 : vector<8x64xf32>
    %658 = arith.addf %656, %657 : vector<8x64xf32>
    %659 = math.tanh %658 : vector<8x64xf32>
    %660 = arith.mulf %653, %659 : vector<8x64xf32>
    %c14_i32 = arith.constant 14 : i32
    %c8_i32_170 = arith.constant 8 : i32
    %661 = arith.muli %c14_i32, %c8_i32_170 : i32
    %662 = tpu.assume_multiple %661, 8 : i32
    %663 = arith.index_cast %662 : i32 to index
    %c0_171 = arith.constant 0 : index
    %664 = vector.load %arg17[%663, %c0_171] : memref<128x256xf32, #tpu.memory_space<vmem>>, vector<8x256xf32>
    %cst_172 = arith.constant dense<0.000000e+00> : vector<8x256xf32>
    %665 = tpu.matmul %640, %66, %cst_172 {dimension_numbers = #tpu.dot_dimension_numbers<[1], [0], [0], [1], [0, 0, 1, 1], [], []>} : vector<8x64xf32>, vector<64x256xf32>, vector<8x256xf32> -> vector<8x256xf32>
    %666 = arith.addf %664, %665 : vector<8x256xf32>
    %667 = vector.extract_strided_slice %666 {offsets = [0, 0], sizes = [8, 192], strides = [1, 1]} : vector<8x256xf32> to vector<8x192xf32>
    %668 = arith.negf %667 : vector<8x192xf32>
    %669 = math.exp %668 : vector<8x192xf32>
    %cst_173 = arith.constant 1.000000e+00 : f32
    %670 = vector.broadcast %cst_173 : f32 to vector<8x192xf32>
    %671 = arith.addf %670, %669 : vector<8x192xf32>
    %672 = arith.divf %670, %671 : vector<8x192xf32>
    %673 = vector.extract_strided_slice %672 {offsets = [0, 0], sizes = [8, 64], strides = [1, 1]} : vector<8x192xf32> to vector<8x64xf32>
    %674 = vector.extract_strided_slice %672 {offsets = [0, 64], sizes = [8, 64], strides = [1, 1]} : vector<8x192xf32> to vector<8x64xf32>
    %675 = vector.extract_strided_slice %672 {offsets = [0, 128], sizes = [8, 64], strides = [1, 1]} : vector<8x192xf32> to vector<8x64xf32>
    %676 = vector.extract_strided_slice %666 {offsets = [0, 192], sizes = [8, 64], strides = [1, 1]} : vector<8x256xf32> to vector<8x64xf32>
    %677 = math.tanh %676 : vector<8x64xf32>
    %678 = arith.mulf %674, %638 : vector<8x64xf32>
    %679 = arith.mulf %673, %677 : vector<8x64xf32>
    %680 = arith.addf %678, %679 : vector<8x64xf32>
    %681 = math.tanh %680 : vector<8x64xf32>
    %682 = arith.mulf %675, %681 : vector<8x64xf32>
    %cst_174 = arith.constant dense<0.000000e+00> : vector<8x256xf32>
    %683 = tpu.matmul %682, %67, %cst_174 {dimension_numbers = #tpu.dot_dimension_numbers<[1], [0], [0], [1], [0, 0, 1, 1], [], []>} : vector<8x64xf32>, vector<64x256xf32>, vector<8x256xf32> -> vector<8x256xf32>
    %cst_175 = arith.constant dense<0.000000e+00> : vector<8x256xf32>
    %684 = tpu.matmul %660, %68, %cst_175 {dimension_numbers = #tpu.dot_dimension_numbers<[1], [0], [0], [1], [0, 0, 1, 1], [], []>} : vector<8x64xf32>, vector<64x256xf32>, vector<8x256xf32> -> vector<8x256xf32>
    %685 = arith.addf %683, %684 : vector<8x256xf32>
    %686 = arith.addf %685, %71 : vector<8x256xf32>
    %687 = vector.extract_strided_slice %686 {offsets = [0, 0], sizes = [8, 192], strides = [1, 1]} : vector<8x256xf32> to vector<8x192xf32>
    %688 = arith.negf %687 : vector<8x192xf32>
    %689 = math.exp %688 : vector<8x192xf32>
    %cst_176 = arith.constant 1.000000e+00 : f32
    %690 = vector.broadcast %cst_176 : f32 to vector<8x192xf32>
    %691 = arith.addf %690, %689 : vector<8x192xf32>
    %692 = arith.divf %690, %691 : vector<8x192xf32>
    %693 = vector.extract_strided_slice %692 {offsets = [0, 0], sizes = [8, 64], strides = [1, 1]} : vector<8x192xf32> to vector<8x64xf32>
    %694 = vector.extract_strided_slice %692 {offsets = [0, 64], sizes = [8, 64], strides = [1, 1]} : vector<8x192xf32> to vector<8x64xf32>
    %695 = vector.extract_strided_slice %692 {offsets = [0, 128], sizes = [8, 64], strides = [1, 1]} : vector<8x192xf32> to vector<8x64xf32>
    %696 = vector.extract_strided_slice %686 {offsets = [0, 192], sizes = [8, 64], strides = [1, 1]} : vector<8x256xf32> to vector<8x64xf32>
    %697 = math.tanh %696 : vector<8x64xf32>
    %698 = arith.mulf %694, %658 : vector<8x64xf32>
    %699 = arith.mulf %693, %697 : vector<8x64xf32>
    %700 = arith.addf %698, %699 : vector<8x64xf32>
    %701 = math.tanh %700 : vector<8x64xf32>
    %702 = arith.mulf %695, %701 : vector<8x64xf32>
    %c15_i32 = arith.constant 15 : i32
    %c8_i32_177 = arith.constant 8 : i32
    %703 = arith.muli %c15_i32, %c8_i32_177 : i32
    %704 = tpu.assume_multiple %703, 8 : i32
    %705 = arith.index_cast %704 : i32 to index
    %c0_178 = arith.constant 0 : index
    %706 = vector.load %arg17[%705, %c0_178] : memref<128x256xf32, #tpu.memory_space<vmem>>, vector<8x256xf32>
    %cst_179 = arith.constant dense<0.000000e+00> : vector<8x256xf32>
    %707 = tpu.matmul %682, %66, %cst_179 {dimension_numbers = #tpu.dot_dimension_numbers<[1], [0], [0], [1], [0, 0, 1, 1], [], []>} : vector<8x64xf32>, vector<64x256xf32>, vector<8x256xf32> -> vector<8x256xf32>
    %708 = arith.addf %706, %707 : vector<8x256xf32>
    %709 = vector.extract_strided_slice %708 {offsets = [0, 0], sizes = [8, 192], strides = [1, 1]} : vector<8x256xf32> to vector<8x192xf32>
    %710 = arith.negf %709 : vector<8x192xf32>
    %711 = math.exp %710 : vector<8x192xf32>
    %cst_180 = arith.constant 1.000000e+00 : f32
    %712 = vector.broadcast %cst_180 : f32 to vector<8x192xf32>
    %713 = arith.addf %712, %711 : vector<8x192xf32>
    %714 = arith.divf %712, %713 : vector<8x192xf32>
    %715 = vector.extract_strided_slice %714 {offsets = [0, 0], sizes = [8, 64], strides = [1, 1]} : vector<8x192xf32> to vector<8x64xf32>
    %716 = vector.extract_strided_slice %714 {offsets = [0, 64], sizes = [8, 64], strides = [1, 1]} : vector<8x192xf32> to vector<8x64xf32>
    %717 = vector.extract_strided_slice %714 {offsets = [0, 128], sizes = [8, 64], strides = [1, 1]} : vector<8x192xf32> to vector<8x64xf32>
    %718 = vector.extract_strided_slice %708 {offsets = [0, 192], sizes = [8, 64], strides = [1, 1]} : vector<8x256xf32> to vector<8x64xf32>
    %719 = math.tanh %718 : vector<8x64xf32>
    %720 = arith.mulf %716, %680 : vector<8x64xf32>
    %721 = arith.mulf %715, %719 : vector<8x64xf32>
    %722 = arith.addf %720, %721 : vector<8x64xf32>
    %723 = math.tanh %722 : vector<8x64xf32>
    %724 = arith.mulf %717, %723 : vector<8x64xf32>
    %cst_181 = arith.constant dense<0.000000e+00> : vector<8x256xf32>
    %725 = tpu.matmul %724, %67, %cst_181 {dimension_numbers = #tpu.dot_dimension_numbers<[1], [0], [0], [1], [0, 0, 1, 1], [], []>} : vector<8x64xf32>, vector<64x256xf32>, vector<8x256xf32> -> vector<8x256xf32>
    %cst_182 = arith.constant dense<0.000000e+00> : vector<8x256xf32>
    %726 = tpu.matmul %702, %68, %cst_182 {dimension_numbers = #tpu.dot_dimension_numbers<[1], [0], [0], [1], [0, 0, 1, 1], [], []>} : vector<8x64xf32>, vector<64x256xf32>, vector<8x256xf32> -> vector<8x256xf32>
    %727 = arith.addf %725, %726 : vector<8x256xf32>
    %728 = arith.addf %727, %71 : vector<8x256xf32>
    %729 = vector.extract_strided_slice %728 {offsets = [0, 0], sizes = [8, 192], strides = [1, 1]} : vector<8x256xf32> to vector<8x192xf32>
    %730 = arith.negf %729 : vector<8x192xf32>
    %731 = math.exp %730 : vector<8x192xf32>
    %cst_183 = arith.constant 1.000000e+00 : f32
    %732 = vector.broadcast %cst_183 : f32 to vector<8x192xf32>
    %733 = arith.addf %732, %731 : vector<8x192xf32>
    %734 = arith.divf %732, %733 : vector<8x192xf32>
    %735 = vector.extract_strided_slice %734 {offsets = [0, 0], sizes = [8, 64], strides = [1, 1]} : vector<8x192xf32> to vector<8x64xf32>
    %736 = vector.extract_strided_slice %734 {offsets = [0, 64], sizes = [8, 64], strides = [1, 1]} : vector<8x192xf32> to vector<8x64xf32>
    %737 = vector.extract_strided_slice %734 {offsets = [0, 128], sizes = [8, 64], strides = [1, 1]} : vector<8x192xf32> to vector<8x64xf32>
    %738 = vector.extract_strided_slice %728 {offsets = [0, 192], sizes = [8, 64], strides = [1, 1]} : vector<8x256xf32> to vector<8x64xf32>
    %739 = math.tanh %738 : vector<8x64xf32>
    %740 = arith.mulf %736, %700 : vector<8x64xf32>
    %741 = arith.mulf %735, %739 : vector<8x64xf32>
    %742 = arith.addf %740, %741 : vector<8x64xf32>
    %743 = math.tanh %742 : vector<8x64xf32>
    %744 = arith.mulf %737, %743 : vector<8x64xf32>
    %c16_i32 = arith.constant 16 : i32
    %c0_184 = arith.constant 0 : index
    %c0_185 = arith.constant 0 : index
    %745 = vector.load %arg14[%c0_184, %c0_185] : memref<64x128xf32, #tpu.memory_space<vmem>>, vector<64x128xf32>
    %cst_186 = arith.constant dense<0.000000e+00> : vector<8x128xf32>
    %746 = tpu.matmul %744, %745, %cst_186 {dimension_numbers = #tpu.dot_dimension_numbers<[1], [0], [0], [1], [0, 0, 1, 1], [], []>} : vector<8x64xf32>, vector<64x128xf32>, vector<8x128xf32> -> vector<8x128xf32>
    %c0_187 = arith.constant 0 : index
    %c0_188 = arith.constant 0 : index
    %747 = vector.load %arg15[%c0_187, %c0_188] : memref<1x128xf32, #tpu.memory_space<vmem>>, vector<1x128xf32>
    %748 = vector.broadcast %747 : vector<1x128xf32> to vector<8x128xf32>
    %749 = arith.addf %746, %748 : vector<8x128xf32>
    %c0_189 = arith.constant 0 : index
    %c0_190 = arith.constant 0 : index
    %c0_191 = arith.constant 0 : index
    %750 = vector.load %arg16[%c0_189, %c0_190, %c0_191] : memref<1x8x128xf32, #tpu.memory_space<vmem>>, vector<1x8x128xf32>
    %751 = vector.shape_cast %750 : vector<1x8x128xf32> to vector<8x128xf32>
    %752 = vector.shape_cast %749 : vector<8x128xf32> to vector<1x8x128xf32>
    tpu.vector_store %arg16[%c0_189, %c0_190, %c0_191], %752 {strides = array<i32>} : memref<1x8x128xf32, #tpu.memory_space<vmem>>, vector<1x8x128xf32>,
    return
  }
  func.func @transform_0(%arg0: i32) -> (i32, i32, i32) {
    %c0_i32 = arith.constant 0 : i32
    %c0_i32_0 = arith.constant 0 : i32
    %c0_i32_1 = arith.constant 0 : i32
    return %arg0, %c0_i32, %c0_i32_0 : i32, i32, i32
  }
  func.func @transform_1(%arg0: i32) -> (i32, i32) {
    %c0_i32 = arith.constant 0 : i32
    %c0_i32_0 = arith.constant 0 : i32
    %c0_i32_1 = arith.constant 0 : i32
    return %c0_i32, %c0_i32_0 : i32, i32
  }
  func.func @transform_2(%arg0: i32) -> (i32, i32) {
    %c0_i32 = arith.constant 0 : i32
    %c0_i32_0 = arith.constant 0 : i32
    %c0_i32_1 = arith.constant 0 : i32
    return %c0_i32, %c0_i32_0 : i32, i32
  }
  func.func @transform_3(%arg0: i32) -> (i32, i32) {
    %c0_i32 = arith.constant 0 : i32
    %c0_i32_0 = arith.constant 0 : i32
    %c0_i32_1 = arith.constant 0 : i32
    return %c0_i32, %c0_i32_0 : i32, i32
  }
  func.func @transform_4(%arg0: i32) -> (i32, i32) {
    %c0_i32 = arith.constant 0 : i32
    %c0_i32_0 = arith.constant 0 : i32
    %c0_i32_1 = arith.constant 0 : i32
    return %c0_i32, %c0_i32_0 : i32, i32
  }
  func.func @transform_5(%arg0: i32) -> (i32, i32) {
    %c0_i32 = arith.constant 0 : i32
    %c0_i32_0 = arith.constant 0 : i32
    %c0_i32_1 = arith.constant 0 : i32
    return %c0_i32, %c0_i32_0 : i32, i32
  }
  func.func @transform_6(%arg0: i32) -> (i32, i32) {
    %c0_i32 = arith.constant 0 : i32
    %c0_i32_0 = arith.constant 0 : i32
    %c0_i32_1 = arith.constant 0 : i32
    return %c0_i32, %c0_i32_0 : i32, i32
  }
  func.func @transform_7(%arg0: i32) -> (i32, i32) {
    %c0_i32 = arith.constant 0 : i32
    %c0_i32_0 = arith.constant 0 : i32
    %c0_i32_1 = arith.constant 0 : i32
    return %c0_i32, %c0_i32_0 : i32, i32
  }
  func.func @transform_8(%arg0: i32) -> (i32, i32) {
    %c0_i32 = arith.constant 0 : i32
    %c0_i32_0 = arith.constant 0 : i32
    %c0_i32_1 = arith.constant 0 : i32
    return %c0_i32, %c0_i32_0 : i32, i32
  }
  func.func @transform_9(%arg0: i32) -> (i32, i32) {
    %c0_i32 = arith.constant 0 : i32
    %c0_i32_0 = arith.constant 0 : i32
    %c0_i32_1 = arith.constant 0 : i32
    return %c0_i32, %c0_i32_0 : i32, i32
  }
  func.func @transform_10(%arg0: i32) -> (i32, i32) {
    %c0_i32 = arith.constant 0 : i32
    %c0_i32_0 = arith.constant 0 : i32
    %c0_i32_1 = arith.constant 0 : i32
    return %c0_i32, %c0_i32_0 : i32, i32
  }
  func.func @transform_11(%arg0: i32) -> (i32, i32) {
    %c0_i32 = arith.constant 0 : i32
    %c0_i32_0 = arith.constant 0 : i32
    %c0_i32_1 = arith.constant 0 : i32
    return %c0_i32, %c0_i32_0 : i32, i32
  }
  func.func @transform_12(%arg0: i32) -> (i32, i32) {
    %c0_i32 = arith.constant 0 : i32
    %c0_i32_0 = arith.constant 0 : i32
    %c0_i32_1 = arith.constant 0 : i32
    return %c0_i32, %c0_i32_0 : i32, i32
  }
  func.func @transform_13(%arg0: i32) -> (i32, i32) {
    %c0_i32 = arith.constant 0 : i32
    %c0_i32_0 = arith.constant 0 : i32
    %c0_i32_1 = arith.constant 0 : i32
    return %c0_i32, %c0_i32_0 : i32, i32
  }
  func.func @transform_14(%arg0: i32) -> (i32, i32) {
    %c0_i32 = arith.constant 0 : i32
    %c0_i32_0 = arith.constant 0 : i32
    %c0_i32_1 = arith.constant 0 : i32
    return %c0_i32, %c0_i32_0 : i32, i32
  }
  func.func @transform_15(%arg0: i32) -> (i32, i32, i32) {
    %c0_i32 = arith.constant 0 : i32
    %c0_i32_0 = arith.constant 0 : i32
    %c0_i32_1 = arith.constant 0 : i32
    return %arg0, %c0_i32, %c0_i32_0 : i32, i32, i32
  }
}

</mosaic_0001>

<llo_original>
// kernel: tpu_custom_call.1
$region0: #{tpu_custom_call.1}
  #allocation0 [shape = 'u32[]', space=smem, size = 0x4, offset = 0x4, fixed_abs, tag = 'smem constant byte address 0x4 - core index']
  #allocation1 [shape = 'u32[144,128]{1,0:T(1,128)}', space=vmem, size = 0x12000, scoped, tag = 'internal scratch']
  #allocation2 [shape = 'f32[128,256]{1,0:T(8,128)}', space=vmem, size = 0x20000, scoped, tag = 'scratch operand']
  #allocation3 [shape = 'f32[144,64]{1,0:T(8,128)}', space=vmem, size = 0x12000, scoped, tag = 'scratch operand']
  #allocation4 [shape = 'f32[144,128]{1,0:T(8,128)}', space=vmem, size = 0x12000, scoped, tag = 'scratch operand']
  %s0 = inlined_call_operand.vmem [shape: f32[1,128,18], index: 0, kind: input, shape index: {}]
  %s1 = inlined_call_operand.hbm [shape: f32[18,64], index: 1, kind: input, shape index: {}]
  %s2 = inlined_call_operand.vmem [shape: f32[1,64], index: 2, kind: input, shape index: {}]
  %s3 = inlined_call_operand.hbm [shape: f32[192,128], index: 3, kind: input, shape index: {}]
  %s4 = inlined_call_operand.hbm [shape: f32[1,128], index: 4, kind: input, shape index: {}]
  %s5 = inlined_call_operand.hbm [shape: f32[384,256], index: 5, kind: input, shape index: {}]
  %s6 = inlined_call_operand.vmem [shape: f32[1,256], index: 6, kind: input, shape index: {}]
  %s7 = inlined_call_operand.hbm [shape: f32[256,256], index: 7, kind: input, shape index: {}]
  %s8 = inlined_call_operand.vmem [shape: f32[64,256], index: 8, kind: input, shape index: {}]
  %s9 = inlined_call_operand.hbm [shape: f32[1,256], index: 9, kind: input, shape index: {}]
  %s10 = inlined_call_operand.hbm [shape: f32[64,256], index: 10, kind: input, shape index: {}]
  %s11 = inlined_call_operand.hbm [shape: f32[64,256], index: 11, kind: input, shape index: {}]
  %s12 = inlined_call_operand.hbm [shape: f32[1,256], index: 12, kind: input, shape index: {}]
  %s13 = inlined_call_operand.vmem [shape: f32[64,128], index: 13, kind: input, shape index: {}]
  %s14 = inlined_call_operand.vmem [shape: f32[1,128], index: 14, kind: input, shape index: {}]
  %s15 = inlined_call_operand.hbm [shape: f32[1,8,128], index: 15, kind: output, shape index: {}]
  %s16 = sld [smem:[#allocation0]]
  $region106: #{tpu_custom_call.1} parent=0
    _
  %s18 = ssub.s32 1, %s16
  %s19 = scalar_select 0, %s18, %s16
  $region1: #{tpu_custom_call.1} parent=0
    #allocation5 [shape = 'u8[12288]{0}', space=vmem, size = 0x3000, scoped, tag = 'input window, operand 1, single buffered']
    #allocation6 [shape = 's32[1]{0}', space=sflag, size = 0x4, scoped, tag = 'scoped memory for tpu_custom_call.1']
    #allocation7 [shape = 's32[1]{0}', space=sflag, size = 0x4, scoped, tag = 'scoped memory for tpu_custom_call.1']
    #allocation8 [shape = 'u8[98304]{0}', space=vmem, size = 0x18000, scoped, tag = 'input window, operand 3, single buffered']
    #allocation9 [shape = 's32[1]{0}', space=sflag, size = 0x4, scoped, tag = 'scoped memory for tpu_custom_call.1']
    #allocation10 [shape = 'u8[512]{0}', space=vmem, size = 0x400, scoped, tag = 'input window, operand 4, single buffered']
    #allocation11 [shape = 'u8[393216]{0}', space=vmem, size = 0x60000, scoped, tag = 'input window, operand 5, single buffered']
    #allocation12 [shape = 's32[1]{0}', space=sflag, size = 0x4, scoped, tag = 'scoped memory for tpu_custom_call.1']
    #allocation13 [shape = 'u8[262144]{0}', space=vmem, size = 0x40000, scoped, tag = 'input window, operand 7, single buffered']
    #allocation14 [shape = 'u8[1024]{0}', space=vmem, size = 0x400, scoped, tag = 'input window, operand 9, single buffered']
    #allocation15 [shape = 's32[1]{0}', space=sflag, size = 0x4, scoped, tag = 'scoped memory for tpu_custom_call.1']
    #allocation16 [shape = 'u8[65536]{0}', space=vmem, size = 0x10000, scoped, tag = 'input window, operand 10, single buffered']
    #allocation17 [shape = 'u8[65536]{0}', space=vmem, size = 0x10000, scoped, tag = 'input window, operand 11, single buffered']
    #allocation18 [shape = 's32[1]{0}', space=sflag, size = 0x4, scoped, tag = 'scoped memory for tpu_custom_call.1']
    #allocation19 [shape = 'u8[1024]{0}', space=vmem, size = 0x400, scoped, tag = 'input window, operand 12, single buffered']
    #allocation20 [shape = 'u8[4096]{0}', space=vmem, size = 0x1000, scoped, tag = 'output window, operand 0, single buffered']
    %20 = vsyncpa [#allocation6], 0
    %21 = vsyncpa [#allocation9], 0
    %22 = vsyncpa [#allocation12], 0
    %23 = vsyncpa [#allocation15], 0
    %24 = vsyncpa [#allocation18], 0
    %25 = vsyncpa [#allocation7], 0
    // Predicated region
    $region2: #{tpu_custom_call.1} parent=1 // pred_check
      _
    $region3: #{tpu_custom_call.1} parent=1 // pred_check_branch
      %27 = sbr.rel (0) target = $region5
    $region4: #{tpu_custom_call.1} parent=1 // pred_region
      _
    $region5: #{tpu_custom_call.1} parent=1 // pred_fallthru
      _
    // Predicated region
    $region6: #{tpu_custom_call.1} parent=1 // pred_check
      _
    $region7: #{tpu_custom_call.1} parent=1 // pred_check_branch
      %29 = sbr.rel (0) target = $region9
    $region8: #{tpu_custom_call.1} parent=1 // pred_region
      %s31 = ssub.s32 384, 384
      %32 = vsyncadd [#allocation6], %s31
      %s33 = sshll.u32 [#allocation5], 4
      %s34 = int_to_ptr.vmem [resolvable:$true] %s33
      %39 = dma.hbm_to_vmem [thread:$0]  %s1, 384, %s34, [#allocation6], 128, 128, 8
    $region9: #{tpu_custom_call.1} parent=1 // pred_fallthru
      _
    // Predicated region
    $region10: #{tpu_custom_call.1} parent=1 // pred_check
      _
    $region11: #{tpu_custom_call.1} parent=1 // pred_check_branch
      %41 = sbr.rel (0) target = $region13
    $region12: #{tpu_custom_call.1} parent=1 // pred_region
      _
    $region13: #{tpu_custom_call.1} parent=1 // pred_fallthru
      _
    // Predicated region
    $region14: #{tpu_custom_call.1} parent=1 // pred_check
      _
    $region15: #{tpu_custom_call.1} parent=1 // pred_check_branch
      %43 = sbr.rel (0) target = $region17
    $region16: #{tpu_custom_call.1} parent=1 // pred_region
      %s45 = ssub.s32 3072, 3072
      %46 = vsyncadd [#allocation9], %s45
      %s47 = sshll.u32 [#allocation8], 4
      %s48 = int_to_ptr.vmem [resolvable:$true] %s47
      %53 = dma.hbm_to_vmem [thread:$0]  %s3, 3072, %s48, [#allocation9], 128, 128, 8
    $region17: #{tpu_custom_call.1} parent=1 // pred_fallthru
      _
    // Predicated region
    $region18: #{tpu_custom_call.1} parent=1 // pred_check
      _
    $region19: #{tpu_custom_call.1} parent=1 // pred_check_branch
      %55 = sbr.rel (0) target = $region21
    $region20: #{tpu_custom_call.1} parent=1 // pred_region
      %s57 = ssub.s32 16, 16
      %58 = vsyncadd [#allocation9], %s57
      %s60 = sshll.u32 [#allocation10], 4
      %s61 = int_to_ptr.vmem [resolvable:$true] %s60
      %63 = dma.hbm_to_vmem [thread:$0]  %s4, 16, %s61, [#allocation9]
    $region21: #{tpu_custom_call.1} parent=1 // pred_fallthru
      _
    // Predicated region
    $region22: #{tpu_custom_call.1} parent=1 // pred_check
      _
    $region23: #{tpu_custom_call.1} parent=1 // pred_check_branch
      %65 = sbr.rel (0) target = $region25
    $region24: #{tpu_custom_call.1} parent=1 // pred_region
      %s67 = ssub.s32 12288, 12288
      %68 = vsyncadd [#allocation12], %s67
      %s69 = sshll.u32 [#allocation11], 4
      %s70 = int_to_ptr.vmem [resolvable:$true] %s69
      %75 = dma.hbm_to_vmem [thread:$0]  %s5, 12288, %s70, [#allocation12], 256, 256, 16
    $region25: #{tpu_custom_call.1} parent=1 // pred_fallthru
      _
    // Predicated region
    $region26: #{tpu_custom_call.1} parent=1 // pred_check
      _
    $region27: #{tpu_custom_call.1} parent=1 // pred_check_branch
      %77 = sbr.rel (0) target = $region29
    $region28: #{tpu_custom_call.1} parent=1 // pred_region
      _
    $region29: #{tpu_custom_call.1} parent=1 // pred_fallthru
      _
    // Predicated region
    $region30: #{tpu_custom_call.1} parent=1 // pred_check
      _
    $region31: #{tpu_custom_call.1} parent=1 // pred_check_branch
      %79 = sbr.rel (0) target = $region33
    $region32: #{tpu_custom_call.1} parent=1 // pred_region
      %s81 = ssub.s32 8192, 8192
      %82 = vsyncadd [#allocation12], %s81
      %s83 = sshll.u32 [#allocation13], 4
      %s84 = int_to_ptr.vmem [resolvable:$true] %s83
      %89 = dma.hbm_to_vmem [thread:$0]  %s7, 8192, %s84, [#allocation12], 256, 256, 16
    $region33: #{tpu_custom_call.1} parent=1 // pred_fallthru
      _
    // Predicated region
    $region34: #{tpu_custom_call.1} parent=1 // pred_check
      _
    $region35: #{tpu_custom_call.1} parent=1 // pred_check_branch
      %91 = sbr.rel (0) target = $region37
    $region36: #{tpu_custom_call.1} parent=1 // pred_region
      _
    $region37: #{tpu_custom_call.1} parent=1 // pred_fallthru
      _
    // Predicated region
    $region38: #{tpu_custom_call.1} parent=1 // pred_check
      _
    $region39: #{tpu_custom_call.1} parent=1 // pred_check_branch
      %93 = sbr.rel (0) target = $region41
    $region40: #{tpu_custom_call.1} parent=1 // pred_region
      %s95 = ssub.s32 32, 32
      %96 = vsyncadd [#allocation15], %s95
      %s98 = sshll.u32 [#allocation14], 4
      %s99 = int_to_ptr.vmem [resolvable:$true] %s98
      %101 = dma.hbm_to_vmem [thread:$0]  %s9, 32, %s99, [#allocation15]
    $region41: #{tpu_custom_call.1} parent=1 // pred_fallthru
      _
    // Predicated region
    $region42: #{tpu_custom_call.1} parent=1 // pred_check
      _
    $region43: #{tpu_custom_call.1} parent=1 // pred_check_branch
      %103 = sbr.rel (0) target = $region45
    $region44: #{tpu_custom_call.1} parent=1 // pred_region
      %s105 = ssub.s32 2048, 2048
      %106 = vsyncadd [#allocation15], %s105
      %s107 = sshll.u32 [#allocation16], 4
      %s108 = int_to_ptr.vmem [resolvable:$true] %s107
      %113 = dma.hbm_to_vmem [thread:$0]  %s10, 2048, %s108, [#allocation15], 256, 256, 16
    $region45: #{tpu_custom_call.1} parent=1 // pred_fallthru
      _
    // Predicated region
    $region46: #{tpu_custom_call.1} parent=1 // pred_check
      _
    $region47: #{tpu_custom_call.1} parent=1 // pred_check_branch
      %115 = sbr.rel (0) target = $region49
    $region48: #{tpu_custom_call.1} parent=1 // pred_region
      %s117 = ssub.s32 2048, 2048
      %118 = vsyncadd [#allocation18], %s117
      %s119 = sshll.u32 [#allocation17], 4
      %s120 = int_to_ptr.vmem [resolvable:$true] %s119
      %125 = dma.hbm_to_vmem [thread:$0]  %s11, 2048, %s120, [#allocation18], 256, 256, 16
    $region49: #{tpu_custom_call.1} parent=1 // pred_fallthru
      _
    // Predicated region
    $region50: #{tpu_custom_call.1} parent=1 // pred_check
      _
    $region51: #{tpu_custom_call.1} parent=1 // pred_check_branch
      %127 = sbr.rel (0) target = $region53
    $region52: #{tpu_custom_call.1} parent=1 // pred_region
      %s129 = ssub.s32 32, 32
      %130 = vsyncadd [#allocation18], %s129
      %s132 = sshll.u32 [#allocation19], 4
      %s133 = int_to_ptr.vmem [resolvable:$true] %s132
      %135 = dma.hbm_to_vmem [thread:$0]  %s12, 32, %s133, [#allocation18]
    $region53: #{tpu_custom_call.1} parent=1 // pred_fallthru
      _
    // Predicated region
    $region54: #{tpu_custom_call.1} parent=1 // pred_check
      _
    $region55: #{tpu_custom_call.1} parent=1 // pred_check_branch
      %137 = sbr.rel (0) target = $region57
    $region56: #{tpu_custom_call.1} parent=1 // pred_region
      _
    $region57: #{tpu_custom_call.1} parent=1 // pred_fallthru
      _
    // Predicated region
    $region58: #{tpu_custom_call.1} parent=1 // pred_check
      _
    $region59: #{tpu_custom_call.1} parent=1 // pred_check_branch
      %139 = sbr.rel (0) target = $region61
    $region60: #{tpu_custom_call.1} parent=1 // pred_region
      _
    $region61: #{tpu_custom_call.1} parent=1 // pred_fallthru
      _
    // Predicated region
    $region62: #{tpu_custom_call.1} parent=1 // pred_check
      _
    $region63: #{tpu_custom_call.1} parent=1 // pred_check_branch
      %141 = sbr.rel (0) target = $region65
    $region64: #{tpu_custom_call.1} parent=1 // pred_region
      %142 = dma.done [#allocation6], 384
    $region65: #{tpu_custom_call.1} parent=1 // pred_fallthru
      _
    // Predicated region
    $region66: #{tpu_custom_call.1} parent=1 // pred_check
      _
    $region67: #{tpu_custom_call.1} parent=1 // pred_check_branch
      %144 = sbr.rel (0) target = $region69
    $region68: #{tpu_custom_call.1} parent=1 // pred_region
      %145 = dma.done [#allocation9], 3072
    $region69: #{tpu_custom_call.1} parent=1 // pred_fallthru
      _
    // Predicated region
    $region70: #{tpu_custom_call.1} parent=1 // pred_check
      _
    $region71: #{tpu_custom_call.1} parent=1 // pred_check_branch
      %147 = sbr.rel (0) target = $region73
    $region72: #{tpu_custom_call.1} parent=1 // pred_region
      %148 = dma.done [#allocation9], 16
    $region73: #{tpu_custom_call.1} parent=1 // pred_fallthru
      _
    // Predicated region
    $region74: #{tpu_custom_call.1} parent=1 // pred_check
      _
    $region75: #{tpu_custom_call.1} parent=1 // pred_check_branch
      %150 = sbr.rel (0) target = $region77
    $region76: #{tpu_custom_call.1} parent=1 // pred_region
      %151 = dma.done [#allocation12], 12288
    $region77: #{tpu_custom_call.1} parent=1 // pred_fallthru
      _
    // Predicated region
    $region78: #{tpu_custom_call.1} parent=1 // pred_check
      _
    $region79: #{tpu_custom_call.1} parent=1 // pred_check_branch
      %153 = sbr.rel (0) target = $region81
    $region80: #{tpu_custom_call.1} parent=1 // pred_region
      %154 = dma.done [#allocation12], 8192
    $region81: #{tpu_custom_call.1} parent=1 // pred_fallthru
      _
    // Predicated region
    $region82: #{tpu_custom_call.1} parent=1 // pred_check
      _
    $region83: #{tpu_custom_call.1} parent=1 // pred_check_branch
      %156 = sbr.rel (0) target = $region85
    $region84: #{tpu_custom_call.1} parent=1 // pred_region
      %157 = dma.done [#allocation15], 32
    $region85: #{tpu_custom_call.1} parent=1 // pred_fallthru
      _
    // Predicated region
    $region86: #{tpu_custom_call.1} parent=1 // pred_check
      _
    $region87: #{tpu_custom_call.1} parent=1 // pred_check_branch
      %159 = sbr.rel (0) target = $region89
    $region88: #{tpu_custom_call.1} parent=1 // pred_region
      %160 = dma.done [#allocation15], 2048
    $region89: #{tpu_custom_call.1} parent=1 // pred_fallthru
      _
    // Predicated region
    $region90: #{tpu_custom_call.1} parent=1 // pred_check
      _
    $region91: #{tpu_custom_call.1} parent=1 // pred_check_branch
      %162 = sbr.rel (0) target = $region93
    $region92: #{tpu_custom_call.1} parent=1 // pred_region
      %163 = dma.done [#allocation18], 2048
    $region93: #{tpu_custom_call.1} parent=1 // pred_fallthru
      _
    // Predicated region
    $region94: #{tpu_custom_call.1} parent=1 // pred_check
      _
    $region95: #{tpu_custom_call.1} parent=1 // pred_check_branch
      %165 = sbr.rel (0) target = $region97
    $region96: #{tpu_custom_call.1} parent=1 // pred_region
      %166 = dma.done [#allocation18], 32
    $region97: #{tpu_custom_call.1} parent=1 // pred_fallthru
      _
    %v167 = vld [vmem:[%s0] sm:$0xff]
    %v168 = vld [vmem:[%s0 + $0x8] sm:$0xff]
    %v169 = vld [vmem:[%s0 + $0x10] sm:$0xff]
    %v170 = vld [vmem:[%s0 + $0x18] sm:$0xff]
    %v171 = vld [vmem:[%s0 + $0x20] sm:$0xff]
    %v172 = vld [vmem:[%s0 + $0x28] sm:$0xff]
    %v173 = vld [vmem:[%s0 + $0x30] sm:$0xff]
    %v174 = vld [vmem:[%s0 + $0x38] sm:$0xff]
    %v175 = vld [vmem:[%s0 + $0x40] sm:$0xff]
    %v176 = vld [vmem:[%s0 + $0x48] sm:$0xff]
    %v177 = vld [vmem:[%s0 + $0x50] sm:$0xff]
    %v178 = vld [vmem:[%s0 + $0x58] sm:$0xff]
    %v179 = vld [vmem:[%s0 + $0x60] sm:$0xff]
    %v180 = vld [vmem:[%s0 + $0x68] sm:$0xff]
    %v181 = vld [vmem:[%s0 + $0x70] sm:$0xff]
    %v182 = vld [vmem:[%s0 + $0x78] sm:$0xff]
    %v183 = vld [vmem:[#allocation5] sm:$0xff]
    %v184 = vld [vmem:[#allocation5 + $0x8] sm:$0xff]
    %v185 = vld [vmem:[#allocation5 + $0x10] sm:$0x3]
    %v186 = vld [vmem:[%s2] sm:$0x1]
    %v188 = vlaneseq
    %v189 = vshrl.u32 %v188, 7
    %v190 = vsub.s32 0, %v189
    %v191 = vrot.slane %v186, %v190
    %vm193 = vcmask 146432
    %v195 = vsel %vm193, %v167, 0
    %v198 = vsel %vm193, %v168, 0
    %v201 = vsel %vm193, %v169, 0
    %v204 = vsel %vm193, %v170, 0
    %v207 = vsel %vm193, %v171, 0
    %v210 = vsel %vm193, %v172, 0
    %v213 = vsel %vm193, %v173, 0
    %v216 = vsel %vm193, %v174, 0
    %v219 = vsel %vm193, %v175, 0
    %v222 = vsel %vm193, %v176, 0
    %v225 = vsel %vm193, %v177, 0
    %v228 = vsel %vm193, %v178, 0
    %v231 = vsel %vm193, %v179, 0
    %v234 = vsel %vm193, %v180, 0
    %v237 = vsel %vm193, %v181, 0
    %v240 = vsel %vm193, %v182, 0
    %vm242 = vcmask 1041408
    %v244 = vsel %vm242, %v185, 0
    %246 = vmatprep.subr.mxu0 0.0
    %247 = vmatpush1.msra.mxu0 %v183
    %248 = vmatprep.subr.mxu0 0.0
    %249 = vmatpush1.msra.mxu0 %v184
    %250 = vmatprep.subr.mxu0 0.0
    %251 = vmatpush1.msra.mxu0 %v244
    %252 = vmatprep.subr.mxu0 0.0
    %253 = vmatpush1.msra.mxu0 0.0
    %254 = vmatprep.subr.mxu0 0.0
    %255 = vmatpush1.msra.mxu0 0.0
    %256 = vmatprep.subr.mxu0 0.0
    %257 = vmatpush1.msra.mxu0 0.0
    %258 = vmatprep.subr.mxu0 0.0
    %259 = vmatpush1.msra.mxu0 0.0
    %260 = vmatprep.subr.mxu0 0.0
    %261 = vmatpush1.msra.mxu0 0.0
    %262 = vmatprep.subr.mxu0 0.0
    %263 = vmatpush1.msra.mxu0 0.0
    %264 = vmatprep.subr.mxu0 0.0
    %265 = vmatpush1.msra.mxu0 0.0
    %266 = vmatprep.subr.mxu0 0.0
    %267 = vmatpush1.msra.mxu0 0.0
    %268 = vmatprep.subr.mxu0 0.0
    %269 = vmatpush1.msra.mxu0 0.0
    %270 = vmatprep.subr.mxu0 0.0
    %271 = vmatpush1.msra.mxu0 0.0
    %272 = vmatprep.subr.mxu0 0.0
    %273 = vmatpush1.msra.mxu0 0.0
    %274 = vmatprep.subr.mxu0 0.0
    %275 = vmatpush1.msra.mxu0 0.0
    %276 = vmatprep.subr.mxu0 0.0
    %277 = vmatpush1.msra.mxu0 0.0
    %278 = vmatprep.subr.mxu0 0.0
    %279 = vmatpush1.msra.mxu0 0.0
    %280 = vmatprep.subr.mxu0 0.0
    %281 = vmatpush1.msra.mxu0 0.0
    %282 = vmatprep.subr.mxu0 0.0
    %283 = vmatpush1.msra.mxu0 0.0
    %284 = vmatprep.subr.mxu0 0.0
    %285 = vmatpush1.msra.mxu0 0.0
    %286 = vmatprep.subr.mxu0 0.0
    %287 = vmatpush1.msra.mxu0 0.0
    %288 = vmatprep.subr.mxu0 0.0
    %289 = vmatpush1.msra.mxu0 0.0
    %290 = vmatprep.subr.mxu0 0.0
    %291 = vmatpush1.msra.mxu0 0.0
    %292 = vmatprep.subr.mxu0 0.0
    %293 = vmatpush1.msra.mxu0 0.0
    %294 = vmatprep.subr.mxu0 0.0
    %295 = vmatpush1.msra.mxu0 0.0
    %296 = vmatprep.subr.mxu0 0.0
    %297 = vmatpush1.msra.mxu0 0.0
    %298 = vmatprep.subr.mxu0 0.0
    %299 = vmatpush1.msra.mxu0 0.0
    %300 = vmatprep.subr.mxu0 0.0
    %301 = vmatpush1.msra.mxu0 0.0
    %302 = vmatprep.subr.mxu0 0.0
    %303 = vmatpush1.msra.mxu0 0.0
    %304 = vmatprep.subr.mxu0 0.0
    %305 = vmatpush1.msra.mxu0 0.0
    %306 = vmatprep.subr.mxu0 0.0
    %307 = vmatpush1.msra.mxu0 0.0
    %308 = vmatprep.subr.mxu0 0.0
    %309 = vmatpush1.msra.mxu0 0.0
    %310 = vmatprep.mubr.f32.mxu0 0.0
    %311 = vmatmul.mubr.f32.gmra.mrb[0].mxu0 %v195
    %v312 = vpop.f32.mrb[0].mxu0
    %v313 = vadd.f32 %v191, %v312
    %v314 = vpop.f32.mrb[0].mxu0
    %315 = vmatprep.mubr.f32.mxu0 0.0
    %316 = vmatmul.mubr.f32.gmra.mrb[0].mxu0 %v198
    %v317 = vpop.f32.mrb[0].mxu0
    %v318 = vadd.f32 %v191, %v317
    %v319 = vpop.f32.mrb[0].mxu0
    %320 = vmatprep.mubr.f32.mxu0 0.0
    %321 = vmatmul.mubr.f32.gmra.mrb[0].mxu0 %v201
    %v322 = vpop.f32.mrb[0].mxu0
    %v323 = vadd.f32 %v191, %v322
    %v324 = vpop.f32.mrb[0].mxu0
    %325 = vmatprep.mubr.f32.mxu0 0.0
    %326 = vmatmul.mubr.f32.gmra.mrb[0].mxu0 %v204
    %v327 = vpop.f32.mrb[0].mxu0
    %v328 = vadd.f32 %v191, %v327
    %v329 = vpop.f32.mrb[0].mxu0
    %330 = vmatprep.mubr.f32.mxu0 0.0
    %331 = vmatmul.mubr.f32.gmra.mrb[0].mxu0 %v207
    %v332 = vpop.f32.mrb[0].mxu0
    %v333 = vadd.f32 %v191, %v332
    %v334 = vpop.f32.mrb[0].mxu0
    %335 = vmatprep.mubr.f32.mxu0 0.0
    %336 = vmatmul.mubr.f32.gmra.mrb[0].mxu0 %v210
    %v337 = vpop.f32.mrb[0].mxu0
    %v338 = vadd.f32 %v191, %v337
    %v339 = vpop.f32.mrb[0].mxu0
    %340 = vmatprep.mubr.f32.mxu0 0.0
    %341 = vmatmul.mubr.f32.gmra.mrb[0].mxu0 %v213
    %v342 = vpop.f32.mrb[0].mxu0
    %v343 = vadd.f32 %v191, %v342
    %v344 = vpop.f32.mrb[0].mxu0
    %345 = vmatprep.mubr.f32.mxu0 0.0
    %346 = vmatmul.mubr.f32.gmra.mrb[0].mxu0 %v216
    %v347 = vpop.f32.mrb[0].mxu0
    %v348 = vadd.f32 %v191, %v347
    %v349 = vpop.f32.mrb[0].mxu0
    %350 = vmatprep.mubr.f32.mxu0 0.0
    %351 = vmatmul.mubr.f32.gmra.mrb[0].mxu0 %v219
    %v352 = vpop.f32.mrb[0].mxu0
    %v353 = vadd.f32 %v191, %v352
    %v354 = vpop.f32.mrb[0].mxu0
    %355 = vmatprep.mubr.f32.mxu0 0.0
    %356 = vmatmul.mubr.f32.gmra.mrb[0].mxu0 %v222
    %v357 = vpop.f32.mrb[0].mxu0
    %v358 = vadd.f32 %v191, %v357
    %v359 = vpop.f32.mrb[0].mxu0
    %360 = vmatprep.mubr.f32.mxu0 0.0
    %361 = vmatmul.mubr.f32.gmra.mrb[0].mxu0 %v225
    %v362 = vpop.f32.mrb[0].mxu0
    %v363 = vadd.f32 %v191, %v362
    %v364 = vpop.f32.mrb[0].mxu0
    %365 = vmatprep.mubr.f32.mxu0 0.0
    %366 = vmatmul.mubr.f32.gmra.mrb[0].mxu0 %v228
    %v367 = vpop.f32.mrb[0].mxu0
    %v368 = vadd.f32 %v191, %v367
    %v369 = vpop.f32.mrb[0].mxu0
    %370 = vmatprep.mubr.f32.mxu0 0.0
    %371 = vmatmul.mubr.f32.gmra.mrb[0].mxu0 %v231
    %v372 = vpop.f32.mrb[0].mxu0
    %v373 = vadd.f32 %v191, %v372
    %v374 = vpop.f32.mrb[0].mxu0
    %375 = vmatprep.mubr.f32.mxu0 0.0
    %376 = vmatmul.mubr.f32.gmra.mrb[0].mxu0 %v234
    %v377 = vpop.f32.mrb[0].mxu0
    %v378 = vadd.f32 %v191, %v377
    %v379 = vpop.f32.mrb[0].mxu0
    %380 = vmatprep.mubr.f32.mxu0 0.0
    %381 = vmatmul.mubr.f32.gmra.mrb[0].mxu0 %v237
    %v382 = vpop.f32.mrb[0].mxu0
    %v383 = vadd.f32 %v191, %v382
    %v384 = vpop.f32.mrb[0].mxu0
    %385 = vmatprep.mubr.f32.mxu0 0.0
    %386 = vmatmul.mubr.f32.gmra.mrb[0].mxu0 %v240
    %v387 = vpop.f32.mrb[0].mxu0
    %v388 = vadd.f32 %v191, %v387
    %v389 = vpop.f32.mrb[0].mxu0
    %390 = vdwg.mxu0
    %vm391 = vcmp.gt.f32.partialorder %v313, 0.0
    %vm392 = vcmp.gt.f32.partialorder %v318, 0.0
    %vm393 = vcmp.gt.f32.partialorder %v323, 0.0
    %vm394 = vcmp.gt.f32.partialorder %v328, 0.0
    %vm395 = vcmp.gt.f32.partialorder %v333, 0.0
    %vm396 = vcmp.gt.f32.partialorder %v338, 0.0
    %vm397 = vcmp.gt.f32.partialorder %v343, 0.0
    %vm398 = vcmp.gt.f32.partialorder %v348, 0.0
    %vm399 = vcmp.gt.f32.partialorder %v353, 0.0
    %vm400 = vcmp.gt.f32.partialorder %v358, 0.0
    %vm401 = vcmp.gt.f32.partialorder %v363, 0.0
    %vm402 = vcmp.gt.f32.partialorder %v368, 0.0
    %vm403 = vcmp.gt.f32.partialorder %v373, 0.0
    %vm404 = vcmp.gt.f32.partialorder %v378, 0.0
    %vm405 = vcmp.gt.f32.partialorder %v383, 0.0
    %vm406 = vcmp.gt.f32.partialorder %v388, 0.0
    %v407 = vmul.f32 %v313, 0.1
    %v408 = vmul.f32 %v318, 0.1
    %v409 = vmul.f32 %v323, 0.1
    %v410 = vmul.f32 %v328, 0.1
    %v411 = vmul.f32 %v333, 0.1
    %v412 = vmul.f32 %v338, 0.1
    %v413 = vmul.f32 %v343, 0.1
    %v414 = vmul.f32 %v348, 0.1
    %v415 = vmul.f32 %v353, 0.1
    %v416 = vmul.f32 %v358, 0.1
    %v417 = vmul.f32 %v363, 0.1
    %v418 = vmul.f32 %v368, 0.1
    %v419 = vmul.f32 %v373, 0.1
    %v420 = vmul.f32 %v378, 0.1
    %v421 = vmul.f32 %v383, 0.1
    %v422 = vmul.f32 %v388, 0.1
    %v423 = vsel %vm391, %v313, %v407
    %v424 = vsel %vm392, %v318, %v408
    %v425 = vsel %vm393, %v323, %v409
    %v426 = vsel %vm394, %v328, %v410
    %v427 = vsel %vm395, %v333, %v411
    %v428 = vsel %vm396, %v338, %v412
    %v429 = vsel %vm397, %v343, %v413
    %v430 = vsel %vm398, %v348, %v414
    %v431 = vsel %vm399, %v353, %v415
    %v432 = vsel %vm400, %v358, %v416
    %v433 = vsel %vm401, %v363, %v417
    %v434 = vsel %vm402, %v368, %v418
    %v435 = vsel %vm403, %v373, %v419
    %v436 = vsel %vm404, %v378, %v420
    %v437 = vsel %vm405, %v383, %v421
    %v438 = vsel %vm406, %v388, %v422
    %vm439 = vcmask 523264
    %440 = vst.msk [vmem:[#allocation3] sm:$0xff] %vm439, 0.0
    %441 = vst.msk [vmem:[#allocation3 + $0x88] sm:$0xff] %vm439, 0.0
    %442 = vst.msk [vmem:[#allocation3 + $0x8] sm:$0xff] %vm439, %v423
    %443 = vst.msk [vmem:[#allocation3 + $0x10] sm:$0xff] %vm439, %v424
    %444 = vst.msk [vmem:[#allocation3 + $0x18] sm:$0xff] %vm439, %v425
    %445 = vst.msk [vmem:[#allocation3 + $0x20] sm:$0xff] %vm439, %v426
    %446 = vst.msk [vmem:[#allocation3 + $0x28] sm:$0xff] %vm439, %v427
    %447 = vst.msk [vmem:[#allocation3 + $0x30] sm:$0xff] %vm439, %v428
    %448 = vst.msk [vmem:[#allocation3 + $0x38] sm:$0xff] %vm439, %v429
    %449 = vst.msk [vmem:[#allocation3 + $0x40] sm:$0xff] %vm439, %v430
    %450 = vst.msk [vmem:[#allocation3 + $0x48] sm:$0xff] %vm439, %v431
    %451 = vst.msk [vmem:[#allocation3 + $0x50] sm:$0xff] %vm439, %v432
    %452 = vst.msk [vmem:[#allocation3 + $0x58] sm:$0xff] %vm439, %v433
    %453 = vst.msk [vmem:[#allocation3 + $0x60] sm:$0xff] %vm439, %v434
    %454 = vst.msk [vmem:[#allocation3 + $0x68] sm:$0xff] %vm439, %v435
    %455 = vst.msk [vmem:[#allocation3 + $0x70] sm:$0xff] %vm439, %v436
    %456 = vst.msk [vmem:[#allocation3 + $0x78] sm:$0xff] %vm439, %v437
    %457 = vst.msk [vmem:[#allocation3 + $0x80] sm:$0xff] %vm439, %v438
    %v458 = vld [vmem:[#allocation3] sm:$0xff]
    %v459 = vld [vmem:[#allocation3 + $0x8] sm:$0xff]
    %v460 = vld [vmem:[#allocation3 + $0x10] sm:$0xff]
    %v461 = vld [vmem:[#allocation3 + $0x18] sm:$0xff]
    %v462 = vld [vmem:[#allocation3 + $0x20] sm:$0xff]
    %v463 = vld [vmem:[#allocation3 + $0x28] sm:$0xff]
    %v464 = vld [vmem:[#allocation3 + $0x30] sm:$0xff]
    %v465 = vld [vmem:[#allocation3 + $0x38] sm:$0xff]
    %v466 = vld [vmem:[#allocation3 + $0x40] sm:$0xff]
    %v467 = vld [vmem:[#allocation3 + $0x48] sm:$0xff]
    %v468 = vld [vmem:[#allocation3 + $0x50] sm:$0xff]
    %v469 = vld [vmem:[#allocation3 + $0x58] sm:$0xff]
    %v470 = vld [vmem:[#allocation3 + $0x60] sm:$0xff]
    %v471 = vld [vmem:[#allocation3 + $0x68] sm:$0xff]
    %v472 = vld [vmem:[#allocation3 + $0x70] sm:$0xff]
    %v473 = vld [vmem:[#allocation3 + $0x78] sm:$0xff]
    %v474 = vld [vmem:[#allocation8] sm:$0xff]
    %v475 = vld [vmem:[#allocation8 + $0x8] sm:$0xff]
    %v476 = vld [vmem:[#allocation8 + $0x10] sm:$0xff]
    %v477 = vld [vmem:[#allocation8 + $0x18] sm:$0xff]
    %v478 = vld [vmem:[#allocation8 + $0x20] sm:$0xff]
    %v479 = vld [vmem:[#allocation8 + $0x28] sm:$0xff]
    %v480 = vld [vmem:[#allocation8 + $0x30] sm:$0xff]
    %v481 = vld [vmem:[#allocation8 + $0x38] sm:$0xff]
    %v482 = vld [vmem:[#allocation3 + $0x80] sm:$0xff]
    %v483 = vld [vmem:[#allocation8 + $0x40] sm:$0xff]
    %v484 = vld [vmem:[#allocation8 + $0x48] sm:$0xff]
    %v485 = vld [vmem:[#allocation8 + $0x50] sm:$0xff]
    %v486 = vld [vmem:[#allocation8 + $0x58] sm:$0xff]
    %v487 = vld [vmem:[#allocation8 + $0x60] sm:$0xff]
    %v488 = vld [vmem:[#allocation8 + $0x68] sm:$0xff]
    %v489 = vld [vmem:[#allocation8 + $0x70] sm:$0xff]
    %v490 = vld [vmem:[#allocation8 + $0x78] sm:$0xff]
    %v492 = vsel %vm439, %v459, 0
    %v495 = vsel %vm439, %v460, 0
    %v498 = vsel %vm439, %v461, 0
    %v501 = vsel %vm439, %v462, 0
    %v504 = vsel %vm439, %v463, 0
    %v507 = vsel %vm439, %v464, 0
    %v510 = vsel %vm439, %v465, 0
    %v513 = vsel %vm439, %v466, 0
    %v516 = vsel %vm439, %v467, 0
    %v519 = vsel %vm439, %v468, 0
    %v522 = vsel %vm439, %v469, 0
    %v525 = vsel %vm439, %v470, 0
    %v528 = vsel %vm439, %v471, 0
    %v531 = vsel %vm439, %v472, 0
    %v534 = vsel %vm439, %v473, 0
    %v537 = vsel %vm439, %v482, 0
    %539 = vmatprep.subr.mxu0 0.0
    %540 = vmatpush1.msra.mxu0 %v483
    %541 = vmatprep.subr.mxu0 0.0
    %542 = vmatpush1.msra.mxu0 %v484
    %543 = vmatprep.subr.mxu0 0.0
    %544 = vmatpush1.msra.mxu0 %v485
    %545 = vmatprep.subr.mxu0 0.0
    %546 = vmatpush1.msra.mxu0 %v486
    %547 = vmatprep.subr.mxu0 0.0
    %548 = vmatpush1.msra.mxu0 %v487
    %549 = vmatprep.subr.mxu0 0.0
    %550 = vmatpush1.msra.mxu0 %v488
    %551 = vmatprep.subr.mxu0 0.0
    %552 = vmatpush1.msra.mxu0 %v489
    %553 = vmatprep.subr.mxu0 0.0
    %554 = vmatpush1.msra.mxu0 %v490
    %555 = vmatprep.subr.mxu0 0.0
    %556 = vmatpush1.msra.mxu0 0.0
    %557 = vmatprep.subr.mxu0 0.0
    %558 = vmatpush1.msra.mxu0 0.0
    %559 = vmatprep.subr.mxu0 0.0
    %560 = vmatpush1.msra.mxu0 0.0
    %561 = vmatprep.subr.mxu0 0.0
    %562 = vmatpush1.msra.mxu0 0.0
    %563 = vmatprep.subr.mxu0 0.0
    %564 = vmatpush1.msra.mxu0 0.0
    %565 = vmatprep.subr.mxu0 0.0
    %566 = vmatpush1.msra.mxu0 0.0
    %567 = vmatprep.subr.mxu0 0.0
    %568 = vmatpush1.msra.mxu0 0.0
    %569 = vmatprep.subr.mxu0 0.0
    %570 = vmatpush1.msra.mxu0 0.0
    %571 = vmatprep.subr.mxu0 0.0
    %572 = vmatpush1.msra.mxu0 0.0
    %573 = vmatprep.subr.mxu0 0.0
    %574 = vmatpush1.msra.mxu0 0.0
    %575 = vmatprep.subr.mxu0 0.0
    %576 = vmatpush1.msra.mxu0 0.0
    %577 = vmatprep.subr.mxu0 0.0
    %578 = vmatpush1.msra.mxu0 0.0
    %579 = vmatprep.subr.mxu0 0.0
    %580 = vmatpush1.msra.mxu0 0.0
    %581 = vmatprep.subr.mxu0 0.0
    %582 = vmatpush1.msra.mxu0 0.0
    %583 = vmatprep.subr.mxu0 0.0
    %584 = vmatpush1.msra.mxu0 0.0
    %585 = vmatprep.subr.mxu0 0.0
    %586 = vmatpush1.msra.mxu0 0.0
    %587 = vmatprep.subr.mxu0 0.0
    %588 = vmatpush1.msra.mxu0 0.0
    %589 = vmatprep.subr.mxu0 0.0
    %590 = vmatpush1.msra.mxu0 0.0
    %591 = vmatprep.subr.mxu0 0.0
    %592 = vmatpush1.msra.mxu0 0.0
    %593 = vmatprep.subr.mxu0 0.0
    %594 = vmatpush1.msra.mxu0 0.0
    %595 = vmatprep.subr.mxu0 0.0
    %596 = vmatpush1.msra.mxu0 0.0
    %597 = vmatprep.subr.mxu0 0.0
    %598 = vmatpush1.msra.mxu0 0.0
    %599 = vmatprep.subr.mxu0 0.0
    %600 = vmatpush1.msra.mxu0 0.0
    %601 = vmatprep.subr.mxu0 0.0
    %602 = vmatpush1.msra.mxu0 0.0
    %603 = vmatprep.mubr.f32.mxu0 0.0
    %604 = vmatmul.mubr.f32.gmra.mrb[0].mxu0 %v492
    %v605 = vpop.f32.mrb[0].mxu0
    %v606 = vadd.f32 0.0, %v605
    %v607 = vpop.f32.mrb[0].mxu0
    %608 = vmatprep.mubr.f32.mxu0 0.0
    %609 = vmatmul.mubr.f32.gmra.mrb[0].mxu0 %v495
    %v610 = vpop.f32.mrb[0].mxu0
    %v611 = vadd.f32 0.0, %v610
    %v612 = vpop.f32.mrb[0].mxu0
    %613 = vmatprep.mubr.f32.mxu0 0.0
    %614 = vmatmul.mubr.f32.gmra.mrb[0].mxu0 %v498
    %v615 = vpop.f32.mrb[0].mxu0
    %v616 = vadd.f32 0.0, %v615
    %v617 = vpop.f32.mrb[0].mxu0
    %618 = vmatprep.mubr.f32.mxu0 0.0
    %619 = vmatmul.mubr.f32.gmra.mrb[0].mxu0 %v501
    %v620 = vpop.f32.mrb[0].mxu0
    %v621 = vadd.f32 0.0, %v620
    %v622 = vpop.f32.mrb[0].mxu0
    %623 = vmatprep.mubr.f32.mxu0 0.0
    %624 = vmatmul.mubr.f32.gmra.mrb[0].mxu0 %v504
    %v625 = vpop.f32.mrb[0].mxu0
    %v626 = vadd.f32 0.0, %v625
    %v627 = vpop.f32.mrb[0].mxu0
    %628 = vmatprep.mubr.f32.mxu0 0.0
    %629 = vmatmul.mubr.f32.gmra.mrb[0].mxu0 %v507
    %v630 = vpop.f32.mrb[0].mxu0
    %v631 = vadd.f32 0.0, %v630
    %v632 = vpop.f32.mrb[0].mxu0
    %633 = vmatprep.mubr.f32.mxu0 0.0
    %634 = vmatmul.mubr.f32.gmra.mrb[0].mxu0 %v510
    %v635 = vpop.f32.mrb[0].mxu0
    %v636 = vadd.f32 0.0, %v635
    %v637 = vpop.f32.mrb[0].mxu0
    %638 = vmatprep.mubr.f32.mxu0 0.0
    %639 = vmatmul.mubr.f32.gmra.mrb[0].mxu0 %v513
    %v640 = vpop.f32.mrb[0].mxu0
    %v641 = vadd.f32 0.0, %v640
    %v642 = vpop.f32.mrb[0].mxu0
    %643 = vmatprep.mubr.f32.mxu0 0.0
    %644 = vmatmul.mubr.f32.gmra.mrb[0].mxu0 %v516
    %v645 = vpop.f32.mrb[0].mxu0
    %v646 = vadd.f32 0.0, %v645
    %v647 = vpop.f32.mrb[0].mxu0
    %648 = vmatprep.mubr.f32.mxu0 0.0
    %649 = vmatmul.mubr.f32.gmra.mrb[0].mxu0 %v519
    %v650 = vpop.f32.mrb[0].mxu0
    %v651 = vadd.f32 0.0, %v650
    %v652 = vpop.f32.mrb[0].mxu0
    %653 = vmatprep.mubr.f32.mxu0 0.0
    %654 = vmatmul.mubr.f32.gmra.mrb[0].mxu0 %v522
    %v655 = vpop.f32.mrb[0].mxu0
    %v656 = vadd.f32 0.0, %v655
    %v657 = vpop.f32.mrb[0].mxu0
    %658 = vmatprep.mubr.f32.mxu0 0.0
    %659 = vmatmul.mubr.f32.gmra.mrb[0].mxu0 %v525
    %v660 = vpop.f32.mrb[0].mxu0
    %v661 = vadd.f32 0.0, %v660
    %v662 = vpop.f32.mrb[0].mxu0
    %663 = vmatprep.mubr.f32.mxu0 0.0
    %664 = vmatmul.mubr.f32.gmra.mrb[0].mxu0 %v528
    %v665 = vpop.f32.mrb[0].mxu0
    %v666 = vadd.f32 0.0, %v665
    %v667 = vpop.f32.mrb[0].mxu0
    %668 = vmatprep.mubr.f32.mxu0 0.0
    %669 = vmatmul.mubr.f32.gmra.mrb[0].mxu0 %v531
    %v670 = vpop.f32.mrb[0].mxu0
    %v671 = vadd.f32 0.0, %v670
    %v672 = vpop.f32.mrb[0].mxu0
    %673 = vmatprep.mubr.f32.mxu0 0.0
    %674 = vmatmul.mubr.f32.gmra.mrb[0].mxu0 %v534
    %v675 = vpop.f32.mrb[0].mxu0
    %v676 = vadd.f32 0.0, %v675
    %v677 = vpop.f32.mrb[0].mxu0
    %678 = vmatprep.mubr.f32.mxu0 0.0
    %679 = vmatmul.mubr.f32.gmra.mrb[0].mxu0 %v537
    %v680 = vpop.f32.mrb[0].mxu0
    %v681 = vadd.f32 0.0, %v680
    %v682 = vpop.f32.mrb[0].mxu0
    %683 = vdwg.mxu0
    %v685 = vsel %vm439, %v458, 0
    %687 = vmatprep.subr.mxu0 0.0
    %688 = vmatpush1.msra.mxu0 %v474
    %689 = vmatprep.subr.mxu0 0.0
    %690 = vmatpush1.msra.mxu0 %v475
    %691 = vmatprep.subr.mxu0 0.0
    %692 = vmatpush1.msra.mxu0 %v476
    %693 = vmatprep.subr.mxu0 0.0
    %694 = vmatpush1.msra.mxu0 %v477
    %695 = vmatprep.subr.mxu0 0.0
    %696 = vmatpush1.msra.mxu0 %v478
    %697 = vmatprep.subr.mxu0 0.0
    %698 = vmatpush1.msra.mxu0 %v479
    %699 = vmatprep.subr.mxu0 0.0
    %700 = vmatpush1.msra.mxu0 %v480
    %701 = vmatprep.subr.mxu0 0.0
    %702 = vmatpush1.msra.mxu0 %v481
    %703 = vmatprep.subr.mxu0 0.0
    %704 = vmatpush1.msra.mxu0 0.0
    %705 = vmatprep.subr.mxu0 0.0
    %706 = vmatpush1.msra.mxu0 0.0
    %707 = vmatprep.subr.mxu0 0.0
    %708 = vmatpush1.msra.mxu0 0.0
    %709 = vmatprep.subr.mxu0 0.0
    %710 = vmatpush1.msra.mxu0 0.0
    %711 = vmatprep.subr.mxu0 0.0
    %712 = vmatpush1.msra.mxu0 0.0
    %713 = vmatprep.subr.mxu0 0.0
    %714 = vmatpush1.msra.mxu0 0.0
    %715 = vmatprep.subr.mxu0 0.0
    %716 = vmatpush1.msra.mxu0 0.0
    %717 = vmatprep.subr.mxu0 0.0
    %718 = vmatpush1.msra.mxu0 0.0
    %719 = vmatprep.subr.mxu0 0.0
    %720 = vmatpush1.msra.mxu0 0.0
    %721 = vmatprep.subr.mxu0 0.0
    %722 = vmatpush1.msra.mxu0 0.0
    %723 = vmatprep.subr.mxu0 0.0
    %724 = vmatpush1.msra.mxu0 0.0
    %725 = vmatprep.subr.mxu0 0.0
    %726 = vmatpush1.msra.mxu0 0.0
    %727 = vmatprep.subr.mxu0 0.0
    %728 = vmatpush1.msra.mxu0 0.0
    %729 = vmatprep.subr.mxu0 0.0
    %730 = vmatpush1.msra.mxu0 0.0
    %731 = vmatprep.subr.mxu0 0.0
    %732 = vmatpush1.msra.mxu0 0.0
    %733 = vmatprep.subr.mxu0 0.0
    %734 = vmatpush1.msra.mxu0 0.0
    %735 = vmatprep.subr.mxu0 0.0
    %736 = vmatpush1.msra.mxu0 0.0
    %737 = vmatprep.subr.mxu0 0.0
    %738 = vmatpush1.msra.mxu0 0.0
    %739 = vmatprep.subr.mxu0 0.0
    %740 = vmatpush1.msra.mxu0 0.0
    %741 = vmatprep.subr.mxu0 0.0
    %742 = vmatpush1.msra.mxu0 0.0
    %743 = vmatprep.subr.mxu0 0.0
    %744 = vmatpush1.msra.mxu0 0.0
    %745 = vmatprep.subr.mxu0 0.0
    %746 = vmatpush1.msra.mxu0 0.0
    %747 = vmatprep.subr.mxu0 0.0
    %748 = vmatpush1.msra.mxu0 0.0
    %749 = vmatprep.subr.mxu0 0.0
    %750 = vmatpush1.msra.mxu0 0.0
    %751 = vmatprep.mubr.f32.mxu0 0.0
    %752 = vmatmul.mubr.f32.gmra.mrb[0].mxu0 %v685
    %v753 = vpop.f32.mrb[0].mxu0
    %v754 = vadd.f32 %v606, %v753
    %v755 = vpop.f32.mrb[0].mxu0
    %756 = vmatprep.mubr.f32.mxu0 0.0
    %757 = vmatmul.mubr.f32.gmra.mrb[0].mxu0 %v492
    %v758 = vpop.f32.mrb[0].mxu0
    %v759 = vadd.f32 %v611, %v758
    %v760 = vpop.f32.mrb[0].mxu0
    %761 = vmatprep.mubr.f32.mxu0 0.0
    %762 = vmatmul.mubr.f32.gmra.mrb[0].mxu0 %v495
    %v763 = vpop.f32.mrb[0].mxu0
    %v764 = vadd.f32 %v616, %v763
    %v765 = vpop.f32.mrb[0].mxu0
    %766 = vmatprep.mubr.f32.mxu0 0.0
    %767 = vmatmul.mubr.f32.gmra.mrb[0].mxu0 %v498
    %v768 = vpop.f32.mrb[0].mxu0
    %v769 = vadd.f32 %v621, %v768
    %v770 = vpop.f32.mrb[0].mxu0
    %771 = vmatprep.mubr.f32.mxu0 0.0
    %772 = vmatmul.mubr.f32.gmra.mrb[0].mxu0 %v501
    %v773 = vpop.f32.mrb[0].mxu0
    %v774 = vadd.f32 %v626, %v773
    %v775 = vpop.f32.mrb[0].mxu0
    %776 = vmatprep.mubr.f32.mxu0 0.0
    %777 = vmatmul.mubr.f32.gmra.mrb[0].mxu0 %v504
    %v778 = vpop.f32.mrb[0].mxu0
    %v779 = vadd.f32 %v631, %v778
    %v780 = vpop.f32.mrb[0].mxu0
    %781 = vmatprep.mubr.f32.mxu0 0.0
    %782 = vmatmul.mubr.f32.gmra.mrb[0].mxu0 %v507
    %v783 = vpop.f32.mrb[0].mxu0
    %v784 = vadd.f32 %v636, %v783
    %v785 = vpop.f32.mrb[0].mxu0
    %786 = vmatprep.mubr.f32.mxu0 0.0
    %787 = vmatmul.mubr.f32.gmra.mrb[0].mxu0 %v510
    %v788 = vpop.f32.mrb[0].mxu0
    %v789 = vadd.f32 %v641, %v788
    %v790 = vpop.f32.mrb[0].mxu0
    %791 = vmatprep.mubr.f32.mxu0 0.0
    %792 = vmatmul.mubr.f32.gmra.mrb[0].mxu0 %v513
    %v793 = vpop.f32.mrb[0].mxu0
    %v794 = vadd.f32 %v646, %v793
    %v795 = vpop.f32.mrb[0].mxu0
    %796 = vmatprep.mubr.f32.mxu0 0.0
    %797 = vmatmul.mubr.f32.gmra.mrb[0].mxu0 %v516
    %v798 = vpop.f32.mrb[0].mxu0
    %v799 = vadd.f32 %v651, %v798
    %v800 = vpop.f32.mrb[0].mxu0
    %801 = vmatprep.mubr.f32.mxu0 0.0
    %802 = vmatmul.mubr.f32.gmra.mrb[0].mxu0 %v519
    %v803 = vpop.f32.mrb[0].mxu0
    %v804 = vadd.f32 %v656, %v803
    %v805 = vpop.f32.mrb[0].mxu0
    %806 = vmatprep.mubr.f32.mxu0 0.0
    %807 = vmatmul.mubr.f32.gmra.mrb[0].mxu0 %v522
    %v808 = vpop.f32.mrb[0].mxu0
    %v809 = vadd.f32 %v661, %v808
    %v810 = vpop.f32.mrb[0].mxu0
    %811 = vmatprep.mubr.f32.mxu0 0.0
    %812 = vmatmul.mubr.f32.gmra.mrb[0].mxu0 %v525
    %v813 = vpop.f32.mrb[0].mxu0
    %v814 = vadd.f32 %v666, %v813
    %v815 = vpop.f32.mrb[0].mxu0
    %816 = vmatprep.mubr.f32.mxu0 0.0
    %817 = vmatmul.mubr.f32.gmra.mrb[0].mxu0 %v528
    %v818 = vpop.f32.mrb[0].mxu0
    %v819 = vadd.f32 %v671, %v818
    %v820 = vpop.f32.mrb[0].mxu0
    %821 = vmatprep.mubr.f32.mxu0 0.0
    %822 = vmatmul.mubr.f32.gmra.mrb[0].mxu0 %v531
    %v823 = vpop.f32.mrb[0].mxu0
    %v824 = vadd.f32 %v676, %v823
    %v825 = vpop.f32.mrb[0].mxu0
    %826 = vmatprep.mubr.f32.mxu0 0.0
    %827 = vmatmul.mubr.f32.gmra.mrb[0].mxu0 %v534
    %v828 = vpop.f32.mrb[0].mxu0
    %v829 = vadd.f32 %v681, %v828
    %v830 = vpop.f32.mrb[0].mxu0
    %831 = vdwg.mxu0
    %v832 = vld [vmem:[#allocation3 + $0x10] sm:$0xff]
    %v833 = vld [vmem:[#allocation3 + $0x18] sm:$0xff]
    %v834 = vld [vmem:[#allocation3 + $0x20] sm:$0xff]
    %v835 = vld [vmem:[#allocation3 + $0x28] sm:$0xff]
    %v836 = vld [vmem:[#allocation3 + $0x30] sm:$0xff]
    %v837 = vld [vmem:[#allocation3 + $0x38] sm:$0xff]
    %v838 = vld [vmem:[#allocation3 + $0x40] sm:$0xff]
    %v839 = vld [vmem:[#allocation3 + $0x48] sm:$0xff]
    %v840 = vld [vmem:[#allocation3 + $0x50] sm:$0xff]
    %v841 = vld [vmem:[#allocation3 + $0x58] sm:$0xff]
    %v842 = vld [vmem:[#allocation3 + $0x60] sm:$0xff]
    %v843 = vld [vmem:[#allocation3 + $0x68] sm:$0xff]
    %v844 = vld [vmem:[#allocation3 + $0x70] sm:$0xff]
    %v845 = vld [vmem:[#allocation3 + $0x78] sm:$0xff]
    %v846 = vld [vmem:[#allocation3 + $0x80] sm:$0xff]
    %v847 = vld [vmem:[#allocation3 + $0x88] sm:$0xff]
    %v848 = vld [vmem:[#allocation8 + $0x80] sm:$0xff]
    %v849 = vld [vmem:[#allocation8 + $0x88] sm:$0xff]
    %v850 = vld [vmem:[#allocation8 + $0x90] sm:$0xff]
    %v851 = vld [vmem:[#allocation8 + $0x98] sm:$0xff]
    %v852 = vld [vmem:[#allocation8 + $0xa0] sm:$0xff]
    %v853 = vld [vmem:[#allocation8 + $0xa8] sm:$0xff]
    %v854 = vld [vmem:[#allocation8 + $0xb0] sm:$0xff]
    %v855 = vld [vmem:[#allocation8 + $0xb8] sm:$0xff]
    %v857 = vsel %vm439, %v832, 0
    %v860 = vsel %vm439, %v833, 0
    %v863 = vsel %vm439, %v834, 0
    %v866 = vsel %vm439, %v835, 0
    %v869 = vsel %vm439, %v836, 0
    %v872 = vsel %vm439, %v837, 0
    %v875 = vsel %vm439, %v838, 0
    %v878 = vsel %vm439, %v839, 0
    %v881 = vsel %vm439, %v840, 0
    %v884 = vsel %vm439, %v841, 0
    %v887 = vsel %vm439, %v842, 0
    %v890 = vsel %vm439, %v843, 0
    %v893 = vsel %vm439, %v844, 0
    %v896 = vsel %vm439, %v845, 0
    %v899 = vsel %vm439, %v846, 0
    %v902 = vsel %vm439, %v847, 0
    %904 = vmatprep.subr.mxu0 0.0
    %905 = vmatpush1.msra.mxu0 %v848
    %906 = vmatprep.subr.mxu0 0.0
    %907 = vmatpush1.msra.mxu0 %v849
    %908 = vmatprep.subr.mxu0 0.0
    %909 = vmatpush1.msra.mxu0 %v850
    %910 = vmatprep.subr.mxu0 0.0
    %911 = vmatpush1.msra.mxu0 %v851
    %912 = vmatprep.subr.mxu0 0.0
    %913 = vmatpush1.msra.mxu0 %v852
    %914 = vmatprep.subr.mxu0 0.0
    %915 = vmatpush1.msra.mxu0 %v853
    %916 = vmatprep.subr.mxu0 0.0
    %917 = vmatpush1.msra.mxu0 %v854
    %918 = vmatprep.subr.mxu0 0.0
    %919 = vmatpush1.msra.mxu0 %v855
    %920 = vmatprep.subr.mxu0 0.0
    %921 = vmatpush1.msra.mxu0 0.0
    %922 = vmatprep.subr.mxu0 0.0
    %923 = vmatpush1.msra.mxu0 0.0
    %924 = vmatprep.subr.mxu0 0.0
    %925 = vmatpush1.msra.mxu0 0.0
    %926 = vmatprep.subr.mxu0 0.0
    %927 = vmatpush1.msra.mxu0 0.0
    %928 = vmatprep.subr.mxu0 0.0
    %929 = vmatpush1.msra.mxu0 0.0
    %930 = vmatprep.subr.mxu0 0.0
    %931 = vmatpush1.msra.mxu0 0.0
    %932 = vmatprep.subr.mxu0 0.0
    %933 = vmatpush1.msra.mxu0 0.0
    %934 = vmatprep.subr.mxu0 0.0
    %935 = vmatpush1.msra.mxu0 0.0
    %936 = vmatprep.subr.mxu0 0.0
    %937 = vmatpush1.msra.mxu0 0.0
    %938 = vmatprep.subr.mxu0 0.0
    %939 = vmatpush1.msra.mxu0 0.0
    %940 = vmatprep.subr.mxu0 0.0
    %941 = vmatpush1.msra.mxu0 0.0
    %942 = vmatprep.subr.mxu0 0.0
    %943 = vmatpush1.msra.mxu0 0.0
    %944 = vmatprep.subr.mxu0 0.0
    %945 = vmatpush1.msra.mxu0 0.0
    %946 = vmatprep.subr.mxu0 0.0
    %947 = vmatpush1.msra.mxu0 0.0
    %948 = vmatprep.subr.mxu0 0.0
    %949 = vmatpush1.msra.mxu0 0.0
    %950 = vmatprep.subr.mxu0 0.0
    %951 = vmatpush1.msra.mxu0 0.0
    %952 = vmatprep.subr.mxu0 0.0
    %953 = vmatpush1.msra.mxu0 0.0
    %954 = vmatprep.subr.mxu0 0.0
    %955 = vmatpush1.msra.mxu0 0.0
    %956 = vmatprep.subr.mxu0 0.0
    %957 = vmatpush1.msra.mxu0 0.0
    %958 = vmatprep.subr.mxu0 0.0
    %959 = vmatpush1.msra.mxu0 0.0
    %960 = vmatprep.subr.mxu0 0.0
    %961 = vmatpush1.msra.mxu0 0.0
    %962 = vmatprep.subr.mxu0 0.0
    %963 = vmatpush1.msra.mxu0 0.0
    %964 = vmatprep.subr.mxu0 0.0
    %965 = vmatpush1.msra.mxu0 0.0
    %966 = vmatprep.subr.mxu0 0.0
    %967 = vmatpush1.msra.mxu0 0.0
    %968 = vmatprep.mubr.f32.mxu0 0.0
    %969 = vmatmul.mubr.f32.gmra.mrb[0].mxu0 %v857
    %v970 = vpop.f32.mrb[0].mxu0
    %v971 = vadd.f32 0.0, %v970
    %v972 = vpop.f32.mrb[0].mxu0
    %973 = vmatprep.mubr.f32.mxu0 0.0
    %974 = vmatmul.mubr.f32.gmra.mrb[0].mxu0 %v860
    %v975 = vpop.f32.mrb[0].mxu0
    %v976 = vadd.f32 0.0, %v975
    %v977 = vpop.f32.mrb[0].mxu0
    %978 = vmatprep.mubr.f32.mxu0 0.0
    %979 = vmatmul.mubr.f32.gmra.mrb[0].mxu0 %v863
    %v980 = vpop.f32.mrb[0].mxu0
    %v981 = vadd.f32 0.0, %v980
    %v982 = vpop.f32.mrb[0].mxu0
    %983 = vmatprep.mubr.f32.mxu0 0.0
    %984 = vmatmul.mubr.f32.gmra.mrb[0].mxu0 %v866
    %v985 = vpop.f32.mrb[0].mxu0
    %v986 = vadd.f32 0.0, %v985
    %v987 = vpop.f32.mrb[0].mxu0
    %988 = vmatprep.mubr.f32.mxu0 0.0
    %989 = vmatmul.mubr.f32.gmra.mrb[0].mxu0 %v869
    %v990 = vpop.f32.mrb[0].mxu0
    %v991 = vadd.f32 0.0, %v990
    %v992 = vpop.f32.mrb[0].mxu0
    %993 = vmatprep.mubr.f32.mxu0 0.0
    %994 = vmatmul.mubr.f32.gmra.mrb[0].mxu0 %v872
    %v995 = vpop.f32.mrb[0].mxu0
    %v996 = vadd.f32 0.0, %v995
    %v997 = vpop.f32.mrb[0].mxu0
    %998 = vmatprep.mubr.f32.mxu0 0.0
    %999 = vmatmul.mubr.f32.gmra.mrb[0].mxu0 %v875
    %v1000 = vpop.f32.mrb[0].mxu0
    %v1001 = vadd.f32 0.0, %v1000
    %v1002 = vpop.f32.mrb[0].mxu0
    %1003 = vmatprep.mubr.f32.mxu0 0.0
    %1004 = vmatmul.mubr.f32.gmra.mrb[0].mxu0 %v878
    %v1005 = vpop.f32.mrb[0].mxu0
    %v1006 = vadd.f32 0.0, %v1005
    %v1007 = vpop.f32.mrb[0].mxu0
    %1008 = vmatprep.mubr.f32.mxu0 0.0
    %1009 = vmatmul.mubr.f32.gmra.mrb[0].mxu0 %v881
    %v1010 = vpop.f32.mrb[0].mxu0
    %v1011 = vadd.f32 0.0, %v1010
    %v1012 = vpop.f32.mrb[0].mxu0
    %1013 = vmatprep.mubr.f32.mxu0 0.0
    %1014 = vmatmul.mubr.f32.gmra.mrb[0].mxu0 %v884
    %v1015 = vpop.f32.mrb[0].mxu0
    %v1016 = vadd.f32 0.0, %v1015
    %v1017 = vpop.f32.mrb[0].mxu0
    %1018 = vmatprep.mubr.f32.mxu0 0.0
    %1019 = vmatmul.mubr.f32.gmra.mrb[0].mxu0 %v887
    %v1020 = vpop.f32.mrb[0].mxu0
    %v1021 = vadd.f32 0.0, %v1020
    %v1022 = vpop.f32.mrb[0].mxu0
    %1023 = vmatprep.mubr.f32.mxu0 0.0
    %1024 = vmatmul.mubr.f32.gmra.mrb[0].mxu0 %v890
    %v1025 = vpop.f32.mrb[0].mxu0
    %v1026 = vadd.f32 0.0, %v1025
    %v1027 = vpop.f32.mrb[0].mxu0
    %1028 = vmatprep.mubr.f32.mxu0 0.0
    %1029 = vmatmul.mubr.f32.gmra.mrb[0].mxu0 %v893
    %v1030 = vpop.f32.mrb[0].mxu0
    %v1031 = vadd.f32 0.0, %v1030
    %v1032 = vpop.f32.mrb[0].mxu0
    %1033 = vmatprep.mubr.f32.mxu0 0.0
    %1034 = vmatmul.mubr.f32.gmra.mrb[0].mxu0 %v896
    %v1035 = vpop.f32.mrb[0].mxu0
    %v1036 = vadd.f32 0.0, %v1035
    %v1037 = vpop.f32.mrb[0].mxu0
    %1038 = vmatprep.mubr.f32.mxu0 0.0
    %1039 = vmatmul.mubr.f32.gmra.mrb[0].mxu0 %v899
    %v1040 = vpop.f32.mrb[0].mxu0
    %v1041 = vadd.f32 0.0, %v1040
    %v1042 = vpop.f32.mrb[0].mxu0
    %1043 = vmatprep.mubr.f32.mxu0 0.0
    %1044 = vmatmul.mubr.f32.gmra.mrb[0].mxu0 %v902
    %v1045 = vpop.f32.mrb[0].mxu0
    %v1046 = vadd.f32 0.0, %v1045
    %v1047 = vpop.f32.mrb[0].mxu0
    %1048 = vdwg.mxu0
    %v1049 = vadd.f32 %v754, %v971
    %v1050 = vadd.f32 %v759, %v976
    %v1051 = vadd.f32 %v764, %v981
    %v1052 = vadd.f32 %v769, %v986
    %v1053 = vadd.f32 %v774, %v991
    %v1054 = vadd.f32 %v779, %v996
    %v1055 = vadd.f32 %v784, %v1001
    %v1056 = vadd.f32 %v789, %v1006
    %v1057 = vadd.f32 %v794, %v1011
    %v1058 = vadd.f32 %v799, %v1016
    %v1059 = vadd.f32 %v804, %v1021
    %v1060 = vadd.f32 %v809, %v1026
    %v1061 = vadd.f32 %v814, %v1031
    %v1062 = vadd.f32 %v819, %v1036
    %v1063 = vadd.f32 %v824, %v1041
    %v1064 = vadd.f32 %v829, %v1046
    %v1065 = vld [vmem:[#allocation10] sm:$0x1]
    %v1067 = vlaneseq
    %v1068 = vshrl.u32 %v1067, 7
    %v1069 = vsub.s32 0, %v1068
    %v1070 = vrot.slane %v1065, %v1069
    %v1072 = vadd.f32 %v1049, %v1070
    %v1073 = vadd.f32 %v1050, %v1070
    %v1074 = vadd.f32 %v1051, %v1070
    %v1075 = vadd.f32 %v1052, %v1070
    %v1076 = vadd.f32 %v1053, %v1070
    %v1077 = vadd.f32 %v1054, %v1070
    %v1078 = vadd.f32 %v1055, %v1070
    %v1079 = vadd.f32 %v1056, %v1070
    %v1080 = vadd.f32 %v1057, %v1070
    %v1081 = vadd.f32 %v1058, %v1070
    %v1082 = vadd.f32 %v1059, %v1070
    %v1083 = vadd.f32 %v1060, %v1070
    %v1084 = vadd.f32 %v1061, %v1070
    %v1085 = vadd.f32 %v1062, %v1070
    %v1086 = vadd.f32 %v1063, %v1070
    %v1087 = vadd.f32 %v1064, %v1070
    %vm1088 = vcmp.gt.f32.partialorder %v1072, 0.0
    %vm1089 = vcmp.gt.f32.partialorder %v1073, 0.0
    %vm1090 = vcmp.gt.f32.partialorder %v1074, 0.0
    %vm1091 = vcmp.gt.f32.partialorder %v1075, 0.0
    %vm1092 = vcmp.gt.f32.partialorder %v1076, 0.0
    %vm1093 = vcmp.gt.f32.partialorder %v1077, 0.0
    %vm1094 = vcmp.gt.f32.partialorder %v1078, 0.0
    %vm1095 = vcmp.gt.f32.partialorder %v1079, 0.0
    %vm1096 = vcmp.gt.f32.partialorder %v1080, 0.0
    %vm1097 = vcmp.gt.f32.partialorder %v1081, 0.0
    %vm1098 = vcmp.gt.f32.partialorder %v1082, 0.0
    %vm1099 = vcmp.gt.f32.partialorder %v1083, 0.0
    %vm1100 = vcmp.gt.f32.partialorder %v1084, 0.0
    %vm1101 = vcmp.gt.f32.partialorder %v1085, 0.0
    %vm1102 = vcmp.gt.f32.partialorder %v1086, 0.0
    %vm1103 = vcmp.gt.f32.partialorder %v1087, 0.0
    %v1104 = vmul.f32 %v1072, 0.1
    %v1105 = vmul.f32 %v1073, 0.1
    %v1106 = vmul.f32 %v1074, 0.1
    %v1107 = vmul.f32 %v1075, 0.1
    %v1108 = vmul.f32 %v1076, 0.1
    %v1109 = vmul.f32 %v1077, 0.1
    %v1110 = vmul.f32 %v1078, 0.1
    %v1111 = vmul.f32 %v1079, 0.1
    %v1112 = vmul.f32 %v1080, 0.1
    %v1113 = vmul.f32 %v1081, 0.1
    %v1114 = vmul.f32 %v1082, 0.1
    %v1115 = vmul.f32 %v1083, 0.1
    %v1116 = vmul.f32 %v1084, 0.1
    %v1117 = vmul.f32 %v1085, 0.1
    %v1118 = vmul.f32 %v1086, 0.1
    %v1119 = vmul.f32 %v1087, 0.1
    %v1120 = vsel %vm1088, %v1072, %v1104
    %v1121 = vsel %vm1089, %v1073, %v1105
    %v1122 = vsel %vm1090, %v1074, %v1106
    %v1123 = vsel %vm1091, %v1075, %v1107
    %v1124 = vsel %vm1092, %v1076, %v1108
    %v1125 = vsel %vm1093, %v1077, %v1109
    %v1126 = vsel %vm1094, %v1078, %v1110
    %v1127 = vsel %vm1095, %v1079, %v1111
    %v1128 = vsel %vm1096, %v1080, %v1112
    %v1129 = vsel %vm1097, %v1081, %v1113
    %v1130 = vsel %vm1098, %v1082, %v1114
    %v1131 = vsel %vm1099, %v1083, %v1115
    %v1132 = vsel %vm1100, %v1084, %v1116
    %v1133 = vsel %vm1101, %v1085, %v1117
    %v1134 = vsel %vm1102, %v1086, %v1118
    %v1135 = vsel %vm1103, %v1087, %v1119
    %1136 = vst [vmem:[#allocation4] sm:$0xff] 0.0
    %1137 = vst [vmem:[#allocation4 + $0x88] sm:$0xff] 0.0
    %1138 = vst [vmem:[#allocation4 + $0x8] sm:$0xff] %v1120
    %1139 = vst [vmem:[#allocation4 + $0x10] sm:$0xff] %v1121
    %1140 = vst [vmem:[#allocation4 + $0x18] sm:$0xff] %v1122
    %1141 = vst [vmem:[#allocation4 + $0x20] sm:$0xff] %v1123
    %1142 = vst [vmem:[#allocation4 + $0x28] sm:$0xff] %v1124
    %1143 = vst [vmem:[#allocation4 + $0x30] sm:$0xff] %v1125
    %1144 = vst [vmem:[#allocation4 + $0x38] sm:$0xff] %v1126
    %1145 = vst [vmem:[#allocation4 + $0x40] sm:$0xff] %v1127
    %1146 = vst [vmem:[#allocation4 + $0x48] sm:$0xff] %v1128
    %1147 = vst [vmem:[#allocation4 + $0x50] sm:$0xff] %v1129
    %1148 = vst [vmem:[#allocation4 + $0x58] sm:$0xff] %v1130
    %1149 = vst [vmem:[#allocation4 + $0x60] sm:$0xff] %v1131
    %1150 = vst [vmem:[#allocation4 + $0x68] sm:$0xff] %v1132
    %1151 = vst [vmem:[#allocation4 + $0x70] sm:$0xff] %v1133
    %1152 = vst [vmem:[#allocation4 + $0x78] sm:$0xff] %v1134
    %1153 = vst [vmem:[#allocation4 + $0x80] sm:$0xff] %v1135
    %v1154 = vld [vmem:[#allocation4] sm:$0xff]
    %v1155 = vld [vmem:[#allocation4 + $0x8] sm:$0xff]
    %v1156 = vld [vmem:[#allocation4 + $0x10] sm:$0xff]
    %v1157 = vld [vmem:[#allocation4 + $0x18] sm:$0xff]
    %v1158 = vld [vmem:[#allocation4 + $0x20] sm:$0xff]
    %v1159 = vld [vmem:[#allocation4 + $0x28] sm:$0xff]
    %v1160 = vld [vmem:[#allocation4 + $0x30] sm:$0xff]
    %v1161 = vld [vmem:[#allocation4 + $0x38] sm:$0xff]
    %v1162 = vld [vmem:[#allocation4 + $0x40] sm:$0xff]
    %v1163 = vld [vmem:[#allocation4 + $0x48] sm:$0xff]
    %v1164 = vld [vmem:[#allocation4 + $0x50] sm:$0xff]
    %v1165 = vld [vmem:[#allocation4 + $0x58] sm:$0xff]
    %v1166 = vld [vmem:[#allocation4 + $0x60] sm:$0xff]
    %v1167 = vld [vmem:[#allocation4 + $0x68] sm:$0xff]
    %v1168 = vld [vmem:[#allocation4 + $0x70] sm:$0xff]
    %v1169 = vld [vmem:[#allocation4 + $0x78] sm:$0xff]
    %v1170 = vld [vmem:[#allocation11] sm:$0xff]
    %v1171 = vld [vmem:[#allocation11 + $0x8] sm:$0xff]
    %v1172 = vld [vmem:[#allocation11 + $0x10] sm:$0xff]
    %v1173 = vld [vmem:[#allocation11 + $0x18] sm:$0xff]
    %v1174 = vld [vmem:[#allocation11 + $0x20] sm:$0xff]
    %v1175 = vld [vmem:[#allocation11 + $0x28] sm:$0xff]
    %v1176 = vld [vmem:[#allocation11 + $0x30] sm:$0xff]
    %v1177 = vld [vmem:[#allocation11 + $0x38] sm:$0xff]
    %v1178 = vld [vmem:[#allocation11 + $0x40] sm:$0xff]
    %v1179 = vld [vmem:[#allocation11 + $0x48] sm:$0xff]
    %v1180 = vld [vmem:[#allocation11 + $0x50] sm:$0xff]
    %v1181 = vld [vmem:[#allocation11 + $0x58] sm:$0xff]
    %v1182 = vld [vmem:[#allocation11 + $0x60] sm:$0xff]
    %v1183 = vld [vmem:[#allocation11 + $0x68] sm:$0xff]
    %v1184 = vld [vmem:[#allocation11 + $0x70] sm:$0xff]
    %v1185 = vld [vmem:[#allocation11 + $0x78] sm:$0xff]
    %v1186 = vld [vmem:[#allocation11 + $0x80] sm:$0xff]
    %v1187 = vld [vmem:[#allocation11 + $0x88] sm:$0xff]
    %v1188 = vld [vmem:[#allocation11 + $0x90] sm:$0xff]
    %v1189 = vld [vmem:[#allocation11 + $0x98] sm:$0xff]
    %v1190 = vld [vmem:[#allocation11 + $0xa0] sm:$0xff]
    %v1191 = vld [vmem:[#allocation11 + $0xa8] sm:$0xff]
    %v1192 = vld [vmem:[#allocation11 + $0xb0] sm:$0xff]
    %v1193 = vld [vmem:[#allocation11 + $0xb8] sm:$0xff]
    %v1194 = vld [vmem:[#allocation11 + $0xc0] sm:$0xff]
    %v1195 = vld [vmem:[#allocation11 + $0xc8] sm:$0xff]
    %v1196 = vld [vmem:[#allocation11 + $0xd0] sm:$0xff]
    %v1197 = vld [vmem:[#allocation11 + $0xd8] sm:$0xff]
    %v1198 = vld [vmem:[#allocation11 + $0xe0] sm:$0xff]
    %v1199 = vld [vmem:[#allocation11 + $0xe8] sm:$0xff]
    %v1200 = vld [vmem:[#allocation11 + $0xf0] sm:$0xff]
    %v1201 = vld [vmem:[#allocation11 + $0xf8] sm:$0xff]
    %v1202 = vld [vmem:[#allocation4 + $0x80] sm:$0xff]
    %v1203 = vld [vmem:[#allocation11 + $0x100] sm:$0xff]
    %v1204 = vld [vmem:[#allocation11 + $0x108] sm:$0xff]
    %v1205 = vld [vmem:[#allocation11 + $0x110] sm:$0xff]
    %v1206 = vld [vmem:[#allocation11 + $0x118] sm:$0xff]
    %v1207 = vld [vmem:[#allocation11 + $0x120] sm:$0xff]
    %v1208 = vld [vmem:[#allocation11 + $0x128] sm:$0xff]
    %v1209 = vld [vmem:[#allocation11 + $0x130] sm:$0xff]
    %v1210 = vld [vmem:[#allocation11 + $0x138] sm:$0xff]
    %v1211 = vld [vmem:[#allocation11 + $0x140] sm:$0xff]
    %v1212 = vld [vmem:[#allocation11 + $0x148] sm:$0xff]
    %v1213 = vld [vmem:[#allocation11 + $0x150] sm:$0xff]
    %v1214 = vld [vmem:[#allocation11 + $0x158] sm:$0xff]
    %v1215 = vld [vmem:[#allocation11 + $0x160] sm:$0xff]
    %v1216 = vld [vmem:[#allocation11 + $0x168] sm:$0xff]
    %v1217 = vld [vmem:[#allocation11 + $0x170] sm:$0xff]
    %v1218 = vld [vmem:[#allocation11 + $0x178] sm:$0xff]
    %v1219 = vld [vmem:[#allocation11 + $0x180] sm:$0xff]
    %v1220 = vld [vmem:[#allocation11 + $0x188] sm:$0xff]
    %v1221 = vld [vmem:[#allocation11 + $0x190] sm:$0xff]
    %v1222 = vld [vmem:[#allocation11 + $0x198] sm:$0xff]
    %v1223 = vld [vmem:[#allocation11 + $0x1a0] sm:$0xff]
    %v1224 = vld [vmem:[#allocation11 + $0x1a8] sm:$0xff]
    %v1225 = vld [vmem:[#allocation11 + $0x1b0] sm:$0xff]
    %v1226 = vld [vmem:[#allocation11 + $0x1b8] sm:$0xff]
    %v1227 = vld [vmem:[#allocation11 + $0x1c0] sm:$0xff]
    %v1228 = vld [vmem:[#allocation11 + $0x1c8] sm:$0xff]
    %v1229 = vld [vmem:[#allocation11 + $0x1d0] sm:$0xff]
    %v1230 = vld [vmem:[#allocation11 + $0x1d8] sm:$0xff]
    %v1231 = vld [vmem:[#allocation11 + $0x1e0] sm:$0xff]
    %v1232 = vld [vmem:[#allocation11 + $0x1e8] sm:$0xff]
    %v1233 = vld [vmem:[#allocation11 + $0x1f0] sm:$0xff]
    %v1234 = vld [vmem:[#allocation11 + $0x1f8] sm:$0xff]
    %1235 = vmatprep.subr.mxu0 %v1204
    %1236 = vmatpush1.msra.mxu0 %v1203
    %1237 = vmatprep.subr.mxu0 %v1206
    %1238 = vmatpush1.msra.mxu0 %v1205
    %1239 = vmatprep.subr.mxu0 %v1208
    %1240 = vmatpush1.msra.mxu0 %v1207
    %1241 = vmatprep.subr.mxu0 %v1210
    %1242 = vmatpush1.msra.mxu0 %v1209
    %1243 = vmatprep.subr.mxu0 %v1212
    %1244 = vmatpush1.msra.mxu0 %v1211
    %1245 = vmatprep.subr.mxu0 %v1214
    %1246 = vmatpush1.msra.mxu0 %v1213
    %1247 = vmatprep.subr.mxu0 %v1216
    %1248 = vmatpush1.msra.mxu0 %v1215
    %1249 = vmatprep.subr.mxu0 %v1218
    %1250 = vmatpush1.msra.mxu0 %v1217
    %1251 = vmatprep.subr.mxu0 %v1220
    %1252 = vmatpush1.msra.mxu0 %v1219
    %1253 = vmatprep.subr.mxu0 %v1222
    %1254 = vmatpush1.msra.mxu0 %v1221
    %1255 = vmatprep.subr.mxu0 %v1224
    %1256 = vmatpush1.msra.mxu0 %v1223
    %1257 = vmatprep.subr.mxu0 %v1226
    %1258 = vmatpush1.msra.mxu0 %v1225
    %1259 = vmatprep.subr.mxu0 %v1228
    %1260 = vmatpush1.msra.mxu0 %v1227
    %1261 = vmatprep.subr.mxu0 %v1230
    %1262 = vmatpush1.msra.mxu0 %v1229
    %1263 = vmatprep.subr.mxu0 %v1232
    %1264 = vmatpush1.msra.mxu0 %v1231
    %1265 = vmatprep.subr.mxu0 %v1234
    %1266 = vmatpush1.msra.mxu0 %v1233
    %1267 = vmatprep.subr.mxu0 0.0
    %1268 = vmatpush1.msra.mxu0 0.0
    %1269 = vmatprep.subr.mxu0 0.0
    %1270 = vmatpush1.msra.mxu0 0.0
    %1271 = vmatprep.subr.mxu0 0.0
    %1272 = vmatpush1.msra.mxu0 0.0
    %1273 = vmatprep.subr.mxu0 0.0
    %1274 = vmatpush1.msra.mxu0 0.0
    %1275 = vmatprep.subr.mxu0 0.0
    %1276 = vmatpush1.msra.mxu0 0.0
    %1277 = vmatprep.subr.mxu0 0.0
    %1278 = vmatpush1.msra.mxu0 0.0
    %1279 = vmatprep.subr.mxu0 0.0
    %1280 = vmatpush1.msra.mxu0 0.0
    %1281 = vmatprep.subr.mxu0 0.0
    %1282 = vmatpush1.msra.mxu0 0.0
    %1283 = vmatprep.subr.mxu0 0.0
    %1284 = vmatpush1.msra.mxu0 0.0
    %1285 = vmatprep.subr.mxu0 0.0
    %1286 = vmatpush1.msra.mxu0 0.0
    %1287 = vmatprep.subr.mxu0 0.0
    %1288 = vmatpush1.msra.mxu0 0.0
    %1289 = vmatprep.subr.mxu0 0.0
    %1290 = vmatpush1.msra.mxu0 0.0
    %1291 = vmatprep.subr.mxu0 0.0
    %1292 = vmatpush1.msra.mxu0 0.0
    %1293 = vmatprep.subr.mxu0 0.0
    %1294 = vmatpush1.msra.mxu0 0.0
    %1295 = vmatprep.subr.mxu0 0.0
    %1296 = vmatpush1.msra.mxu0 0.0
    %1297 = vmatprep.subr.mxu0 0.0
    %1298 = vmatpush1.msra.mxu0 0.0
    %1299 = vmatprep.mubr.f32.mxu0 0.0
    %1300 = vmatmul.mubr.f32.gmra.mrb[0].mxu0 %v1155
    %v1301 = vpop.f32.mrb[0].mxu0
    %v1302 = vadd.f32 0.0, %v1301
    %v1303 = vpop.f32.mrb[0].mxu0
    %v1304 = vadd.f32 0.0, %v1303
    %1305 = vmatprep.mubr.f32.mxu0 0.0
    %1306 = vmatmul.mubr.f32.gmra.mrb[0].mxu0 %v1156
    %v1307 = vpop.f32.mrb[0].mxu0
    %v1308 = vadd.f32 0.0, %v1307
    %v1309 = vpop.f32.mrb[0].mxu0
    %v1310 = vadd.f32 0.0, %v1309
    %1311 = vmatprep.mubr.f32.mxu0 0.0
    %1312 = vmatmul.mubr.f32.gmra.mrb[0].mxu0 %v1157
    %v1313 = vpop.f32.mrb[0].mxu0
    %v1314 = vadd.f32 0.0, %v1313
    %v1315 = vpop.f32.mrb[0].mxu0
    %v1316 = vadd.f32 0.0, %v1315
    %1317 = vmatprep.mubr.f32.mxu0 0.0
    %1318 = vmatmul.mubr.f32.gmra.mrb[0].mxu0 %v1158
    %v1319 = vpop.f32.mrb[0].mxu0
    %v1320 = vadd.f32 0.0, %v1319
    %v1321 = vpop.f32.mrb[0].mxu0
    %v1322 = vadd.f32 0.0, %v1321
    %1323 = vmatprep.mubr.f32.mxu0 0.0
    %1324 = vmatmul.mubr.f32.gmra.mrb[0].mxu0 %v1159
    %v1325 = vpop.f32.mrb[0].mxu0
    %v1326 = vadd.f32 0.0, %v1325
    %v1327 = vpop.f32.mrb[0].mxu0
    %v1328 = vadd.f32 0.0, %v1327
    %1329 = vmatprep.mubr.f32.mxu0 0.0
    %1330 = vmatmul.mubr.f32.gmra.mrb[0].mxu0 %v1160
    %v1331 = vpop.f32.mrb[0].mxu0
    %v1332 = vadd.f32 0.0, %v1331
    %v1333 = vpop.f32.mrb[0].mxu0
    %v1334 = vadd.f32 0.0, %v1333
    %1335 = vmatprep.mubr.f32.mxu0 0.0
    %1336 = vmatmul.mubr.f32.gmra.mrb[0].mxu0 %v1161
    %v1337 = vpop.f32.mrb[0].mxu0
    %v1338 = vadd.f32 0.0, %v1337
    %v1339 = vpop.f32.mrb[0].mxu0
    %v1340 = vadd.f32 0.0, %v1339
    %1341 = vmatprep.mubr.f32.mxu0 0.0
    %1342 = vmatmul.mubr.f32.gmra.mrb[0].mxu0 %v1162
    %v1343 = vpop.f32.mrb[0].mxu0
    %v1344 = vadd.f32 0.0, %v1343
    %v1345 = vpop.f32.mrb[0].mxu0
    %v1346 = vadd.f32 0.0, %v1345
    %1347 = vmatprep.mubr.f32.mxu0 0.0
    %1348 = vmatmul.mubr.f32.gmra.mrb[0].mxu0 %v1163
    %v1349 = vpop.f32.mrb[0].mxu0
    %v1350 = vadd.f32 0.0, %v1349
    %v1351 = vpop.f32.mrb[0].mxu0
    %v1352 = vadd.f32 0.0, %v1351
    %1353 = vmatprep.mubr.f32.mxu0 0.0
    %1354 = vmatmul.mubr.f32.gmra.mrb[0].mxu0 %v1164
    %v1355 = vpop.f32.mrb[0].mxu0
    %v1356 = vadd.f32 0.0, %v1355
    %v1357 = vpop.f32.mrb[0].mxu0
    %v1358 = vadd.f32 0.0, %v1357
    %1359 = vmatprep.mubr.f32.mxu0 0.0
    %1360 = vmatmul.mubr.f32.gmra.mrb[0].mxu0 %v1165
    %v1361 = vpop.f32.mrb[0].mxu0
    %v1362 = vadd.f32 0.0, %v1361
    %v1363 = vpop.f32.mrb[0].mxu0
    %v1364 = vadd.f32 0.0, %v1363
    %1365 = vmatprep.mubr.f32.mxu0 0.0
    %1366 = vmatmul.mubr.f32.gmra.mrb[0].mxu0 %v1166
    %v1367 = vpop.f32.mrb[0].mxu0
    %v1368 = vadd.f32 0.0, %v1367
    %v1369 = vpop.f32.mrb[0].mxu0
    %v1370 = vadd.f32 0.0, %v1369
    %1371 = vmatprep.mubr.f32.mxu0 0.0
    %1372 = vmatmul.mubr.f32.gmra.mrb[0].mxu0 %v1167
    %v1373 = vpop.f32.mrb[0].mxu0
    %v1374 = vadd.f32 0.0, %v1373
    %v1375 = vpop.f32.mrb[0].mxu0
    %v1376 = vadd.f32 0.0, %v1375
    %1377 = vmatprep.mubr.f32.mxu0 0.0
    %1378 = vmatmul.mubr.f32.gmra.mrb[0].mxu0 %v1168
    %v1379 = vpop.f32.mrb[0].mxu0
    %v1380 = vadd.f32 0.0, %v1379
    %v1381 = vpop.f32.mrb[0].mxu0
    %v1382 = vadd.f32 0.0, %v1381
    %1383 = vmatprep.mubr.f32.mxu0 0.0
    %1384 = vmatmul.mubr.f32.gmra.mrb[0].mxu0 %v1169
    %v1385 = vpop.f32.mrb[0].mxu0
    %v1386 = vadd.f32 0.0, %v1385
    %v1387 = vpop.f32.mrb[0].mxu0
    %v1388 = vadd.f32 0.0, %v1387
    %1389 = vmatprep.mubr.f32.mxu0 0.0
    %1390 = vmatmul.mubr.f32.gmra.mrb[0].mxu0 %v1202
    %v1391 = vpop.f32.mrb[0].mxu0
    %v1392 = vadd.f32 0.0, %v1391
    %v1393 = vpop.f32.mrb[0].mxu0
    %v1394 = vadd.f32 0.0, %v1393
    %1395 = vdwg.mxu0
    %1396 = vmatprep.subr.mxu0 %v1171
    %1397 = vmatpush1.msra.mxu0 %v1170
    %1398 = vmatprep.subr.mxu0 %v1173
    %1399 = vmatpush1.msra.mxu0 %v1172
    %1400 = vmatprep.subr.mxu0 %v1175
    %1401 = vmatpush1.msra.mxu0 %v1174
    %1402 = vmatprep.subr.mxu0 %v1177
    %1403 = vmatpush1.msra.mxu0 %v1176
    %1404 = vmatprep.subr.mxu0 %v1179
    %1405 = vmatpush1.msra.mxu0 %v1178
    %1406 = vmatprep.subr.mxu0 %v1181
    %1407 = vmatpush1.msra.mxu0 %v1180
    %1408 = vmatprep.subr.mxu0 %v1183
    %1409 = vmatpush1.msra.mxu0 %v1182
    %1410 = vmatprep.subr.mxu0 %v1185
    %1411 = vmatpush1.msra.mxu0 %v1184
    %1412 = vmatprep.subr.mxu0 %v1187
    %1413 = vmatpush1.msra.mxu0 %v1186
    %1414 = vmatprep.subr.mxu0 %v1189
    %1415 = vmatpush1.msra.mxu0 %v1188
    %1416 = vmatprep.subr.mxu0 %v1191
    %1417 = vmatpush1.msra.mxu0 %v1190
    %1418 = vmatprep.subr.mxu0 %v1193
    %1419 = vmatpush1.msra.mxu0 %v1192
    %1420 = vmatprep.subr.mxu0 %v1195
    %1421 = vmatpush1.msra.mxu0 %v1194
    %1422 = vmatprep.subr.mxu0 %v1197
    %1423 = vmatpush1.msra.mxu0 %v1196
    %1424 = vmatprep.subr.mxu0 %v1199
    %1425 = vmatpush1.msra.mxu0 %v1198
    %1426 = vmatprep.subr.mxu0 %v1201
    %1427 = vmatpush1.msra.mxu0 %v1200
    %1428 = vmatprep.subr.mxu0 0.0
    %1429 = vmatpush1.msra.mxu0 0.0
    %1430 = vmatprep.subr.mxu0 0.0
    %1431 = vmatpush1.msra.mxu0 0.0
    %1432 = vmatprep.subr.mxu0 0.0
    %1433 = vmatpush1.msra.mxu0 0.0
    %1434 = vmatprep.subr.mxu0 0.0
    %1435 = vmatpush1.msra.mxu0 0.0
    %1436 = vmatprep.subr.mxu0 0.0
    %1437 = vmatpush1.msra.mxu0 0.0
    %1438 = vmatprep.subr.mxu0 0.0
    %1439 = vmatpush1.msra.mxu0 0.0
    %1440 = vmatprep.subr.mxu0 0.0
    %1441 = vmatpush1.msra.mxu0 0.0
    %1442 = vmatprep.subr.mxu0 0.0
    %1443 = vmatpush1.msra.mxu0 0.0
    %1444 = vmatprep.subr.mxu0 0.0
    %1445 = vmatpush1.msra.mxu0 0.0
    %1446 = vmatprep.subr.mxu0 0.0
    %1447 = vmatpush1.msra.mxu0 0.0
    %1448 = vmatprep.subr.mxu0 0.0
    %1449 = vmatpush1.msra.mxu0 0.0
    %1450 = vmatprep.subr.mxu0 0.0
    %1451 = vmatpush1.msra.mxu0 0.0
    %1452 = vmatprep.subr.mxu0 0.0
    %1453 = vmatpush1.msra.mxu0 0.0
    %1454 = vmatprep.subr.mxu0 0.0
    %1455 = vmatpush1.msra.mxu0 0.0
    %1456 = vmatprep.subr.mxu0 0.0
    %1457 = vmatpush1.msra.mxu0 0.0
    %1458 = vmatprep.subr.mxu0 0.0
    %1459 = vmatpush1.msra.mxu0 0.0
    %1460 = vmatprep.mubr.f32.mxu0 0.0
    %1461 = vmatmul.mubr.f32.gmra.mrb[0].mxu0 %v1154
    %v1462 = vpop.f32.mrb[0].mxu0
    %v1463 = vadd.f32 %v1302, %v1462
    %v1464 = vpop.f32.mrb[0].mxu0
    %v1465 = vadd.f32 %v1304, %v1464
    %1466 = vmatprep.mubr.f32.mxu0 0.0
    %1467 = vmatmul.mubr.f32.gmra.mrb[0].mxu0 %v1155
    %v1468 = vpop.f32.mrb[0].mxu0
    %v1469 = vadd.f32 %v1308, %v1468
    %v1470 = vpop.f32.mrb[0].mxu0
    %v1471 = vadd.f32 %v1310, %v1470
    %1472 = vmatprep.mubr.f32.mxu0 0.0
    %1473 = vmatmul.mubr.f32.gmra.mrb[0].mxu0 %v1156
    %v1474 = vpop.f32.mrb[0].mxu0
    %v1475 = vadd.f32 %v1314, %v1474
    %v1476 = vpop.f32.mrb[0].mxu0
    %v1477 = vadd.f32 %v1316, %v1476
    %1478 = vmatprep.mubr.f32.mxu0 0.0
    %1479 = vmatmul.mubr.f32.gmra.mrb[0].mxu0 %v1157
    %v1480 = vpop.f32.mrb[0].mxu0
    %v1481 = vadd.f32 %v1320, %v1480
    %v1482 = vpop.f32.mrb[0].mxu0
    %v1483 = vadd.f32 %v1322, %v1482
    %1484 = vmatprep.mubr.f32.mxu0 0.0
    %1485 = vmatmul.mubr.f32.gmra.mrb[0].mxu0 %v1158
    %v1486 = vpop.f32.mrb[0].mxu0
    %v1487 = vadd.f32 %v1326, %v1486
    %v1488 = vpop.f32.mrb[0].mxu0
    %v1489 = vadd.f32 %v1328, %v1488
    %1490 = vmatprep.mubr.f32.mxu0 0.0
    %1491 = vmatmul.mubr.f32.gmra.mrb[0].mxu0 %v1159
    %v1492 = vpop.f32.mrb[0].mxu0
    %v1493 = vadd.f32 %v1332, %v1492
    %v1494 = vpop.f32.mrb[0].mxu0
    %v1495 = vadd.f32 %v1334, %v1494
    %1496 = vmatprep.mubr.f32.mxu0 0.0
    %1497 = vmatmul.mubr.f32.gmra.mrb[0].mxu0 %v1160
    %v1498 = vpop.f32.mrb[0].mxu0
    %v1499 = vadd.f32 %v1338, %v1498
    %v1500 = vpop.f32.mrb[0].mxu0
    %v1501 = vadd.f32 %v1340, %v1500
    %1502 = vmatprep.mubr.f32.mxu0 0.0
    %1503 = vmatmul.mubr.f32.gmra.mrb[0].mxu0 %v1161
    %v1504 = vpop.f32.mrb[0].mxu0
    %v1505 = vadd.f32 %v1344, %v1504
    %v1506 = vpop.f32.mrb[0].mxu0
    %v1507 = vadd.f32 %v1346, %v1506
    %1508 = vmatprep.mubr.f32.mxu0 0.0
    %1509 = vmatmul.mubr.f32.gmra.mrb[0].mxu0 %v1162
    %v1510 = vpop.f32.mrb[0].mxu0
    %v1511 = vadd.f32 %v1350, %v1510
    %v1512 = vpop.f32.mrb[0].mxu0
    %v1513 = vadd.f32 %v1352, %v1512
    %1514 = vmatprep.mubr.f32.mxu0 0.0
    %1515 = vmatmul.mubr.f32.gmra.mrb[0].mxu0 %v1163
    %v1516 = vpop.f32.mrb[0].mxu0
    %v1517 = vadd.f32 %v1356, %v1516
    %v1518 = vpop.f32.mrb[0].mxu0
    %v1519 = vadd.f32 %v1358, %v1518
    %1520 = vmatprep.mubr.f32.mxu0 0.0
    %1521 = vmatmul.mubr.f32.gmra.mrb[0].mxu0 %v1164
    %v1522 = vpop.f32.mrb[0].mxu0
    %v1523 = vadd.f32 %v1362, %v1522
    %v1524 = vpop.f32.mrb[0].mxu0
    %v1525 = vadd.f32 %v1364, %v1524
    %1526 = vmatprep.mubr.f32.mxu0 0.0
    %1527 = vmatmul.mubr.f32.gmra.mrb[0].mxu0 %v1165
    %v1528 = vpop.f32.mrb[0].mxu0
    %v1529 = vadd.f32 %v1368, %v1528
    %v1530 = vpop.f32.mrb[0].mxu0
    %v1531 = vadd.f32 %v1370, %v1530
    %1532 = vmatprep.mubr.f32.mxu0 0.0
    %1533 = vmatmul.mubr.f32.gmra.mrb[0].mxu0 %v1166
    %v1534 = vpop.f32.mrb[0].mxu0
    %v1535 = vadd.f32 %v1374, %v1534
    %v1536 = vpop.f32.mrb[0].mxu0
    %v1537 = vadd.f32 %v1376, %v1536
    %1538 = vmatprep.mubr.f32.mxu0 0.0
    %1539 = vmatmul.mubr.f32.gmra.mrb[0].mxu0 %v1167
    %v1540 = vpop.f32.mrb[0].mxu0
    %v1541 = vadd.f32 %v1380, %v1540
    %v1542 = vpop.f32.mrb[0].mxu0
    %v1543 = vadd.f32 %v1382, %v1542
    %1544 = vmatprep.mubr.f32.mxu0 0.0
    %1545 = vmatmul.mubr.f32.gmra.mrb[0].mxu0 %v1168
    %v1546 = vpop.f32.mrb[0].mxu0
    %v1547 = vadd.f32 %v1386, %v1546
    %v1548 = vpop.f32.mrb[0].mxu0
    %v1549 = vadd.f32 %v1388, %v1548
    %1550 = vmatprep.mubr.f32.mxu0 0.0
    %1551 = vmatmul.mubr.f32.gmra.mrb[0].mxu0 %v1169
    %v1552 = vpop.f32.mrb[0].mxu0
    %v1553 = vadd.f32 %v1392, %v1552
    %v1554 = vpop.f32.mrb[0].mxu0
    %v1555 = vadd.f32 %v1394, %v1554
    %1556 = vdwg.mxu0
    %v1557 = vld [vmem:[#allocation4 + $0x10] sm:$0xff]
    %v1558 = vld [vmem:[#allocation4 + $0x18] sm:$0xff]
    %v1559 = vld [vmem:[#allocation4 + $0x20] sm:$0xff]
    %v1560 = vld [vmem:[#allocation4 + $0x28] sm:$0xff]
    %v1561 = vld [vmem:[#allocation4 + $0x30] sm:$0xff]
    %v1562 = vld [vmem:[#allocation4 + $0x38] sm:$0xff]
    %v1563 = vld [vmem:[#allocation4 + $0x40] sm:$0xff]
    %v1564 = vld [vmem:[#allocation4 + $0x48] sm:$0xff]
    %v1565 = vld [vmem:[#allocation4 + $0x50] sm:$0xff]
    %v1566 = vld [vmem:[#allocation4 + $0x58] sm:$0xff]
    %v1567 = vld [vmem:[#allocation4 + $0x60] sm:$0xff]
    %v1568 = vld [vmem:[#allocation4 + $0x68] sm:$0xff]
    %v1569 = vld [vmem:[#allocation4 + $0x70] sm:$0xff]
    %v1570 = vld [vmem:[#allocation4 + $0x78] sm:$0xff]
    %v1571 = vld [vmem:[#allocation4 + $0x80] sm:$0xff]
    %v1572 = vld [vmem:[#allocation4 + $0x88] sm:$0xff]
    %v1573 = vld [vmem:[#allocation11 + $0x200] sm:$0xff]
    %v1574 = vld [vmem:[#allocation11 + $0x208] sm:$0xff]
    %v1575 = vld [vmem:[#allocation11 + $0x210] sm:$0xff]
    %v1576 = vld [vmem:[#allocation11 + $0x218] sm:$0xff]
    %v1577 = vld [vmem:[#allocation11 + $0x220] sm:$0xff]
    %v1578 = vld [vmem:[#allocation11 + $0x228] sm:$0xff]
    %v1579 = vld [vmem:[#allocation11 + $0x230] sm:$0xff]
    %v1580 = vld [vmem:[#allocation11 + $0x238] sm:$0xff]
    %v1581 = vld [vmem:[#allocation11 + $0x240] sm:$0xff]
    %v1582 = vld [vmem:[#allocation11 + $0x248] sm:$0xff]
    %v1583 = vld [vmem:[#allocation11 + $0x250] sm:$0xff]
    %v1584 = vld [vmem:[#allocation11 + $0x258] sm:$0xff]
    %v1585 = vld [vmem:[#allocation11 + $0x260] sm:$0xff]
    %v1586 = vld [vmem:[#allocation11 + $0x268] sm:$0xff]
    %v1587 = vld [vmem:[#allocation11 + $0x270] sm:$0xff]
    %v1588 = vld [vmem:[#allocation11 + $0x278] sm:$0xff]
    %v1589 = vld [vmem:[#allocation11 + $0x280] sm:$0xff]
    %v1590 = vld [vmem:[#allocation11 + $0x288] sm:$0xff]
    %v1591 = vld [vmem:[#allocation11 + $0x290] sm:$0xff]
    %v1592 = vld [vmem:[#allocation11 + $0x298] sm:$0xff]
    %v1593 = vld [vmem:[#allocation11 + $0x2a0] sm:$0xff]
    %v1594 = vld [vmem:[#allocation11 + $0x2a8] sm:$0xff]
    %v1595 = vld [vmem:[#allocation11 + $0x2b0] sm:$0xff]
    %v1596 = vld [vmem:[#allocation11 + $0x2b8] sm:$0xff]
    %v1597 = vld [vmem:[#allocation11 + $0x2c0] sm:$0xff]
    %v1598 = vld [vmem:[#allocation11 + $0x2c8] sm:$0xff]
    %v1599 = vld [vmem:[#allocation11 + $0x2d0] sm:$0xff]
    %v1600 = vld [vmem:[#allocation11 + $0x2d8] sm:$0xff]
    %v1601 = vld [vmem:[#allocation11 + $0x2e0] sm:$0xff]
    %v1602 = vld [vmem:[#allocation11 + $0x2e8] sm:$0xff]
    %v1603 = vld [vmem:[#allocation11 + $0x2f0] sm:$0xff]
    %v1604 = vld [vmem:[#allocation11 + $0x2f8] sm:$0xff]
    %1605 = vmatprep.subr.mxu0 %v1574
    %1606 = vmatpush1.msra.mxu0 %v1573
    %1607 = vmatprep.subr.mxu0 %v1576
    %1608 = vmatpush1.msra.mxu0 %v1575
    %1609 = vmatprep.subr.mxu0 %v1578
    %1610 = vmatpush1.msra.mxu0 %v1577
    %1611 = vmatprep.subr.mxu0 %v1580
    %1612 = vmatpush1.msra.mxu0 %v1579
    %1613 = vmatprep.subr.mxu0 %v1582
    %1614 = vmatpush1.msra.mxu0 %v1581
    %1615 = vmatprep.subr.mxu0 %v1584
    %1616 = vmatpush1.msra.mxu0 %v1583
    %1617 = vmatprep.subr.mxu0 %v1586
    %1618 = vmatpush1.msra.mxu0 %v1585
    %1619 = vmatprep.subr.mxu0 %v1588
    %1620 = vmatpush1.msra.mxu0 %v1587
    %1621 = vmatprep.subr.mxu0 %v1590
    %1622 = vmatpush1.msra.mxu0 %v1589
    %1623 = vmatprep.subr.mxu0 %v1592
    %1624 = vmatpush1.msra.mxu0 %v1591
    %1625 = vmatprep.subr.mxu0 %v1594
    %1626 = vmatpush1.msra.mxu0 %v1593
    %1627 = vmatprep.subr.mxu0 %v1596
    %1628 = vmatpush1.msra.mxu0 %v1595
    %1629 = vmatprep.subr.mxu0 %v1598
    %1630 = vmatpush1.msra.mxu0 %v1597
    %1631 = vmatprep.subr.mxu0 %v1600
    %1632 = vmatpush1.msra.mxu0 %v1599
    %1633 = vmatprep.subr.mxu0 %v1602
    %1634 = vmatpush1.msra.mxu0 %v1601
    %1635 = vmatprep.subr.mxu0 %v1604
    %1636 = vmatpush1.msra.mxu0 %v1603
    %1637 = vmatprep.subr.mxu0 0.0
    %1638 = vmatpush1.msra.mxu0 0.0
    %1639 = vmatprep.subr.mxu0 0.0
    %1640 = vmatpush1.msra.mxu0 0.0
    %1641 = vmatprep.subr.mxu0 0.0
    %1642 = vmatpush1.msra.mxu0 0.0
    %1643 = vmatprep.subr.mxu0 0.0
    %1644 = vmatpush1.msra.mxu0 0.0
    %1645 = vmatprep.subr.mxu0 0.0
    %1646 = vmatpush1.msra.mxu0 0.0
    %1647 = vmatprep.subr.mxu0 0.0
    %1648 = vmatpush1.msra.mxu0 0.0
    %1649 = vmatprep.subr.mxu0 0.0
    %1650 = vmatpush1.msra.mxu0 0.0
    %1651 = vmatprep.subr.mxu0 0.0
    %1652 = vmatpush1.msra.mxu0 0.0
    %1653 = vmatprep.subr.mxu0 0.0
    %1654 = vmatpush1.msra.mxu0 0.0
    %1655 = vmatprep.subr.mxu0 0.0
    %1656 = vmatpush1.msra.mxu0 0.0
    %1657 = vmatprep.subr.mxu0 0.0
    %1658 = vmatpush1.msra.mxu0 0.0
    %1659 = vmatprep.subr.mxu0 0.0
    %1660 = vmatpush1.msra.mxu0 0.0
    %1661 = vmatprep.subr.mxu0 0.0
    %1662 = vmatpush1.msra.mxu0 0.0
    %1663 = vmatprep.subr.mxu0 0.0
    %1664 = vmatpush1.msra.mxu0 0.0
    %1665 = vmatprep.subr.mxu0 0.0
    %1666 = vmatpush1.msra.mxu0 0.0
    %1667 = vmatprep.subr.mxu0 0.0
    %1668 = vmatpush1.msra.mxu0 0.0
    %1669 = vmatprep.mubr.f32.mxu0 0.0
    %1670 = vmatmul.mubr.f32.gmra.mrb[0].mxu0 %v1557
    %v1671 = vpop.f32.mrb[0].mxu0
    %v1672 = vadd.f32 0.0, %v1671
    %v1673 = vpop.f32.mrb[0].mxu0
    %v1674 = vadd.f32 0.0, %v1673
    %1675 = vmatprep.mubr.f32.mxu0 0.0
    %1676 = vmatmul.mubr.f32.gmra.mrb[0].mxu0 %v1558
    %v1677 = vpop.f32.mrb[0].mxu0
    %v1678 = vadd.f32 0.0, %v1677
    %v1679 = vpop.f32.mrb[0].mxu0
    %v1680 = vadd.f32 0.0, %v1679
    %1681 = vmatprep.mubr.f32.mxu0 0.0
    %1682 = vmatmul.mubr.f32.gmra.mrb[0].mxu0 %v1559
    %v1683 = vpop.f32.mrb[0].mxu0
    %v1684 = vadd.f32 0.0, %v1683
    %v1685 = vpop.f32.mrb[0].mxu0
    %v1686 = vadd.f32 0.0, %v1685
    %1687 = vmatprep.mubr.f32.mxu0 0.0
    %1688 = vmatmul.mubr.f32.gmra.mrb[0].mxu0 %v1560
    %v1689 = vpop.f32.mrb[0].mxu0
    %v1690 = vadd.f32 0.0, %v1689
    %v1691 = vpop.f32.mrb[0].mxu0
    %v1692 = vadd.f32 0.0, %v1691
    %1693 = vmatprep.mubr.f32.mxu0 0.0
    %1694 = vmatmul.mubr.f32.gmra.mrb[0].mxu0 %v1561
    %v1695 = vpop.f32.mrb[0].mxu0
    %v1696 = vadd.f32 0.0, %v1695
    %v1697 = vpop.f32.mrb[0].mxu0
    %v1698 = vadd.f32 0.0, %v1697
    %1699 = vmatprep.mubr.f32.mxu0 0.0
    %1700 = vmatmul.mubr.f32.gmra.mrb[0].mxu0 %v1562
    %v1701 = vpop.f32.mrb[0].mxu0
    %v1702 = vadd.f32 0.0, %v1701
    %v1703 = vpop.f32.mrb[0].mxu0
    %v1704 = vadd.f32 0.0, %v1703
    %1705 = vmatprep.mubr.f32.mxu0 0.0
    %1706 = vmatmul.mubr.f32.gmra.mrb[0].mxu0 %v1563
    %v1707 = vpop.f32.mrb[0].mxu0
    %v1708 = vadd.f32 0.0, %v1707
    %v1709 = vpop.f32.mrb[0].mxu0
    %v1710 = vadd.f32 0.0, %v1709
    %1711 = vmatprep.mubr.f32.mxu0 0.0
    %1712 = vmatmul.mubr.f32.gmra.mrb[0].mxu0 %v1564
    %v1713 = vpop.f32.mrb[0].mxu0
    %v1714 = vadd.f32 0.0, %v1713
    %v1715 = vpop.f32.mrb[0].mxu0
    %v1716 = vadd.f32 0.0, %v1715
    %1717 = vmatprep.mubr.f32.mxu0 0.0
    %1718 = vmatmul.mubr.f32.gmra.mrb[0].mxu0 %v1565
    %v1719 = vpop.f32.mrb[0].mxu0
    %v1720 = vadd.f32 0.0, %v1719
    %v1721 = vpop.f32.mrb[0].mxu0
    %v1722 = vadd.f32 0.0, %v1721
    %1723 = vmatprep.mubr.f32.mxu0 0.0
    %1724 = vmatmul.mubr.f32.gmra.mrb[0].mxu0 %v1566
    %v1725 = vpop.f32.mrb[0].mxu0
    %v1726 = vadd.f32 0.0, %v1725
    %v1727 = vpop.f32.mrb[0].mxu0
    %v1728 = vadd.f32 0.0, %v1727
    %1729 = vmatprep.mubr.f32.mxu0 0.0
    %1730 = vmatmul.mubr.f32.gmra.mrb[0].mxu0 %v1567
    %v1731 = vpop.f32.mrb[0].mxu0
    %v1732 = vadd.f32 0.0, %v1731
    %v1733 = vpop.f32.mrb[0].mxu0
    %v1734 = vadd.f32 0.0, %v1733
    %1735 = vmatprep.mubr.f32.mxu0 0.0
    %1736 = vmatmul.mubr.f32.gmra.mrb[0].mxu0 %v1568
    %v1737 = vpop.f32.mrb[0].mxu0
    %v1738 = vadd.f32 0.0, %v1737
    %v1739 = vpop.f32.mrb[0].mxu0
    %v1740 = vadd.f32 0.0, %v1739
    %1741 = vmatprep.mubr.f32.mxu0 0.0
    %1742 = vmatmul.mubr.f32.gmra.mrb[0].mxu0 %v1569
    %v1743 = vpop.f32.mrb[0].mxu0
    %v1744 = vadd.f32 0.0, %v1743
    %v1745 = vpop.f32.mrb[0].mxu0
    %v1746 = vadd.f32 0.0, %v1745
    %1747 = vmatprep.mubr.f32.mxu0 0.0
    %1748 = vmatmul.mubr.f32.gmra.mrb[0].mxu0 %v1570
    %v1749 = vpop.f32.mrb[0].mxu0
    %v1750 = vadd.f32 0.0, %v1749
    %v1751 = vpop.f32.mrb[0].mxu0
    %v1752 = vadd.f32 0.0, %v1751
    %1753 = vmatprep.mubr.f32.mxu0 0.0
    %1754 = vmatmul.mubr.f32.gmra.mrb[0].mxu0 %v1571
    %v1755 = vpop.f32.mrb[0].mxu0
    %v1756 = vadd.f32 0.0, %v1755
    %v1757 = vpop.f32.mrb[0].mxu0
    %v1758 = vadd.f32 0.0, %v1757
    %1759 = vmatprep.mubr.f32.mxu0 0.0
    %1760 = vmatmul.mubr.f32.gmra.mrb[0].mxu0 %v1572
    %v1761 = vpop.f32.mrb[0].mxu0
    %v1762 = vadd.f32 0.0, %v1761
    %v1763 = vpop.f32.mrb[0].mxu0
    %v1764 = vadd.f32 0.0, %v1763
    %1765 = vdwg.mxu0
    %v1766 = vadd.f32 %v1463, %v1672
    %v1767 = vadd.f32 %v1465, %v1674
    %v1768 = vadd.f32 %v1469, %v1678
    %v1769 = vadd.f32 %v1471, %v1680
    %v1770 = vadd.f32 %v1475, %v1684
    %v1771 = vadd.f32 %v1477, %v1686
    %v1772 = vadd.f32 %v1481, %v1690
    %v1773 = vadd.f32 %v1483, %v1692
    %v1774 = vadd.f32 %v1487, %v1696
    %v1775 = vadd.f32 %v1489, %v1698
    %v1776 = vadd.f32 %v1493, %v1702
    %v1777 = vadd.f32 %v1495, %v1704
    %v1778 = vadd.f32 %v1499, %v1708
    %v1779 = vadd.f32 %v1501, %v1710
    %v1780 = vadd.f32 %v1505, %v1714
    %v1781 = vadd.f32 %v1507, %v1716
    %v1782 = vadd.f32 %v1511, %v1720
    %v1783 = vadd.f32 %v1513, %v1722
    %v1784 = vadd.f32 %v1517, %v1726
    %v1785 = vadd.f32 %v1519, %v1728
    %v1786 = vadd.f32 %v1523, %v1732
    %v1787 = vadd.f32 %v1525, %v1734
    %v1788 = vadd.f32 %v1529, %v1738
    %v1789 = vadd.f32 %v1531, %v1740
    %v1790 = vadd.f32 %v1535, %v1744
    %v1791 = vadd.f32 %v1537, %v1746
    %v1792 = vadd.f32 %v1541, %v1750
    %v1793 = vadd.f32 %v1543, %v1752
    %v1794 = vadd.f32 %v1547, %v1756
    %v1795 = vadd.f32 %v1549, %v1758
    %v1796 = vadd.f32 %v1553, %v1762
    %v1797 = vadd.f32 %v1555, %v1764
    %v1798 = vld [vmem:[%s6] sm:$0x3]
    %v1800 = vlaneseq
    %v1801 = vshrl.u32 %v1800, 7
    %v1802 = vsub.s32 0, %v1801
    %v1803 = vrot.slane %v1798, %v1802
    %v1804 = vlaneseq
    %v1805 = vshrl.u32 %v1804, 7
    %v1806 = vsub.s32 1, %v1805
    %v1807 = vrot.slane %v1798, %v1806
    %v1810 = vadd.f32 %v1766, %v1803
    %v1811 = vadd.f32 %v1767, %v1807
    %v1812 = vadd.f32 %v1768, %v1803
    %v1813 = vadd.f32 %v1769, %v1807
    %v1814 = vadd.f32 %v1770, %v1803
    %v1815 = vadd.f32 %v1771, %v1807
    %v1816 = vadd.f32 %v1772, %v1803
    %v1817 = vadd.f32 %v1773, %v1807
    %v1818 = vadd.f32 %v1774, %v1803
    %v1819 = vadd.f32 %v1775, %v1807
    %v1820 = vadd.f32 %v1776, %v1803
    %v1821 = vadd.f32 %v1777, %v1807
    %v1822 = vadd.f32 %v1778, %v1803
    %v1823 = vadd.f32 %v1779, %v1807
    %v1824 = vadd.f32 %v1780, %v1803
    %v1825 = vadd.f32 %v1781, %v1807
    %v1826 = vadd.f32 %v1782, %v1803
    %v1827 = vadd.f32 %v1783, %v1807
    %v1828 = vadd.f32 %v1784, %v1803
    %v1829 = vadd.f32 %v1785, %v1807
    %v1830 = vadd.f32 %v1786, %v1803
    %v1831 = vadd.f32 %v1787, %v1807
    %v1832 = vadd.f32 %v1788, %v1803
    %v1833 = vadd.f32 %v1789, %v1807
    %v1834 = vadd.f32 %v1790, %v1803
    %v1835 = vadd.f32 %v1791, %v1807
    %v1836 = vadd.f32 %v1792, %v1803
    %v1837 = vadd.f32 %v1793, %v1807
    %v1838 = vadd.f32 %v1794, %v1803
    %v1839 = vadd.f32 %v1795, %v1807
    %v1840 = vadd.f32 %v1796, %v1803
    %v1841 = vadd.f32 %v1797, %v1807
    %vm1842 = vcmp.gt.f32.partialorder %v1810, 0.0
    %vm1843 = vcmp.gt.f32.partialorder %v1811, 0.0
    %vm1844 = vcmp.gt.f32.partialorder %v1812, 0.0
    %vm1845 = vcmp.gt.f32.partialorder %v1813, 0.0
    %vm1846 = vcmp.gt.f32.partialorder %v1814, 0.0
    %vm1847 = vcmp.gt.f32.partialorder %v1815, 0.0
    %vm1848 = vcmp.gt.f32.partialorder %v1816, 0.0
    %vm1849 = vcmp.gt.f32.partialorder %v1817, 0.0
    %vm1850 = vcmp.gt.f32.partialorder %v1818, 0.0
    %vm1851 = vcmp.gt.f32.partialorder %v1819, 0.0
    %vm1852 = vcmp.gt.f32.partialorder %v1820, 0.0
    %vm1853 = vcmp.gt.f32.partialorder %v1821, 0.0
    %vm1854 = vcmp.gt.f32.partialorder %v1822, 0.0
    %vm1855 = vcmp.gt.f32.partialorder %v1823, 0.0
    %vm1856 = vcmp.gt.f32.partialorder %v1824, 0.0
    %vm1857 = vcmp.gt.f32.partialorder %v1825, 0.0
    %vm1858 = vcmp.gt.f32.partialorder %v1826, 0.0
    %vm1859 = vcmp.gt.f32.partialorder %v1827, 0.0
    %vm1860 = vcmp.gt.f32.partialorder %v1828, 0.0
    %vm1861 = vcmp.gt.f32.partialorder %v1829, 0.0
    %vm1862 = vcmp.gt.f32.partialorder %v1830, 0.0
    %vm1863 = vcmp.gt.f32.partialorder %v1831, 0.0
    %vm1864 = vcmp.gt.f32.partialorder %v1832, 0.0
    %vm1865 = vcmp.gt.f32.partialorder %v1833, 0.0
    %vm1866 = vcmp.gt.f32.partialorder %v1834, 0.0
    %vm1867 = vcmp.gt.f32.partialorder %v1835, 0.0
    %vm1868 = vcmp.gt.f32.partialorder %v1836, 0.0
    %vm1869 = vcmp.gt.f32.partialorder %v1837, 0.0
    %vm1870 = vcmp.gt.f32.partialorder %v1838, 0.0
    %vm1871 = vcmp.gt.f32.partialorder %v1839, 0.0
    %vm1872 = vcmp.gt.f32.partialorder %v1840, 0.0
    %vm1873 = vcmp.gt.f32.partialorder %v1841, 0.0
    %v1874 = vmul.f32 %v1810, 0.1
    %v1875 = vmul.f32 %v1811, 0.1
    %v1876 = vmul.f32 %v1812, 0.1
    %v1877 = vmul.f32 %v1813, 0.1
    %v1878 = vmul.f32 %v1814, 0.1
    %v1879 = vmul.f32 %v1815, 0.1
    %v1880 = vmul.f32 %v1816, 0.1
    %v1881 = vmul.f32 %v1817, 0.1
    %v1882 = vmul.f32 %v1818, 0.1
    %v1883 = vmul.f32 %v1819, 0.1
    %v1884 = vmul.f32 %v1820, 0.1
    %v1885 = vmul.f32 %v1821, 0.1
    %v1886 = vmul.f32 %v1822, 0.1
    %v1887 = vmul.f32 %v1823, 0.1
    %v1888 = vmul.f32 %v1824, 0.1
    %v1889 = vmul.f32 %v1825, 0.1
    %v1890 = vmul.f32 %v1826, 0.1
    %v1891 = vmul.f32 %v1827, 0.1
    %v1892 = vmul.f32 %v1828, 0.1
    %v1893 = vmul.f32 %v1829, 0.1
    %v1894 = vmul.f32 %v1830, 0.1
    %v1895 = vmul.f32 %v1831, 0.1
    %v1896 = vmul.f32 %v1832, 0.1
    %v1897 = vmul.f32 %v1833, 0.1
    %v1898 = vmul.f32 %v1834, 0.1
    %v1899 = vmul.f32 %v1835, 0.1
    %v1900 = vmul.f32 %v1836, 0.1
    %v1901 = vmul.f32 %v1837, 0.1
    %v1902 = vmul.f32 %v1838, 0.1
    %v1903 = vmul.f32 %v1839, 0.1
    %v1904 = vmul.f32 %v1840, 0.1
    %v1905 = vmul.f32 %v1841, 0.1
    %v1906 = vsel %vm1842, %v1810, %v1874
    %v1907 = vsel %vm1843, %v1811, %v1875
    %v1908 = vsel %vm1844, %v1812, %v1876
    %v1909 = vsel %vm1845, %v1813, %v1877
    %v1910 = vsel %vm1846, %v1814, %v1878
    %v1911 = vsel %vm1847, %v1815, %v1879
    %v1912 = vsel %vm1848, %v1816, %v1880
    %v1913 = vsel %vm1849, %v1817, %v1881
    %v1914 = vsel %vm1850, %v1818, %v1882
    %v1915 = vsel %vm1851, %v1819, %v1883
    %v1916 = vsel %vm1852, %v1820, %v1884
    %v1917 = vsel %vm1853, %v1821, %v1885
    %v1918 = vsel %vm1854, %v1822, %v1886
    %v1919 = vsel %vm1855, %v1823, %v1887
    %v1920 = vsel %vm1856, %v1824, %v1888
    %v1921 = vsel %vm1857, %v1825, %v1889
    %v1922 = vsel %vm1858, %v1826, %v1890
    %v1923 = vsel %vm1859, %v1827, %v1891
    %v1924 = vsel %vm1860, %v1828, %v1892
    %v1925 = vsel %vm1861, %v1829, %v1893
    %v1926 = vsel %vm1862, %v1830, %v1894
    %v1927 = vsel %vm1863, %v1831, %v1895
    %v1928 = vsel %vm1864, %v1832, %v1896
    %v1929 = vsel %vm1865, %v1833, %v1897
    %v1930 = vsel %vm1866, %v1834, %v1898
    %v1931 = vsel %vm1867, %v1835, %v1899
    %v1932 = vsel %vm1868, %v1836, %v1900
    %v1933 = vsel %vm1869, %v1837, %v1901
    %v1934 = vsel %vm1870, %v1838, %v1902
    %v1935 = vsel %vm1871, %v1839, %v1903
    %v1936 = vsel %vm1872, %v1840, %v1904
    %v1937 = vsel %vm1873, %v1841, %v1905
    %v1938 = vld [vmem:[#allocation13] sm:$0xff]
    %v1939 = vld [vmem:[#allocation13 + $0x8] sm:$0xff]
    %v1940 = vld [vmem:[#allocation13 + $0x10] sm:$0xff]
    %v1941 = vld [vmem:[#allocation13 + $0x18] sm:$0xff]
    %v1942 = vld [vmem:[#allocation13 + $0x20] sm:$0xff]
    %v1943 = vld [vmem:[#allocation13 + $0x28] sm:$0xff]
    %v1944 = vld [vmem:[#allocation13 + $0x30] sm:$0xff]
    %v1945 = vld [vmem:[#allocation13 + $0x38] sm:$0xff]
    %v1946 = vld [vmem:[#allocation13 + $0x40] sm:$0xff]
    %v1947 = vld [vmem:[#allocation13 + $0x48] sm:$0xff]
    %v1948 = vld [vmem:[#allocation13 + $0x50] sm:$0xff]
    %v1949 = vld [vmem:[#allocation13 + $0x58] sm:$0xff]
    %v1950 = vld [vmem:[#allocation13 + $0x60] sm:$0xff]
    %v1951 = vld [vmem:[#allocation13 + $0x68] sm:$0xff]
    %v1952 = vld [vmem:[#allocation13 + $0x70] sm:$0xff]
    %v1953 = vld [vmem:[#allocation13 + $0x78] sm:$0xff]
    %v1954 = vld [vmem:[#allocation13 + $0x80] sm:$0xff]
    %v1955 = vld [vmem:[#allocation13 + $0x88] sm:$0xff]
    %v1956 = vld [vmem:[#allocation13 + $0x90] sm:$0xff]
    %v1957 = vld [vmem:[#allocation13 + $0x98] sm:$0xff]
    %v1958 = vld [vmem:[#allocation13 + $0xa0] sm:$0xff]
    %v1959 = vld [vmem:[#allocation13 + $0xa8] sm:$0xff]
    %v1960 = vld [vmem:[#allocation13 + $0xb0] sm:$0xff]
    %v1961 = vld [vmem:[#allocation13 + $0xb8] sm:$0xff]
    %v1962 = vld [vmem:[#allocation13 + $0xc0] sm:$0xff]
    %v1963 = vld [vmem:[#allocation13 + $0xc8] sm:$0xff]
    %v1964 = vld [vmem:[#allocation13 + $0xd0] sm:$0xff]
    %v1965 = vld [vmem:[#allocation13 + $0xd8] sm:$0xff]
    %v1966 = vld [vmem:[#allocation13 + $0xe0] sm:$0xff]
    %v1967 = vld [vmem:[#allocation13 + $0xe8] sm:$0xff]
    %v1968 = vld [vmem:[#allocation13 + $0xf0] sm:$0xff]
    %v1969 = vld [vmem:[#allocation13 + $0xf8] sm:$0xff]
    %v1970 = vld [vmem:[#allocation13 + $0x100] sm:$0xff]
    %v1971 = vld [vmem:[#allocation13 + $0x108] sm:$0xff]
    %v1972 = vld [vmem:[#allocation13 + $0x110] sm:$0xff]
    %v1973 = vld [vmem:[#allocation13 + $0x118] sm:$0xff]
    %v1974 = vld [vmem:[#allocation13 + $0x120] sm:$0xff]
    %v1975 = vld [vmem:[#allocation13 + $0x128] sm:$0xff]
    %v1976 = vld [vmem:[#allocation13 + $0x130] sm:$0xff]
    %v1977 = vld [vmem:[#allocation13 + $0x138] sm:$0xff]
    %v1978 = vld [vmem:[#allocation13 + $0x140] sm:$0xff]
    %v1979 = vld [vmem:[#allocation13 + $0x148] sm:$0xff]
    %v1980 = vld [vmem:[#allocation13 + $0x150] sm:$0xff]
    %v1981 = vld [vmem:[#allocation13 + $0x158] sm:$0xff]
    %v1982 = vld [vmem:[#allocation13 + $0x160] sm:$0xff]
    %v1983 = vld [vmem:[#allocation13 + $0x168] sm:$0xff]
    %v1984 = vld [vmem:[#allocation13 + $0x170] sm:$0xff]
    %v1985 = vld [vmem:[#allocation13 + $0x178] sm:$0xff]
    %v1986 = vld [vmem:[#allocation13 + $0x180] sm:$0xff]
    %v1987 = vld [vmem:[#allocation13 + $0x188] sm:$0xff]
    %v1988 = vld [vmem:[#allocation13 + $0x190] sm:$0xff]
    %v1989 = vld [vmem:[#allocation13 + $0x198] sm:$0xff]
    %v1990 = vld [vmem:[#allocation13 + $0x1a0] sm:$0xff]
    %v1991 = vld [vmem:[#allocation13 + $0x1a8] sm:$0xff]
    %v1992 = vld [vmem:[#allocation13 + $0x1b0] sm:$0xff]
    %v1993 = vld [vmem:[#allocation13 + $0x1b8] sm:$0xff]
    %v1994 = vld [vmem:[#allocation13 + $0x1c0] sm:$0xff]
    %v1995 = vld [vmem:[#allocation13 + $0x1c8] sm:$0xff]
    %v1996 = vld [vmem:[#allocation13 + $0x1d0] sm:$0xff]
    %v1997 = vld [vmem:[#allocation13 + $0x1d8] sm:$0xff]
    %v1998 = vld [vmem:[#allocation13 + $0x1e0] sm:$0xff]
    %v1999 = vld [vmem:[#allocation13 + $0x1e8] sm:$0xff]
    %v2000 = vld [vmem:[#allocation13 + $0x1f0] sm:$0xff]
    %v2001 = vld [vmem:[#allocation13 + $0x1f8] sm:$0xff]
    %v2002 = vld [vmem:[#allocation14] sm:$0x3]
    %v2004 = vlaneseq
    %v2005 = vshrl.u32 %v2004, 7
    %v2006 = vsub.s32 0, %v2005
    %v2007 = vrot.slane %v2002, %v2006
    %v2008 = vlaneseq
    %v2009 = vshrl.u32 %v2008, 7
    %v2010 = vsub.s32 1, %v2009
    %v2011 = vrot.slane %v2002, %v2010
    %2014 = vmatprep.subr.mxu0 %v1939
    %2015 = vmatpush1.msra.mxu0 %v1938
    %2016 = vmatprep.subr.mxu0 %v1941
    %2017 = vmatpush1.msra.mxu0 %v1940
    %2018 = vmatprep.subr.mxu0 %v1943
    %2019 = vmatpush1.msra.mxu0 %v1942
    %2020 = vmatprep.subr.mxu0 %v1945
    %2021 = vmatpush1.msra.mxu0 %v1944
    %2022 = vmatprep.subr.mxu0 %v1947
    %2023 = vmatpush1.msra.mxu0 %v1946
    %2024 = vmatprep.subr.mxu0 %v1949
    %2025 = vmatpush1.msra.mxu0 %v1948
    %2026 = vmatprep.subr.mxu0 %v1951
    %2027 = vmatpush1.msra.mxu0 %v1950
    %2028 = vmatprep.subr.mxu0 %v1953
    %2029 = vmatpush1.msra.mxu0 %v1952
    %2030 = vmatprep.subr.mxu0 %v1955
    %2031 = vmatpush1.msra.mxu0 %v1954
    %2032 = vmatprep.subr.mxu0 %v1957
    %2033 = vmatpush1.msra.mxu0 %v1956
    %2034 = vmatprep.subr.mxu0 %v1959
    %2035 = vmatpush1.msra.mxu0 %v1958
    %2036 = vmatprep.subr.mxu0 %v1961
    %2037 = vmatpush1.msra.mxu0 %v1960
    %2038 = vmatprep.subr.mxu0 %v1963
    %2039 = vmatpush1.msra.mxu0 %v1962
    %2040 = vmatprep.subr.mxu0 %v1965
    %2041 = vmatpush1.msra.mxu0 %v1964
    %2042 = vmatprep.subr.mxu0 %v1967
    %2043 = vmatpush1.msra.mxu0 %v1966
    %2044 = vmatprep.subr.mxu0 %v1969
    %2045 = vmatpush1.msra.mxu0 %v1968
    %2046 = vmatprep.subr.mxu0 %v1971
    %2047 = vmatpush1.msra.mxu0 %v1970
    %2048 = vmatprep.subr.mxu0 %v1973
    %2049 = vmatpush1.msra.mxu0 %v1972
    %2050 = vmatprep.subr.mxu0 %v1975
    %2051 = vmatpush1.msra.mxu0 %v1974
    %2052 = vmatprep.subr.mxu0 %v1977
    %2053 = vmatpush1.msra.mxu0 %v1976
    %2054 = vmatprep.subr.mxu0 %v1979
    %2055 = vmatpush1.msra.mxu0 %v1978
    %2056 = vmatprep.subr.mxu0 %v1981
    %2057 = vmatpush1.msra.mxu0 %v1980
    %2058 = vmatprep.subr.mxu0 %v1983
    %2059 = vmatpush1.msra.mxu0 %v1982
    %2060 = vmatprep.subr.mxu0 %v1985
    %2061 = vmatpush1.msra.mxu0 %v1984
    %2062 = vmatprep.subr.mxu0 %v1987
    %2063 = vmatpush1.msra.mxu0 %v1986
    %2064 = vmatprep.subr.mxu0 %v1989
    %2065 = vmatpush1.msra.mxu0 %v1988
    %2066 = vmatprep.subr.mxu0 %v1991
    %2067 = vmatpush1.msra.mxu0 %v1990
    %2068 = vmatprep.subr.mxu0 %v1993
    %2069 = vmatpush1.msra.mxu0 %v1992
    %2070 = vmatprep.subr.mxu0 %v1995
    %2071 = vmatpush1.msra.mxu0 %v1994
    %2072 = vmatprep.subr.mxu0 %v1997
    %2073 = vmatpush1.msra.mxu0 %v1996
    %2074 = vmatprep.subr.mxu0 %v1999
    %2075 = vmatpush1.msra.mxu0 %v1998
    %2076 = vmatprep.subr.mxu0 %v2001
    %2077 = vmatpush1.msra.mxu0 %v2000
    %2078 = vmatprep.mubr.f32.mxu0 %v1907
    %2079 = vmatmul.mubr.f32.gmra.mrb[0].mxu0 %v1906
    %v2080 = vpop.f32.mrb[0].mxu0
    %v2081 = vadd.f32 %v2007, %v2080
    %v2082 = vpop.f32.mrb[0].mxu0
    %v2083 = vadd.f32 %v2011, %v2082
    %2084 = vmatprep.mubr.f32.mxu0 %v1909
    %2085 = vmatmul.mubr.f32.gmra.mrb[0].mxu0 %v1908
    %v2086 = vpop.f32.mrb[0].mxu0
    %v2087 = vadd.f32 %v2007, %v2086
    %v2088 = vpop.f32.mrb[0].mxu0
    %v2089 = vadd.f32 %v2011, %v2088
    %2090 = vmatprep.mubr.f32.mxu0 %v1911
    %2091 = vmatmul.mubr.f32.gmra.mrb[0].mxu0 %v1910
    %v2092 = vpop.f32.mrb[0].mxu0
    %v2093 = vadd.f32 %v2007, %v2092
    %v2094 = vpop.f32.mrb[0].mxu0
    %v2095 = vadd.f32 %v2011, %v2094
    %2096 = vmatprep.mubr.f32.mxu0 %v1913
    %2097 = vmatmul.mubr.f32.gmra.mrb[0].mxu0 %v1912
    %v2098 = vpop.f32.mrb[0].mxu0
    %v2099 = vadd.f32 %v2007, %v2098
    %v2100 = vpop.f32.mrb[0].mxu0
    %v2101 = vadd.f32 %v2011, %v2100
    %2102 = vmatprep.mubr.f32.mxu0 %v1915
    %2103 = vmatmul.mubr.f32.gmra.mrb[0].mxu0 %v1914
    %v2104 = vpop.f32.mrb[0].mxu0
    %v2105 = vadd.f32 %v2007, %v2104
    %v2106 = vpop.f32.mrb[0].mxu0
    %v2107 = vadd.f32 %v2011, %v2106
    %2108 = vmatprep.mubr.f32.mxu0 %v1917
    %2109 = vmatmul.mubr.f32.gmra.mrb[0].mxu0 %v1916
    %v2110 = vpop.f32.mrb[0].mxu0
    %v2111 = vadd.f32 %v2007, %v2110
    %v2112 = vpop.f32.mrb[0].mxu0
    %v2113 = vadd.f32 %v2011, %v2112
    %2114 = vmatprep.mubr.f32.mxu0 %v1919
    %2115 = vmatmul.mubr.f32.gmra.mrb[0].mxu0 %v1918
    %v2116 = vpop.f32.mrb[0].mxu0
    %v2117 = vadd.f32 %v2007, %v2116
    %v2118 = vpop.f32.mrb[0].mxu0
    %v2119 = vadd.f32 %v2011, %v2118
    %2120 = vmatprep.mubr.f32.mxu0 %v1921
    %2121 = vmatmul.mubr.f32.gmra.mrb[0].mxu0 %v1920
    %v2122 = vpop.f32.mrb[0].mxu0
    %v2123 = vadd.f32 %v2007, %v2122
    %v2124 = vpop.f32.mrb[0].mxu0
    %v2125 = vadd.f32 %v2011, %v2124
    %2126 = vmatprep.mubr.f32.mxu0 %v1923
    %2127 = vmatmul.mubr.f32.gmra.mrb[0].mxu0 %v1922
    %v2128 = vpop.f32.mrb[0].mxu0
    %v2129 = vadd.f32 %v2007, %v2128
    %v2130 = vpop.f32.mrb[0].mxu0
    %v2131 = vadd.f32 %v2011, %v2130
    %2132 = vmatprep.mubr.f32.mxu0 %v1925
    %2133 = vmatmul.mubr.f32.gmra.mrb[0].mxu0 %v1924
    %v2134 = vpop.f32.mrb[0].mxu0
    %v2135 = vadd.f32 %v2007, %v2134
    %v2136 = vpop.f32.mrb[0].mxu0
    %v2137 = vadd.f32 %v2011, %v2136
    %2138 = vmatprep.mubr.f32.mxu0 %v1927
    %2139 = vmatmul.mubr.f32.gmra.mrb[0].mxu0 %v1926
    %v2140 = vpop.f32.mrb[0].mxu0
    %v2141 = vadd.f32 %v2007, %v2140
    %v2142 = vpop.f32.mrb[0].mxu0
    %v2143 = vadd.f32 %v2011, %v2142
    %2144 = vmatprep.mubr.f32.mxu0 %v1929
    %2145 = vmatmul.mubr.f32.gmra.mrb[0].mxu0 %v1928
    %v2146 = vpop.f32.mrb[0].mxu0
    %v2147 = vadd.f32 %v2007, %v2146
    %v2148 = vpop.f32.mrb[0].mxu0
    %v2149 = vadd.f32 %v2011, %v2148
    %2150 = vmatprep.mubr.f32.mxu0 %v1931
    %2151 = vmatmul.mubr.f32.gmra.mrb[0].mxu0 %v1930
    %v2152 = vpop.f32.mrb[0].mxu0
    %v2153 = vadd.f32 %v2007, %v2152
    %v2154 = vpop.f32.mrb[0].mxu0
    %v2155 = vadd.f32 %v2011, %v2154
    %2156 = vmatprep.mubr.f32.mxu0 %v1933
    %2157 = vmatmul.mubr.f32.gmra.mrb[0].mxu0 %v1932
    %v2158 = vpop.f32.mrb[0].mxu0
    %v2159 = vadd.f32 %v2007, %v2158
    %v2160 = vpop.f32.mrb[0].mxu0
    %v2161 = vadd.f32 %v2011, %v2160
    %2162 = vmatprep.mubr.f32.mxu0 %v1935
    %2163 = vmatmul.mubr.f32.gmra.mrb[0].mxu0 %v1934
    %v2164 = vpop.f32.mrb[0].mxu0
    %v2165 = vadd.f32 %v2007, %v2164
    %v2166 = vpop.f32.mrb[0].mxu0
    %v2167 = vadd.f32 %v2011, %v2166
    %2168 = vmatprep.mubr.f32.mxu0 %v1937
    %2169 = vmatmul.mubr.f32.gmra.mrb[0].mxu0 %v1936
    %v2170 = vpop.f32.mrb[0].mxu0
    %v2171 = vadd.f32 %v2007, %v2170
    %v2172 = vpop.f32.mrb[0].mxu0
    %v2173 = vadd.f32 %v2011, %v2172
    %2174 = vdwg.mxu0
    %2175 = vst [vmem:[#allocation2] sm:$0xff] %v2081
    %2176 = vst [vmem:[#allocation2 + $0x8] sm:$0xff] %v2083
    %2177 = vst [vmem:[#allocation2 + $0x10] sm:$0xff] %v2087
    %2178 = vst [vmem:[#allocation2 + $0x18] sm:$0xff] %v2089
    %2179 = vst [vmem:[#allocation2 + $0x20] sm:$0xff] %v2093
    %2180 = vst [vmem:[#allocation2 + $0x28] sm:$0xff] %v2095
    %2181 = vst [vmem:[#allocation2 + $0x30] sm:$0xff] %v2099
    %2182 = vst [vmem:[#allocation2 + $0x38] sm:$0xff] %v2101
    %2183 = vst [vmem:[#allocation2 + $0x40] sm:$0xff] %v2105
    %2184 = vst [vmem:[#allocation2 + $0x48] sm:$0xff] %v2107
    %2185 = vst [vmem:[#allocation2 + $0x50] sm:$0xff] %v2111
    %2186 = vst [vmem:[#allocation2 + $0x58] sm:$0xff] %v2113
    %2187 = vst [vmem:[#allocation2 + $0x60] sm:$0xff] %v2117
    %2188 = vst [vmem:[#allocation2 + $0x68] sm:$0xff] %v2119
    %2189 = vst [vmem:[#allocation2 + $0x70] sm:$0xff] %v2123
    %2190 = vst [vmem:[#allocation2 + $0x78] sm:$0xff] %v2125
    %2191 = vst [vmem:[#allocation2 + $0x80] sm:$0xff] %v2129
    %2192 = vst [vmem:[#allocation2 + $0x88] sm:$0xff] %v2131
    %2193 = vst [vmem:[#allocation2 + $0x90] sm:$0xff] %v2135
    %2194 = vst [vmem:[#allocation2 + $0x98] sm:$0xff] %v2137
    %2195 = vst [vmem:[#allocation2 + $0xa0] sm:$0xff] %v2141
    %2196 = vst [vmem:[#allocation2 + $0xa8] sm:$0xff] %v2143
    %2197 = vst [vmem:[#allocation2 + $0xb0] sm:$0xff] %v2147
    %2198 = vst [vmem:[#allocation2 + $0xb8] sm:$0xff] %v2149
    %2199 = vst [vmem:[#allocation2 + $0xc0] sm:$0xff] %v2153
    %2200 = vst [vmem:[#allocation2 + $0xc8] sm:$0xff] %v2155
    %2201 = vst [vmem:[#allocation2 + $0xd0] sm:$0xff] %v2159
    %2202 = vst [vmem:[#allocation2 + $0xd8] sm:$0xff] %v2161
    %2203 = vst [vmem:[#allocation2 + $0xe0] sm:$0xff] %v2165
    %2204 = vst [vmem:[#allocation2 + $0xe8] sm:$0xff] %v2167
    %2205 = vst [vmem:[#allocation2 + $0xf0] sm:$0xff] %v2171
    %2206 = vst [vmem:[#allocation2 + $0xf8] sm:$0xff] %v2173
    %v2207 = vld [vmem:[%s8] sm:$0xff]
    %v2208 = vld [vmem:[%s8 + $0x8] sm:$0xff]
    %v2209 = vld [vmem:[%s8 + $0x10] sm:$0xff]
    %v2210 = vld [vmem:[%s8 + $0x18] sm:$0xff]
    %v2211 = vld [vmem:[%s8 + $0x20] sm:$0xff]
    %v2212 = vld [vmem:[%s8 + $0x28] sm:$0xff]
    %v2213 = vld [vmem:[%s8 + $0x30] sm:$0xff]
    %v2214 = vld [vmem:[%s8 + $0x38] sm:$0xff]
    %v2215 = vld [vmem:[%s8 + $0x40] sm:$0xff]
    %v2216 = vld [vmem:[%s8 + $0x48] sm:$0xff]
    %v2217 = vld [vmem:[%s8 + $0x50] sm:$0xff]
    %v2218 = vld [vmem:[%s8 + $0x58] sm:$0xff]
    %v2219 = vld [vmem:[%s8 + $0x60] sm:$0xff]
    %v2220 = vld [vmem:[%s8 + $0x68] sm:$0xff]
    %v2221 = vld [vmem:[%s8 + $0x70] sm:$0xff]
    %v2222 = vld [vmem:[%s8 + $0x78] sm:$0xff]
    %v2223 = vld [vmem:[#allocation16] sm:$0xff]
    %v2224 = vld [vmem:[#allocation16 + $0x8] sm:$0xff]
    %v2225 = vld [vmem:[#allocation16 + $0x10] sm:$0xff]
    %v2226 = vld [vmem:[#allocation16 + $0x18] sm:$0xff]
    %v2227 = vld [vmem:[#allocation16 + $0x20] sm:$0xff]
    %v2228 = vld [vmem:[#allocation16 + $0x28] sm:$0xff]
    %v2229 = vld [vmem:[#allocation16 + $0x30] sm:$0xff]
    %v2230 = vld [vmem:[#allocation16 + $0x38] sm:$0xff]
    %v2231 = vld [vmem:[#allocation16 + $0x40] sm:$0xff]
    %v2232 = vld [vmem:[#allocation16 + $0x48] sm:$0xff]
    %v2233 = vld [vmem:[#allocation16 + $0x50] sm:$0xff]
    %v2234 = vld [vmem:[#allocation16 + $0x58] sm:$0xff]
    %v2235 = vld [vmem:[#allocation16 + $0x60] sm:$0xff]
    %v2236 = vld [vmem:[#allocation16 + $0x68] sm:$0xff]
    %v2237 = vld [vmem:[#allocation16 + $0x70] sm:$0xff]
    %v2238 = vld [vmem:[#allocation16 + $0x78] sm:$0xff]
    %v2239 = vld [vmem:[#allocation17] sm:$0xff]
    %v2240 = vld [vmem:[#allocation17 + $0x8] sm:$0xff]
    %v2241 = vld [vmem:[#allocation17 + $0x10] sm:$0xff]
    %v2242 = vld [vmem:[#allocation17 + $0x18] sm:$0xff]
    %v2243 = vld [vmem:[#allocation17 + $0x20] sm:$0xff]
    %v2244 = vld [vmem:[#allocation17 + $0x28] sm:$0xff]
    %v2245 = vld [vmem:[#allocation17 + $0x30] sm:$0xff]
    %v2246 = vld [vmem:[#allocation17 + $0x38] sm:$0xff]
    %v2247 = vld [vmem:[#allocation17 + $0x40] sm:$0xff]
    %v2248 = vld [vmem:[#allocation17 + $0x48] sm:$0xff]
    %v2249 = vld [vmem:[#allocation17 + $0x50] sm:$0xff]
    %v2250 = vld [vmem:[#allocation17 + $0x58] sm:$0xff]
    %v2251 = vld [vmem:[#allocation17 + $0x60] sm:$0xff]
    %v2252 = vld [vmem:[#allocation17 + $0x68] sm:$0xff]
    %v2253 = vld [vmem:[#allocation17 + $0x70] sm:$0xff]
    %v2254 = vld [vmem:[#allocation17 + $0x78] sm:$0xff]
    %v2255 = vld [vmem:[#allocation19] sm:$0x3]
    %v2257 = vlaneseq
    %v2258 = vshrl.u32 %v2257, 7
    %v2259 = vsub.s32 0, %v2258
    %v2260 = vrot.slane %v2255, %v2259
    %v2261 = vlaneseq
    %v2262 = vshrl.u32 %v2261, 7
    %v2263 = vsub.s32 1, %v2262
    %v2264 = vrot.slane %v2255, %v2263
    %s2267 = smul.u32 0, 2
    %s2268 = smul.addr %s2267, 8
    %s2269 = scalar_lea.vmem [#allocation2], %s2268
    %v2270 = vld [vmem:[%s2269] sm:$0xff]
    %v2271 = vld [vmem:[%s2269 + $0x8] sm:$0xff]
    %v2273 = vsel %vm439, 0.0, 0
    %2275 = vmatprep.subr.mxu0 %v2208
    %2276 = vmatpush1.msra.mxu0 %v2207
    %2277 = vmatprep.subr.mxu0 %v2210
    %2278 = vmatpush1.msra.mxu0 %v2209
    %2279 = vmatprep.subr.mxu0 %v2212
    %2280 = vmatpush1.msra.mxu0 %v2211
    %2281 = vmatprep.subr.mxu0 %v2214
    %2282 = vmatpush1.msra.mxu0 %v2213
    %2283 = vmatprep.subr.mxu0 %v2216
    %2284 = vmatpush1.msra.mxu0 %v2215
    %2285 = vmatprep.subr.mxu0 %v2218
    %2286 = vmatpush1.msra.mxu0 %v2217
    %2287 = vmatprep.subr.mxu0 %v2220
    %2288 = vmatpush1.msra.mxu0 %v2219
    %2289 = vmatprep.subr.mxu0 %v2222
    %2290 = vmatpush1.msra.mxu0 %v2221
    %2291 = vmatprep.subr.mxu0 0.0
    %2292 = vmatpush1.msra.mxu0 0.0
    %2293 = vmatprep.subr.mxu0 0.0
    %2294 = vmatpush1.msra.mxu0 0.0
    %2295 = vmatprep.subr.mxu0 0.0
    %2296 = vmatpush1.msra.mxu0 0.0
    %2297 = vmatprep.subr.mxu0 0.0
    %2298 = vmatpush1.msra.mxu0 0.0
    %2299 = vmatprep.subr.mxu0 0.0
    %2300 = vmatpush1.msra.mxu0 0.0
    %2301 = vmatprep.subr.mxu0 0.0
    %2302 = vmatpush1.msra.mxu0 0.0
    %2303 = vmatprep.subr.mxu0 0.0
    %2304 = vmatpush1.msra.mxu0 0.0
    %2305 = vmatprep.subr.mxu0 0.0
    %2306 = vmatpush1.msra.mxu0 0.0
    %2307 = vmatprep.subr.mxu0 0.0
    %2308 = vmatpush1.msra.mxu0 0.0
    %2309 = vmatprep.subr.mxu0 0.0
    %2310 = vmatpush1.msra.mxu0 0.0
    %2311 = vmatprep.subr.mxu0 0.0
    %2312 = vmatpush1.msra.mxu0 0.0
    %2313 = vmatprep.subr.mxu0 0.0
    %2314 = vmatpush1.msra.mxu0 0.0
    %2315 = vmatprep.subr.mxu0 0.0
    %2316 = vmatpush1.msra.mxu0 0.0
    %2317 = vmatprep.subr.mxu0 0.0
    %2318 = vmatpush1.msra.mxu0 0.0
    %2319 = vmatprep.subr.mxu0 0.0
    %2320 = vmatpush1.msra.mxu0 0.0
    %2321 = vmatprep.subr.mxu0 0.0
    %2322 = vmatpush1.msra.mxu0 0.0
    %2323 = vmatprep.subr.mxu0 0.0
    %2324 = vmatpush1.msra.mxu0 0.0
    %2325 = vmatprep.subr.mxu0 0.0
    %2326 = vmatpush1.msra.mxu0 0.0
    %2327 = vmatprep.subr.mxu0 0.0
    %2328 = vmatpush1.msra.mxu0 0.0
    %2329 = vmatprep.subr.mxu0 0.0
    %2330 = vmatpush1.msra.mxu0 0.0
    %2331 = vmatprep.subr.mxu0 0.0
    %2332 = vmatpush1.msra.mxu0 0.0
    %2333 = vmatprep.subr.mxu0 0.0
    %2334 = vmatpush1.msra.mxu0 0.0
    %2335 = vmatprep.subr.mxu0 0.0
    %2336 = vmatpush1.msra.mxu0 0.0
    %2337 = vmatprep.subr.mxu0 0.0
    %2338 = vmatpush1.msra.mxu0 0.0
    %2339 = vmatprep.mubr.f32.mxu0 0.0
    %2340 = vmatmul.mubr.f32.gmra.mrb[0].mxu0 %v2273
    %v2341 = vpop.f32.mrb[0].mxu0
    %v2342 = vadd.f32 0.0, %v2341
    %v2343 = vpop.f32.mrb[0].mxu0
    %v2344 = vadd.f32 0.0, %v2343
    %2345 = vdwg.mxu0
    %v2346 = vadd.f32 %v2270, %v2342
    %v2347 = vadd.f32 %v2271, %v2344
    %v2348 = vxor.u32 %v2346, 2147483648
    %v2349 = vxor.u32 %v2347, 2147483648
    %v2350 = vmul.f32 %v2348, 1.442695
    %v2351 = vpow.pop %v2350
    %v2352 = vmul.f32 %v2349, 1.442695
    %v2353 = vpow.pop %v2352
    %v2354 = vadd.f32 %v2351, 1.0
    %v2355 = vadd.f32 %v2353, 1.0
    %v2356 = vrcp.pop %v2354
    %v2357 = vmul.f32 1.0, %v2356
    %v2358 = vrcp.pop %v2355
    %v2359 = vmul.f32 1.0, %v2358
    %v2360 = vtanh.pop %v2347
    %v2361 = vmul.f32 %v2357, 0.0
    %2363 = vrot.lane.b32.xlu0 %v2360, 64
    %v2364 = vpop.permute.xlu0 %2363
    %v2366 = vmul.f32 %v2357, %v2364
    %2368 = vrot.lane.b32.xlu0 %v2366, 64
    %v2369 = vpop.permute.xlu0 %2368
    %v2371 = vadd.f32 %v2361, %v2369
    %v2372 = vtanh.pop %v2371
    %2374 = vrot.lane.b32.xlu0 %v2372, 64
    %v2375 = vpop.permute.xlu0 %2374
    %v2377 = vmul.f32 %v2359, %v2375
    %2378 = vmatprep.subr.mxu0 %v2240
    %2379 = vmatpush1.msra.mxu0 %v2239
    %2380 = vmatprep.subr.mxu0 %v2242
    %2381 = vmatpush1.msra.mxu0 %v2241
    %2382 = vmatprep.subr.mxu0 %v2244
    %2383 = vmatpush1.msra.mxu0 %v2243
    %2384 = vmatprep.subr.mxu0 %v2246
    %2385 = vmatpush1.msra.mxu0 %v2245
    %2386 = vmatprep.subr.mxu0 %v2248
    %2387 = vmatpush1.msra.mxu0 %v2247
    %2388 = vmatprep.subr.mxu0 %v2250
    %2389 = vmatpush1.msra.mxu0 %v2249
    %2390 = vmatprep.subr.mxu0 %v2252
    %2391 = vmatpush1.msra.mxu0 %v2251
    %2392 = vmatprep.subr.mxu0 %v2254
    %2393 = vmatpush1.msra.mxu0 %v2253
    %2394 = vmatprep.subr.mxu0 0.0
    %2395 = vmatpush1.msra.mxu0 0.0
    %2396 = vmatprep.subr.mxu0 0.0
    %2397 = vmatpush1.msra.mxu0 0.0
    %2398 = vmatprep.subr.mxu0 0.0
    %2399 = vmatpush1.msra.mxu0 0.0
    %2400 = vmatprep.subr.mxu0 0.0
    %2401 = vmatpush1.msra.mxu0 0.0
    %2402 = vmatprep.subr.mxu0 0.0
    %2403 = vmatpush1.msra.mxu0 0.0
    %2404 = vmatprep.subr.mxu0 0.0
    %2405 = vmatpush1.msra.mxu0 0.0
    %2406 = vmatprep.subr.mxu0 0.0
    %2407 = vmatpush1.msra.mxu0 0.0
    %2408 = vmatprep.subr.mxu0 0.0
    %2409 = vmatpush1.msra.mxu0 0.0
    %2410 = vmatprep.subr.mxu0 0.0
    %2411 = vmatpush1.msra.mxu0 0.0
    %2412 = vmatprep.subr.mxu0 0.0
    %2413 = vmatpush1.msra.mxu0 0.0
    %2414 = vmatprep.subr.mxu0 0.0
    %2415 = vmatpush1.msra.mxu0 0.0
    %2416 = vmatprep.subr.mxu0 0.0
    %2417 = vmatpush1.msra.mxu0 0.0
    %2418 = vmatprep.subr.mxu0 0.0
    %2419 = vmatpush1.msra.mxu0 0.0
    %2420 = vmatprep.subr.mxu0 0.0
    %2421 = vmatpush1.msra.mxu0 0.0
    %2422 = vmatprep.subr.mxu0 0.0
    %2423 = vmatpush1.msra.mxu0 0.0
    %2424 = vmatprep.subr.mxu0 0.0
    %2425 = vmatpush1.msra.mxu0 0.0
    %2426 = vmatprep.subr.mxu0 0.0
    %2427 = vmatpush1.msra.mxu0 0.0
    %2428 = vmatprep.subr.mxu0 0.0
    %2429 = vmatpush1.msra.mxu0 0.0
    %2430 = vmatprep.subr.mxu0 0.0
    %2431 = vmatpush1.msra.mxu0 0.0
    %2432 = vmatprep.subr.mxu0 0.0
    %2433 = vmatpush1.msra.mxu0 0.0
    %2434 = vmatprep.subr.mxu0 0.0
    %2435 = vmatpush1.msra.mxu0 0.0
    %2436 = vmatprep.subr.mxu0 0.0
    %2437 = vmatpush1.msra.mxu0 0.0
    %2438 = vmatprep.subr.mxu0 0.0
    %2439 = vmatpush1.msra.mxu0 0.0
    %2440 = vmatprep.subr.mxu0 0.0
    %2441 = vmatpush1.msra.mxu0 0.0
    %2442 = vmatprep.mubr.f32.mxu0 0.0
    %2443 = vmatmul.mubr.f32.gmra.mrb[0].mxu0 %v2273
    %v2444 = vpop.f32.mrb[0].mxu0
    %v2445 = vadd.f32 0.0, %v2444
    %v2446 = vpop.f32.mrb[0].mxu0
    %v2447 = vadd.f32 0.0, %v2446
    %2448 = vdwg.mxu0
    %v2450 = vsel %vm439, %v2377, 0
    %2452 = vmatprep.subr.mxu0 %v2224
    %2453 = vmatpush1.msra.mxu0 %v2223
    %2454 = vmatprep.subr.mxu0 %v2226
    %2455 = vmatpush1.msra.mxu0 %v2225
    %2456 = vmatprep.subr.mxu0 %v2228
    %2457 = vmatpush1.msra.mxu0 %v2227
    %2458 = vmatprep.subr.mxu0 %v2230
    %2459 = vmatpush1.msra.mxu0 %v2229
    %2460 = vmatprep.subr.mxu0 %v2232
    %2461 = vmatpush1.msra.mxu0 %v2231
    %2462 = vmatprep.subr.mxu0 %v2234
    %2463 = vmatpush1.msra.mxu0 %v2233
    %2464 = vmatprep.subr.mxu0 %v2236
    %2465 = vmatpush1.msra.mxu0 %v2235
    %2466 = vmatprep.subr.mxu0 %v2238
    %2467 = vmatpush1.msra.mxu0 %v2237
    %2468 = vmatprep.subr.mxu0 0.0
    %2469 = vmatpush1.msra.mxu0 0.0
    %2470 = vmatprep.subr.mxu0 0.0
    %2471 = vmatpush1.msra.mxu0 0.0
    %2472 = vmatprep.subr.mxu0 0.0
    %2473 = vmatpush1.msra.mxu0 0.0
    %2474 = vmatprep.subr.mxu0 0.0
    %2475 = vmatpush1.msra.mxu0 0.0
    %2476 = vmatprep.subr.mxu0 0.0
    %2477 = vmatpush1.msra.mxu0 0.0
    %2478 = vmatprep.subr.mxu0 0.0
    %2479 = vmatpush1.msra.mxu0 0.0
    %2480 = vmatprep.subr.mxu0 0.0
    %2481 = vmatpush1.msra.mxu0 0.0
    %2482 = vmatprep.subr.mxu0 0.0
    %2483 = vmatpush1.msra.mxu0 0.0
    %2484 = vmatprep.subr.mxu0 0.0
    %2485 = vmatpush1.msra.mxu0 0.0
    %2486 = vmatprep.subr.mxu0 0.0
    %2487 = vmatpush1.msra.mxu0 0.0
    %2488 = vmatprep.subr.mxu0 0.0
    %2489 = vmatpush1.msra.mxu0 0.0
    %2490 = vmatprep.subr.mxu0 0.0
    %2491 = vmatpush1.msra.mxu0 0.0
    %2492 = vmatprep.subr.mxu0 0.0
    %2493 = vmatpush1.msra.mxu0 0.0
    %2494 = vmatprep.subr.mxu0 0.0
    %2495 = vmatpush1.msra.mxu0 0.0
    %2496 = vmatprep.subr.mxu0 0.0
    %2497 = vmatpush1.msra.mxu0 0.0
    %2498 = vmatprep.subr.mxu0 0.0
    %2499 = vmatpush1.msra.mxu0 0.0
    %2500 = vmatprep.subr.mxu0 0.0
    %2501 = vmatpush1.msra.mxu0 0.0
    %2502 = vmatprep.subr.mxu0 0.0
    %2503 = vmatpush1.msra.mxu0 0.0
    %2504 = vmatprep.subr.mxu0 0.0
    %2505 = vmatpush1.msra.mxu0 0.0
    %2506 = vmatprep.subr.mxu0 0.0
    %2507 = vmatpush1.msra.mxu0 0.0
    %2508 = vmatprep.subr.mxu0 0.0
    %2509 = vmatpush1.msra.mxu0 0.0
    %2510 = vmatprep.subr.mxu0 0.0
    %2511 = vmatpush1.msra.mxu0 0.0
    %2512 = vmatprep.subr.mxu0 0.0
    %2513 = vmatpush1.msra.mxu0 0.0
    %2514 = vmatprep.subr.mxu0 0.0
    %2515 = vmatpush1.msra.mxu0 0.0
    %2516 = vmatprep.mubr.f32.mxu0 0.0
    %2517 = vmatmul.mubr.f32.gmra.mrb[0].mxu0 %v2450
    %v2518 = vpop.f32.mrb[0].mxu0
    %v2519 = vadd.f32 %v2445, %v2518
    %v2520 = vpop.f32.mrb[0].mxu0
    %v2521 = vadd.f32 %v2447, %v2520
    %2522 = vdwg.mxu0
    %v2523 = vadd.f32 %v2519, %v2260
    %v2524 = vadd.f32 %v2521, %v2264
    %v2525 = vxor.u32 %v2523, 2147483648
    %v2526 = vxor.u32 %v2524, 2147483648
    %v2527 = vmul.f32 %v2525, 1.442695
    %v2528 = vpow.pop %v2527
    %v2529 = vmul.f32 %v2526, 1.442695
    %v2530 = vpow.pop %v2529
    %v2531 = vadd.f32 %v2528, 1.0
    %v2532 = vadd.f32 %v2530, 1.0
    %v2533 = vrcp.pop %v2531
    %v2534 = vmul.f32 1.0, %v2533
    %v2535 = vrcp.pop %v2532
    %v2536 = vmul.f32 1.0, %v2535
    %v2537 = vtanh.pop %v2524
    %v2538 = vmul.f32 %v2534, 0.0
    %2540 = vrot.lane.b32.xlu0 %v2537, 64
    %v2541 = vpop.permute.xlu0 %2540
    %v2543 = vmul.f32 %v2534, %v2541
    %2545 = vrot.lane.b32.xlu0 %v2543, 64
    %v2546 = vpop.permute.xlu0 %2545
    %v2548 = vadd.f32 %v2538, %v2546
    %v2549 = vtanh.pop %v2548
    %2551 = vrot.lane.b32.xlu0 %v2549, 64
    %v2552 = vpop.permute.xlu0 %2551
    %v2554 = vmul.f32 %v2536, %v2552
    %s2555 = smul.u32 1, 2
    %s2556 = smul.addr %s2555, 8
    %s2557 = scalar_lea.vmem [#allocation2], %s2556
    %v2558 = vld [vmem:[%s2557] sm:$0xff]
    %v2559 = vld [vmem:[%s2557 + $0x8] sm:$0xff]
    %2560 = vmatprep.subr.mxu0 %v2208
    %2561 = vmatpush1.msra.mxu0 %v2207
    %2562 = vmatprep.subr.mxu0 %v2210
    %2563 = vmatpush1.msra.mxu0 %v2209
    %2564 = vmatprep.subr.mxu0 %v2212
    %2565 = vmatpush1.msra.mxu0 %v2211
    %2566 = vmatprep.subr.mxu0 %v2214
    %2567 = vmatpush1.msra.mxu0 %v2213
    %2568 = vmatprep.subr.mxu0 %v2216
    %2569 = vmatpush1.msra.mxu0 %v2215
    %2570 = vmatprep.subr.mxu0 %v2218
    %2571 = vmatpush1.msra.mxu0 %v2217
    %2572 = vmatprep.subr.mxu0 %v2220
    %2573 = vmatpush1.msra.mxu0 %v2219
    %2574 = vmatprep.subr.mxu0 %v2222
    %2575 = vmatpush1.msra.mxu0 %v2221
    %2576 = vmatprep.subr.mxu0 0.0
    %2577 = vmatpush1.msra.mxu0 0.0
    %2578 = vmatprep.subr.mxu0 0.0
    %2579 = vmatpush1.msra.mxu0 0.0
    %2580 = vmatprep.subr.mxu0 0.0
    %2581 = vmatpush1.msra.mxu0 0.0
    %2582 = vmatprep.subr.mxu0 0.0
    %2583 = vmatpush1.msra.mxu0 0.0
    %2584 = vmatprep.subr.mxu0 0.0
    %2585 = vmatpush1.msra.mxu0 0.0
    %2586 = vmatprep.subr.mxu0 0.0
    %2587 = vmatpush1.msra.mxu0 0.0
    %2588 = vmatprep.subr.mxu0 0.0
    %2589 = vmatpush1.msra.mxu0 0.0
    %2590 = vmatprep.subr.mxu0 0.0
    %2591 = vmatpush1.msra.mxu0 0.0
    %2592 = vmatprep.subr.mxu0 0.0
    %2593 = vmatpush1.msra.mxu0 0.0
    %2594 = vmatprep.subr.mxu0 0.0
    %2595 = vmatpush1.msra.mxu0 0.0
    %2596 = vmatprep.subr.mxu0 0.0
    %2597 = vmatpush1.msra.mxu0 0.0
    %2598 = vmatprep.subr.mxu0 0.0
    %2599 = vmatpush1.msra.mxu0 0.0
    %2600 = vmatprep.subr.mxu0 0.0
    %2601 = vmatpush1.msra.mxu0 0.0
    %2602 = vmatprep.subr.mxu0 0.0
    %2603 = vmatpush1.msra.mxu0 0.0
    %2604 = vmatprep.subr.mxu0 0.0
    %2605 = vmatpush1.msra.mxu0 0.0
    %2606 = vmatprep.subr.mxu0 0.0
    %2607 = vmatpush1.msra.mxu0 0.0
    %2608 = vmatprep.subr.mxu0 0.0
    %2609 = vmatpush1.msra.mxu0 0.0
    %2610 = vmatprep.subr.mxu0 0.0
    %2611 = vmatpush1.msra.mxu0 0.0
    %2612 = vmatprep.subr.mxu0 0.0
    %2613 = vmatpush1.msra.mxu0 0.0
    %2614 = vmatprep.subr.mxu0 0.0
    %2615 = vmatpush1.msra.mxu0 0.0
    %2616 = vmatprep.subr.mxu0 0.0
    %2617 = vmatpush1.msra.mxu0 0.0
    %2618 = vmatprep.subr.mxu0 0.0
    %2619 = vmatpush1.msra.mxu0 0.0
    %2620 = vmatprep.subr.mxu0 0.0
    %2621 = vmatpush1.msra.mxu0 0.0
    %2622 = vmatprep.subr.mxu0 0.0
    %2623 = vmatpush1.msra.mxu0 0.0
    %2624 = vmatprep.mubr.f32.mxu0 0.0
    %2625 = vmatmul.mubr.f32.gmra.mrb[0].mxu0 %v2450
    %v2626 = vpop.f32.mrb[0].mxu0
    %v2627 = vadd.f32 0.0, %v2626
    %v2628 = vpop.f32.mrb[0].mxu0
    %v2629 = vadd.f32 0.0, %v2628
    %2630 = vdwg.mxu0
    %v2631 = vadd.f32 %v2558, %v2627
    %v2632 = vadd.f32 %v2559, %v2629
    %v2633 = vxor.u32 %v2631, 2147483648
    %v2634 = vxor.u32 %v2632, 2147483648
    %v2635 = vmul.f32 %v2633, 1.442695
    %v2636 = vpow.pop %v2635
    %v2637 = vmul.f32 %v2634, 1.442695
    %v2638 = vpow.pop %v2637
    %v2639 = vadd.f32 %v2636, 1.0
    %v2640 = vadd.f32 %v2638, 1.0
    %v2641 = vrcp.pop %v2639
    %v2642 = vmul.f32 1.0, %v2641
    %v2643 = vrcp.pop %v2640
    %v2644 = vmul.f32 1.0, %v2643
    %v2645 = vtanh.pop %v2632
    %v2646 = vmul.f32 %v2642, %v2371
    %2648 = vrot.lane.b32.xlu0 %v2645, 64
    %v2649 = vpop.permute.xlu0 %2648
    %v2651 = vmul.f32 %v2642, %v2649
    %2653 = vrot.lane.b32.xlu0 %v2651, 64
    %v2654 = vpop.permute.xlu0 %2653
    %v2656 = vadd.f32 %v2646, %v2654
    %v2657 = vtanh.pop %v2656
    %2659 = vrot.lane.b32.xlu0 %v2657, 64
    %v2660 = vpop.permute.xlu0 %2659
    %v2662 = vmul.f32 %v2644, %v2660
    %v2664 = vsel %vm439, %v2554, 0
    %2666 = vmatprep.subr.mxu0 %v2240
    %2667 = vmatpush1.msra.mxu0 %v2239
    %2668 = vmatprep.subr.mxu0 %v2242
    %2669 = vmatpush1.msra.mxu0 %v2241
    %2670 = vmatprep.subr.mxu0 %v2244
    %2671 = vmatpush1.msra.mxu0 %v2243
    %2672 = vmatprep.subr.mxu0 %v2246
    %2673 = vmatpush1.msra.mxu0 %v2245
    %2674 = vmatprep.subr.mxu0 %v2248
    %2675 = vmatpush1.msra.mxu0 %v2247
    %2676 = vmatprep.subr.mxu0 %v2250
    %2677 = vmatpush1.msra.mxu0 %v2249
    %2678 = vmatprep.subr.mxu0 %v2252
    %2679 = vmatpush1.msra.mxu0 %v2251
    %2680 = vmatprep.subr.mxu0 %v2254
    %2681 = vmatpush1.msra.mxu0 %v2253
    %2682 = vmatprep.subr.mxu0 0.0
    %2683 = vmatpush1.msra.mxu0 0.0
    %2684 = vmatprep.subr.mxu0 0.0
    %2685 = vmatpush1.msra.mxu0 0.0
    %2686 = vmatprep.subr.mxu0 0.0
    %2687 = vmatpush1.msra.mxu0 0.0
    %2688 = vmatprep.subr.mxu0 0.0
    %2689 = vmatpush1.msra.mxu0 0.0
    %2690 = vmatprep.subr.mxu0 0.0
    %2691 = vmatpush1.msra.mxu0 0.0
    %2692 = vmatprep.subr.mxu0 0.0
    %2693 = vmatpush1.msra.mxu0 0.0
    %2694 = vmatprep.subr.mxu0 0.0
    %2695 = vmatpush1.msra.mxu0 0.0
    %2696 = vmatprep.subr.mxu0 0.0
    %2697 = vmatpush1.msra.mxu0 0.0
    %2698 = vmatprep.subr.mxu0 0.0
    %2699 = vmatpush1.msra.mxu0 0.0
    %2700 = vmatprep.subr.mxu0 0.0
    %2701 = vmatpush1.msra.mxu0 0.0
    %2702 = vmatprep.subr.mxu0 0.0
    %2703 = vmatpush1.msra.mxu0 0.0
    %2704 = vmatprep.subr.mxu0 0.0
    %2705 = vmatpush1.msra.mxu0 0.0
    %2706 = vmatprep.subr.mxu0 0.0
    %2707 = vmatpush1.msra.mxu0 0.0
    %2708 = vmatprep.subr.mxu0 0.0
    %2709 = vmatpush1.msra.mxu0 0.0
    %2710 = vmatprep.subr.mxu0 0.0
    %2711 = vmatpush1.msra.mxu0 0.0
    %2712 = vmatprep.subr.mxu0 0.0
    %2713 = vmatpush1.msra.mxu0 0.0
    %2714 = vmatprep.subr.mxu0 0.0
    %2715 = vmatpush1.msra.mxu0 0.0
    %2716 = vmatprep.subr.mxu0 0.0
    %2717 = vmatpush1.msra.mxu0 0.0
    %2718 = vmatprep.subr.mxu0 0.0
    %2719 = vmatpush1.msra.mxu0 0.0
    %2720 = vmatprep.subr.mxu0 0.0
    %2721 = vmatpush1.msra.mxu0 0.0
    %2722 = vmatprep.subr.mxu0 0.0
    %2723 = vmatpush1.msra.mxu0 0.0
    %2724 = vmatprep.subr.mxu0 0.0
    %2725 = vmatpush1.msra.mxu0 0.0
    %2726 = vmatprep.subr.mxu0 0.0
    %2727 = vmatpush1.msra.mxu0 0.0
    %2728 = vmatprep.subr.mxu0 0.0
    %2729 = vmatpush1.msra.mxu0 0.0
    %2730 = vmatprep.mubr.f32.mxu0 0.0
    %2731 = vmatmul.mubr.f32.gmra.mrb[0].mxu0 %v2664
    %v2732 = vpop.f32.mrb[0].mxu0
    %v2733 = vadd.f32 0.0, %v2732
    %v2734 = vpop.f32.mrb[0].mxu0
    %v2735 = vadd.f32 0.0, %v2734
    %2736 = vdwg.mxu0
    %v2738 = vsel %vm439, %v2662, 0
    %2740 = vmatprep.subr.mxu0 %v2224
    %2741 = vmatpush1.msra.mxu0 %v2223
    %2742 = vmatprep.subr.mxu0 %v2226
    %2743 = vmatpush1.msra.mxu0 %v2225
    %2744 = vmatprep.subr.mxu0 %v2228
    %2745 = vmatpush1.msra.mxu0 %v2227
    %2746 = vmatprep.subr.mxu0 %v2230
    %2747 = vmatpush1.msra.mxu0 %v2229
    %2748 = vmatprep.subr.mxu0 %v2232
    %2749 = vmatpush1.msra.mxu0 %v2231
    %2750 = vmatprep.subr.mxu0 %v2234
    %2751 = vmatpush1.msra.mxu0 %v2233
    %2752 = vmatprep.subr.mxu0 %v2236
    %2753 = vmatpush1.msra.mxu0 %v2235
    %2754 = vmatprep.subr.mxu0 %v2238
    %2755 = vmatpush1.msra.mxu0 %v2237
    %2756 = vmatprep.subr.mxu0 0.0
    %2757 = vmatpush1.msra.mxu0 0.0
    %2758 = vmatprep.subr.mxu0 0.0
    %2759 = vmatpush1.msra.mxu0 0.0
    %2760 = vmatprep.subr.mxu0 0.0
    %2761 = vmatpush1.msra.mxu0 0.0
    %2762 = vmatprep.subr.mxu0 0.0
    %2763 = vmatpush1.msra.mxu0 0.0
    %2764 = vmatprep.subr.mxu0 0.0
    %2765 = vmatpush1.msra.mxu0 0.0
    %2766 = vmatprep.subr.mxu0 0.0
    %2767 = vmatpush1.msra.mxu0 0.0
    %2768 = vmatprep.subr.mxu0 0.0
    %2769 = vmatpush1.msra.mxu0 0.0
    %2770 = vmatprep.subr.mxu0 0.0
    %2771 = vmatpush1.msra.mxu0 0.0
    %2772 = vmatprep.subr.mxu0 0.0
    %2773 = vmatpush1.msra.mxu0 0.0
    %2774 = vmatprep.subr.mxu0 0.0
    %2775 = vmatpush1.msra.mxu0 0.0
    %2776 = vmatprep.subr.mxu0 0.0
    %2777 = vmatpush1.msra.mxu0 0.0
    %2778 = vmatprep.subr.mxu0 0.0
    %2779 = vmatpush1.msra.mxu0 0.0
    %2780 = vmatprep.subr.mxu0 0.0
    %2781 = vmatpush1.msra.mxu0 0.0
    %2782 = vmatprep.subr.mxu0 0.0
    %2783 = vmatpush1.msra.mxu0 0.0
    %2784 = vmatprep.subr.mxu0 0.0
    %2785 = vmatpush1.msra.mxu0 0.0
    %2786 = vmatprep.subr.mxu0 0.0
    %2787 = vmatpush1.msra.mxu0 0.0
    %2788 = vmatprep.subr.mxu0 0.0
    %2789 = vmatpush1.msra.mxu0 0.0
    %2790 = vmatprep.subr.mxu0 0.0
    %2791 = vmatpush1.msra.mxu0 0.0
    %2792 = vmatprep.subr.mxu0 0.0
    %2793 = vmatpush1.msra.mxu0 0.0
    %2794 = vmatprep.subr.mxu0 0.0
    %2795 = vmatpush1.msra.mxu0 0.0
    %2796 = vmatprep.subr.mxu0 0.0
    %2797 = vmatpush1.msra.mxu0 0.0
    %2798 = vmatprep.subr.mxu0 0.0
    %2799 = vmatpush1.msra.mxu0 0.0
    %2800 = vmatprep.subr.mxu0 0.0
    %2801 = vmatpush1.msra.mxu0 0.0
    %2802 = vmatprep.subr.mxu0 0.0
    %2803 = vmatpush1.msra.mxu0 0.0
    %2804 = vmatprep.mubr.f32.mxu0 0.0
    %2805 = vmatmul.mubr.f32.gmra.mrb[0].mxu0 %v2738
    %v2806 = vpop.f32.mrb[0].mxu0
    %v2807 = vadd.f32 %v2733, %v2806
    %v2808 = vpop.f32.mrb[0].mxu0
    %v2809 = vadd.f32 %v2735, %v2808
    %2810 = vdwg.mxu0
    %v2811 = vadd.f32 %v2807, %v2260
    %v2812 = vadd.f32 %v2809, %v2264
    %v2813 = vxor.u32 %v2811, 2147483648
    %v2814 = vxor.u32 %v2812, 2147483648
    %v2815 = vmul.f32 %v2813, 1.442695
    %v2816 = vpow.pop %v2815
    %v2817 = vmul.f32 %v2814, 1.442695
    %v2818 = vpow.pop %v2817
    %v2819 = vadd.f32 %v2816, 1.0
    %v2820 = vadd.f32 %v2818, 1.0
    %v2821 = vrcp.pop %v2819
    %v2822 = vmul.f32 1.0, %v2821
    %v2823 = vrcp.pop %v2820
    %v2824 = vmul.f32 1.0, %v2823
    %v2825 = vtanh.pop %v2812
    %v2826 = vmul.f32 %v2822, %v2548
    %2828 = vrot.lane.b32.xlu0 %v2825, 64
    %v2829 = vpop.permute.xlu0 %2828
    %v2831 = vmul.f32 %v2822, %v2829
    %2833 = vrot.lane.b32.xlu0 %v2831, 64
    %v2834 = vpop.permute.xlu0 %2833
    %v2836 = vadd.f32 %v2826, %v2834
    %v2837 = vtanh.pop %v2836
    %2839 = vrot.lane.b32.xlu0 %v2837, 64
    %v2840 = vpop.permute.xlu0 %2839
    %v2842 = vmul.f32 %v2824, %v2840
    %s2843 = smul.u32 2, 2
    %s2844 = smul.addr %s2843, 8
    %s2845 = scalar_lea.vmem [#allocation2], %s2844
    %v2846 = vld [vmem:[%s2845] sm:$0xff]
    %v2847 = vld [vmem:[%s2845 + $0x8] sm:$0xff]
    %2848 = vmatprep.subr.mxu0 %v2208
    %2849 = vmatpush1.msra.mxu0 %v2207
    %2850 = vmatprep.subr.mxu0 %v2210
    %2851 = vmatpush1.msra.mxu0 %v2209
    %2852 = vmatprep.subr.mxu0 %v2212
    %2853 = vmatpush1.msra.mxu0 %v2211
    %2854 = vmatprep.subr.mxu0 %v2214
    %2855 = vmatpush1.msra.mxu0 %v2213
    %2856 = vmatprep.subr.mxu0 %v2216
    %2857 = vmatpush1.msra.mxu0 %v2215
    %2858 = vmatprep.subr.mxu0 %v2218
    %2859 = vmatpush1.msra.mxu0 %v2217
    %2860 = vmatprep.subr.mxu0 %v2220
    %2861 = vmatpush1.msra.mxu0 %v2219
    %2862 = vmatprep.subr.mxu0 %v2222
    %2863 = vmatpush1.msra.mxu0 %v2221
    %2864 = vmatprep.subr.mxu0 0.0
    %2865 = vmatpush1.msra.mxu0 0.0
    %2866 = vmatprep.subr.mxu0 0.0
    %2867 = vmatpush1.msra.mxu0 0.0
    %2868 = vmatprep.subr.mxu0 0.0
    %2869 = vmatpush1.msra.mxu0 0.0
    %2870 = vmatprep.subr.mxu0 0.0
    %2871 = vmatpush1.msra.mxu0 0.0
    %2872 = vmatprep.subr.mxu0 0.0
    %2873 = vmatpush1.msra.mxu0 0.0
    %2874 = vmatprep.subr.mxu0 0.0
    %2875 = vmatpush1.msra.mxu0 0.0
    %2876 = vmatprep.subr.mxu0 0.0
    %2877 = vmatpush1.msra.mxu0 0.0
    %2878 = vmatprep.subr.mxu0 0.0
    %2879 = vmatpush1.msra.mxu0 0.0
    %2880 = vmatprep.subr.mxu0 0.0
    %2881 = vmatpush1.msra.mxu0 0.0
    %2882 = vmatprep.subr.mxu0 0.0
    %2883 = vmatpush1.msra.mxu0 0.0
    %2884 = vmatprep.subr.mxu0 0.0
    %2885 = vmatpush1.msra.mxu0 0.0
    %2886 = vmatprep.subr.mxu0 0.0
    %2887 = vmatpush1.msra.mxu0 0.0
    %2888 = vmatprep.subr.mxu0 0.0
    %2889 = vmatpush1.msra.mxu0 0.0
    %2890 = vmatprep.subr.mxu0 0.0
    %2891 = vmatpush1.msra.mxu0 0.0
    %2892 = vmatprep.subr.mxu0 0.0
    %2893 = vmatpush1.msra.mxu0 0.0
    %2894 = vmatprep.subr.mxu0 0.0
    %2895 = vmatpush1.msra.mxu0 0.0
    %2896 = vmatprep.subr.mxu0 0.0
    %2897 = vmatpush1.msra.mxu0 0.0
    %2898 = vmatprep.subr.mxu0 0.0
    %2899 = vmatpush1.msra.mxu0 0.0
    %2900 = vmatprep.subr.mxu0 0.0
    %2901 = vmatpush1.msra.mxu0 0.0
    %2902 = vmatprep.subr.mxu0 0.0
    %2903 = vmatpush1.msra.mxu0 0.0
    %2904 = vmatprep.subr.mxu0 0.0
    %2905 = vmatpush1.msra.mxu0 0.0
    %2906 = vmatprep.subr.mxu0 0.0
    %2907 = vmatpush1.msra.mxu0 0.0
    %2908 = vmatprep.subr.mxu0 0.0
    %2909 = vmatpush1.msra.mxu0 0.0
    %2910 = vmatprep.subr.mxu0 0.0
    %2911 = vmatpush1.msra.mxu0 0.0
    %2912 = vmatprep.mubr.f32.mxu0 0.0
    %2913 = vmatmul.mubr.f32.gmra.mrb[0].mxu0 %v2738
    %v2914 = vpop.f32.mrb[0].mxu0
    %v2915 = vadd.f32 0.0, %v2914
    %v2916 = vpop.f32.mrb[0].mxu0
    %v2917 = vadd.f32 0.0, %v2916
    %2918 = vdwg.mxu0
    %v2919 = vadd.f32 %v2846, %v2915
    %v2920 = vadd.f32 %v2847, %v2917
    %v2921 = vxor.u32 %v2919, 2147483648
    %v2922 = vxor.u32 %v2920, 2147483648
    %v2923 = vmul.f32 %v2921, 1.442695
    %v2924 = vpow.pop %v2923
    %v2925 = vmul.f32 %v2922, 1.442695
    %v2926 = vpow.pop %v2925
    %v2927 = vadd.f32 %v2924, 1.0
    %v2928 = vadd.f32 %v2926, 1.0
    %v2929 = vrcp.pop %v2927
    %v2930 = vmul.f32 1.0, %v2929
    %v2931 = vrcp.pop %v2928
    %v2932 = vmul.f32 1.0, %v2931
    %v2933 = vtanh.pop %v2920
    %v2934 = vmul.f32 %v2930, %v2656
    %2936 = vrot.lane.b32.xlu0 %v2933, 64
    %v2937 = vpop.permute.xlu0 %2936
    %v2939 = vmul.f32 %v2930, %v2937
    %2941 = vrot.lane.b32.xlu0 %v2939, 64
    %v2942 = vpop.permute.xlu0 %2941
    %v2944 = vadd.f32 %v2934, %v2942
    %v2945 = vtanh.pop %v2944
    %2947 = vrot.lane.b32.xlu0 %v2945, 64
    %v2948 = vpop.permute.xlu0 %2947
    %v2950 = vmul.f32 %v2932, %v2948
    %v2952 = vsel %vm439, %v2842, 0
    %2954 = vmatprep.subr.mxu0 %v2240
    %2955 = vmatpush1.msra.mxu0 %v2239
    %2956 = vmatprep.subr.mxu0 %v2242
    %2957 = vmatpush1.msra.mxu0 %v2241
    %2958 = vmatprep.subr.mxu0 %v2244
    %2959 = vmatpush1.msra.mxu0 %v2243
    %2960 = vmatprep.subr.mxu0 %v2246
    %2961 = vmatpush1.msra.mxu0 %v2245
    %2962 = vmatprep.subr.mxu0 %v2248
    %2963 = vmatpush1.msra.mxu0 %v2247
    %2964 = vmatprep.subr.mxu0 %v2250
    %2965 = vmatpush1.msra.mxu0 %v2249
    %2966 = vmatprep.subr.mxu0 %v2252
    %2967 = vmatpush1.msra.mxu0 %v2251
    %2968 = vmatprep.subr.mxu0 %v2254
    %2969 = vmatpush1.msra.mxu0 %v2253
    %2970 = vmatprep.subr.mxu0 0.0
    %2971 = vmatpush1.msra.mxu0 0.0
    %2972 = vmatprep.subr.mxu0 0.0
    %2973 = vmatpush1.msra.mxu0 0.0
    %2974 = vmatprep.subr.mxu0 0.0
    %2975 = vmatpush1.msra.mxu0 0.0
    %2976 = vmatprep.subr.mxu0 0.0
    %2977 = vmatpush1.msra.mxu0 0.0
    %2978 = vmatprep.subr.mxu0 0.0
    %2979 = vmatpush1.msra.mxu0 0.0
    %2980 = vmatprep.subr.mxu0 0.0
    %2981 = vmatpush1.msra.mxu0 0.0
    %2982 = vmatprep.subr.mxu0 0.0
    %2983 = vmatpush1.msra.mxu0 0.0
    %2984 = vmatprep.subr.mxu0 0.0
    %2985 = vmatpush1.msra.mxu0 0.0
    %2986 = vmatprep.subr.mxu0 0.0
    %2987 = vmatpush1.msra.mxu0 0.0
    %2988 = vmatprep.subr.mxu0 0.0
    %2989 = vmatpush1.msra.mxu0 0.0
    %2990 = vmatprep.subr.mxu0 0.0
    %2991 = vmatpush1.msra.mxu0 0.0
    %2992 = vmatprep.subr.mxu0 0.0
    %2993 = vmatpush1.msra.mxu0 0.0
    %2994 = vmatprep.subr.mxu0 0.0
    %2995 = vmatpush1.msra.mxu0 0.0
    %2996 = vmatprep.subr.mxu0 0.0
    %2997 = vmatpush1.msra.mxu0 0.0
    %2998 = vmatprep.subr.mxu0 0.0
    %2999 = vmatpush1.msra.mxu0 0.0
    %3000 = vmatprep.subr.mxu0 0.0
    %3001 = vmatpush1.msra.mxu0 0.0
    %3002 = vmatprep.subr.mxu0 0.0
    %3003 = vmatpush1.msra.mxu0 0.0
    %3004 = vmatprep.subr.mxu0 0.0
    %3005 = vmatpush1.msra.mxu0 0.0
    %3006 = vmatprep.subr.mxu0 0.0
    %3007 = vmatpush1.msra.mxu0 0.0
    %3008 = vmatprep.subr.mxu0 0.0
    %3009 = vmatpush1.msra.mxu0 0.0
    %3010 = vmatprep.subr.mxu0 0.0
    %3011 = vmatpush1.msra.mxu0 0.0
    %3012 = vmatprep.subr.mxu0 0.0
    %3013 = vmatpush1.msra.mxu0 0.0
    %3014 = vmatprep.subr.mxu0 0.0
    %3015 = vmatpush1.msra.mxu0 0.0
    %3016 = vmatprep.subr.mxu0 0.0
    %3017 = vmatpush1.msra.mxu0 0.0
    %3018 = vmatprep.mubr.f32.mxu0 0.0
    %3019 = vmatmul.mubr.f32.gmra.mrb[0].mxu0 %v2952
    %v3020 = vpop.f32.mrb[0].mxu0
    %v3021 = vadd.f32 0.0, %v3020
    %v3022 = vpop.f32.mrb[0].mxu0
    %v3023 = vadd.f32 0.0, %v3022
    %3024 = vdwg.mxu0
    %v3026 = vsel %vm439, %v2950, 0
    %3028 = vmatprep.subr.mxu0 %v2224
    %3029 = vmatpush1.msra.mxu0 %v2223
    %3030 = vmatprep.subr.mxu0 %v2226
    %3031 = vmatpush1.msra.mxu0 %v2225
    %3032 = vmatprep.subr.mxu0 %v2228
    %3033 = vmatpush1.msra.mxu0 %v2227
    %3034 = vmatprep.subr.mxu0 %v2230
    %3035 = vmatpush1.msra.mxu0 %v2229
    %3036 = vmatprep.subr.mxu0 %v2232
    %3037 = vmatpush1.msra.mxu0 %v2231
    %3038 = vmatprep.subr.mxu0 %v2234
    %3039 = vmatpush1.msra.mxu0 %v2233
    %3040 = vmatprep.subr.mxu0 %v2236
    %3041 = vmatpush1.msra.mxu0 %v2235
    %3042 = vmatprep.subr.mxu0 %v2238
    %3043 = vmatpush1.msra.mxu0 %v2237
    %3044 = vmatprep.subr.mxu0 0.0
    %3045 = vmatpush1.msra.mxu0 0.0
    %3046 = vmatprep.subr.mxu0 0.0
    %3047 = vmatpush1.msra.mxu0 0.0
    %3048 = vmatprep.subr.mxu0 0.0
    %3049 = vmatpush1.msra.mxu0 0.0
    %3050 = vmatprep.subr.mxu0 0.0
    %3051 = vmatpush1.msra.mxu0 0.0
    %3052 = vmatprep.subr.mxu0 0.0
    %3053 = vmatpush1.msra.mxu0 0.0
    %3054 = vmatprep.subr.mxu0 0.0
    %3055 = vmatpush1.msra.mxu0 0.0
    %3056 = vmatprep.subr.mxu0 0.0
    %3057 = vmatpush1.msra.mxu0 0.0
    %3058 = vmatprep.subr.mxu0 0.0
    %3059 = vmatpush1.msra.mxu0 0.0
    %3060 = vmatprep.subr.mxu0 0.0
    %3061 = vmatpush1.msra.mxu0 0.0
    %3062 = vmatprep.subr.mxu0 0.0
    %3063 = vmatpush1.msra.mxu0 0.0
    %3064 = vmatprep.subr.mxu0 0.0
    %3065 = vmatpush1.msra.mxu0 0.0
    %3066 = vmatprep.subr.mxu0 0.0
    %3067 = vmatpush1.msra.mxu0 0.0
    %3068 = vmatprep.subr.mxu0 0.0
    %3069 = vmatpush1.msra.mxu0 0.0
    %3070 = vmatprep.subr.mxu0 0.0
    %3071 = vmatpush1.msra.mxu0 0.0
    %3072 = vmatprep.subr.mxu0 0.0
    %3073 = vmatpush1.msra.mxu0 0.0
    %3074 = vmatprep.subr.mxu0 0.0
    %3075 = vmatpush1.msra.mxu0 0.0
    %3076 = vmatprep.subr.mxu0 0.0
    %3077 = vmatpush1.msra.mxu0 0.0
    %3078 = vmatprep.subr.mxu0 0.0
    %3079 = vmatpush1.msra.mxu0 0.0
    %3080 = vmatprep.subr.mxu0 0.0
    %3081 = vmatpush1.msra.mxu0 0.0
    %3082 = vmatprep.subr.mxu0 0.0
    %3083 = vmatpush1.msra.mxu0 0.0
    %3084 = vmatprep.subr.mxu0 0.0
    %3085 = vmatpush1.msra.mxu0 0.0
    %3086 = vmatprep.subr.mxu0 0.0
    %3087 = vmatpush1.msra.mxu0 0.0
    %3088 = vmatprep.subr.mxu0 0.0
    %3089 = vmatpush1.msra.mxu0 0.0
    %3090 = vmatprep.subr.mxu0 0.0
    %3091 = vmatpush1.msra.mxu0 0.0
    %3092 = vmatprep.mubr.f32.mxu0 0.0
    %3093 = vmatmul.mubr.f32.gmra.mrb[0].mxu0 %v3026
    %v3094 = vpop.f32.mrb[0].mxu0
    %v3095 = vadd.f32 %v3021, %v3094
    %v3096 = vpop.f32.mrb[0].mxu0
    %v3097 = vadd.f32 %v3023, %v3096
    %3098 = vdwg.mxu0
    %v3099 = vadd.f32 %v3095, %v2260
    %v3100 = vadd.f32 %v3097, %v2264
    %v3101 = vxor.u32 %v3099, 2147483648
    %v3102 = vxor.u32 %v3100, 2147483648
    %v3103 = vmul.f32 %v3101, 1.442695
    %v3104 = vpow.pop %v3103
    %v3105 = vmul.f32 %v3102, 1.442695
    %v3106 = vpow.pop %v3105
    %v3107 = vadd.f32 %v3104, 1.0
    %v3108 = vadd.f32 %v3106, 1.0
    %v3109 = vrcp.pop %v3107
    %v3110 = vmul.f32 1.0, %v3109
    %v3111 = vrcp.pop %v3108
    %v3112 = vmul.f32 1.0, %v3111
    %v3113 = vtanh.pop %v3100
    %v3114 = vmul.f32 %v3110, %v2836
    %3116 = vrot.lane.b32.xlu0 %v3113, 64
    %v3117 = vpop.permute.xlu0 %3116
    %v3119 = vmul.f32 %v3110, %v3117
    %3121 = vrot.lane.b32.xlu0 %v3119, 64
    %v3122 = vpop.permute.xlu0 %3121
    %v3124 = vadd.f32 %v3114, %v3122
    %v3125 = vtanh.pop %v3124
    %3127 = vrot.lane.b32.xlu0 %v3125, 64
    %v3128 = vpop.permute.xlu0 %3127
    %v3130 = vmul.f32 %v3112, %v3128
    %s3131 = smul.u32 3, 2
    %s3132 = smul.addr %s3131, 8
    %s3133 = scalar_lea.vmem [#allocation2], %s3132
    %v3134 = vld [vmem:[%s3133] sm:$0xff]
    %v3135 = vld [vmem:[%s3133 + $0x8] sm:$0xff]
    %3136 = vmatprep.subr.mxu0 %v2208
    %3137 = vmatpush1.msra.mxu0 %v2207
    %3138 = vmatprep.subr.mxu0 %v2210
    %3139 = vmatpush1.msra.mxu0 %v2209
    %3140 = vmatprep.subr.mxu0 %v2212
    %3141 = vmatpush1.msra.mxu0 %v2211
    %3142 = vmatprep.subr.mxu0 %v2214
    %3143 = vmatpush1.msra.mxu0 %v2213
    %3144 = vmatprep.subr.mxu0 %v2216
    %3145 = vmatpush1.msra.mxu0 %v2215
    %3146 = vmatprep.subr.mxu0 %v2218
    %3147 = vmatpush1.msra.mxu0 %v2217
    %3148 = vmatprep.subr.mxu0 %v2220
    %3149 = vmatpush1.msra.mxu0 %v2219
    %3150 = vmatprep.subr.mxu0 %v2222
    %3151 = vmatpush1.msra.mxu0 %v2221
    %3152 = vmatprep.subr.mxu0 0.0
    %3153 = vmatpush1.msra.mxu0 0.0
    %3154 = vmatprep.subr.mxu0 0.0
    %3155 = vmatpush1.msra.mxu0 0.0
    %3156 = vmatprep.subr.mxu0 0.0
    %3157 = vmatpush1.msra.mxu0 0.0
    %3158 = vmatprep.subr.mxu0 0.0
    %3159 = vmatpush1.msra.mxu0 0.0
    %3160 = vmatprep.subr.mxu0 0.0
    %3161 = vmatpush1.msra.mxu0 0.0
    %3162 = vmatprep.subr.mxu0 0.0
    %3163 = vmatpush1.msra.mxu0 0.0
    %3164 = vmatprep.subr.mxu0 0.0
    %3165 = vmatpush1.msra.mxu0 0.0
    %3166 = vmatprep.subr.mxu0 0.0
    %3167 = vmatpush1.msra.mxu0 0.0
    %3168 = vmatprep.subr.mxu0 0.0
    %3169 = vmatpush1.msra.mxu0 0.0
    %3170 = vmatprep.subr.mxu0 0.0
    %3171 = vmatpush1.msra.mxu0 0.0
    %3172 = vmatprep.subr.mxu0 0.0
    %3173 = vmatpush1.msra.mxu0 0.0
    %3174 = vmatprep.subr.mxu0 0.0
    %3175 = vmatpush1.msra.mxu0 0.0
    %3176 = vmatprep.subr.mxu0 0.0
    %3177 = vmatpush1.msra.mxu0 0.0
    %3178 = vmatprep.subr.mxu0 0.0
    %3179 = vmatpush1.msra.mxu0 0.0
    %3180 = vmatprep.subr.mxu0 0.0
    %3181 = vmatpush1.msra.mxu0 0.0
    %3182 = vmatprep.subr.mxu0 0.0
    %3183 = vmatpush1.msra.mxu0 0.0
    %3184 = vmatprep.subr.mxu0 0.0
    %3185 = vmatpush1.msra.mxu0 0.0
    %3186 = vmatprep.subr.mxu0 0.0
    %3187 = vmatpush1.msra.mxu0 0.0
    %3188 = vmatprep.subr.mxu0 0.0
    %3189 = vmatpush1.msra.mxu0 0.0
    %3190 = vmatprep.subr.mxu0 0.0
    %3191 = vmatpush1.msra.mxu0 0.0
    %3192 = vmatprep.subr.mxu0 0.0
    %3193 = vmatpush1.msra.mxu0 0.0
    %3194 = vmatprep.subr.mxu0 0.0
    %3195 = vmatpush1.msra.mxu0 0.0
    %3196 = vmatprep.subr.mxu0 0.0
    %3197 = vmatpush1.msra.mxu0 0.0
    %3198 = vmatprep.subr.mxu0 0.0
    %3199 = vmatpush1.msra.mxu0 0.0
    %3200 = vmatprep.mubr.f32.mxu0 0.0
    %3201 = vmatmul.mubr.f32.gmra.mrb[0].mxu0 %v3026
    %v3202 = vpop.f32.mrb[0].mxu0
    %v3203 = vadd.f32 0.0, %v3202
    %v3204 = vpop.f32.mrb[0].mxu0
    %v3205 = vadd.f32 0.0, %v3204
    %3206 = vdwg.mxu0
    %v3207 = vadd.f32 %v3134, %v3203
    %v3208 = vadd.f32 %v3135, %v3205
    %v3209 = vxor.u32 %v3207, 2147483648
    %v3210 = vxor.u32 %v3208, 2147483648
    %v3211 = vmul.f32 %v3209, 1.442695
    %v3212 = vpow.pop %v3211
    %v3213 = vmul.f32 %v3210, 1.442695
    %v3214 = vpow.pop %v3213
    %v3215 = vadd.f32 %v3212, 1.0
    %v3216 = vadd.f32 %v3214, 1.0
    %v3217 = vrcp.pop %v3215
    %v3218 = vmul.f32 1.0, %v3217
    %v3219 = vrcp.pop %v3216
    %v3220 = vmul.f32 1.0, %v3219
    %v3221 = vtanh.pop %v3208
    %v3222 = vmul.f32 %v3218, %v2944
    %3224 = vrot.lane.b32.xlu0 %v3221, 64
    %v3225 = vpop.permute.xlu0 %3224
    %v3227 = vmul.f32 %v3218, %v3225
    %3229 = vrot.lane.b32.xlu0 %v3227, 64
    %v3230 = vpop.permute.xlu0 %3229
    %v3232 = vadd.f32 %v3222, %v3230
    %v3233 = vtanh.pop %v3232
    %3235 = vrot.lane.b32.xlu0 %v3233, 64
    %v3236 = vpop.permute.xlu0 %3235
    %v3238 = vmul.f32 %v3220, %v3236
    %v3240 = vsel %vm439, %v3130, 0
    %3242 = vmatprep.subr.mxu0 %v2240
    %3243 = vmatpush1.msra.mxu0 %v2239
    %3244 = vmatprep.subr.mxu0 %v2242
    %3245 = vmatpush1.msra.mxu0 %v2241
    %3246 = vmatprep.subr.mxu0 %v2244
    %3247 = vmatpush1.msra.mxu0 %v2243
    %3248 = vmatprep.subr.mxu0 %v2246
    %3249 = vmatpush1.msra.mxu0 %v2245
    %3250 = vmatprep.subr.mxu0 %v2248
    %3251 = vmatpush1.msra.mxu0 %v2247
    %3252 = vmatprep.subr.mxu0 %v2250
    %3253 = vmatpush1.msra.mxu0 %v2249
    %3254 = vmatprep.subr.mxu0 %v2252
    %3255 = vmatpush1.msra.mxu0 %v2251
    %3256 = vmatprep.subr.mxu0 %v2254
    %3257 = vmatpush1.msra.mxu0 %v2253
    %3258 = vmatprep.subr.mxu0 0.0
    %3259 = vmatpush1.msra.mxu0 0.0
    %3260 = vmatprep.subr.mxu0 0.0
    %3261 = vmatpush1.msra.mxu0 0.0
    %3262 = vmatprep.subr.mxu0 0.0
    %3263 = vmatpush1.msra.mxu0 0.0
    %3264 = vmatprep.subr.mxu0 0.0
    %3265 = vmatpush1.msra.mxu0 0.0
    %3266 = vmatprep.subr.mxu0 0.0
    %3267 = vmatpush1.msra.mxu0 0.0
    %3268 = vmatprep.subr.mxu0 0.0
    %3269 = vmatpush1.msra.mxu0 0.0
    %3270 = vmatprep.subr.mxu0 0.0
    %3271 = vmatpush1.msra.mxu0 0.0
    %3272 = vmatprep.subr.mxu0 0.0
    %3273 = vmatpush1.msra.mxu0 0.0
    %3274 = vmatprep.subr.mxu0 0.0
    %3275 = vmatpush1.msra.mxu0 0.0
    %3276 = vmatprep.subr.mxu0 0.0
    %3277 = vmatpush1.msra.mxu0 0.0
    %3278 = vmatprep.subr.mxu0 0.0
    %3279 = vmatpush1.msra.mxu0 0.0
    %3280 = vmatprep.subr.mxu0 0.0
    %3281 = vmatpush1.msra.mxu0 0.0
    %3282 = vmatprep.subr.mxu0 0.0
    %3283 = vmatpush1.msra.mxu0 0.0
    %3284 = vmatprep.subr.mxu0 0.0
    %3285 = vmatpush1.msra.mxu0 0.0
    %3286 = vmatprep.subr.mxu0 0.0
    %3287 = vmatpush1.msra.mxu0 0.0
    %3288 = vmatprep.subr.mxu0 0.0
    %3289 = vmatpush1.msra.mxu0 0.0
    %3290 = vmatprep.subr.mxu0 0.0
    %3291 = vmatpush1.msra.mxu0 0.0
    %3292 = vmatprep.subr.mxu0 0.0
    %3293 = vmatpush1.msra.mxu0 0.0
    %3294 = vmatprep.subr.mxu0 0.0
    %3295 = vmatpush1.msra.mxu0 0.0
    %3296 = vmatprep.subr.mxu0 0.0
    %3297 = vmatpush1.msra.mxu0 0.0
    %3298 = vmatprep.subr.mxu0 0.0
    %3299 = vmatpush1.msra.mxu0 0.0
    %3300 = vmatprep.subr.mxu0 0.0
    %3301 = vmatpush1.msra.mxu0 0.0
    %3302 = vmatprep.subr.mxu0 0.0
    %3303 = vmatpush1.msra.mxu0 0.0
    %3304 = vmatprep.subr.mxu0 0.0
    %3305 = vmatpush1.msra.mxu0 0.0
    %3306 = vmatprep.mubr.f32.mxu0 0.0
    %3307 = vmatmul.mubr.f32.gmra.mrb[0].mxu0 %v3240
    %v3308 = vpop.f32.mrb[0].mxu0
    %v3309 = vadd.f32 0.0, %v3308
    %v3310 = vpop.f32.mrb[0].mxu0
    %v3311 = vadd.f32 0.0, %v3310
    %3312 = vdwg.mxu0
    %v3314 = vsel %vm439, %v3238, 0
    %3316 = vmatprep.subr.mxu0 %v2224
    %3317 = vmatpush1.msra.mxu0 %v2223
    %3318 = vmatprep.subr.mxu0 %v2226
    %3319 = vmatpush1.msra.mxu0 %v2225
    %3320 = vmatprep.subr.mxu0 %v2228
    %3321 = vmatpush1.msra.mxu0 %v2227
    %3322 = vmatprep.subr.mxu0 %v2230
    %3323 = vmatpush1.msra.mxu0 %v2229
    %3324 = vmatprep.subr.mxu0 %v2232
    %3325 = vmatpush1.msra.mxu0 %v2231
    %3326 = vmatprep.subr.mxu0 %v2234
    %3327 = vmatpush1.msra.mxu0 %v2233
    %3328 = vmatprep.subr.mxu0 %v2236
    %3329 = vmatpush1.msra.mxu0 %v2235
    %3330 = vmatprep.subr.mxu0 %v2238
    %3331 = vmatpush1.msra.mxu0 %v2237
    %3332 = vmatprep.subr.mxu0 0.0
    %3333 = vmatpush1.msra.mxu0 0.0
    %3334 = vmatprep.subr.mxu0 0.0
    %3335 = vmatpush1.msra.mxu0 0.0
    %3336 = vmatprep.subr.mxu0 0.0
    %3337 = vmatpush1.msra.mxu0 0.0
    %3338 = vmatprep.subr.mxu0 0.0
    %3339 = vmatpush1.msra.mxu0 0.0
    %3340 = vmatprep.subr.mxu0 0.0
    %3341 = vmatpush1.msra.mxu0 0.0
    %3342 = vmatprep.subr.mxu0 0.0
    %3343 = vmatpush1.msra.mxu0 0.0
    %3344 = vmatprep.subr.mxu0 0.0
    %3345 = vmatpush1.msra.mxu0 0.0
    %3346 = vmatprep.subr.mxu0 0.0
    %3347 = vmatpush1.msra.mxu0 0.0
    %3348 = vmatprep.subr.mxu0 0.0
    %3349 = vmatpush1.msra.mxu0 0.0
    %3350 = vmatprep.subr.mxu0 0.0
    %3351 = vmatpush1.msra.mxu0 0.0
    %3352 = vmatprep.subr.mxu0 0.0
    %3353 = vmatpush1.msra.mxu0 0.0
    %3354 = vmatprep.subr.mxu0 0.0
    %3355 = vmatpush1.msra.mxu0 0.0
    %3356 = vmatprep.subr.mxu0 0.0
    %3357 = vmatpush1.msra.mxu0 0.0
    %3358 = vmatprep.subr.mxu0 0.0
    %3359 = vmatpush1.msra.mxu0 0.0
    %3360 = vmatprep.subr.mxu0 0.0
    %3361 = vmatpush1.msra.mxu0 0.0
    %3362 = vmatprep.subr.mxu0 0.0
    %3363 = vmatpush1.msra.mxu0 0.0
    %3364 = vmatprep.subr.mxu0 0.0
    %3365 = vmatpush1.msra.mxu0 0.0
    %3366 = vmatprep.subr.mxu0 0.0
    %3367 = vmatpush1.msra.mxu0 0.0
    %3368 = vmatprep.subr.mxu0 0.0
    %3369 = vmatpush1.msra.mxu0 0.0
    %3370 = vmatprep.subr.mxu0 0.0
    %3371 = vmatpush1.msra.mxu0 0.0
    %3372 = vmatprep.subr.mxu0 0.0
    %3373 = vmatpush1.msra.mxu0 0.0
    %3374 = vmatprep.subr.mxu0 0.0
    %3375 = vmatpush1.msra.mxu0 0.0
    %3376 = vmatprep.subr.mxu0 0.0
    %3377 = vmatpush1.msra.mxu0 0.0
    %3378 = vmatprep.subr.mxu0 0.0
    %3379 = vmatpush1.msra.mxu0 0.0
    %3380 = vmatprep.mubr.f32.mxu0 0.0
    %3381 = vmatmul.mubr.f32.gmra.mrb[0].mxu0 %v3314
    %v3382 = vpop.f32.mrb[0].mxu0
    %v3383 = vadd.f32 %v3309, %v3382
    %v3384 = vpop.f32.mrb[0].mxu0
    %v3385 = vadd.f32 %v3311, %v3384
    %3386 = vdwg.mxu0
    %v3387 = vadd.f32 %v3383, %v2260
    %v3388 = vadd.f32 %v3385, %v2264
    %v3389 = vxor.u32 %v3387, 2147483648
    %v3390 = vxor.u32 %v3388, 2147483648
    %v3391 = vmul.f32 %v3389, 1.442695
    %v3392 = vpow.pop %v3391
    %v3393 = vmul.f32 %v3390, 1.442695
    %v3394 = vpow.pop %v3393
    %v3395 = vadd.f32 %v3392, 1.0
    %v3396 = vadd.f32 %v3394, 1.0
    %v3397 = vrcp.pop %v3395
    %v3398 = vmul.f32 1.0, %v3397
    %v3399 = vrcp.pop %v3396
    %v3400 = vmul.f32 1.0, %v3399
    %v3401 = vtanh.pop %v3388
    %v3402 = vmul.f32 %v3398, %v3124
    %3404 = vrot.lane.b32.xlu0 %v3401, 64
    %v3405 = vpop.permute.xlu0 %3404
    %v3407 = vmul.f32 %v3398, %v3405
    %3409 = vrot.lane.b32.xlu0 %v3407, 64
    %v3410 = vpop.permute.xlu0 %3409
    %v3412 = vadd.f32 %v3402, %v3410
    %v3413 = vtanh.pop %v3412
    %3415 = vrot.lane.b32.xlu0 %v3413, 64
    %v3416 = vpop.permute.xlu0 %3415
    %v3418 = vmul.f32 %v3400, %v3416
    %s3419 = smul.u32 4, 2
    %s3420 = smul.addr %s3419, 8
    %s3421 = scalar_lea.vmem [#allocation2], %s3420
    %v3422 = vld [vmem:[%s3421] sm:$0xff]
    %v3423 = vld [vmem:[%s3421 + $0x8] sm:$0xff]
    %3424 = vmatprep.subr.mxu0 %v2208
    %3425 = vmatpush1.msra.mxu0 %v2207
    %3426 = vmatprep.subr.mxu0 %v2210
    %3427 = vmatpush1.msra.mxu0 %v2209
    %3428 = vmatprep.subr.mxu0 %v2212
    %3429 = vmatpush1.msra.mxu0 %v2211
    %3430 = vmatprep.subr.mxu0 %v2214
    %3431 = vmatpush1.msra.mxu0 %v2213
    %3432 = vmatprep.subr.mxu0 %v2216
    %3433 = vmatpush1.msra.mxu0 %v2215
    %3434 = vmatprep.subr.mxu0 %v2218
    %3435 = vmatpush1.msra.mxu0 %v2217
    %3436 = vmatprep.subr.mxu0 %v2220
    %3437 = vmatpush1.msra.mxu0 %v2219
    %3438 = vmatprep.subr.mxu0 %v2222
    %3439 = vmatpush1.msra.mxu0 %v2221
    %3440 = vmatprep.subr.mxu0 0.0
    %3441 = vmatpush1.msra.mxu0 0.0
    %3442 = vmatprep.subr.mxu0 0.0
    %3443 = vmatpush1.msra.mxu0 0.0
    %3444 = vmatprep.subr.mxu0 0.0
    %3445 = vmatpush1.msra.mxu0 0.0
    %3446 = vmatprep.subr.mxu0 0.0
    %3447 = vmatpush1.msra.mxu0 0.0
    %3448 = vmatprep.subr.mxu0 0.0
    %3449 = vmatpush1.msra.mxu0 0.0
    %3450 = vmatprep.subr.mxu0 0.0
    %3451 = vmatpush1.msra.mxu0 0.0
    %3452 = vmatprep.subr.mxu0 0.0
    %3453 = vmatpush1.msra.mxu0 0.0
    %3454 = vmatprep.subr.mxu0 0.0
    %3455 = vmatpush1.msra.mxu0 0.0
    %3456 = vmatprep.subr.mxu0 0.0
    %3457 = vmatpush1.msra.mxu0 0.0
    %3458 = vmatprep.subr.mxu0 0.0
    %3459 = vmatpush1.msra.mxu0 0.0
    %3460 = vmatprep.subr.mxu0 0.0
    %3461 = vmatpush1.msra.mxu0 0.0
    %3462 = vmatprep.subr.mxu0 0.0
    %3463 = vmatpush1.msra.mxu0 0.0
    %3464 = vmatprep.subr.mxu0 0.0
    %3465 = vmatpush1.msra.mxu0 0.0
    %3466 = vmatprep.subr.mxu0 0.0
    %3467 = vmatpush1.msra.mxu0 0.0
    %3468 = vmatprep.subr.mxu0 0.0
    %3469 = vmatpush1.msra.mxu0 0.0
    %3470 = vmatprep.subr.mxu0 0.0
    %3471 = vmatpush1.msra.mxu0 0.0
    %3472 = vmatprep.subr.mxu0 0.0
    %3473 = vmatpush1.msra.mxu0 0.0
    %3474 = vmatprep.subr.mxu0 0.0
    %3475 = vmatpush1.msra.mxu0 0.0
    %3476 = vmatprep.subr.mxu0 0.0
    %3477 = vmatpush1.msra.mxu0 0.0
    %3478 = vmatprep.subr.mxu0 0.0
    %3479 = vmatpush1.msra.mxu0 0.0
    %3480 = vmatprep.subr.mxu0 0.0
    %3481 = vmatpush1.msra.mxu0 0.0
    %3482 = vmatprep.subr.mxu0 0.0
    %3483 = vmatpush1.msra.mxu0 0.0
    %3484 = vmatprep.subr.mxu0 0.0
    %3485 = vmatpush1.msra.mxu0 0.0
    %3486 = vmatprep.subr.mxu0 0.0
    %3487 = vmatpush1.msra.mxu0 0.0
    %3488 = vmatprep.mubr.f32.mxu0 0.0
    %3489 = vmatmul.mubr.f32.gmra.mrb[0].mxu0 %v3314
    %v3490 = vpop.f32.mrb[0].mxu0
    %v3491 = vadd.f32 0.0, %v3490
    %v3492 = vpop.f32.mrb[0].mxu0
    %v3493 = vadd.f32 0.0, %v3492
    %3494 = vdwg.mxu0
    %v3495 = vadd.f32 %v3422, %v3491
    %v3496 = vadd.f32 %v3423, %v3493
    %v3497 = vxor.u32 %v3495, 2147483648
    %v3498 = vxor.u32 %v3496, 2147483648
    %v3499 = vmul.f32 %v3497, 1.442695
    %v3500 = vpow.pop %v3499
    %v3501 = vmul.f32 %v3498, 1.442695
    %v3502 = vpow.pop %v3501
    %v3503 = vadd.f32 %v3500, 1.0
    %v3504 = vadd.f32 %v3502, 1.0
    %v3505 = vrcp.pop %v3503
    %v3506 = vmul.f32 1.0, %v3505
    %v3507 = vrcp.pop %v3504
    %v3508 = vmul.f32 1.0, %v3507
    %v3509 = vtanh.pop %v3496
    %v3510 = vmul.f32 %v3506, %v3232
    %3512 = vrot.lane.b32.xlu0 %v3509, 64
    %v3513 = vpop.permute.xlu0 %3512
    %v3515 = vmul.f32 %v3506, %v3513
    %3517 = vrot.lane.b32.xlu0 %v3515, 64
    %v3518 = vpop.permute.xlu0 %3517
    %v3520 = vadd.f32 %v3510, %v3518
    %v3521 = vtanh.pop %v3520
    %3523 = vrot.lane.b32.xlu0 %v3521, 64
    %v3524 = vpop.permute.xlu0 %3523
    %v3526 = vmul.f32 %v3508, %v3524
    %v3528 = vsel %vm439, %v3418, 0
    %3530 = vmatprep.subr.mxu0 %v2240
    %3531 = vmatpush1.msra.mxu0 %v2239
    %3532 = vmatprep.subr.mxu0 %v2242
    %3533 = vmatpush1.msra.mxu0 %v2241
    %3534 = vmatprep.subr.mxu0 %v2244
    %3535 = vmatpush1.msra.mxu0 %v2243
    %3536 = vmatprep.subr.mxu0 %v2246
    %3537 = vmatpush1.msra.mxu0 %v2245
    %3538 = vmatprep.subr.mxu0 %v2248
    %3539 = vmatpush1.msra.mxu0 %v2247
    %3540 = vmatprep.subr.mxu0 %v2250
    %3541 = vmatpush1.msra.mxu0 %v2249
    %3542 = vmatprep.subr.mxu0 %v2252
    %3543 = vmatpush1.msra.mxu0 %v2251
    %3544 = vmatprep.subr.mxu0 %v2254
    %3545 = vmatpush1.msra.mxu0 %v2253
    %3546 = vmatprep.subr.mxu0 0.0
    %3547 = vmatpush1.msra.mxu0 0.0
    %3548 = vmatprep.subr.mxu0 0.0
    %3549 = vmatpush1.msra.mxu0 0.0
    %3550 = vmatprep.subr.mxu0 0.0
    %3551 = vmatpush1.msra.mxu0 0.0
    %3552 = vmatprep.subr.mxu0 0.0
    %3553 = vmatpush1.msra.mxu0 0.0
    %3554 = vmatprep.subr.mxu0 0.0
    %3555 = vmatpush1.msra.mxu0 0.0
    %3556 = vmatprep.subr.mxu0 0.0
    %3557 = vmatpush1.msra.mxu0 0.0
    %3558 = vmatprep.subr.mxu0 0.0
    %3559 = vmatpush1.msra.mxu0 0.0
    %3560 = vmatprep.subr.mxu0 0.0
    %3561 = vmatpush1.msra.mxu0 0.0
    %3562 = vmatprep.subr.mxu0 0.0
    %3563 = vmatpush1.msra.mxu0 0.0
    %3564 = vmatprep.subr.mxu0 0.0
    %3565 = vmatpush1.msra.mxu0 0.0
    %3566 = vmatprep.subr.mxu0 0.0
    %3567 = vmatpush1.msra.mxu0 0.0
    %3568 = vmatprep.subr.mxu0 0.0
    %3569 = vmatpush1.msra.mxu0 0.0
    %3570 = vmatprep.subr.mxu0 0.0
    %3571 = vmatpush1.msra.mxu0 0.0
    %3572 = vmatprep.subr.mxu0 0.0
    %3573 = vmatpush1.msra.mxu0 0.0
    %3574 = vmatprep.subr.mxu0 0.0
    %3575 = vmatpush1.msra.mxu0 0.0
    %3576 = vmatprep.subr.mxu0 0.0
    %3577 = vmatpush1.msra.mxu0 0.0
    %3578 = vmatprep.subr.mxu0 0.0
    %3579 = vmatpush1.msra.mxu0 0.0
    %3580 = vmatprep.subr.mxu0 0.0
    %3581 = vmatpush1.msra.mxu0 0.0
    %3582 = vmatprep.subr.mxu0 0.0
    %3583 = vmatpush1.msra.mxu0 0.0
    %3584 = vmatprep.subr.mxu0 0.0
    %3585 = vmatpush1.msra.mxu0 0.0
    %3586 = vmatprep.subr.mxu0 0.0
    %3587 = vmatpush1.msra.mxu0 0.0
    %3588 = vmatprep.subr.mxu0 0.0
    %3589 = vmatpush1.msra.mxu0 0.0
    %3590 = vmatprep.subr.mxu0 0.0
    %3591 = vmatpush1.msra.mxu0 0.0
    %3592 = vmatprep.subr.mxu0 0.0
    %3593 = vmatpush1.msra.mxu0 0.0
    %3594 = vmatprep.mubr.f32.mxu0 0.0
    %3595 = vmatmul.mubr.f32.gmra.mrb[0].mxu0 %v3528
    %v3596 = vpop.f32.mrb[0].mxu0
    %v3597 = vadd.f32 0.0, %v3596
    %v3598 = vpop.f32.mrb[0].mxu0
    %v3599 = vadd.f32 0.0, %v3598
    %3600 = vdwg.mxu0
    %v3602 = vsel %vm439, %v3526, 0
    %3604 = vmatprep.subr.mxu0 %v2224
    %3605 = vmatpush1.msra.mxu0 %v2223
    %3606 = vmatprep.subr.mxu0 %v2226
    %3607 = vmatpush1.msra.mxu0 %v2225
    %3608 = vmatprep.subr.mxu0 %v2228
    %3609 = vmatpush1.msra.mxu0 %v2227
    %3610 = vmatprep.subr.mxu0 %v2230
    %3611 = vmatpush1.msra.mxu0 %v2229
    %3612 = vmatprep.subr.mxu0 %v2232
    %3613 = vmatpush1.msra.mxu0 %v2231
    %3614 = vmatprep.subr.mxu0 %v2234
    %3615 = vmatpush1.msra.mxu0 %v2233
    %3616 = vmatprep.subr.mxu0 %v2236
    %3617 = vmatpush1.msra.mxu0 %v2235
    %3618 = vmatprep.subr.mxu0 %v2238
    %3619 = vmatpush1.msra.mxu0 %v2237
    %3620 = vmatprep.subr.mxu0 0.0
    %3621 = vmatpush1.msra.mxu0 0.0
    %3622 = vmatprep.subr.mxu0 0.0
    %3623 = vmatpush1.msra.mxu0 0.0
    %3624 = vmatprep.subr.mxu0 0.0
    %3625 = vmatpush1.msra.mxu0 0.0
    %3626 = vmatprep.subr.mxu0 0.0
    %3627 = vmatpush1.msra.mxu0 0.0
    %3628 = vmatprep.subr.mxu0 0.0
    %3629 = vmatpush1.msra.mxu0 0.0
    %3630 = vmatprep.subr.mxu0 0.0
    %3631 = vmatpush1.msra.mxu0 0.0
    %3632 = vmatprep.subr.mxu0 0.0
    %3633 = vmatpush1.msra.mxu0 0.0
    %3634 = vmatprep.subr.mxu0 0.0
    %3635 = vmatpush1.msra.mxu0 0.0
    %3636 = vmatprep.subr.mxu0 0.0
    %3637 = vmatpush1.msra.mxu0 0.0
    %3638 = vmatprep.subr.mxu0 0.0
    %3639 = vmatpush1.msra.mxu0 0.0
    %3640 = vmatprep.subr.mxu0 0.0
    %3641 = vmatpush1.msra.mxu0 0.0
    %3642 = vmatprep.subr.mxu0 0.0
    %3643 = vmatpush1.msra.mxu0 0.0
    %3644 = vmatprep.subr.mxu0 0.0
    %3645 = vmatpush1.msra.mxu0 0.0
    %3646 = vmatprep.subr.mxu0 0.0
    %3647 = vmatpush1.msra.mxu0 0.0
    %3648 = vmatprep.subr.mxu0 0.0
    %3649 = vmatpush1.msra.mxu0 0.0
    %3650 = vmatprep.subr.mxu0 0.0
    %3651 = vmatpush1.msra.mxu0 0.0
    %3652 = vmatprep.subr.mxu0 0.0
    %3653 = vmatpush1.msra.mxu0 0.0
    %3654 = vmatprep.subr.mxu0 0.0
    %3655 = vmatpush1.msra.mxu0 0.0
    %3656 = vmatprep.subr.mxu0 0.0
    %3657 = vmatpush1.msra.mxu0 0.0
    %3658 = vmatprep.subr.mxu0 0.0
    %3659 = vmatpush1.msra.mxu0 0.0
    %3660 = vmatprep.subr.mxu0 0.0
    %3661 = vmatpush1.msra.mxu0 0.0
    %3662 = vmatprep.subr.mxu0 0.0
    %3663 = vmatpush1.msra.mxu0 0.0
    %3664 = vmatprep.subr.mxu0 0.0
    %3665 = vmatpush1.msra.mxu0 0.0
    %3666 = vmatprep.subr.mxu0 0.0
    %3667 = vmatpush1.msra.mxu0 0.0
    %3668 = vmatprep.mubr.f32.mxu0 0.0
    %3669 = vmatmul.mubr.f32.gmra.mrb[0].mxu0 %v3602
    %v3670 = vpop.f32.mrb[0].mxu0
    %v3671 = vadd.f32 %v3597, %v3670
    %v3672 = vpop.f32.mrb[0].mxu0
    %v3673 = vadd.f32 %v3599, %v3672
    %3674 = vdwg.mxu0
    %v3675 = vadd.f32 %v3671, %v2260
    %v3676 = vadd.f32 %v3673, %v2264
    %v3677 = vxor.u32 %v3675, 2147483648
    %v3678 = vxor.u32 %v3676, 2147483648
    %v3679 = vmul.f32 %v3677, 1.442695
    %v3680 = vpow.pop %v3679
    %v3681 = vmul.f32 %v3678, 1.442695
    %v3682 = vpow.pop %v3681
    %v3683 = vadd.f32 %v3680, 1.0
    %v3684 = vadd.f32 %v3682, 1.0
    %v3685 = vrcp.pop %v3683
    %v3686 = vmul.f32 1.0, %v3685
    %v3687 = vrcp.pop %v3684
    %v3688 = vmul.f32 1.0, %v3687
    %v3689 = vtanh.pop %v3676
    %v3690 = vmul.f32 %v3686, %v3412
    %3692 = vrot.lane.b32.xlu0 %v3689, 64
    %v3693 = vpop.permute.xlu0 %3692
    %v3695 = vmul.f32 %v3686, %v3693
    %3697 = vrot.lane.b32.xlu0 %v3695, 64
    %v3698 = vpop.permute.xlu0 %3697
    %v3700 = vadd.f32 %v3690, %v3698
    %v3701 = vtanh.pop %v3700
    %3703 = vrot.lane.b32.xlu0 %v3701, 64
    %v3704 = vpop.permute.xlu0 %3703
    %v3706 = vmul.f32 %v3688, %v3704
    %s3707 = smul.u32 5, 2
    %s3708 = smul.addr %s3707, 8
    %s3709 = scalar_lea.vmem [#allocation2], %s3708
    %v3710 = vld [vmem:[%s3709] sm:$0xff]
    %v3711 = vld [vmem:[%s3709 + $0x8] sm:$0xff]
    %3712 = vmatprep.subr.mxu0 %v2208
    %3713 = vmatpush1.msra.mxu0 %v2207
    %3714 = vmatprep.subr.mxu0 %v2210
    %3715 = vmatpush1.msra.mxu0 %v2209
    %3716 = vmatprep.subr.mxu0 %v2212
    %3717 = vmatpush1.msra.mxu0 %v2211
    %3718 = vmatprep.subr.mxu0 %v2214
    %3719 = vmatpush1.msra.mxu0 %v2213
    %3720 = vmatprep.subr.mxu0 %v2216
    %3721 = vmatpush1.msra.mxu0 %v2215
    %3722 = vmatprep.subr.mxu0 %v2218
    %3723 = vmatpush1.msra.mxu0 %v2217
    %3724 = vmatprep.subr.mxu0 %v2220
    %3725 = vmatpush1.msra.mxu0 %v2219
    %3726 = vmatprep.subr.mxu0 %v2222
    %3727 = vmatpush1.msra.mxu0 %v2221
    %3728 = vmatprep.subr.mxu0 0.0
    %3729 = vmatpush1.msra.mxu0 0.0
    %3730 = vmatprep.subr.mxu0 0.0
    %3731 = vmatpush1.msra.mxu0 0.0
    %3732 = vmatprep.subr.mxu0 0.0
    %3733 = vmatpush1.msra.mxu0 0.0
    %3734 = vmatprep.subr.mxu0 0.0
    %3735 = vmatpush1.msra.mxu0 0.0
    %3736 = vmatprep.subr.mxu0 0.0
    %3737 = vmatpush1.msra.mxu0 0.0
    %3738 = vmatprep.subr.mxu0 0.0
    %3739 = vmatpush1.msra.mxu0 0.0
    %3740 = vmatprep.subr.mxu0 0.0
    %3741 = vmatpush1.msra.mxu0 0.0
    %3742 = vmatprep.subr.mxu0 0.0
    %3743 = vmatpush1.msra.mxu0 0.0
    %3744 = vmatprep.subr.mxu0 0.0
    %3745 = vmatpush1.msra.mxu0 0.0
    %3746 = vmatprep.subr.mxu0 0.0
    %3747 = vmatpush1.msra.mxu0 0.0
    %3748 = vmatprep.subr.mxu0 0.0
    %3749 = vmatpush1.msra.mxu0 0.0
    %3750 = vmatprep.subr.mxu0 0.0
    %3751 = vmatpush1.msra.mxu0 0.0
    %3752 = vmatprep.subr.mxu0 0.0
    %3753 = vmatpush1.msra.mxu0 0.0
    %3754 = vmatprep.subr.mxu0 0.0
    %3755 = vmatpush1.msra.mxu0 0.0
    %3756 = vmatprep.subr.mxu0 0.0
    %3757 = vmatpush1.msra.mxu0 0.0
    %3758 = vmatprep.subr.mxu0 0.0
    %3759 = vmatpush1.msra.mxu0 0.0
    %3760 = vmatprep.subr.mxu0 0.0
    %3761 = vmatpush1.msra.mxu0 0.0
    %3762 = vmatprep.subr.mxu0 0.0
    %3763 = vmatpush1.msra.mxu0 0.0
    %3764 = vmatprep.subr.mxu0 0.0
    %3765 = vmatpush1.msra.mxu0 0.0
    %3766 = vmatprep.subr.mxu0 0.0
    %3767 = vmatpush1.msra.mxu0 0.0
    %3768 = vmatprep.subr.mxu0 0.0
    %3769 = vmatpush1.msra.mxu0 0.0
    %3770 = vmatprep.subr.mxu0 0.0
    %3771 = vmatpush1.msra.mxu0 0.0
    %3772 = vmatprep.subr.mxu0 0.0
    %3773 = vmatpush1.msra.mxu0 0.0
    %3774 = vmatprep.subr.mxu0 0.0
    %3775 = vmatpush1.msra.mxu0 0.0
    %3776 = vmatprep.mubr.f32.mxu0 0.0
    %3777 = vmatmul.mubr.f32.gmra.mrb[0].mxu0 %v3602
    %v3778 = vpop.f32.mrb[0].mxu0
    %v3779 = vadd.f32 0.0, %v3778
    %v3780 = vpop.f32.mrb[0].mxu0
    %v3781 = vadd.f32 0.0, %v3780
    %3782 = vdwg.mxu0
    %v3783 = vadd.f32 %v3710, %v3779
    %v3784 = vadd.f32 %v3711, %v3781
    %v3785 = vxor.u32 %v3783, 2147483648
    %v3786 = vxor.u32 %v3784, 2147483648
    %v3787 = vmul.f32 %v3785, 1.442695
    %v3788 = vpow.pop %v3787
    %v3789 = vmul.f32 %v3786, 1.442695
    %v3790 = vpow.pop %v3789
    %v3791 = vadd.f32 %v3788, 1.0
    %v3792 = vadd.f32 %v3790, 1.0
    %v3793 = vrcp.pop %v3791
    %v3794 = vmul.f32 1.0, %v3793
    %v3795 = vrcp.pop %v3792
    %v3796 = vmul.f32 1.0, %v3795
    %v3797 = vtanh.pop %v3784
    %v3798 = vmul.f32 %v3794, %v3520
    %3800 = vrot.lane.b32.xlu0 %v3797, 64
    %v3801 = vpop.permute.xlu0 %3800
    %v3803 = vmul.f32 %v3794, %v3801
    %3805 = vrot.lane.b32.xlu0 %v3803, 64
    %v3806 = vpop.permute.xlu0 %3805
    %v3808 = vadd.f32 %v3798, %v3806
    %v3809 = vtanh.pop %v3808
    %3811 = vrot.lane.b32.xlu0 %v3809, 64
    %v3812 = vpop.permute.xlu0 %3811
    %v3814 = vmul.f32 %v3796, %v3812
    %v3816 = vsel %vm439, %v3706, 0
    %3818 = vmatprep.subr.mxu0 %v2240
    %3819 = vmatpush1.msra.mxu0 %v2239
    %3820 = vmatprep.subr.mxu0 %v2242
    %3821 = vmatpush1.msra.mxu0 %v2241
    %3822 = vmatprep.subr.mxu0 %v2244
    %3823 = vmatpush1.msra.mxu0 %v2243
    %3824 = vmatprep.subr.mxu0 %v2246
    %3825 = vmatpush1.msra.mxu0 %v2245
    %3826 = vmatprep.subr.mxu0 %v2248
    %3827 = vmatpush1.msra.mxu0 %v2247
    %3828 = vmatprep.subr.mxu0 %v2250
    %3829 = vmatpush1.msra.mxu0 %v2249
    %3830 = vmatprep.subr.mxu0 %v2252
    %3831 = vmatpush1.msra.mxu0 %v2251
    %3832 = vmatprep.subr.mxu0 %v2254
    %3833 = vmatpush1.msra.mxu0 %v2253
    %3834 = vmatprep.subr.mxu0 0.0
    %3835 = vmatpush1.msra.mxu0 0.0
    %3836 = vmatprep.subr.mxu0 0.0
    %3837 = vmatpush1.msra.mxu0 0.0
    %3838 = vmatprep.subr.mxu0 0.0
    %3839 = vmatpush1.msra.mxu0 0.0
    %3840 = vmatprep.subr.mxu0 0.0
    %3841 = vmatpush1.msra.mxu0 0.0
    %3842 = vmatprep.subr.mxu0 0.0
    %3843 = vmatpush1.msra.mxu0 0.0
    %3844 = vmatprep.subr.mxu0 0.0
    %3845 = vmatpush1.msra.mxu0 0.0
    %3846 = vmatprep.subr.mxu0 0.0
    %3847 = vmatpush1.msra.mxu0 0.0
    %3848 = vmatprep.subr.mxu0 0.0
    %3849 = vmatpush1.msra.mxu0 0.0
    %3850 = vmatprep.subr.mxu0 0.0
    %3851 = vmatpush1.msra.mxu0 0.0
    %3852 = vmatprep.subr.mxu0 0.0
    %3853 = vmatpush1.msra.mxu0 0.0
    %3854 = vmatprep.subr.mxu0 0.0
    %3855 = vmatpush1.msra.mxu0 0.0
    %3856 = vmatprep.subr.mxu0 0.0
    %3857 = vmatpush1.msra.mxu0 0.0
    %3858 = vmatprep.subr.mxu0 0.0
    %3859 = vmatpush1.msra.mxu0 0.0
    %3860 = vmatprep.subr.mxu0 0.0
    %3861 = vmatpush1.msra.mxu0 0.0
    %3862 = vmatprep.subr.mxu0 0.0
    %3863 = vmatpush1.msra.mxu0 0.0
    %3864 = vmatprep.subr.mxu0 0.0
    %3865 = vmatpush1.msra.mxu0 0.0
    %3866 = vmatprep.subr.mxu0 0.0
    %3867 = vmatpush1.msra.mxu0 0.0
    %3868 = vmatprep.subr.mxu0 0.0
    %3869 = vmatpush1.msra.mxu0 0.0
    %3870 = vmatprep.subr.mxu0 0.0
    %3871 = vmatpush1.msra.mxu0 0.0
    %3872 = vmatprep.subr.mxu0 0.0
    %3873 = vmatpush1.msra.mxu0 0.0
    %3874 = vmatprep.subr.mxu0 0.0
    %3875 = vmatpush1.msra.mxu0 0.0
    %3876 = vmatprep.subr.mxu0 0.0
    %3877 = vmatpush1.msra.mxu0 0.0
    %3878 = vmatprep.subr.mxu0 0.0
    %3879 = vmatpush1.msra.mxu0 0.0
    %3880 = vmatprep.subr.mxu0 0.0
    %3881 = vmatpush1.msra.mxu0 0.0
    %3882 = vmatprep.mubr.f32.mxu0 0.0
    %3883 = vmatmul.mubr.f32.gmra.mrb[0].mxu0 %v3816
    %v3884 = vpop.f32.mrb[0].mxu0
    %v3885 = vadd.f32 0.0, %v3884
    %v3886 = vpop.f32.mrb[0].mxu0
    %v3887 = vadd.f32 0.0, %v3886
    %3888 = vdwg.mxu0
    %v3890 = vsel %vm439, %v3814, 0
    %3892 = vmatprep.subr.mxu0 %v2224
    %3893 = vmatpush1.msra.mxu0 %v2223
    %3894 = vmatprep.subr.mxu0 %v2226
    %3895 = vmatpush1.msra.mxu0 %v2225
    %3896 = vmatprep.subr.mxu0 %v2228
    %3897 = vmatpush1.msra.mxu0 %v2227
    %3898 = vmatprep.subr.mxu0 %v2230
    %3899 = vmatpush1.msra.mxu0 %v2229
    %3900 = vmatprep.subr.mxu0 %v2232
    %3901 = vmatpush1.msra.mxu0 %v2231
    %3902 = vmatprep.subr.mxu0 %v2234
    %3903 = vmatpush1.msra.mxu0 %v2233
    %3904 = vmatprep.subr.mxu0 %v2236
    %3905 = vmatpush1.msra.mxu0 %v2235
    %3906 = vmatprep.subr.mxu0 %v2238
    %3907 = vmatpush1.msra.mxu0 %v2237
    %3908 = vmatprep.subr.mxu0 0.0
    %3909 = vmatpush1.msra.mxu0 0.0
    %3910 = vmatprep.subr.mxu0 0.0
    %3911 = vmatpush1.msra.mxu0 0.0
    %3912 = vmatprep.subr.mxu0 0.0
    %3913 = vmatpush1.msra.mxu0 0.0
    %3914 = vmatprep.subr.mxu0 0.0
    %3915 = vmatpush1.msra.mxu0 0.0
    %3916 = vmatprep.subr.mxu0 0.0
    %3917 = vmatpush1.msra.mxu0 0.0
    %3918 = vmatprep.subr.mxu0 0.0
    %3919 = vmatpush1.msra.mxu0 0.0
    %3920 = vmatprep.subr.mxu0 0.0
    %3921 = vmatpush1.msra.mxu0 0.0
    %3922 = vmatprep.subr.mxu0 0.0
    %3923 = vmatpush1.msra.mxu0 0.0
    %3924 = vmatprep.subr.mxu0 0.0
    %3925 = vmatpush1.msra.mxu0 0.0
    %3926 = vmatprep.subr.mxu0 0.0
    %3927 = vmatpush1.msra.mxu0 0.0
    %3928 = vmatprep.subr.mxu0 0.0
    %3929 = vmatpush1.msra.mxu0 0.0
    %3930 = vmatprep.subr.mxu0 0.0
    %3931 = vmatpush1.msra.mxu0 0.0
    %3932 = vmatprep.subr.mxu0 0.0
    %3933 = vmatpush1.msra.mxu0 0.0
    %3934 = vmatprep.subr.mxu0 0.0
    %3935 = vmatpush1.msra.mxu0 0.0
    %3936 = vmatprep.subr.mxu0 0.0
    %3937 = vmatpush1.msra.mxu0 0.0
    %3938 = vmatprep.subr.mxu0 0.0
    %3939 = vmatpush1.msra.mxu0 0.0
    %3940 = vmatprep.subr.mxu0 0.0
    %3941 = vmatpush1.msra.mxu0 0.0
    %3942 = vmatprep.subr.mxu0 0.0
    %3943 = vmatpush1.msra.mxu0 0.0
    %3944 = vmatprep.subr.mxu0 0.0
    %3945 = vmatpush1.msra.mxu0 0.0
    %3946 = vmatprep.subr.mxu0 0.0
    %3947 = vmatpush1.msra.mxu0 0.0
    %3948 = vmatprep.subr.mxu0 0.0
    %3949 = vmatpush1.msra.mxu0 0.0
    %3950 = vmatprep.subr.mxu0 0.0
    %3951 = vmatpush1.msra.mxu0 0.0
    %3952 = vmatprep.subr.mxu0 0.0
    %3953 = vmatpush1.msra.mxu0 0.0
    %3954 = vmatprep.subr.mxu0 0.0
    %3955 = vmatpush1.msra.mxu0 0.0
    %3956 = vmatprep.mubr.f32.mxu0 0.0
    %3957 = vmatmul.mubr.f32.gmra.mrb[0].mxu0 %v3890
    %v3958 = vpop.f32.mrb[0].mxu0
    %v3959 = vadd.f32 %v3885, %v3958
    %v3960 = vpop.f32.mrb[0].mxu0
    %v3961 = vadd.f32 %v3887, %v3960
    %3962 = vdwg.mxu0
    %v3963 = vadd.f32 %v3959, %v2260
    %v3964 = vadd.f32 %v3961, %v2264
    %v3965 = vxor.u32 %v3963, 2147483648
    %v3966 = vxor.u32 %v3964, 2147483648
    %v3967 = vmul.f32 %v3965, 1.442695
    %v3968 = vpow.pop %v3967
    %v3969 = vmul.f32 %v3966, 1.442695
    %v3970 = vpow.pop %v3969
    %v3971 = vadd.f32 %v3968, 1.0
    %v3972 = vadd.f32 %v3970, 1.0
    %v3973 = vrcp.pop %v3971
    %v3974 = vmul.f32 1.0, %v3973
    %v3975 = vrcp.pop %v3972
    %v3976 = vmul.f32 1.0, %v3975
    %v3977 = vtanh.pop %v3964
    %v3978 = vmul.f32 %v3974, %v3700
    %3980 = vrot.lane.b32.xlu0 %v3977, 64
    %v3981 = vpop.permute.xlu0 %3980
    %v3983 = vmul.f32 %v3974, %v3981
    %3985 = vrot.lane.b32.xlu0 %v3983, 64
    %v3986 = vpop.permute.xlu0 %3985
    %v3988 = vadd.f32 %v3978, %v3986
    %v3989 = vtanh.pop %v3988
    %3991 = vrot.lane.b32.xlu0 %v3989, 64
    %v3992 = vpop.permute.xlu0 %3991
    %v3994 = vmul.f32 %v3976, %v3992
    %s3995 = smul.u32 6, 2
    %s3996 = smul.addr %s3995, 8
    %s3997 = scalar_lea.vmem [#allocation2], %s3996
    %v3998 = vld [vmem:[%s3997] sm:$0xff]
    %v3999 = vld [vmem:[%s3997 + $0x8] sm:$0xff]
    %4000 = vmatprep.subr.mxu0 %v2208
    %4001 = vmatpush1.msra.mxu0 %v2207
    %4002 = vmatprep.subr.mxu0 %v2210
    %4003 = vmatpush1.msra.mxu0 %v2209
    %4004 = vmatprep.subr.mxu0 %v2212
    %4005 = vmatpush1.msra.mxu0 %v2211
    %4006 = vmatprep.subr.mxu0 %v2214
    %4007 = vmatpush1.msra.mxu0 %v2213
    %4008 = vmatprep.subr.mxu0 %v2216
    %4009 = vmatpush1.msra.mxu0 %v2215
    %4010 = vmatprep.subr.mxu0 %v2218
    %4011 = vmatpush1.msra.mxu0 %v2217
    %4012 = vmatprep.subr.mxu0 %v2220
    %4013 = vmatpush1.msra.mxu0 %v2219
    %4014 = vmatprep.subr.mxu0 %v2222
    %4015 = vmatpush1.msra.mxu0 %v2221
    %4016 = vmatprep.subr.mxu0 0.0
    %4017 = vmatpush1.msra.mxu0 0.0
    %4018 = vmatprep.subr.mxu0 0.0
    %4019 = vmatpush1.msra.mxu0 0.0
    %4020 = vmatprep.subr.mxu0 0.0
    %4021 = vmatpush1.msra.mxu0 0.0
    %4022 = vmatprep.subr.mxu0 0.0
    %4023 = vmatpush1.msra.mxu0 0.0
    %4024 = vmatprep.subr.mxu0 0.0
    %4025 = vmatpush1.msra.mxu0 0.0
    %4026 = vmatprep.subr.mxu0 0.0
    %4027 = vmatpush1.msra.mxu0 0.0
    %4028 = vmatprep.subr.mxu0 0.0
    %4029 = vmatpush1.msra.mxu0 0.0
    %4030 = vmatprep.subr.mxu0 0.0
    %4031 = vmatpush1.msra.mxu0 0.0
    %4032 = vmatprep.subr.mxu0 0.0
    %4033 = vmatpush1.msra.mxu0 0.0
    %4034 = vmatprep.subr.mxu0 0.0
    %4035 = vmatpush1.msra.mxu0 0.0
    %4036 = vmatprep.subr.mxu0 0.0
    %4037 = vmatpush1.msra.mxu0 0.0
    %4038 = vmatprep.subr.mxu0 0.0
    %4039 = vmatpush1.msra.mxu0 0.0
    %4040 = vmatprep.subr.mxu0 0.0
    %4041 = vmatpush1.msra.mxu0 0.0
    %4042 = vmatprep.subr.mxu0 0.0
    %4043 = vmatpush1.msra.mxu0 0.0
    %4044 = vmatprep.subr.mxu0 0.0
    %4045 = vmatpush1.msra.mxu0 0.0
    %4046 = vmatprep.subr.mxu0 0.0
    %4047 = vmatpush1.msra.mxu0 0.0
    %4048 = vmatprep.subr.mxu0 0.0
    %4049 = vmatpush1.msra.mxu0 0.0
    %4050 = vmatprep.subr.mxu0 0.0
    %4051 = vmatpush1.msra.mxu0 0.0
    %4052 = vmatprep.subr.mxu0 0.0
    %4053 = vmatpush1.msra.mxu0 0.0
    %4054 = vmatprep.subr.mxu0 0.0
    %4055 = vmatpush1.msra.mxu0 0.0
    %4056 = vmatprep.subr.mxu0 0.0
    %4057 = vmatpush1.msra.mxu0 0.0
    %4058 = vmatprep.subr.mxu0 0.0
    %4059 = vmatpush1.msra.mxu0 0.0
    %4060 = vmatprep.subr.mxu0 0.0
    %4061 = vmatpush1.msra.mxu0 0.0
    %4062 = vmatprep.subr.mxu0 0.0
    %4063 = vmatpush1.msra.mxu0 0.0
    %4064 = vmatprep.mubr.f32.mxu0 0.0
    %4065 = vmatmul.mubr.f32.gmra.mrb[0].mxu0 %v3890
    %v4066 = vpop.f32.mrb[0].mxu0
    %v4067 = vadd.f32 0.0, %v4066
    %v4068 = vpop.f32.mrb[0].mxu0
    %v4069 = vadd.f32 0.0, %v4068
    %4070 = vdwg.mxu0
    %v4071 = vadd.f32 %v3998, %v4067
    %v4072 = vadd.f32 %v3999, %v4069
    %v4073 = vxor.u32 %v4071, 2147483648
    %v4074 = vxor.u32 %v4072, 2147483648
    %v4075 = vmul.f32 %v4073, 1.442695
    %v4076 = vpow.pop %v4075
    %v4077 = vmul.f32 %v4074, 1.442695
    %v4078 = vpow.pop %v4077
    %v4079 = vadd.f32 %v4076, 1.0
    %v4080 = vadd.f32 %v4078, 1.0
    %v4081 = vrcp.pop %v4079
    %v4082 = vmul.f32 1.0, %v4081
    %v4083 = vrcp.pop %v4080
    %v4084 = vmul.f32 1.0, %v4083
    %v4085 = vtanh.pop %v4072
    %v4086 = vmul.f32 %v4082, %v3808
    %4088 = vrot.lane.b32.xlu0 %v4085, 64
    %v4089 = vpop.permute.xlu0 %4088
    %v4091 = vmul.f32 %v4082, %v4089
    %4093 = vrot.lane.b32.xlu0 %v4091, 64
    %v4094 = vpop.permute.xlu0 %4093
    %v4096 = vadd.f32 %v4086, %v4094
    %v4097 = vtanh.pop %v4096
    %4099 = vrot.lane.b32.xlu0 %v4097, 64
    %v4100 = vpop.permute.xlu0 %4099
    %v4102 = vmul.f32 %v4084, %v4100
    %v4104 = vsel %vm439, %v3994, 0
    %4106 = vmatprep.subr.mxu0 %v2240
    %4107 = vmatpush1.msra.mxu0 %v2239
    %4108 = vmatprep.subr.mxu0 %v2242
    %4109 = vmatpush1.msra.mxu0 %v2241
    %4110 = vmatprep.subr.mxu0 %v2244
    %4111 = vmatpush1.msra.mxu0 %v2243
    %4112 = vmatprep.subr.mxu0 %v2246
    %4113 = vmatpush1.msra.mxu0 %v2245
    %4114 = vmatprep.subr.mxu0 %v2248
    %4115 = vmatpush1.msra.mxu0 %v2247
    %4116 = vmatprep.subr.mxu0 %v2250
    %4117 = vmatpush1.msra.mxu0 %v2249
    %4118 = vmatprep.subr.mxu0 %v2252
    %4119 = vmatpush1.msra.mxu0 %v2251
    %4120 = vmatprep.subr.mxu0 %v2254
    %4121 = vmatpush1.msra.mxu0 %v2253
    %4122 = vmatprep.subr.mxu0 0.0
    %4123 = vmatpush1.msra.mxu0 0.0
    %4124 = vmatprep.subr.mxu0 0.0
    %4125 = vmatpush1.msra.mxu0 0.0
    %4126 = vmatprep.subr.mxu0 0.0
    %4127 = vmatpush1.msra.mxu0 0.0
    %4128 = vmatprep.subr.mxu0 0.0
    %4129 = vmatpush1.msra.mxu0 0.0
    %4130 = vmatprep.subr.mxu0 0.0
    %4131 = vmatpush1.msra.mxu0 0.0
    %4132 = vmatprep.subr.mxu0 0.0
    %4133 = vmatpush1.msra.mxu0 0.0
    %4134 = vmatprep.subr.mxu0 0.0
    %4135 = vmatpush1.msra.mxu0 0.0
    %4136 = vmatprep.subr.mxu0 0.0
    %4137 = vmatpush1.msra.mxu0 0.0
    %4138 = vmatprep.subr.mxu0 0.0
    %4139 = vmatpush1.msra.mxu0 0.0
    %4140 = vmatprep.subr.mxu0 0.0
    %4141 = vmatpush1.msra.mxu0 0.0
    %4142 = vmatprep.subr.mxu0 0.0
    %4143 = vmatpush1.msra.mxu0 0.0
    %4144 = vmatprep.subr.mxu0 0.0
    %4145 = vmatpush1.msra.mxu0 0.0
    %4146 = vmatprep.subr.mxu0 0.0
    %4147 = vmatpush1.msra.mxu0 0.0
    %4148 = vmatprep.subr.mxu0 0.0
    %4149 = vmatpush1.msra.mxu0 0.0
    %4150 = vmatprep.subr.mxu0 0.0
    %4151 = vmatpush1.msra.mxu0 0.0
    %4152 = vmatprep.subr.mxu0 0.0
    %4153 = vmatpush1.msra.mxu0 0.0
    %4154 = vmatprep.subr.mxu0 0.0
    %4155 = vmatpush1.msra.mxu0 0.0
    %4156 = vmatprep.subr.mxu0 0.0
    %4157 = vmatpush1.msra.mxu0 0.0
    %4158 = vmatprep.subr.mxu0 0.0
    %4159 = vmatpush1.msra.mxu0 0.0
    %4160 = vmatprep.subr.mxu0 0.0
    %4161 = vmatpush1.msra.mxu0 0.0
    %4162 = vmatprep.subr.mxu0 0.0
    %4163 = vmatpush1.msra.mxu0 0.0
    %4164 = vmatprep.subr.mxu0 0.0
    %4165 = vmatpush1.msra.mxu0 0.0
    %4166 = vmatprep.subr.mxu0 0.0
    %4167 = vmatpush1.msra.mxu0 0.0
    %4168 = vmatprep.subr.mxu0 0.0
    %4169 = vmatpush1.msra.mxu0 0.0
    %4170 = vmatprep.mubr.f32.mxu0 0.0
    %4171 = vmatmul.mubr.f32.gmra.mrb[0].mxu0 %v4104
    %v4172 = vpop.f32.mrb[0].mxu0
    %v4173 = vadd.f32 0.0, %v4172
    %v4174 = vpop.f32.mrb[0].mxu0
    %v4175 = vadd.f32 0.0, %v4174
    %4176 = vdwg.mxu0
    %v4178 = vsel %vm439, %v4102, 0
    %4180 = vmatprep.subr.mxu0 %v2224
    %4181 = vmatpush1.msra.mxu0 %v2223
    %4182 = vmatprep.subr.mxu0 %v2226
    %4183 = vmatpush1.msra.mxu0 %v2225
    %4184 = vmatprep.subr.mxu0 %v2228
    %4185 = vmatpush1.msra.mxu0 %v2227
    %4186 = vmatprep.subr.mxu0 %v2230
    %4187 = vmatpush1.msra.mxu0 %v2229
    %4188 = vmatprep.subr.mxu0 %v2232
    %4189 = vmatpush1.msra.mxu0 %v2231
    %4190 = vmatprep.subr.mxu0 %v2234
    %4191 = vmatpush1.msra.mxu0 %v2233
    %4192 = vmatprep.subr.mxu0 %v2236
    %4193 = vmatpush1.msra.mxu0 %v2235
    %4194 = vmatprep.subr.mxu0 %v2238
    %4195 = vmatpush1.msra.mxu0 %v2237
    %4196 = vmatprep.subr.mxu0 0.0
    %4197 = vmatpush1.msra.mxu0 0.0
    %4198 = vmatprep.subr.mxu0 0.0
    %4199 = vmatpush1.msra.mxu0 0.0
    %4200 = vmatprep.subr.mxu0 0.0
    %4201 = vmatpush1.msra.mxu0 0.0
    %4202 = vmatprep.subr.mxu0 0.0
    %4203 = vmatpush1.msra.mxu0 0.0
    %4204 = vmatprep.subr.mxu0 0.0
    %4205 = vmatpush1.msra.mxu0 0.0
    %4206 = vmatprep.subr.mxu0 0.0
    %4207 = vmatpush1.msra.mxu0 0.0
    %4208 = vmatprep.subr.mxu0 0.0
    %4209 = vmatpush1.msra.mxu0 0.0
    %4210 = vmatprep.subr.mxu0 0.0
    %4211 = vmatpush1.msra.mxu0 0.0
    %4212 = vmatprep.subr.mxu0 0.0
    %4213 = vmatpush1.msra.mxu0 0.0
    %4214 = vmatprep.subr.mxu0 0.0
    %4215 = vmatpush1.msra.mxu0 0.0
    %4216 = vmatprep.subr.mxu0 0.0
    %4217 = vmatpush1.msra.mxu0 0.0
    %4218 = vmatprep.subr.mxu0 0.0
    %4219 = vmatpush1.msra.mxu0 0.0
    %4220 = vmatprep.subr.mxu0 0.0
    %4221 = vmatpush1.msra.mxu0 0.0
    %4222 = vmatprep.subr.mxu0 0.0
    %4223 = vmatpush1.msra.mxu0 0.0
    %4224 = vmatprep.subr.mxu0 0.0
    %4225 = vmatpush1.msra.mxu0 0.0
    %4226 = vmatprep.subr.mxu0 0.0
    %4227 = vmatpush1.msra.mxu0 0.0
    %4228 = vmatprep.subr.mxu0 0.0
    %4229 = vmatpush1.msra.mxu0 0.0
    %4230 = vmatprep.subr.mxu0 0.0
    %4231 = vmatpush1.msra.mxu0 0.0
    %4232 = vmatprep.subr.mxu0 0.0
    %4233 = vmatpush1.msra.mxu0 0.0
    %4234 = vmatprep.subr.mxu0 0.0
    %4235 = vmatpush1.msra.mxu0 0.0
    %4236 = vmatprep.subr.mxu0 0.0
    %4237 = vmatpush1.msra.mxu0 0.0
    %4238 = vmatprep.subr.mxu0 0.0
    %4239 = vmatpush1.msra.mxu0 0.0
    %4240 = vmatprep.subr.mxu0 0.0
    %4241 = vmatpush1.msra.mxu0 0.0
    %4242 = vmatprep.subr.mxu0 0.0
    %4243 = vmatpush1.msra.mxu0 0.0
    %4244 = vmatprep.mubr.f32.mxu0 0.0
    %4245 = vmatmul.mubr.f32.gmra.mrb[0].mxu0 %v4178
    %v4246 = vpop.f32.mrb[0].mxu0
    %v4247 = vadd.f32 %v4173, %v4246
    %v4248 = vpop.f32.mrb[0].mxu0
    %v4249 = vadd.f32 %v4175, %v4248
    %4250 = vdwg.mxu0
    %v4251 = vadd.f32 %v4247, %v2260
    %v4252 = vadd.f32 %v4249, %v2264
    %v4253 = vxor.u32 %v4251, 2147483648
    %v4254 = vxor.u32 %v4252, 2147483648
    %v4255 = vmul.f32 %v4253, 1.442695
    %v4256 = vpow.pop %v4255
    %v4257 = vmul.f32 %v4254, 1.442695
    %v4258 = vpow.pop %v4257
    %v4259 = vadd.f32 %v4256, 1.0
    %v4260 = vadd.f32 %v4258, 1.0
    %v4261 = vrcp.pop %v4259
    %v4262 = vmul.f32 1.0, %v4261
    %v4263 = vrcp.pop %v4260
    %v4264 = vmul.f32 1.0, %v4263
    %v4265 = vtanh.pop %v4252
    %v4266 = vmul.f32 %v4262, %v3988
    %4268 = vrot.lane.b32.xlu0 %v4265, 64
    %v4269 = vpop.permute.xlu0 %4268
    %v4271 = vmul.f32 %v4262, %v4269
    %4273 = vrot.lane.b32.xlu0 %v4271, 64
    %v4274 = vpop.permute.xlu0 %4273
    %v4276 = vadd.f32 %v4266, %v4274
    %v4277 = vtanh.pop %v4276
    %4279 = vrot.lane.b32.xlu0 %v4277, 64
    %v4280 = vpop.permute.xlu0 %4279
    %v4282 = vmul.f32 %v4264, %v4280
    %s4283 = smul.u32 7, 2
    %s4284 = smul.addr %s4283, 8
    %s4285 = scalar_lea.vmem [#allocation2], %s4284
    %v4286 = vld [vmem:[%s4285] sm:$0xff]
    %v4287 = vld [vmem:[%s4285 + $0x8] sm:$0xff]
    %4288 = vmatprep.subr.mxu0 %v2208
    %4289 = vmatpush1.msra.mxu0 %v2207
    %4290 = vmatprep.subr.mxu0 %v2210
    %4291 = vmatpush1.msra.mxu0 %v2209
    %4292 = vmatprep.subr.mxu0 %v2212
    %4293 = vmatpush1.msra.mxu0 %v2211
    %4294 = vmatprep.subr.mxu0 %v2214
    %4295 = vmatpush1.msra.mxu0 %v2213
    %4296 = vmatprep.subr.mxu0 %v2216
    %4297 = vmatpush1.msra.mxu0 %v2215
    %4298 = vmatprep.subr.mxu0 %v2218
    %4299 = vmatpush1.msra.mxu0 %v2217
    %4300 = vmatprep.subr.mxu0 %v2220
    %4301 = vmatpush1.msra.mxu0 %v2219
    %4302 = vmatprep.subr.mxu0 %v2222
    %4303 = vmatpush1.msra.mxu0 %v2221
    %4304 = vmatprep.subr.mxu0 0.0
    %4305 = vmatpush1.msra.mxu0 0.0
    %4306 = vmatprep.subr.mxu0 0.0
    %4307 = vmatpush1.msra.mxu0 0.0
    %4308 = vmatprep.subr.mxu0 0.0
    %4309 = vmatpush1.msra.mxu0 0.0
    %4310 = vmatprep.subr.mxu0 0.0
    %4311 = vmatpush1.msra.mxu0 0.0
    %4312 = vmatprep.subr.mxu0 0.0
    %4313 = vmatpush1.msra.mxu0 0.0
    %4314 = vmatprep.subr.mxu0 0.0
    %4315 = vmatpush1.msra.mxu0 0.0
    %4316 = vmatprep.subr.mxu0 0.0
    %4317 = vmatpush1.msra.mxu0 0.0
    %4318 = vmatprep.subr.mxu0 0.0
    %4319 = vmatpush1.msra.mxu0 0.0
    %4320 = vmatprep.subr.mxu0 0.0
    %4321 = vmatpush1.msra.mxu0 0.0
    %4322 = vmatprep.subr.mxu0 0.0
    %4323 = vmatpush1.msra.mxu0 0.0
    %4324 = vmatprep.subr.mxu0 0.0
    %4325 = vmatpush1.msra.mxu0 0.0
    %4326 = vmatprep.subr.mxu0 0.0
    %4327 = vmatpush1.msra.mxu0 0.0
    %4328 = vmatprep.subr.mxu0 0.0
    %4329 = vmatpush1.msra.mxu0 0.0
    %4330 = vmatprep.subr.mxu0 0.0
    %4331 = vmatpush1.msra.mxu0 0.0
    %4332 = vmatprep.subr.mxu0 0.0
    %4333 = vmatpush1.msra.mxu0 0.0
    %4334 = vmatprep.subr.mxu0 0.0
    %4335 = vmatpush1.msra.mxu0 0.0
    %4336 = vmatprep.subr.mxu0 0.0
    %4337 = vmatpush1.msra.mxu0 0.0
    %4338 = vmatprep.subr.mxu0 0.0
    %4339 = vmatpush1.msra.mxu0 0.0
    %4340 = vmatprep.subr.mxu0 0.0
    %4341 = vmatpush1.msra.mxu0 0.0
    %4342 = vmatprep.subr.mxu0 0.0
    %4343 = vmatpush1.msra.mxu0 0.0
    %4344 = vmatprep.subr.mxu0 0.0
    %4345 = vmatpush1.msra.mxu0 0.0
    %4346 = vmatprep.subr.mxu0 0.0
    %4347 = vmatpush1.msra.mxu0 0.0
    %4348 = vmatprep.subr.mxu0 0.0
    %4349 = vmatpush1.msra.mxu0 0.0
    %4350 = vmatprep.subr.mxu0 0.0
    %4351 = vmatpush1.msra.mxu0 0.0
    %4352 = vmatprep.mubr.f32.mxu0 0.0
    %4353 = vmatmul.mubr.f32.gmra.mrb[0].mxu0 %v4178
    %v4354 = vpop.f32.mrb[0].mxu0
    %v4355 = vadd.f32 0.0, %v4354
    %v4356 = vpop.f32.mrb[0].mxu0
    %v4357 = vadd.f32 0.0, %v4356
    %4358 = vdwg.mxu0
    %v4359 = vadd.f32 %v4286, %v4355
    %v4360 = vadd.f32 %v4287, %v4357
    %v4361 = vxor.u32 %v4359, 2147483648
    %v4362 = vxor.u32 %v4360, 2147483648
    %v4363 = vmul.f32 %v4361, 1.442695
    %v4364 = vpow.pop %v4363
    %v4365 = vmul.f32 %v4362, 1.442695
    %v4366 = vpow.pop %v4365
    %v4367 = vadd.f32 %v4364, 1.0
    %v4368 = vadd.f32 %v4366, 1.0
    %v4369 = vrcp.pop %v4367
    %v4370 = vmul.f32 1.0, %v4369
    %v4371 = vrcp.pop %v4368
    %v4372 = vmul.f32 1.0, %v4371
    %v4373 = vtanh.pop %v4360
    %v4374 = vmul.f32 %v4370, %v4096
    %4376 = vrot.lane.b32.xlu0 %v4373, 64
    %v4377 = vpop.permute.xlu0 %4376
    %v4379 = vmul.f32 %v4370, %v4377
    %4381 = vrot.lane.b32.xlu0 %v4379, 64
    %v4382 = vpop.permute.xlu0 %4381
    %v4384 = vadd.f32 %v4374, %v4382
    %v4385 = vtanh.pop %v4384
    %4387 = vrot.lane.b32.xlu0 %v4385, 64
    %v4388 = vpop.permute.xlu0 %4387
    %v4390 = vmul.f32 %v4372, %v4388
    %v4392 = vsel %vm439, %v4282, 0
    %4394 = vmatprep.subr.mxu0 %v2240
    %4395 = vmatpush1.msra.mxu0 %v2239
    %4396 = vmatprep.subr.mxu0 %v2242
    %4397 = vmatpush1.msra.mxu0 %v2241
    %4398 = vmatprep.subr.mxu0 %v2244
    %4399 = vmatpush1.msra.mxu0 %v2243
    %4400 = vmatprep.subr.mxu0 %v2246
    %4401 = vmatpush1.msra.mxu0 %v2245
    %4402 = vmatprep.subr.mxu0 %v2248
    %4403 = vmatpush1.msra.mxu0 %v2247
    %4404 = vmatprep.subr.mxu0 %v2250
    %4405 = vmatpush1.msra.mxu0 %v2249
    %4406 = vmatprep.subr.mxu0 %v2252
    %4407 = vmatpush1.msra.mxu0 %v2251
    %4408 = vmatprep.subr.mxu0 %v2254
    %4409 = vmatpush1.msra.mxu0 %v2253
    %4410 = vmatprep.subr.mxu0 0.0
    %4411 = vmatpush1.msra.mxu0 0.0
    %4412 = vmatprep.subr.mxu0 0.0
    %4413 = vmatpush1.msra.mxu0 0.0
    %4414 = vmatprep.subr.mxu0 0.0
    %4415 = vmatpush1.msra.mxu0 0.0
    %4416 = vmatprep.subr.mxu0 0.0
    %4417 = vmatpush1.msra.mxu0 0.0
    %4418 = vmatprep.subr.mxu0 0.0
    %4419 = vmatpush1.msra.mxu0 0.0
    %4420 = vmatprep.subr.mxu0 0.0
    %4421 = vmatpush1.msra.mxu0 0.0
    %4422 = vmatprep.subr.mxu0 0.0
    %4423 = vmatpush1.msra.mxu0 0.0
    %4424 = vmatprep.subr.mxu0 0.0
    %4425 = vmatpush1.msra.mxu0 0.0
    %4426 = vmatprep.subr.mxu0 0.0
    %4427 = vmatpush1.msra.mxu0 0.0
    %4428 = vmatprep.subr.mxu0 0.0
    %4429 = vmatpush1.msra.mxu0 0.0
    %4430 = vmatprep.subr.mxu0 0.0
    %4431 = vmatpush1.msra.mxu0 0.0
    %4432 = vmatprep.subr.mxu0 0.0
    %4433 = vmatpush1.msra.mxu0 0.0
    %4434 = vmatprep.subr.mxu0 0.0
    %4435 = vmatpush1.msra.mxu0 0.0
    %4436 = vmatprep.subr.mxu0 0.0
    %4437 = vmatpush1.msra.mxu0 0.0
    %4438 = vmatprep.subr.mxu0 0.0
    %4439 = vmatpush1.msra.mxu0 0.0
    %4440 = vmatprep.subr.mxu0 0.0
    %4441 = vmatpush1.msra.mxu0 0.0
    %4442 = vmatprep.subr.mxu0 0.0
    %4443 = vmatpush1.msra.mxu0 0.0
    %4444 = vmatprep.subr.mxu0 0.0
    %4445 = vmatpush1.msra.mxu0 0.0
    %4446 = vmatprep.subr.mxu0 0.0
    %4447 = vmatpush1.msra.mxu0 0.0
    %4448 = vmatprep.subr.mxu0 0.0
    %4449 = vmatpush1.msra.mxu0 0.0
    %4450 = vmatprep.subr.mxu0 0.0
    %4451 = vmatpush1.msra.mxu0 0.0
    %4452 = vmatprep.subr.mxu0 0.0
    %4453 = vmatpush1.msra.mxu0 0.0
    %4454 = vmatprep.subr.mxu0 0.0
    %4455 = vmatpush1.msra.mxu0 0.0
    %4456 = vmatprep.subr.mxu0 0.0
    %4457 = vmatpush1.msra.mxu0 0.0
    %4458 = vmatprep.mubr.f32.mxu0 0.0
    %4459 = vmatmul.mubr.f32.gmra.mrb[0].mxu0 %v4392
    %v4460 = vpop.f32.mrb[0].mxu0
    %v4461 = vadd.f32 0.0, %v4460
    %v4462 = vpop.f32.mrb[0].mxu0
    %v4463 = vadd.f32 0.0, %v4462
    %4464 = vdwg.mxu0
    %v4466 = vsel %vm439, %v4390, 0
    %4468 = vmatprep.subr.mxu0 %v2224
    %4469 = vmatpush1.msra.mxu0 %v2223
    %4470 = vmatprep.subr.mxu0 %v2226
    %4471 = vmatpush1.msra.mxu0 %v2225
    %4472 = vmatprep.subr.mxu0 %v2228
    %4473 = vmatpush1.msra.mxu0 %v2227
    %4474 = vmatprep.subr.mxu0 %v2230
    %4475 = vmatpush1.msra.mxu0 %v2229
    %4476 = vmatprep.subr.mxu0 %v2232
    %4477 = vmatpush1.msra.mxu0 %v2231
    %4478 = vmatprep.subr.mxu0 %v2234
    %4479 = vmatpush1.msra.mxu0 %v2233
    %4480 = vmatprep.subr.mxu0 %v2236
    %4481 = vmatpush1.msra.mxu0 %v2235
    %4482 = vmatprep.subr.mxu0 %v2238
    %4483 = vmatpush1.msra.mxu0 %v2237
    %4484 = vmatprep.subr.mxu0 0.0
    %4485 = vmatpush1.msra.mxu0 0.0
    %4486 = vmatprep.subr.mxu0 0.0
    %4487 = vmatpush1.msra.mxu0 0.0
    %4488 = vmatprep.subr.mxu0 0.0
    %4489 = vmatpush1.msra.mxu0 0.0
    %4490 = vmatprep.subr.mxu0 0.0
    %4491 = vmatpush1.msra.mxu0 0.0
    %4492 = vmatprep.subr.mxu0 0.0
    %4493 = vmatpush1.msra.mxu0 0.0
    %4494 = vmatprep.subr.mxu0 0.0
    %4495 = vmatpush1.msra.mxu0 0.0
    %4496 = vmatprep.subr.mxu0 0.0
    %4497 = vmatpush1.msra.mxu0 0.0
    %4498 = vmatprep.subr.mxu0 0.0
    %4499 = vmatpush1.msra.mxu0 0.0
    %4500 = vmatprep.subr.mxu0 0.0
    %4501 = vmatpush1.msra.mxu0 0.0
    %4502 = vmatprep.subr.mxu0 0.0
    %4503 = vmatpush1.msra.mxu0 0.0
    %4504 = vmatprep.subr.mxu0 0.0
    %4505 = vmatpush1.msra.mxu0 0.0
    %4506 = vmatprep.subr.mxu0 0.0
    %4507 = vmatpush1.msra.mxu0 0.0
    %4508 = vmatprep.subr.mxu0 0.0
    %4509 = vmatpush1.msra.mxu0 0.0
    %4510 = vmatprep.subr.mxu0 0.0
    %4511 = vmatpush1.msra.mxu0 0.0
    %4512 = vmatprep.subr.mxu0 0.0
    %4513 = vmatpush1.msra.mxu0 0.0
    %4514 = vmatprep.subr.mxu0 0.0
    %4515 = vmatpush1.msra.mxu0 0.0
    %4516 = vmatprep.subr.mxu0 0.0
    %4517 = vmatpush1.msra.mxu0 0.0
    %4518 = vmatprep.subr.mxu0 0.0
    %4519 = vmatpush1.msra.mxu0 0.0
    %4520 = vmatprep.subr.mxu0 0.0
    %4521 = vmatpush1.msra.mxu0 0.0
    %4522 = vmatprep.subr.mxu0 0.0
    %4523 = vmatpush1.msra.mxu0 0.0
    %4524 = vmatprep.subr.mxu0 0.0
    %4525 = vmatpush1.msra.mxu0 0.0
    %4526 = vmatprep.subr.mxu0 0.0
    %4527 = vmatpush1.msra.mxu0 0.0
    %4528 = vmatprep.subr.mxu0 0.0
    %4529 = vmatpush1.msra.mxu0 0.0
    %4530 = vmatprep.subr.mxu0 0.0
    %4531 = vmatpush1.msra.mxu0 0.0
    %4532 = vmatprep.mubr.f32.mxu0 0.0
    %4533 = vmatmul.mubr.f32.gmra.mrb[0].mxu0 %v4466
    %v4534 = vpop.f32.mrb[0].mxu0
    %v4535 = vadd.f32 %v4461, %v4534
    %v4536 = vpop.f32.mrb[0].mxu0
    %v4537 = vadd.f32 %v4463, %v4536
    %4538 = vdwg.mxu0
    %v4539 = vadd.f32 %v4535, %v2260
    %v4540 = vadd.f32 %v4537, %v2264
    %v4541 = vxor.u32 %v4539, 2147483648
    %v4542 = vxor.u32 %v4540, 2147483648
    %v4543 = vmul.f32 %v4541, 1.442695
    %v4544 = vpow.pop %v4543
    %v4545 = vmul.f32 %v4542, 1.442695
    %v4546 = vpow.pop %v4545
    %v4547 = vadd.f32 %v4544, 1.0
    %v4548 = vadd.f32 %v4546, 1.0
    %v4549 = vrcp.pop %v4547
    %v4550 = vmul.f32 1.0, %v4549
    %v4551 = vrcp.pop %v4548
    %v4552 = vmul.f32 1.0, %v4551
    %v4553 = vtanh.pop %v4540
    %v4554 = vmul.f32 %v4550, %v4276
    %4556 = vrot.lane.b32.xlu0 %v4553, 64
    %v4557 = vpop.permute.xlu0 %4556
    %v4559 = vmul.f32 %v4550, %v4557
    %4561 = vrot.lane.b32.xlu0 %v4559, 64
    %v4562 = vpop.permute.xlu0 %4561
    %v4564 = vadd.f32 %v4554, %v4562
    %v4565 = vtanh.pop %v4564
    %4567 = vrot.lane.b32.xlu0 %v4565, 64
    %v4568 = vpop.permute.xlu0 %4567
    %v4570 = vmul.f32 %v4552, %v4568
    %s4571 = smul.u32 8, 2
    %s4572 = smul.addr %s4571, 8
    %s4573 = scalar_lea.vmem [#allocation2], %s4572
    %v4574 = vld [vmem:[%s4573] sm:$0xff]
    %v4575 = vld [vmem:[%s4573 + $0x8] sm:$0xff]
    %4576 = vmatprep.subr.mxu0 %v2208
    %4577 = vmatpush1.msra.mxu0 %v2207
    %4578 = vmatprep.subr.mxu0 %v2210
    %4579 = vmatpush1.msra.mxu0 %v2209
    %4580 = vmatprep.subr.mxu0 %v2212
    %4581 = vmatpush1.msra.mxu0 %v2211
    %4582 = vmatprep.subr.mxu0 %v2214
    %4583 = vmatpush1.msra.mxu0 %v2213
    %4584 = vmatprep.subr.mxu0 %v2216
    %4585 = vmatpush1.msra.mxu0 %v2215
    %4586 = vmatprep.subr.mxu0 %v2218
    %4587 = vmatpush1.msra.mxu0 %v2217
    %4588 = vmatprep.subr.mxu0 %v2220
    %4589 = vmatpush1.msra.mxu0 %v2219
    %4590 = vmatprep.subr.mxu0 %v2222
    %4591 = vmatpush1.msra.mxu0 %v2221
    %4592 = vmatprep.subr.mxu0 0.0
    %4593 = vmatpush1.msra.mxu0 0.0
    %4594 = vmatprep.subr.mxu0 0.0
    %4595 = vmatpush1.msra.mxu0 0.0
    %4596 = vmatprep.subr.mxu0 0.0
    %4597 = vmatpush1.msra.mxu0 0.0
    %4598 = vmatprep.subr.mxu0 0.0
    %4599 = vmatpush1.msra.mxu0 0.0
    %4600 = vmatprep.subr.mxu0 0.0
    %4601 = vmatpush1.msra.mxu0 0.0
    %4602 = vmatprep.subr.mxu0 0.0
    %4603 = vmatpush1.msra.mxu0 0.0
    %4604 = vmatprep.subr.mxu0 0.0
    %4605 = vmatpush1.msra.mxu0 0.0
    %4606 = vmatprep.subr.mxu0 0.0
    %4607 = vmatpush1.msra.mxu0 0.0
    %4608 = vmatprep.subr.mxu0 0.0
    %4609 = vmatpush1.msra.mxu0 0.0
    %4610 = vmatprep.subr.mxu0 0.0
    %4611 = vmatpush1.msra.mxu0 0.0
    %4612 = vmatprep.subr.mxu0 0.0
    %4613 = vmatpush1.msra.mxu0 0.0
    %4614 = vmatprep.subr.mxu0 0.0
    %4615 = vmatpush1.msra.mxu0 0.0
    %4616 = vmatprep.subr.mxu0 0.0
    %4617 = vmatpush1.msra.mxu0 0.0
    %4618 = vmatprep.subr.mxu0 0.0
    %4619 = vmatpush1.msra.mxu0 0.0
    %4620 = vmatprep.subr.mxu0 0.0
    %4621 = vmatpush1.msra.mxu0 0.0
    %4622 = vmatprep.subr.mxu0 0.0
    %4623 = vmatpush1.msra.mxu0 0.0
    %4624 = vmatprep.subr.mxu0 0.0
    %4625 = vmatpush1.msra.mxu0 0.0
    %4626 = vmatprep.subr.mxu0 0.0
    %4627 = vmatpush1.msra.mxu0 0.0
    %4628 = vmatprep.subr.mxu0 0.0
    %4629 = vmatpush1.msra.mxu0 0.0
    %4630 = vmatprep.subr.mxu0 0.0
    %4631 = vmatpush1.msra.mxu0 0.0
    %4632 = vmatprep.subr.mxu0 0.0
    %4633 = vmatpush1.msra.mxu0 0.0
    %4634 = vmatprep.subr.mxu0 0.0
    %4635 = vmatpush1.msra.mxu0 0.0
    %4636 = vmatprep.subr.mxu0 0.0
    %4637 = vmatpush1.msra.mxu0 0.0
    %4638 = vmatprep.subr.mxu0 0.0
    %4639 = vmatpush1.msra.mxu0 0.0
    %4640 = vmatprep.mubr.f32.mxu0 0.0
    %4641 = vmatmul.mubr.f32.gmra.mrb[0].mxu0 %v4466
    %v4642 = vpop.f32.mrb[0].mxu0
    %v4643 = vadd.f32 0.0, %v4642
    %v4644 = vpop.f32.mrb[0].mxu0
    %v4645 = vadd.f32 0.0, %v4644
    %4646 = vdwg.mxu0
    %v4647 = vadd.f32 %v4574, %v4643
    %v4648 = vadd.f32 %v4575, %v4645
    %v4649 = vxor.u32 %v4647, 2147483648
    %v4650 = vxor.u32 %v4648, 2147483648
    %v4651 = vmul.f32 %v4649, 1.442695
    %v4652 = vpow.pop %v4651
    %v4653 = vmul.f32 %v4650, 1.442695
    %v4654 = vpow.pop %v4653
    %v4655 = vadd.f32 %v4652, 1.0
    %v4656 = vadd.f32 %v4654, 1.0
    %v4657 = vrcp.pop %v4655
    %v4658 = vmul.f32 1.0, %v4657
    %v4659 = vrcp.pop %v4656
    %v4660 = vmul.f32 1.0, %v4659
    %v4661 = vtanh.pop %v4648
    %v4662 = vmul.f32 %v4658, %v4384
    %4664 = vrot.lane.b32.xlu0 %v4661, 64
    %v4665 = vpop.permute.xlu0 %4664
    %v4667 = vmul.f32 %v4658, %v4665
    %4669 = vrot.lane.b32.xlu0 %v4667, 64
    %v4670 = vpop.permute.xlu0 %4669
    %v4672 = vadd.f32 %v4662, %v4670
    %v4673 = vtanh.pop %v4672
    %4675 = vrot.lane.b32.xlu0 %v4673, 64
    %v4676 = vpop.permute.xlu0 %4675
    %v4678 = vmul.f32 %v4660, %v4676
    %v4680 = vsel %vm439, %v4570, 0
    %4682 = vmatprep.subr.mxu0 %v2240
    %4683 = vmatpush1.msra.mxu0 %v2239
    %4684 = vmatprep.subr.mxu0 %v2242
    %4685 = vmatpush1.msra.mxu0 %v2241
    %4686 = vmatprep.subr.mxu0 %v2244
    %4687 = vmatpush1.msra.mxu0 %v2243
    %4688 = vmatprep.subr.mxu0 %v2246
    %4689 = vmatpush1.msra.mxu0 %v2245
    %4690 = vmatprep.subr.mxu0 %v2248
    %4691 = vmatpush1.msra.mxu0 %v2247
    %4692 = vmatprep.subr.mxu0 %v2250
    %4693 = vmatpush1.msra.mxu0 %v2249
    %4694 = vmatprep.subr.mxu0 %v2252
    %4695 = vmatpush1.msra.mxu0 %v2251
    %4696 = vmatprep.subr.mxu0 %v2254
    %4697 = vmatpush1.msra.mxu0 %v2253
    %4698 = vmatprep.subr.mxu0 0.0
    %4699 = vmatpush1.msra.mxu0 0.0
    %4700 = vmatprep.subr.mxu0 0.0
    %4701 = vmatpush1.msra.mxu0 0.0
    %4702 = vmatprep.subr.mxu0 0.0
    %4703 = vmatpush1.msra.mxu0 0.0
    %4704 = vmatprep.subr.mxu0 0.0
    %4705 = vmatpush1.msra.mxu0 0.0
    %4706 = vmatprep.subr.mxu0 0.0
    %4707 = vmatpush1.msra.mxu0 0.0
    %4708 = vmatprep.subr.mxu0 0.0
    %4709 = vmatpush1.msra.mxu0 0.0
    %4710 = vmatprep.subr.mxu0 0.0
    %4711 = vmatpush1.msra.mxu0 0.0
    %4712 = vmatprep.subr.mxu0 0.0
    %4713 = vmatpush1.msra.mxu0 0.0
    %4714 = vmatprep.subr.mxu0 0.0
    %4715 = vmatpush1.msra.mxu0 0.0
    %4716 = vmatprep.subr.mxu0 0.0
    %4717 = vmatpush1.msra.mxu0 0.0
    %4718 = vmatprep.subr.mxu0 0.0
    %4719 = vmatpush1.msra.mxu0 0.0
    %4720 = vmatprep.subr.mxu0 0.0
    %4721 = vmatpush1.msra.mxu0 0.0
    %4722 = vmatprep.subr.mxu0 0.0
    %4723 = vmatpush1.msra.mxu0 0.0
    %4724 = vmatprep.subr.mxu0 0.0
    %4725 = vmatpush1.msra.mxu0 0.0
    %4726 = vmatprep.subr.mxu0 0.0
    %4727 = vmatpush1.msra.mxu0 0.0
    %4728 = vmatprep.subr.mxu0 0.0
    %4729 = vmatpush1.msra.mxu0 0.0
    %4730 = vmatprep.subr.mxu0 0.0
    %4731 = vmatpush1.msra.mxu0 0.0
    %4732 = vmatprep.subr.mxu0 0.0
    %4733 = vmatpush1.msra.mxu0 0.0
    %4734 = vmatprep.subr.mxu0 0.0
    %4735 = vmatpush1.msra.mxu0 0.0
    %4736 = vmatprep.subr.mxu0 0.0
    %4737 = vmatpush1.msra.mxu0 0.0
    %4738 = vmatprep.subr.mxu0 0.0
    %4739 = vmatpush1.msra.mxu0 0.0
    %4740 = vmatprep.subr.mxu0 0.0
    %4741 = vmatpush1.msra.mxu0 0.0
    %4742 = vmatprep.subr.mxu0 0.0
    %4743 = vmatpush1.msra.mxu0 0.0
    %4744 = vmatprep.subr.mxu0 0.0
    %4745 = vmatpush1.msra.mxu0 0.0
    %4746 = vmatprep.mubr.f32.mxu0 0.0
    %4747 = vmatmul.mubr.f32.gmra.mrb[0].mxu0 %v4680
    %v4748 = vpop.f32.mrb[0].mxu0
    %v4749 = vadd.f32 0.0, %v4748
    %v4750 = vpop.f32.mrb[0].mxu0
    %v4751 = vadd.f32 0.0, %v4750
    %4752 = vdwg.mxu0
    %v4754 = vsel %vm439, %v4678, 0
    %4756 = vmatprep.subr.mxu0 %v2224
    %4757 = vmatpush1.msra.mxu0 %v2223
    %4758 = vmatprep.subr.mxu0 %v2226
    %4759 = vmatpush1.msra.mxu0 %v2225
    %4760 = vmatprep.subr.mxu0 %v2228
    %4761 = vmatpush1.msra.mxu0 %v2227
    %4762 = vmatprep.subr.mxu0 %v2230
    %4763 = vmatpush1.msra.mxu0 %v2229
    %4764 = vmatprep.subr.mxu0 %v2232
    %4765 = vmatpush1.msra.mxu0 %v2231
    %4766 = vmatprep.subr.mxu0 %v2234
    %4767 = vmatpush1.msra.mxu0 %v2233
    %4768 = vmatprep.subr.mxu0 %v2236
    %4769 = vmatpush1.msra.mxu0 %v2235
    %4770 = vmatprep.subr.mxu0 %v2238
    %4771 = vmatpush1.msra.mxu0 %v2237
    %4772 = vmatprep.subr.mxu0 0.0
    %4773 = vmatpush1.msra.mxu0 0.0
    %4774 = vmatprep.subr.mxu0 0.0
    %4775 = vmatpush1.msra.mxu0 0.0
    %4776 = vmatprep.subr.mxu0 0.0
    %4777 = vmatpush1.msra.mxu0 0.0
    %4778 = vmatprep.subr.mxu0 0.0
    %4779 = vmatpush1.msra.mxu0 0.0
    %4780 = vmatprep.subr.mxu0 0.0
    %4781 = vmatpush1.msra.mxu0 0.0
    %4782 = vmatprep.subr.mxu0 0.0
    %4783 = vmatpush1.msra.mxu0 0.0
    %4784 = vmatprep.subr.mxu0 0.0
    %4785 = vmatpush1.msra.mxu0 0.0
    %4786 = vmatprep.subr.mxu0 0.0
    %4787 = vmatpush1.msra.mxu0 0.0
    %4788 = vmatprep.subr.mxu0 0.0
    %4789 = vmatpush1.msra.mxu0 0.0
    %4790 = vmatprep.subr.mxu0 0.0
    %4791 = vmatpush1.msra.mxu0 0.0
    %4792 = vmatprep.subr.mxu0 0.0
    %4793 = vmatpush1.msra.mxu0 0.0
    %4794 = vmatprep.subr.mxu0 0.0
    %4795 = vmatpush1.msra.mxu0 0.0
    %4796 = vmatprep.subr.mxu0 0.0
    %4797 = vmatpush1.msra.mxu0 0.0
    %4798 = vmatprep.subr.mxu0 0.0
    %4799 = vmatpush1.msra.mxu0 0.0
    %4800 = vmatprep.subr.mxu0 0.0
    %4801 = vmatpush1.msra.mxu0 0.0
    %4802 = vmatprep.subr.mxu0 0.0
    %4803 = vmatpush1.msra.mxu0 0.0
    %4804 = vmatprep.subr.mxu0 0.0
    %4805 = vmatpush1.msra.mxu0 0.0
    %4806 = vmatprep.subr.mxu0 0.0
    %4807 = vmatpush1.msra.mxu0 0.0
    %4808 = vmatprep.subr.mxu0 0.0
    %4809 = vmatpush1.msra.mxu0 0.0
    %4810 = vmatprep.subr.mxu0 0.0
    %4811 = vmatpush1.msra.mxu0 0.0
    %4812 = vmatprep.subr.mxu0 0.0
    %4813 = vmatpush1.msra.mxu0 0.0
    %4814 = vmatprep.subr.mxu0 0.0
    %4815 = vmatpush1.msra.mxu0 0.0
    %4816 = vmatprep.subr.mxu0 0.0
    %4817 = vmatpush1.msra.mxu0 0.0
    %4818 = vmatprep.subr.mxu0 0.0
    %4819 = vmatpush1.msra.mxu0 0.0
    %4820 = vmatprep.mubr.f32.mxu0 0.0
    %4821 = vmatmul.mubr.f32.gmra.mrb[0].mxu0 %v4754
    %v4822 = vpop.f32.mrb[0].mxu0
    %v4823 = vadd.f32 %v4749, %v4822
    %v4824 = vpop.f32.mrb[0].mxu0
    %v4825 = vadd.f32 %v4751, %v4824
    %4826 = vdwg.mxu0
    %v4827 = vadd.f32 %v4823, %v2260
    %v4828 = vadd.f32 %v4825, %v2264
    %v4829 = vxor.u32 %v4827, 2147483648
    %v4830 = vxor.u32 %v4828, 2147483648
    %v4831 = vmul.f32 %v4829, 1.442695
    %v4832 = vpow.pop %v4831
    %v4833 = vmul.f32 %v4830, 1.442695
    %v4834 = vpow.pop %v4833
    %v4835 = vadd.f32 %v4832, 1.0
    %v4836 = vadd.f32 %v4834, 1.0
    %v4837 = vrcp.pop %v4835
    %v4838 = vmul.f32 1.0, %v4837
    %v4839 = vrcp.pop %v4836
    %v4840 = vmul.f32 1.0, %v4839
    %v4841 = vtanh.pop %v4828
    %v4842 = vmul.f32 %v4838, %v4564
    %4844 = vrot.lane.b32.xlu0 %v4841, 64
    %v4845 = vpop.permute.xlu0 %4844
    %v4847 = vmul.f32 %v4838, %v4845
    %4849 = vrot.lane.b32.xlu0 %v4847, 64
    %v4850 = vpop.permute.xlu0 %4849
    %v4852 = vadd.f32 %v4842, %v4850
    %v4853 = vtanh.pop %v4852
    %4855 = vrot.lane.b32.xlu0 %v4853, 64
    %v4856 = vpop.permute.xlu0 %4855
    %v4858 = vmul.f32 %v4840, %v4856
    %s4859 = smul.u32 9, 2
    %s4860 = smul.addr %s4859, 8
    %s4861 = scalar_lea.vmem [#allocation2], %s4860
    %v4862 = vld [vmem:[%s4861] sm:$0xff]
    %v4863 = vld [vmem:[%s4861 + $0x8] sm:$0xff]
    %4864 = vmatprep.subr.mxu0 %v2208
    %4865 = vmatpush1.msra.mxu0 %v2207
    %4866 = vmatprep.subr.mxu0 %v2210
    %4867 = vmatpush1.msra.mxu0 %v2209
    %4868 = vmatprep.subr.mxu0 %v2212
    %4869 = vmatpush1.msra.mxu0 %v2211
    %4870 = vmatprep.subr.mxu0 %v2214
    %4871 = vmatpush1.msra.mxu0 %v2213
    %4872 = vmatprep.subr.mxu0 %v2216
    %4873 = vmatpush1.msra.mxu0 %v2215
    %4874 = vmatprep.subr.mxu0 %v2218
    %4875 = vmatpush1.msra.mxu0 %v2217
    %4876 = vmatprep.subr.mxu0 %v2220
    %4877 = vmatpush1.msra.mxu0 %v2219
    %4878 = vmatprep.subr.mxu0 %v2222
    %4879 = vmatpush1.msra.mxu0 %v2221
    %4880 = vmatprep.subr.mxu0 0.0
    %4881 = vmatpush1.msra.mxu0 0.0
    %4882 = vmatprep.subr.mxu0 0.0
    %4883 = vmatpush1.msra.mxu0 0.0
    %4884 = vmatprep.subr.mxu0 0.0
    %4885 = vmatpush1.msra.mxu0 0.0
    %4886 = vmatprep.subr.mxu0 0.0
    %4887 = vmatpush1.msra.mxu0 0.0
    %4888 = vmatprep.subr.mxu0 0.0
    %4889 = vmatpush1.msra.mxu0 0.0
    %4890 = vmatprep.subr.mxu0 0.0
    %4891 = vmatpush1.msra.mxu0 0.0
    %4892 = vmatprep.subr.mxu0 0.0
    %4893 = vmatpush1.msra.mxu0 0.0
    %4894 = vmatprep.subr.mxu0 0.0
    %4895 = vmatpush1.msra.mxu0 0.0
    %4896 = vmatprep.subr.mxu0 0.0
    %4897 = vmatpush1.msra.mxu0 0.0
    %4898 = vmatprep.subr.mxu0 0.0
    %4899 = vmatpush1.msra.mxu0 0.0
    %4900 = vmatprep.subr.mxu0 0.0
    %4901 = vmatpush1.msra.mxu0 0.0
    %4902 = vmatprep.subr.mxu0 0.0
    %4903 = vmatpush1.msra.mxu0 0.0
    %4904 = vmatprep.subr.mxu0 0.0
    %4905 = vmatpush1.msra.mxu0 0.0
    %4906 = vmatprep.subr.mxu0 0.0
    %4907 = vmatpush1.msra.mxu0 0.0
    %4908 = vmatprep.subr.mxu0 0.0
    %4909 = vmatpush1.msra.mxu0 0.0
    %4910 = vmatprep.subr.mxu0 0.0
    %4911 = vmatpush1.msra.mxu0 0.0
    %4912 = vmatprep.subr.mxu0 0.0
    %4913 = vmatpush1.msra.mxu0 0.0
    %4914 = vmatprep.subr.mxu0 0.0
    %4915 = vmatpush1.msra.mxu0 0.0
    %4916 = vmatprep.subr.mxu0 0.0
    %4917 = vmatpush1.msra.mxu0 0.0
    %4918 = vmatprep.subr.mxu0 0.0
    %4919 = vmatpush1.msra.mxu0 0.0
    %4920 = vmatprep.subr.mxu0 0.0
    %4921 = vmatpush1.msra.mxu0 0.0
    %4922 = vmatprep.subr.mxu0 0.0
    %4923 = vmatpush1.msra.mxu0 0.0
    %4924 = vmatprep.subr.mxu0 0.0
    %4925 = vmatpush1.msra.mxu0 0.0
    %4926 = vmatprep.subr.mxu0 0.0
    %4927 = vmatpush1.msra.mxu0 0.0
    %4928 = vmatprep.mubr.f32.mxu0 0.0
    %4929 = vmatmul.mubr.f32.gmra.mrb[0].mxu0 %v4754
    %v4930 = vpop.f32.mrb[0].mxu0
    %v4931 = vadd.f32 0.0, %v4930
    %v4932 = vpop.f32.mrb[0].mxu0
    %v4933 = vadd.f32 0.0, %v4932
    %4934 = vdwg.mxu0
    %v4935 = vadd.f32 %v4862, %v4931
    %v4936 = vadd.f32 %v4863, %v4933
    %v4937 = vxor.u32 %v4935, 2147483648
    %v4938 = vxor.u32 %v4936, 2147483648
    %v4939 = vmul.f32 %v4937, 1.442695
    %v4940 = vpow.pop %v4939
    %v4941 = vmul.f32 %v4938, 1.442695
    %v4942 = vpow.pop %v4941
    %v4943 = vadd.f32 %v4940, 1.0
    %v4944 = vadd.f32 %v4942, 1.0
    %v4945 = vrcp.pop %v4943
    %v4946 = vmul.f32 1.0, %v4945
    %v4947 = vrcp.pop %v4944
    %v4948 = vmul.f32 1.0, %v4947
    %v4949 = vtanh.pop %v4936
    %v4950 = vmul.f32 %v4946, %v4672
    %4952 = vrot.lane.b32.xlu0 %v4949, 64
    %v4953 = vpop.permute.xlu0 %4952
    %v4955 = vmul.f32 %v4946, %v4953
    %4957 = vrot.lane.b32.xlu0 %v4955, 64
    %v4958 = vpop.permute.xlu0 %4957
    %v4960 = vadd.f32 %v4950, %v4958
    %v4961 = vtanh.pop %v4960
    %4963 = vrot.lane.b32.xlu0 %v4961, 64
    %v4964 = vpop.permute.xlu0 %4963
    %v4966 = vmul.f32 %v4948, %v4964
    %v4968 = vsel %vm439, %v4858, 0
    %4970 = vmatprep.subr.mxu0 %v2240
    %4971 = vmatpush1.msra.mxu0 %v2239
    %4972 = vmatprep.subr.mxu0 %v2242
    %4973 = vmatpush1.msra.mxu0 %v2241
    %4974 = vmatprep.subr.mxu0 %v2244
    %4975 = vmatpush1.msra.mxu0 %v2243
    %4976 = vmatprep.subr.mxu0 %v2246
    %4977 = vmatpush1.msra.mxu0 %v2245
    %4978 = vmatprep.subr.mxu0 %v2248
    %4979 = vmatpush1.msra.mxu0 %v2247
    %4980 = vmatprep.subr.mxu0 %v2250
    %4981 = vmatpush1.msra.mxu0 %v2249
    %4982 = vmatprep.subr.mxu0 %v2252
    %4983 = vmatpush1.msra.mxu0 %v2251
    %4984 = vmatprep.subr.mxu0 %v2254
    %4985 = vmatpush1.msra.mxu0 %v2253
    %4986 = vmatprep.subr.mxu0 0.0
    %4987 = vmatpush1.msra.mxu0 0.0
    %4988 = vmatprep.subr.mxu0 0.0
    %4989 = vmatpush1.msra.mxu0 0.0
    %4990 = vmatprep.subr.mxu0 0.0
    %4991 = vmatpush1.msra.mxu0 0.0
    %4992 = vmatprep.subr.mxu0 0.0
    %4993 = vmatpush1.msra.mxu0 0.0
    %4994 = vmatprep.subr.mxu0 0.0
    %4995 = vmatpush1.msra.mxu0 0.0
    %4996 = vmatprep.subr.mxu0 0.0
    %4997 = vmatpush1.msra.mxu0 0.0
    %4998 = vmatprep.subr.mxu0 0.0
    %4999 = vmatpush1.msra.mxu0 0.0
    %5000 = vmatprep.subr.mxu0 0.0
    %5001 = vmatpush1.msra.mxu0 0.0
    %5002 = vmatprep.subr.mxu0 0.0
    %5003 = vmatpush1.msra.mxu0 0.0
    %5004 = vmatprep.subr.mxu0 0.0
    %5005 = vmatpush1.msra.mxu0 0.0
    %5006 = vmatprep.subr.mxu0 0.0
    %5007 = vmatpush1.msra.mxu0 0.0
    %5008 = vmatprep.subr.mxu0 0.0
    %5009 = vmatpush1.msra.mxu0 0.0
    %5010 = vmatprep.subr.mxu0 0.0
    %5011 = vmatpush1.msra.mxu0 0.0
    %5012 = vmatprep.subr.mxu0 0.0
    %5013 = vmatpush1.msra.mxu0 0.0
    %5014 = vmatprep.subr.mxu0 0.0
    %5015 = vmatpush1.msra.mxu0 0.0
    %5016 = vmatprep.subr.mxu0 0.0
    %5017 = vmatpush1.msra.mxu0 0.0
    %5018 = vmatprep.subr.mxu0 0.0
    %5019 = vmatpush1.msra.mxu0 0.0
    %5020 = vmatprep.subr.mxu0 0.0
    %5021 = vmatpush1.msra.mxu0 0.0
    %5022 = vmatprep.subr.mxu0 0.0
    %5023 = vmatpush1.msra.mxu0 0.0
    %5024 = vmatprep.subr.mxu0 0.0
    %5025 = vmatpush1.msra.mxu0 0.0
    %5026 = vmatprep.subr.mxu0 0.0
    %5027 = vmatpush1.msra.mxu0 0.0
    %5028 = vmatprep.subr.mxu0 0.0
    %5029 = vmatpush1.msra.mxu0 0.0
    %5030 = vmatprep.subr.mxu0 0.0
    %5031 = vmatpush1.msra.mxu0 0.0
    %5032 = vmatprep.subr.mxu0 0.0
    %5033 = vmatpush1.msra.mxu0 0.0
    %5034 = vmatprep.mubr.f32.mxu0 0.0
    %5035 = vmatmul.mubr.f32.gmra.mrb[0].mxu0 %v4968
    %v5036 = vpop.f32.mrb[0].mxu0
    %v5037 = vadd.f32 0.0, %v5036
    %v5038 = vpop.f32.mrb[0].mxu0
    %v5039 = vadd.f32 0.0, %v5038
    %5040 = vdwg.mxu0
    %v5042 = vsel %vm439, %v4966, 0
    %5044 = vmatprep.subr.mxu0 %v2224
    %5045 = vmatpush1.msra.mxu0 %v2223
    %5046 = vmatprep.subr.mxu0 %v2226
    %5047 = vmatpush1.msra.mxu0 %v2225
    %5048 = vmatprep.subr.mxu0 %v2228
    %5049 = vmatpush1.msra.mxu0 %v2227
    %5050 = vmatprep.subr.mxu0 %v2230
    %5051 = vmatpush1.msra.mxu0 %v2229
    %5052 = vmatprep.subr.mxu0 %v2232
    %5053 = vmatpush1.msra.mxu0 %v2231
    %5054 = vmatprep.subr.mxu0 %v2234
    %5055 = vmatpush1.msra.mxu0 %v2233
    %5056 = vmatprep.subr.mxu0 %v2236
    %5057 = vmatpush1.msra.mxu0 %v2235
    %5058 = vmatprep.subr.mxu0 %v2238
    %5059 = vmatpush1.msra.mxu0 %v2237
    %5060 = vmatprep.subr.mxu0 0.0
    %5061 = vmatpush1.msra.mxu0 0.0
    %5062 = vmatprep.subr.mxu0 0.0
    %5063 = vmatpush1.msra.mxu0 0.0
    %5064 = vmatprep.subr.mxu0 0.0
    %5065 = vmatpush1.msra.mxu0 0.0
    %5066 = vmatprep.subr.mxu0 0.0
    %5067 = vmatpush1.msra.mxu0 0.0
    %5068 = vmatprep.subr.mxu0 0.0
    %5069 = vmatpush1.msra.mxu0 0.0
    %5070 = vmatprep.subr.mxu0 0.0
    %5071 = vmatpush1.msra.mxu0 0.0
    %5072 = vmatprep.subr.mxu0 0.0
    %5073 = vmatpush1.msra.mxu0 0.0
    %5074 = vmatprep.subr.mxu0 0.0
    %5075 = vmatpush1.msra.mxu0 0.0
    %5076 = vmatprep.subr.mxu0 0.0
    %5077 = vmatpush1.msra.mxu0 0.0
    %5078 = vmatprep.subr.mxu0 0.0
    %5079 = vmatpush1.msra.mxu0 0.0
    %5080 = vmatprep.subr.mxu0 0.0
    %5081 = vmatpush1.msra.mxu0 0.0
    %5082 = vmatprep.subr.mxu0 0.0
    %5083 = vmatpush1.msra.mxu0 0.0
    %5084 = vmatprep.subr.mxu0 0.0
    %5085 = vmatpush1.msra.mxu0 0.0
    %5086 = vmatprep.subr.mxu0 0.0
    %5087 = vmatpush1.msra.mxu0 0.0
    %5088 = vmatprep.subr.mxu0 0.0
    %5089 = vmatpush1.msra.mxu0 0.0
    %5090 = vmatprep.subr.mxu0 0.0
    %5091 = vmatpush1.msra.mxu0 0.0
    %5092 = vmatprep.subr.mxu0 0.0
    %5093 = vmatpush1.msra.mxu0 0.0
    %5094 = vmatprep.subr.mxu0 0.0
    %5095 = vmatpush1.msra.mxu0 0.0
    %5096 = vmatprep.subr.mxu0 0.0
    %5097 = vmatpush1.msra.mxu0 0.0
    %5098 = vmatprep.subr.mxu0 0.0
    %5099 = vmatpush1.msra.mxu0 0.0
    %5100 = vmatprep.subr.mxu0 0.0
    %5101 = vmatpush1.msra.mxu0 0.0
    %5102 = vmatprep.subr.mxu0 0.0
    %5103 = vmatpush1.msra.mxu0 0.0
    %5104 = vmatprep.subr.mxu0 0.0
    %5105 = vmatpush1.msra.mxu0 0.0
    %5106 = vmatprep.subr.mxu0 0.0
    %5107 = vmatpush1.msra.mxu0 0.0
    %5108 = vmatprep.mubr.f32.mxu0 0.0
    %5109 = vmatmul.mubr.f32.gmra.mrb[0].mxu0 %v5042
    %v5110 = vpop.f32.mrb[0].mxu0
    %v5111 = vadd.f32 %v5037, %v5110
    %v5112 = vpop.f32.mrb[0].mxu0
    %v5113 = vadd.f32 %v5039, %v5112
    %5114 = vdwg.mxu0
    %v5115 = vadd.f32 %v5111, %v2260
    %v5116 = vadd.f32 %v5113, %v2264
    %v5117 = vxor.u32 %v5115, 2147483648
    %v5118 = vxor.u32 %v5116, 2147483648
    %v5119 = vmul.f32 %v5117, 1.442695
    %v5120 = vpow.pop %v5119
    %v5121 = vmul.f32 %v5118, 1.442695
    %v5122 = vpow.pop %v5121
    %v5123 = vadd.f32 %v5120, 1.0
    %v5124 = vadd.f32 %v5122, 1.0
    %v5125 = vrcp.pop %v5123
    %v5126 = vmul.f32 1.0, %v5125
    %v5127 = vrcp.pop %v5124
    %v5128 = vmul.f32 1.0, %v5127
    %v5129 = vtanh.pop %v5116
    %v5130 = vmul.f32 %v5126, %v4852
    %5132 = vrot.lane.b32.xlu0 %v5129, 64
    %v5133 = vpop.permute.xlu0 %5132
    %v5135 = vmul.f32 %v5126, %v5133
    %5137 = vrot.lane.b32.xlu0 %v5135, 64
    %v5138 = vpop.permute.xlu0 %5137
    %v5140 = vadd.f32 %v5130, %v5138
    %v5141 = vtanh.pop %v5140
    %5143 = vrot.lane.b32.xlu0 %v5141, 64
    %v5144 = vpop.permute.xlu0 %5143
    %v5146 = vmul.f32 %v5128, %v5144
    %s5147 = smul.u32 10, 2
    %s5148 = smul.addr %s5147, 8
    %s5149 = scalar_lea.vmem [#allocation2], %s5148
    %v5150 = vld [vmem:[%s5149] sm:$0xff]
    %v5151 = vld [vmem:[%s5149 + $0x8] sm:$0xff]
    %5152 = vmatprep.subr.mxu0 %v2208
    %5153 = vmatpush1.msra.mxu0 %v2207
    %5154 = vmatprep.subr.mxu0 %v2210
    %5155 = vmatpush1.msra.mxu0 %v2209
    %5156 = vmatprep.subr.mxu0 %v2212
    %5157 = vmatpush1.msra.mxu0 %v2211
    %5158 = vmatprep.subr.mxu0 %v2214
    %5159 = vmatpush1.msra.mxu0 %v2213
    %5160 = vmatprep.subr.mxu0 %v2216
    %5161 = vmatpush1.msra.mxu0 %v2215
    %5162 = vmatprep.subr.mxu0 %v2218
    %5163 = vmatpush1.msra.mxu0 %v2217
    %5164 = vmatprep.subr.mxu0 %v2220
    %5165 = vmatpush1.msra.mxu0 %v2219
    %5166 = vmatprep.subr.mxu0 %v2222
    %5167 = vmatpush1.msra.mxu0 %v2221
    %5168 = vmatprep.subr.mxu0 0.0
    %5169 = vmatpush1.msra.mxu0 0.0
    %5170 = vmatprep.subr.mxu0 0.0
    %5171 = vmatpush1.msra.mxu0 0.0
    %5172 = vmatprep.subr.mxu0 0.0
    %5173 = vmatpush1.msra.mxu0 0.0
    %5174 = vmatprep.subr.mxu0 0.0
    %5175 = vmatpush1.msra.mxu0 0.0
    %5176 = vmatprep.subr.mxu0 0.0
    %5177 = vmatpush1.msra.mxu0 0.0
    %5178 = vmatprep.subr.mxu0 0.0
    %5179 = vmatpush1.msra.mxu0 0.0
    %5180 = vmatprep.subr.mxu0 0.0
    %5181 = vmatpush1.msra.mxu0 0.0
    %5182 = vmatprep.subr.mxu0 0.0
    %5183 = vmatpush1.msra.mxu0 0.0
    %5184 = vmatprep.subr.mxu0 0.0
    %5185 = vmatpush1.msra.mxu0 0.0
    %5186 = vmatprep.subr.mxu0 0.0
    %5187 = vmatpush1.msra.mxu0 0.0
    %5188 = vmatprep.subr.mxu0 0.0
    %5189 = vmatpush1.msra.mxu0 0.0
    %5190 = vmatprep.subr.mxu0 0.0
    %5191 = vmatpush1.msra.mxu0 0.0
    %5192 = vmatprep.subr.mxu0 0.0
    %5193 = vmatpush1.msra.mxu0 0.0
    %5194 = vmatprep.subr.mxu0 0.0
    %5195 = vmatpush1.msra.mxu0 0.0
    %5196 = vmatprep.subr.mxu0 0.0
    %5197 = vmatpush1.msra.mxu0 0.0
    %5198 = vmatprep.subr.mxu0 0.0
    %5199 = vmatpush1.msra.mxu0 0.0
    %5200 = vmatprep.subr.mxu0 0.0
    %5201 = vmatpush1.msra.mxu0 0.0
    %5202 = vmatprep.subr.mxu0 0.0
    %5203 = vmatpush1.msra.mxu0 0.0
    %5204 = vmatprep.subr.mxu0 0.0
    %5205 = vmatpush1.msra.mxu0 0.0
    %5206 = vmatprep.subr.mxu0 0.0
    %5207 = vmatpush1.msra.mxu0 0.0
    %5208 = vmatprep.subr.mxu0 0.0
    %5209 = vmatpush1.msra.mxu0 0.0
    %5210 = vmatprep.subr.mxu0 0.0
    %5211 = vmatpush1.msra.mxu0 0.0
    %5212 = vmatprep.subr.mxu0 0.0
    %5213 = vmatpush1.msra.mxu0 0.0
    %5214 = vmatprep.subr.mxu0 0.0
    %5215 = vmatpush1.msra.mxu0 0.0
    %5216 = vmatprep.mubr.f32.mxu0 0.0
    %5217 = vmatmul.mubr.f32.gmra.mrb[0].mxu0 %v5042
    %v5218 = vpop.f32.mrb[0].mxu0
    %v5219 = vadd.f32 0.0, %v5218
    %v5220 = vpop.f32.mrb[0].mxu0
    %v5221 = vadd.f32 0.0, %v5220
    %5222 = vdwg.mxu0
    %v5223 = vadd.f32 %v5150, %v5219
    %v5224 = vadd.f32 %v5151, %v5221
    %v5225 = vxor.u32 %v5223, 2147483648
    %v5226 = vxor.u32 %v5224, 2147483648
    %v5227 = vmul.f32 %v5225, 1.442695
    %v5228 = vpow.pop %v5227
    %v5229 = vmul.f32 %v5226, 1.442695
    %v5230 = vpow.pop %v5229
    %v5231 = vadd.f32 %v5228, 1.0
    %v5232 = vadd.f32 %v5230, 1.0
    %v5233 = vrcp.pop %v5231
    %v5234 = vmul.f32 1.0, %v5233
    %v5235 = vrcp.pop %v5232
    %v5236 = vmul.f32 1.0, %v5235
    %v5237 = vtanh.pop %v5224
    %v5238 = vmul.f32 %v5234, %v4960
    %5240 = vrot.lane.b32.xlu0 %v5237, 64
    %v5241 = vpop.permute.xlu0 %5240
    %v5243 = vmul.f32 %v5234, %v5241
    %5245 = vrot.lane.b32.xlu0 %v5243, 64
    %v5246 = vpop.permute.xlu0 %5245
    %v5248 = vadd.f32 %v5238, %v5246
    %v5249 = vtanh.pop %v5248
    %5251 = vrot.lane.b32.xlu0 %v5249, 64
    %v5252 = vpop.permute.xlu0 %5251
    %v5254 = vmul.f32 %v5236, %v5252
    %v5256 = vsel %vm439, %v5146, 0
    %5258 = vmatprep.subr.mxu0 %v2240
    %5259 = vmatpush1.msra.mxu0 %v2239
    %5260 = vmatprep.subr.mxu0 %v2242
    %5261 = vmatpush1.msra.mxu0 %v2241
    %5262 = vmatprep.subr.mxu0 %v2244
    %5263 = vmatpush1.msra.mxu0 %v2243
    %5264 = vmatprep.subr.mxu0 %v2246
    %5265 = vmatpush1.msra.mxu0 %v2245
    %5266 = vmatprep.subr.mxu0 %v2248
    %5267 = vmatpush1.msra.mxu0 %v2247
    %5268 = vmatprep.subr.mxu0 %v2250
    %5269 = vmatpush1.msra.mxu0 %v2249
    %5270 = vmatprep.subr.mxu0 %v2252
    %5271 = vmatpush1.msra.mxu0 %v2251
    %5272 = vmatprep.subr.mxu0 %v2254
    %5273 = vmatpush1.msra.mxu0 %v2253
    %5274 = vmatprep.subr.mxu0 0.0
    %5275 = vmatpush1.msra.mxu0 0.0
    %5276 = vmatprep.subr.mxu0 0.0
    %5277 = vmatpush1.msra.mxu0 0.0
    %5278 = vmatprep.subr.mxu0 0.0
    %5279 = vmatpush1.msra.mxu0 0.0
    %5280 = vmatprep.subr.mxu0 0.0
    %5281 = vmatpush1.msra.mxu0 0.0
    %5282 = vmatprep.subr.mxu0 0.0
    %5283 = vmatpush1.msra.mxu0 0.0
    %5284 = vmatprep.subr.mxu0 0.0
    %5285 = vmatpush1.msra.mxu0 0.0
    %5286 = vmatprep.subr.mxu0 0.0
    %5287 = vmatpush1.msra.mxu0 0.0
    %5288 = vmatprep.subr.mxu0 0.0
    %5289 = vmatpush1.msra.mxu0 0.0
    %5290 = vmatprep.subr.mxu0 0.0
    %5291 = vmatpush1.msra.mxu0 0.0
    %5292 = vmatprep.subr.mxu0 0.0
    %5293 = vmatpush1.msra.mxu0 0.0
    %5294 = vmatprep.subr.mxu0 0.0
    %5295 = vmatpush1.msra.mxu0 0.0
    %5296 = vmatprep.subr.mxu0 0.0
    %5297 = vmatpush1.msra.mxu0 0.0
    %5298 = vmatprep.subr.mxu0 0.0
    %5299 = vmatpush1.msra.mxu0 0.0
    %5300 = vmatprep.subr.mxu0 0.0
    %5301 = vmatpush1.msra.mxu0 0.0
    %5302 = vmatprep.subr.mxu0 0.0
    %5303 = vmatpush1.msra.mxu0 0.0
    %5304 = vmatprep.subr.mxu0 0.0
    %5305 = vmatpush1.msra.mxu0 0.0
    %5306 = vmatprep.subr.mxu0 0.0
    %5307 = vmatpush1.msra.mxu0 0.0
    %5308 = vmatprep.subr.mxu0 0.0
    %5309 = vmatpush1.msra.mxu0 0.0
    %5310 = vmatprep.subr.mxu0 0.0
    %5311 = vmatpush1.msra.mxu0 0.0
    %5312 = vmatprep.subr.mxu0 0.0
    %5313 = vmatpush1.msra.mxu0 0.0
    %5314 = vmatprep.subr.mxu0 0.0
    %5315 = vmatpush1.msra.mxu0 0.0
    %5316 = vmatprep.subr.mxu0 0.0
    %5317 = vmatpush1.msra.mxu0 0.0
    %5318 = vmatprep.subr.mxu0 0.0
    %5319 = vmatpush1.msra.mxu0 0.0
    %5320 = vmatprep.subr.mxu0 0.0
    %5321 = vmatpush1.msra.mxu0 0.0
    %5322 = vmatprep.mubr.f32.mxu0 0.0
    %5323 = vmatmul.mubr.f32.gmra.mrb[0].mxu0 %v5256
    %v5324 = vpop.f32.mrb[0].mxu0
    %v5325 = vadd.f32 0.0, %v5324
    %v5326 = vpop.f32.mrb[0].mxu0
    %v5327 = vadd.f32 0.0, %v5326
    %5328 = vdwg.mxu0
    %v5330 = vsel %vm439, %v5254, 0
    %5332 = vmatprep.subr.mxu0 %v2224
    %5333 = vmatpush1.msra.mxu0 %v2223
    %5334 = vmatprep.subr.mxu0 %v2226
    %5335 = vmatpush1.msra.mxu0 %v2225
    %5336 = vmatprep.subr.mxu0 %v2228
    %5337 = vmatpush1.msra.mxu0 %v2227
    %5338 = vmatprep.subr.mxu0 %v2230
    %5339 = vmatpush1.msra.mxu0 %v2229
    %5340 = vmatprep.subr.mxu0 %v2232
    %5341 = vmatpush1.msra.mxu0 %v2231
    %5342 = vmatprep.subr.mxu0 %v2234
    %5343 = vmatpush1.msra.mxu0 %v2233
    %5344 = vmatprep.subr.mxu0 %v2236
    %5345 = vmatpush1.msra.mxu0 %v2235
    %5346 = vmatprep.subr.mxu0 %v2238
    %5347 = vmatpush1.msra.mxu0 %v2237
    %5348 = vmatprep.subr.mxu0 0.0
    %5349 = vmatpush1.msra.mxu0 0.0
    %5350 = vmatprep.subr.mxu0 0.0
    %5351 = vmatpush1.msra.mxu0 0.0
    %5352 = vmatprep.subr.mxu0 0.0
    %5353 = vmatpush1.msra.mxu0 0.0
    %5354 = vmatprep.subr.mxu0 0.0
    %5355 = vmatpush1.msra.mxu0 0.0
    %5356 = vmatprep.subr.mxu0 0.0
    %5357 = vmatpush1.msra.mxu0 0.0
    %5358 = vmatprep.subr.mxu0 0.0
    %5359 = vmatpush1.msra.mxu0 0.0
    %5360 = vmatprep.subr.mxu0 0.0
    %5361 = vmatpush1.msra.mxu0 0.0
    %5362 = vmatprep.subr.mxu0 0.0
    %5363 = vmatpush1.msra.mxu0 0.0
    %5364 = vmatprep.subr.mxu0 0.0
    %5365 = vmatpush1.msra.mxu0 0.0
    %5366 = vmatprep.subr.mxu0 0.0
    %5367 = vmatpush1.msra.mxu0 0.0
    %5368 = vmatprep.subr.mxu0 0.0
    %5369 = vmatpush1.msra.mxu0 0.0
    %5370 = vmatprep.subr.mxu0 0.0
    %5371 = vmatpush1.msra.mxu0 0.0
    %5372 = vmatprep.subr.mxu0 0.0
    %5373 = vmatpush1.msra.mxu0 0.0
    %5374 = vmatprep.subr.mxu0 0.0
    %5375 = vmatpush1.msra.mxu0 0.0
    %5376 = vmatprep.subr.mxu0 0.0
    %5377 = vmatpush1.msra.mxu0 0.0
    %5378 = vmatprep.subr.mxu0 0.0
    %5379 = vmatpush1.msra.mxu0 0.0
    %5380 = vmatprep.subr.mxu0 0.0
    %5381 = vmatpush1.msra.mxu0 0.0
    %5382 = vmatprep.subr.mxu0 0.0
    %5383 = vmatpush1.msra.mxu0 0.0
    %5384 = vmatprep.subr.mxu0 0.0
    %5385 = vmatpush1.msra.mxu0 0.0
    %5386 = vmatprep.subr.mxu0 0.0
    %5387 = vmatpush1.msra.mxu0 0.0
    %5388 = vmatprep.subr.mxu0 0.0
    %5389 = vmatpush1.msra.mxu0 0.0
    %5390 = vmatprep.subr.mxu0 0.0
    %5391 = vmatpush1.msra.mxu0 0.0
    %5392 = vmatprep.subr.mxu0 0.0
    %5393 = vmatpush1.msra.mxu0 0.0
    %5394 = vmatprep.subr.mxu0 0.0
    %5395 = vmatpush1.msra.mxu0 0.0
    %5396 = vmatprep.mubr.f32.mxu0 0.0
    %5397 = vmatmul.mubr.f32.gmra.mrb[0].mxu0 %v5330
    %v5398 = vpop.f32.mrb[0].mxu0
    %v5399 = vadd.f32 %v5325, %v5398
    %v5400 = vpop.f32.mrb[0].mxu0
    %v5401 = vadd.f32 %v5327, %v5400
    %5402 = vdwg.mxu0
    %v5403 = vadd.f32 %v5399, %v2260
    %v5404 = vadd.f32 %v5401, %v2264
    %v5405 = vxor.u32 %v5403, 2147483648
    %v5406 = vxor.u32 %v5404, 2147483648
    %v5407 = vmul.f32 %v5405, 1.442695
    %v5408 = vpow.pop %v5407
    %v5409 = vmul.f32 %v5406, 1.442695
    %v5410 = vpow.pop %v5409
    %v5411 = vadd.f32 %v5408, 1.0
    %v5412 = vadd.f32 %v5410, 1.0
    %v5413 = vrcp.pop %v5411
    %v5414 = vmul.f32 1.0, %v5413
    %v5415 = vrcp.pop %v5412
    %v5416 = vmul.f32 1.0, %v5415
    %v5417 = vtanh.pop %v5404
    %v5418 = vmul.f32 %v5414, %v5140
    %5420 = vrot.lane.b32.xlu0 %v5417, 64
    %v5421 = vpop.permute.xlu0 %5420
    %v5423 = vmul.f32 %v5414, %v5421
    %5425 = vrot.lane.b32.xlu0 %v5423, 64
    %v5426 = vpop.permute.xlu0 %5425
    %v5428 = vadd.f32 %v5418, %v5426
    %v5429 = vtanh.pop %v5428
    %5431 = vrot.lane.b32.xlu0 %v5429, 64
    %v5432 = vpop.permute.xlu0 %5431
    %v5434 = vmul.f32 %v5416, %v5432
    %s5435 = smul.u32 11, 2
    %s5436 = smul.addr %s5435, 8
    %s5437 = scalar_lea.vmem [#allocation2], %s5436
    %v5438 = vld [vmem:[%s5437] sm:$0xff]
    %v5439 = vld [vmem:[%s5437 + $0x8] sm:$0xff]
    %5440 = vmatprep.subr.mxu0 %v2208
    %5441 = vmatpush1.msra.mxu0 %v2207
    %5442 = vmatprep.subr.mxu0 %v2210
    %5443 = vmatpush1.msra.mxu0 %v2209
    %5444 = vmatprep.subr.mxu0 %v2212
    %5445 = vmatpush1.msra.mxu0 %v2211
    %5446 = vmatprep.subr.mxu0 %v2214
    %5447 = vmatpush1.msra.mxu0 %v2213
    %5448 = vmatprep.subr.mxu0 %v2216
    %5449 = vmatpush1.msra.mxu0 %v2215
    %5450 = vmatprep.subr.mxu0 %v2218
    %5451 = vmatpush1.msra.mxu0 %v2217
    %5452 = vmatprep.subr.mxu0 %v2220
    %5453 = vmatpush1.msra.mxu0 %v2219
    %5454 = vmatprep.subr.mxu0 %v2222
    %5455 = vmatpush1.msra.mxu0 %v2221
    %5456 = vmatprep.subr.mxu0 0.0
    %5457 = vmatpush1.msra.mxu0 0.0
    %5458 = vmatprep.subr.mxu0 0.0
    %5459 = vmatpush1.msra.mxu0 0.0
    %5460 = vmatprep.subr.mxu0 0.0
    %5461 = vmatpush1.msra.mxu0 0.0
    %5462 = vmatprep.subr.mxu0 0.0
    %5463 = vmatpush1.msra.mxu0 0.0
    %5464 = vmatprep.subr.mxu0 0.0
    %5465 = vmatpush1.msra.mxu0 0.0
    %5466 = vmatprep.subr.mxu0 0.0
    %5467 = vmatpush1.msra.mxu0 0.0
    %5468 = vmatprep.subr.mxu0 0.0
    %5469 = vmatpush1.msra.mxu0 0.0
    %5470 = vmatprep.subr.mxu0 0.0
    %5471 = vmatpush1.msra.mxu0 0.0
    %5472 = vmatprep.subr.mxu0 0.0
    %5473 = vmatpush1.msra.mxu0 0.0
    %5474 = vmatprep.subr.mxu0 0.0
    %5475 = vmatpush1.msra.mxu0 0.0
    %5476 = vmatprep.subr.mxu0 0.0
    %5477 = vmatpush1.msra.mxu0 0.0
    %5478 = vmatprep.subr.mxu0 0.0
    %5479 = vmatpush1.msra.mxu0 0.0
    %5480 = vmatprep.subr.mxu0 0.0
    %5481 = vmatpush1.msra.mxu0 0.0
    %5482 = vmatprep.subr.mxu0 0.0
    %5483 = vmatpush1.msra.mxu0 0.0
    %5484 = vmatprep.subr.mxu0 0.0
    %5485 = vmatpush1.msra.mxu0 0.0
    %5486 = vmatprep.subr.mxu0 0.0
    %5487 = vmatpush1.msra.mxu0 0.0
    %5488 = vmatprep.subr.mxu0 0.0
    %5489 = vmatpush1.msra.mxu0 0.0
    %5490 = vmatprep.subr.mxu0 0.0
    %5491 = vmatpush1.msra.mxu0 0.0
    %5492 = vmatprep.subr.mxu0 0.0
    %5493 = vmatpush1.msra.mxu0 0.0
    %5494 = vmatprep.subr.mxu0 0.0
    %5495 = vmatpush1.msra.mxu0 0.0
    %5496 = vmatprep.subr.mxu0 0.0
    %5497 = vmatpush1.msra.mxu0 0.0
    %5498 = vmatprep.subr.mxu0 0.0
    %5499 = vmatpush1.msra.mxu0 0.0
    %5500 = vmatprep.subr.mxu0 0.0
    %5501 = vmatpush1.msra.mxu0 0.0
    %5502 = vmatprep.subr.mxu0 0.0
    %5503 = vmatpush1.msra.mxu0 0.0
    %5504 = vmatprep.mubr.f32.mxu0 0.0
    %5505 = vmatmul.mubr.f32.gmra.mrb[0].mxu0 %v5330
    %v5506 = vpop.f32.mrb[0].mxu0
    %v5507 = vadd.f32 0.0, %v5506
    %v5508 = vpop.f32.mrb[0].mxu0
    %v5509 = vadd.f32 0.0, %v5508
    %5510 = vdwg.mxu0
    %v5511 = vadd.f32 %v5438, %v5507
    %v5512 = vadd.f32 %v5439, %v5509
    %v5513 = vxor.u32 %v5511, 2147483648
    %v5514 = vxor.u32 %v5512, 2147483648
    %v5515 = vmul.f32 %v5513, 1.442695
    %v5516 = vpow.pop %v5515
    %v5517 = vmul.f32 %v5514, 1.442695
    %v5518 = vpow.pop %v5517
    %v5519 = vadd.f32 %v5516, 1.0
    %v5520 = vadd.f32 %v5518, 1.0
    %v5521 = vrcp.pop %v5519
    %v5522 = vmul.f32 1.0, %v5521
    %v5523 = vrcp.pop %v5520
    %v5524 = vmul.f32 1.0, %v5523
    %v5525 = vtanh.pop %v5512
    %v5526 = vmul.f32 %v5522, %v5248
    %5528 = vrot.lane.b32.xlu0 %v5525, 64
    %v5529 = vpop.permute.xlu0 %5528
    %v5531 = vmul.f32 %v5522, %v5529
    %5533 = vrot.lane.b32.xlu0 %v5531, 64
    %v5534 = vpop.permute.xlu0 %5533
    %v5536 = vadd.f32 %v5526, %v5534
    %v5537 = vtanh.pop %v5536
    %5539 = vrot.lane.b32.xlu0 %v5537, 64
    %v5540 = vpop.permute.xlu0 %5539
    %v5542 = vmul.f32 %v5524, %v5540
    %v5544 = vsel %vm439, %v5434, 0
    %5546 = vmatprep.subr.mxu0 %v2240
    %5547 = vmatpush1.msra.mxu0 %v2239
    %5548 = vmatprep.subr.mxu0 %v2242
    %5549 = vmatpush1.msra.mxu0 %v2241
    %5550 = vmatprep.subr.mxu0 %v2244
    %5551 = vmatpush1.msra.mxu0 %v2243
    %5552 = vmatprep.subr.mxu0 %v2246
    %5553 = vmatpush1.msra.mxu0 %v2245
    %5554 = vmatprep.subr.mxu0 %v2248
    %5555 = vmatpush1.msra.mxu0 %v2247
    %5556 = vmatprep.subr.mxu0 %v2250
    %5557 = vmatpush1.msra.mxu0 %v2249
    %5558 = vmatprep.subr.mxu0 %v2252
    %5559 = vmatpush1.msra.mxu0 %v2251
    %5560 = vmatprep.subr.mxu0 %v2254
    %5561 = vmatpush1.msra.mxu0 %v2253
    %5562 = vmatprep.subr.mxu0 0.0
    %5563 = vmatpush1.msra.mxu0 0.0
    %5564 = vmatprep.subr.mxu0 0.0
    %5565 = vmatpush1.msra.mxu0 0.0
    %5566 = vmatprep.subr.mxu0 0.0
    %5567 = vmatpush1.msra.mxu0 0.0
    %5568 = vmatprep.subr.mxu0 0.0
    %5569 = vmatpush1.msra.mxu0 0.0
    %5570 = vmatprep.subr.mxu0 0.0
    %5571 = vmatpush1.msra.mxu0 0.0
    %5572 = vmatprep.subr.mxu0 0.0
    %5573 = vmatpush1.msra.mxu0 0.0
    %5574 = vmatprep.subr.mxu0 0.0
    %5575 = vmatpush1.msra.mxu0 0.0
    %5576 = vmatprep.subr.mxu0 0.0
    %5577 = vmatpush1.msra.mxu0 0.0
    %5578 = vmatprep.subr.mxu0 0.0
    %5579 = vmatpush1.msra.mxu0 0.0
    %5580 = vmatprep.subr.mxu0 0.0
    %5581 = vmatpush1.msra.mxu0 0.0
    %5582 = vmatprep.subr.mxu0 0.0
    %5583 = vmatpush1.msra.mxu0 0.0
    %5584 = vmatprep.subr.mxu0 0.0
    %5585 = vmatpush1.msra.mxu0 0.0
    %5586 = vmatprep.subr.mxu0 0.0
    %5587 = vmatpush1.msra.mxu0 0.0
    %5588 = vmatprep.subr.mxu0 0.0
    %5589 = vmatpush1.msra.mxu0 0.0
    %5590 = vmatprep.subr.mxu0 0.0
    %5591 = vmatpush1.msra.mxu0 0.0
    %5592 = vmatprep.subr.mxu0 0.0
    %5593 = vmatpush1.msra.mxu0 0.0
    %5594 = vmatprep.subr.mxu0 0.0
    %5595 = vmatpush1.msra.mxu0 0.0
    %5596 = vmatprep.subr.mxu0 0.0
    %5597 = vmatpush1.msra.mxu0 0.0
    %5598 = vmatprep.subr.mxu0 0.0
    %5599 = vmatpush1.msra.mxu0 0.0
    %5600 = vmatprep.subr.mxu0 0.0
    %5601 = vmatpush1.msra.mxu0 0.0
    %5602 = vmatprep.subr.mxu0 0.0
    %5603 = vmatpush1.msra.mxu0 0.0
    %5604 = vmatprep.subr.mxu0 0.0
    %5605 = vmatpush1.msra.mxu0 0.0
    %5606 = vmatprep.subr.mxu0 0.0
    %5607 = vmatpush1.msra.mxu0 0.0
    %5608 = vmatprep.subr.mxu0 0.0
    %5609 = vmatpush1.msra.mxu0 0.0
    %5610 = vmatprep.mubr.f32.mxu0 0.0
    %5611 = vmatmul.mubr.f32.gmra.mrb[0].mxu0 %v5544
    %v5612 = vpop.f32.mrb[0].mxu0
    %v5613 = vadd.f32 0.0, %v5612
    %v5614 = vpop.f32.mrb[0].mxu0
    %v5615 = vadd.f32 0.0, %v5614
    %5616 = vdwg.mxu0
    %v5618 = vsel %vm439, %v5542, 0
    %5620 = vmatprep.subr.mxu0 %v2224
    %5621 = vmatpush1.msra.mxu0 %v2223
    %5622 = vmatprep.subr.mxu0 %v2226
    %5623 = vmatpush1.msra.mxu0 %v2225
    %5624 = vmatprep.subr.mxu0 %v2228
    %5625 = vmatpush1.msra.mxu0 %v2227
    %5626 = vmatprep.subr.mxu0 %v2230
    %5627 = vmatpush1.msra.mxu0 %v2229
    %5628 = vmatprep.subr.mxu0 %v2232
    %5629 = vmatpush1.msra.mxu0 %v2231
    %5630 = vmatprep.subr.mxu0 %v2234
    %5631 = vmatpush1.msra.mxu0 %v2233
    %5632 = vmatprep.subr.mxu0 %v2236
    %5633 = vmatpush1.msra.mxu0 %v2235
    %5634 = vmatprep.subr.mxu0 %v2238
    %5635 = vmatpush1.msra.mxu0 %v2237
    %5636 = vmatprep.subr.mxu0 0.0
    %5637 = vmatpush1.msra.mxu0 0.0
    %5638 = vmatprep.subr.mxu0 0.0
    %5639 = vmatpush1.msra.mxu0 0.0
    %5640 = vmatprep.subr.mxu0 0.0
    %5641 = vmatpush1.msra.mxu0 0.0
    %5642 = vmatprep.subr.mxu0 0.0
    %5643 = vmatpush1.msra.mxu0 0.0
    %5644 = vmatprep.subr.mxu0 0.0
    %5645 = vmatpush1.msra.mxu0 0.0
    %5646 = vmatprep.subr.mxu0 0.0
    %5647 = vmatpush1.msra.mxu0 0.0
    %5648 = vmatprep.subr.mxu0 0.0
    %5649 = vmatpush1.msra.mxu0 0.0
    %5650 = vmatprep.subr.mxu0 0.0
    %5651 = vmatpush1.msra.mxu0 0.0
    %5652 = vmatprep.subr.mxu0 0.0
    %5653 = vmatpush1.msra.mxu0 0.0
    %5654 = vmatprep.subr.mxu0 0.0
    %5655 = vmatpush1.msra.mxu0 0.0
    %5656 = vmatprep.subr.mxu0 0.0
    %5657 = vmatpush1.msra.mxu0 0.0
    %5658 = vmatprep.subr.mxu0 0.0
    %5659 = vmatpush1.msra.mxu0 0.0
    %5660 = vmatprep.subr.mxu0 0.0
    %5661 = vmatpush1.msra.mxu0 0.0
    %5662 = vmatprep.subr.mxu0 0.0
    %5663 = vmatpush1.msra.mxu0 0.0
    %5664 = vmatprep.subr.mxu0 0.0
    %5665 = vmatpush1.msra.mxu0 0.0
    %5666 = vmatprep.subr.mxu0 0.0
    %5667 = vmatpush1.msra.mxu0 0.0
    %5668 = vmatprep.subr.mxu0 0.0
    %5669 = vmatpush1.msra.mxu0 0.0
    %5670 = vmatprep.subr.mxu0 0.0
    %5671 = vmatpush1.msra.mxu0 0.0
    %5672 = vmatprep.subr.mxu0 0.0
    %5673 = vmatpush1.msra.mxu0 0.0
    %5674 = vmatprep.subr.mxu0 0.0
    %5675 = vmatpush1.msra.mxu0 0.0
    %5676 = vmatprep.subr.mxu0 0.0
    %5677 = vmatpush1.msra.mxu0 0.0
    %5678 = vmatprep.subr.mxu0 0.0
    %5679 = vmatpush1.msra.mxu0 0.0
    %5680 = vmatprep.subr.mxu0 0.0
    %5681 = vmatpush1.msra.mxu0 0.0
    %5682 = vmatprep.subr.mxu0 0.0
    %5683 = vmatpush1.msra.mxu0 0.0
    %5684 = vmatprep.mubr.f32.mxu0 0.0
    %5685 = vmatmul.mubr.f32.gmra.mrb[0].mxu0 %v5618
    %v5686 = vpop.f32.mrb[0].mxu0
    %v5687 = vadd.f32 %v5613, %v5686
    %v5688 = vpop.f32.mrb[0].mxu0
    %v5689 = vadd.f32 %v5615, %v5688
    %5690 = vdwg.mxu0
    %v5691 = vadd.f32 %v5687, %v2260
    %v5692 = vadd.f32 %v5689, %v2264
    %v5693 = vxor.u32 %v5691, 2147483648
    %v5694 = vxor.u32 %v5692, 2147483648
    %v5695 = vmul.f32 %v5693, 1.442695
    %v5696 = vpow.pop %v5695
    %v5697 = vmul.f32 %v5694, 1.442695
    %v5698 = vpow.pop %v5697
    %v5699 = vadd.f32 %v5696, 1.0
    %v5700 = vadd.f32 %v5698, 1.0
    %v5701 = vrcp.pop %v5699
    %v5702 = vmul.f32 1.0, %v5701
    %v5703 = vrcp.pop %v5700
    %v5704 = vmul.f32 1.0, %v5703
    %v5705 = vtanh.pop %v5692
    %v5706 = vmul.f32 %v5702, %v5428
    %5708 = vrot.lane.b32.xlu0 %v5705, 64
    %v5709 = vpop.permute.xlu0 %5708
    %v5711 = vmul.f32 %v5702, %v5709
    %5713 = vrot.lane.b32.xlu0 %v5711, 64
    %v5714 = vpop.permute.xlu0 %5713
    %v5716 = vadd.f32 %v5706, %v5714
    %v5717 = vtanh.pop %v5716
    %5719 = vrot.lane.b32.xlu0 %v5717, 64
    %v5720 = vpop.permute.xlu0 %5719
    %v5722 = vmul.f32 %v5704, %v5720
    %s5723 = smul.u32 12, 2
    %s5724 = smul.addr %s5723, 8
    %s5725 = scalar_lea.vmem [#allocation2], %s5724
    %v5726 = vld [vmem:[%s5725] sm:$0xff]
    %v5727 = vld [vmem:[%s5725 + $0x8] sm:$0xff]
    %5728 = vmatprep.subr.mxu0 %v2208
    %5729 = vmatpush1.msra.mxu0 %v2207
    %5730 = vmatprep.subr.mxu0 %v2210
    %5731 = vmatpush1.msra.mxu0 %v2209
    %5732 = vmatprep.subr.mxu0 %v2212
    %5733 = vmatpush1.msra.mxu0 %v2211
    %5734 = vmatprep.subr.mxu0 %v2214
    %5735 = vmatpush1.msra.mxu0 %v2213
    %5736 = vmatprep.subr.mxu0 %v2216
    %5737 = vmatpush1.msra.mxu0 %v2215
    %5738 = vmatprep.subr.mxu0 %v2218
    %5739 = vmatpush1.msra.mxu0 %v2217
    %5740 = vmatprep.subr.mxu0 %v2220
    %5741 = vmatpush1.msra.mxu0 %v2219
    %5742 = vmatprep.subr.mxu0 %v2222
    %5743 = vmatpush1.msra.mxu0 %v2221
    %5744 = vmatprep.subr.mxu0 0.0
    %5745 = vmatpush1.msra.mxu0 0.0
    %5746 = vmatprep.subr.mxu0 0.0
    %5747 = vmatpush1.msra.mxu0 0.0
    %5748 = vmatprep.subr.mxu0 0.0
    %5749 = vmatpush1.msra.mxu0 0.0
    %5750 = vmatprep.subr.mxu0 0.0
    %5751 = vmatpush1.msra.mxu0 0.0
    %5752 = vmatprep.subr.mxu0 0.0
    %5753 = vmatpush1.msra.mxu0 0.0
    %5754 = vmatprep.subr.mxu0 0.0
    %5755 = vmatpush1.msra.mxu0 0.0
    %5756 = vmatprep.subr.mxu0 0.0
    %5757 = vmatpush1.msra.mxu0 0.0
    %5758 = vmatprep.subr.mxu0 0.0
    %5759 = vmatpush1.msra.mxu0 0.0
    %5760 = vmatprep.subr.mxu0 0.0
    %5761 = vmatpush1.msra.mxu0 0.0
    %5762 = vmatprep.subr.mxu0 0.0
    %5763 = vmatpush1.msra.mxu0 0.0
    %5764 = vmatprep.subr.mxu0 0.0
    %5765 = vmatpush1.msra.mxu0 0.0
    %5766 = vmatprep.subr.mxu0 0.0
    %5767 = vmatpush1.msra.mxu0 0.0
    %5768 = vmatprep.subr.mxu0 0.0
    %5769 = vmatpush1.msra.mxu0 0.0
    %5770 = vmatprep.subr.mxu0 0.0
    %5771 = vmatpush1.msra.mxu0 0.0
    %5772 = vmatprep.subr.mxu0 0.0
    %5773 = vmatpush1.msra.mxu0 0.0
    %5774 = vmatprep.subr.mxu0 0.0
    %5775 = vmatpush1.msra.mxu0 0.0
    %5776 = vmatprep.subr.mxu0 0.0
    %5777 = vmatpush1.msra.mxu0 0.0
    %5778 = vmatprep.subr.mxu0 0.0
    %5779 = vmatpush1.msra.mxu0 0.0
    %5780 = vmatprep.subr.mxu0 0.0
    %5781 = vmatpush1.msra.mxu0 0.0
    %5782 = vmatprep.subr.mxu0 0.0
    %5783 = vmatpush1.msra.mxu0 0.0
    %5784 = vmatprep.subr.mxu0 0.0
    %5785 = vmatpush1.msra.mxu0 0.0
    %5786 = vmatprep.subr.mxu0 0.0
    %5787 = vmatpush1.msra.mxu0 0.0
    %5788 = vmatprep.subr.mxu0 0.0
    %5789 = vmatpush1.msra.mxu0 0.0
    %5790 = vmatprep.subr.mxu0 0.0
    %5791 = vmatpush1.msra.mxu0 0.0
    %5792 = vmatprep.mubr.f32.mxu0 0.0
    %5793 = vmatmul.mubr.f32.gmra.mrb[0].mxu0 %v5618
    %v5794 = vpop.f32.mrb[0].mxu0
    %v5795 = vadd.f32 0.0, %v5794
    %v5796 = vpop.f32.mrb[0].mxu0
    %v5797 = vadd.f32 0.0, %v5796
    %5798 = vdwg.mxu0
    %v5799 = vadd.f32 %v5726, %v5795
    %v5800 = vadd.f32 %v5727, %v5797
    %v5801 = vxor.u32 %v5799, 2147483648
    %v5802 = vxor.u32 %v5800, 2147483648
    %v5803 = vmul.f32 %v5801, 1.442695
    %v5804 = vpow.pop %v5803
    %v5805 = vmul.f32 %v5802, 1.442695
    %v5806 = vpow.pop %v5805
    %v5807 = vadd.f32 %v5804, 1.0
    %v5808 = vadd.f32 %v5806, 1.0
    %v5809 = vrcp.pop %v5807
    %v5810 = vmul.f32 1.0, %v5809
    %v5811 = vrcp.pop %v5808
    %v5812 = vmul.f32 1.0, %v5811
    %v5813 = vtanh.pop %v5800
    %v5814 = vmul.f32 %v5810, %v5536
    %5816 = vrot.lane.b32.xlu0 %v5813, 64
    %v5817 = vpop.permute.xlu0 %5816
    %v5819 = vmul.f32 %v5810, %v5817
    %5821 = vrot.lane.b32.xlu0 %v5819, 64
    %v5822 = vpop.permute.xlu0 %5821
    %v5824 = vadd.f32 %v5814, %v5822
    %v5825 = vtanh.pop %v5824
    %5827 = vrot.lane.b32.xlu0 %v5825, 64
    %v5828 = vpop.permute.xlu0 %5827
    %v5830 = vmul.f32 %v5812, %v5828
    %v5832 = vsel %vm439, %v5722, 0
    %5834 = vmatprep.subr.mxu0 %v2240
    %5835 = vmatpush1.msra.mxu0 %v2239
    %5836 = vmatprep.subr.mxu0 %v2242
    %5837 = vmatpush1.msra.mxu0 %v2241
    %5838 = vmatprep.subr.mxu0 %v2244
    %5839 = vmatpush1.msra.mxu0 %v2243
    %5840 = vmatprep.subr.mxu0 %v2246
    %5841 = vmatpush1.msra.mxu0 %v2245
    %5842 = vmatprep.subr.mxu0 %v2248
    %5843 = vmatpush1.msra.mxu0 %v2247
    %5844 = vmatprep.subr.mxu0 %v2250
    %5845 = vmatpush1.msra.mxu0 %v2249
    %5846 = vmatprep.subr.mxu0 %v2252
    %5847 = vmatpush1.msra.mxu0 %v2251
    %5848 = vmatprep.subr.mxu0 %v2254
    %5849 = vmatpush1.msra.mxu0 %v2253
    %5850 = vmatprep.subr.mxu0 0.0
    %5851 = vmatpush1.msra.mxu0 0.0
    %5852 = vmatprep.subr.mxu0 0.0
    %5853 = vmatpush1.msra.mxu0 0.0
    %5854 = vmatprep.subr.mxu0 0.0
    %5855 = vmatpush1.msra.mxu0 0.0
    %5856 = vmatprep.subr.mxu0 0.0
    %5857 = vmatpush1.msra.mxu0 0.0
    %5858 = vmatprep.subr.mxu0 0.0
    %5859 = vmatpush1.msra.mxu0 0.0
    %5860 = vmatprep.subr.mxu0 0.0
    %5861 = vmatpush1.msra.mxu0 0.0
    %5862 = vmatprep.subr.mxu0 0.0
    %5863 = vmatpush1.msra.mxu0 0.0
    %5864 = vmatprep.subr.mxu0 0.0
    %5865 = vmatpush1.msra.mxu0 0.0
    %5866 = vmatprep.subr.mxu0 0.0
    %5867 = vmatpush1.msra.mxu0 0.0
    %5868 = vmatprep.subr.mxu0 0.0
    %5869 = vmatpush1.msra.mxu0 0.0
    %5870 = vmatprep.subr.mxu0 0.0
    %5871 = vmatpush1.msra.mxu0 0.0
    %5872 = vmatprep.subr.mxu0 0.0
    %5873 = vmatpush1.msra.mxu0 0.0
    %5874 = vmatprep.subr.mxu0 0.0
    %5875 = vmatpush1.msra.mxu0 0.0
    %5876 = vmatprep.subr.mxu0 0.0
    %5877 = vmatpush1.msra.mxu0 0.0
    %5878 = vmatprep.subr.mxu0 0.0
    %5879 = vmatpush1.msra.mxu0 0.0
    %5880 = vmatprep.subr.mxu0 0.0
    %5881 = vmatpush1.msra.mxu0 0.0
    %5882 = vmatprep.subr.mxu0 0.0
    %5883 = vmatpush1.msra.mxu0 0.0
    %5884 = vmatprep.subr.mxu0 0.0
    %5885 = vmatpush1.msra.mxu0 0.0
    %5886 = vmatprep.subr.mxu0 0.0
    %5887 = vmatpush1.msra.mxu0 0.0
    %5888 = vmatprep.subr.mxu0 0.0
    %5889 = vmatpush1.msra.mxu0 0.0
    %5890 = vmatprep.subr.mxu0 0.0
    %5891 = vmatpush1.msra.mxu0 0.0
    %5892 = vmatprep.subr.mxu0 0.0
    %5893 = vmatpush1.msra.mxu0 0.0
    %5894 = vmatprep.subr.mxu0 0.0
    %5895 = vmatpush1.msra.mxu0 0.0
    %5896 = vmatprep.subr.mxu0 0.0
    %5897 = vmatpush1.msra.mxu0 0.0
    %5898 = vmatprep.mubr.f32.mxu0 0.0
    %5899 = vmatmul.mubr.f32.gmra.mrb[0].mxu0 %v5832
    %v5900 = vpop.f32.mrb[0].mxu0
    %v5901 = vadd.f32 0.0, %v5900
    %v5902 = vpop.f32.mrb[0].mxu0
    %v5903 = vadd.f32 0.0, %v5902
    %5904 = vdwg.mxu0
    %v5906 = vsel %vm439, %v5830, 0
    %5908 = vmatprep.subr.mxu0 %v2224
    %5909 = vmatpush1.msra.mxu0 %v2223
    %5910 = vmatprep.subr.mxu0 %v2226
    %5911 = vmatpush1.msra.mxu0 %v2225
    %5912 = vmatprep.subr.mxu0 %v2228
    %5913 = vmatpush1.msra.mxu0 %v2227
    %5914 = vmatprep.subr.mxu0 %v2230
    %5915 = vmatpush1.msra.mxu0 %v2229
    %5916 = vmatprep.subr.mxu0 %v2232
    %5917 = vmatpush1.msra.mxu0 %v2231
    %5918 = vmatprep.subr.mxu0 %v2234
    %5919 = vmatpush1.msra.mxu0 %v2233
    %5920 = vmatprep.subr.mxu0 %v2236
    %5921 = vmatpush1.msra.mxu0 %v2235
    %5922 = vmatprep.subr.mxu0 %v2238
    %5923 = vmatpush1.msra.mxu0 %v2237
    %5924 = vmatprep.subr.mxu0 0.0
    %5925 = vmatpush1.msra.mxu0 0.0
    %5926 = vmatprep.subr.mxu0 0.0
    %5927 = vmatpush1.msra.mxu0 0.0
    %5928 = vmatprep.subr.mxu0 0.0
    %5929 = vmatpush1.msra.mxu0 0.0
    %5930 = vmatprep.subr.mxu0 0.0
    %5931 = vmatpush1.msra.mxu0 0.0
    %5932 = vmatprep.subr.mxu0 0.0
    %5933 = vmatpush1.msra.mxu0 0.0
    %5934 = vmatprep.subr.mxu0 0.0
    %5935 = vmatpush1.msra.mxu0 0.0
    %5936 = vmatprep.subr.mxu0 0.0
    %5937 = vmatpush1.msra.mxu0 0.0
    %5938 = vmatprep.subr.mxu0 0.0
    %5939 = vmatpush1.msra.mxu0 0.0
    %5940 = vmatprep.subr.mxu0 0.0
    %5941 = vmatpush1.msra.mxu0 0.0
    %5942 = vmatprep.subr.mxu0 0.0
    %5943 = vmatpush1.msra.mxu0 0.0
    %5944 = vmatprep.subr.mxu0 0.0
    %5945 = vmatpush1.msra.mxu0 0.0
    %5946 = vmatprep.subr.mxu0 0.0
    %5947 = vmatpush1.msra.mxu0 0.0
    %5948 = vmatprep.subr.mxu0 0.0
    %5949 = vmatpush1.msra.mxu0 0.0
    %5950 = vmatprep.subr.mxu0 0.0
    %5951 = vmatpush1.msra.mxu0 0.0
    %5952 = vmatprep.subr.mxu0 0.0
    %5953 = vmatpush1.msra.mxu0 0.0
    %5954 = vmatprep.subr.mxu0 0.0
    %5955 = vmatpush1.msra.mxu0 0.0
    %5956 = vmatprep.subr.mxu0 0.0
    %5957 = vmatpush1.msra.mxu0 0.0
    %5958 = vmatprep.subr.mxu0 0.0
    %5959 = vmatpush1.msra.mxu0 0.0
    %5960 = vmatprep.subr.mxu0 0.0
    %5961 = vmatpush1.msra.mxu0 0.0
    %5962 = vmatprep.subr.mxu0 0.0
    %5963 = vmatpush1.msra.mxu0 0.0
    %5964 = vmatprep.subr.mxu0 0.0
    %5965 = vmatpush1.msra.mxu0 0.0
    %5966 = vmatprep.subr.mxu0 0.0
    %5967 = vmatpush1.msra.mxu0 0.0
    %5968 = vmatprep.subr.mxu0 0.0
    %5969 = vmatpush1.msra.mxu0 0.0
    %5970 = vmatprep.subr.mxu0 0.0
    %5971 = vmatpush1.msra.mxu0 0.0
    %5972 = vmatprep.mubr.f32.mxu0 0.0
    %5973 = vmatmul.mubr.f32.gmra.mrb[0].mxu0 %v5906
    %v5974 = vpop.f32.mrb[0].mxu0
    %v5975 = vadd.f32 %v5901, %v5974
    %v5976 = vpop.f32.mrb[0].mxu0
    %v5977 = vadd.f32 %v5903, %v5976
    %5978 = vdwg.mxu0
    %v5979 = vadd.f32 %v5975, %v2260
    %v5980 = vadd.f32 %v5977, %v2264
    %v5981 = vxor.u32 %v5979, 2147483648
    %v5982 = vxor.u32 %v5980, 2147483648
    %v5983 = vmul.f32 %v5981, 1.442695
    %v5984 = vpow.pop %v5983
    %v5985 = vmul.f32 %v5982, 1.442695
    %v5986 = vpow.pop %v5985
    %v5987 = vadd.f32 %v5984, 1.0
    %v5988 = vadd.f32 %v5986, 1.0
    %v5989 = vrcp.pop %v5987
    %v5990 = vmul.f32 1.0, %v5989
    %v5991 = vrcp.pop %v5988
    %v5992 = vmul.f32 1.0, %v5991
    %v5993 = vtanh.pop %v5980
    %v5994 = vmul.f32 %v5990, %v5716
    %5996 = vrot.lane.b32.xlu0 %v5993, 64
    %v5997 = vpop.permute.xlu0 %5996
    %v5999 = vmul.f32 %v5990, %v5997
    %6001 = vrot.lane.b32.xlu0 %v5999, 64
    %v6002 = vpop.permute.xlu0 %6001
    %v6004 = vadd.f32 %v5994, %v6002
    %v6005 = vtanh.pop %v6004
    %6007 = vrot.lane.b32.xlu0 %v6005, 64
    %v6008 = vpop.permute.xlu0 %6007
    %v6010 = vmul.f32 %v5992, %v6008
    %s6011 = smul.u32 13, 2
    %s6012 = smul.addr %s6011, 8
    %s6013 = scalar_lea.vmem [#allocation2], %s6012
    %v6014 = vld [vmem:[%s6013] sm:$0xff]
    %v6015 = vld [vmem:[%s6013 + $0x8] sm:$0xff]
    %6016 = vmatprep.subr.mxu0 %v2208
    %6017 = vmatpush1.msra.mxu0 %v2207
    %6018 = vmatprep.subr.mxu0 %v2210
    %6019 = vmatpush1.msra.mxu0 %v2209
    %6020 = vmatprep.subr.mxu0 %v2212
    %6021 = vmatpush1.msra.mxu0 %v2211
    %6022 = vmatprep.subr.mxu0 %v2214
    %6023 = vmatpush1.msra.mxu0 %v2213
    %6024 = vmatprep.subr.mxu0 %v2216
    %6025 = vmatpush1.msra.mxu0 %v2215
    %6026 = vmatprep.subr.mxu0 %v2218
    %6027 = vmatpush1.msra.mxu0 %v2217
    %6028 = vmatprep.subr.mxu0 %v2220
    %6029 = vmatpush1.msra.mxu0 %v2219
    %6030 = vmatprep.subr.mxu0 %v2222
    %6031 = vmatpush1.msra.mxu0 %v2221
    %6032 = vmatprep.subr.mxu0 0.0
    %6033 = vmatpush1.msra.mxu0 0.0
    %6034 = vmatprep.subr.mxu0 0.0
    %6035 = vmatpush1.msra.mxu0 0.0
    %6036 = vmatprep.subr.mxu0 0.0
    %6037 = vmatpush1.msra.mxu0 0.0
    %6038 = vmatprep.subr.mxu0 0.0
    %6039 = vmatpush1.msra.mxu0 0.0
    %6040 = vmatprep.subr.mxu0 0.0
    %6041 = vmatpush1.msra.mxu0 0.0
    %6042 = vmatprep.subr.mxu0 0.0
    %6043 = vmatpush1.msra.mxu0 0.0
    %6044 = vmatprep.subr.mxu0 0.0
    %6045 = vmatpush1.msra.mxu0 0.0
    %6046 = vmatprep.subr.mxu0 0.0
    %6047 = vmatpush1.msra.mxu0 0.0
    %6048 = vmatprep.subr.mxu0 0.0
    %6049 = vmatpush1.msra.mxu0 0.0
    %6050 = vmatprep.subr.mxu0 0.0
    %6051 = vmatpush1.msra.mxu0 0.0
    %6052 = vmatprep.subr.mxu0 0.0
    %6053 = vmatpush1.msra.mxu0 0.0
    %6054 = vmatprep.subr.mxu0 0.0
    %6055 = vmatpush1.msra.mxu0 0.0
    %6056 = vmatprep.subr.mxu0 0.0
    %6057 = vmatpush1.msra.mxu0 0.0
    %6058 = vmatprep.subr.mxu0 0.0
    %6059 = vmatpush1.msra.mxu0 0.0
    %6060 = vmatprep.subr.mxu0 0.0
    %6061 = vmatpush1.msra.mxu0 0.0
    %6062 = vmatprep.subr.mxu0 0.0
    %6063 = vmatpush1.msra.mxu0 0.0
    %6064 = vmatprep.subr.mxu0 0.0
    %6065 = vmatpush1.msra.mxu0 0.0
    %6066 = vmatprep.subr.mxu0 0.0
    %6067 = vmatpush1.msra.mxu0 0.0
    %6068 = vmatprep.subr.mxu0 0.0
    %6069 = vmatpush1.msra.mxu0 0.0
    %6070 = vmatprep.subr.mxu0 0.0
    %6071 = vmatpush1.msra.mxu0 0.0
    %6072 = vmatprep.subr.mxu0 0.0
    %6073 = vmatpush1.msra.mxu0 0.0
    %6074 = vmatprep.subr.mxu0 0.0
    %6075 = vmatpush1.msra.mxu0 0.0
    %6076 = vmatprep.subr.mxu0 0.0
    %6077 = vmatpush1.msra.mxu0 0.0
    %6078 = vmatprep.subr.mxu0 0.0
    %6079 = vmatpush1.msra.mxu0 0.0
    %6080 = vmatprep.mubr.f32.mxu0 0.0
    %6081 = vmatmul.mubr.f32.gmra.mrb[0].mxu0 %v5906
    %v6082 = vpop.f32.mrb[0].mxu0
    %v6083 = vadd.f32 0.0, %v6082
    %v6084 = vpop.f32.mrb[0].mxu0
    %v6085 = vadd.f32 0.0, %v6084
    %6086 = vdwg.mxu0
    %v6087 = vadd.f32 %v6014, %v6083
    %v6088 = vadd.f32 %v6015, %v6085
    %v6089 = vxor.u32 %v6087, 2147483648
    %v6090 = vxor.u32 %v6088, 2147483648
    %v6091 = vmul.f32 %v6089, 1.442695
    %v6092 = vpow.pop %v6091
    %v6093 = vmul.f32 %v6090, 1.442695
    %v6094 = vpow.pop %v6093
    %v6095 = vadd.f32 %v6092, 1.0
    %v6096 = vadd.f32 %v6094, 1.0
    %v6097 = vrcp.pop %v6095
    %v6098 = vmul.f32 1.0, %v6097
    %v6099 = vrcp.pop %v6096
    %v6100 = vmul.f32 1.0, %v6099
    %v6101 = vtanh.pop %v6088
    %v6102 = vmul.f32 %v6098, %v5824
    %6104 = vrot.lane.b32.xlu0 %v6101, 64
    %v6105 = vpop.permute.xlu0 %6104
    %v6107 = vmul.f32 %v6098, %v6105
    %6109 = vrot.lane.b32.xlu0 %v6107, 64
    %v6110 = vpop.permute.xlu0 %6109
    %v6112 = vadd.f32 %v6102, %v6110
    %v6113 = vtanh.pop %v6112
    %6115 = vrot.lane.b32.xlu0 %v6113, 64
    %v6116 = vpop.permute.xlu0 %6115
    %v6118 = vmul.f32 %v6100, %v6116
    %v6120 = vsel %vm439, %v6010, 0
    %6122 = vmatprep.subr.mxu0 %v2240
    %6123 = vmatpush1.msra.mxu0 %v2239
    %6124 = vmatprep.subr.mxu0 %v2242
    %6125 = vmatpush1.msra.mxu0 %v2241
    %6126 = vmatprep.subr.mxu0 %v2244
    %6127 = vmatpush1.msra.mxu0 %v2243
    %6128 = vmatprep.subr.mxu0 %v2246
    %6129 = vmatpush1.msra.mxu0 %v2245
    %6130 = vmatprep.subr.mxu0 %v2248
    %6131 = vmatpush1.msra.mxu0 %v2247
    %6132 = vmatprep.subr.mxu0 %v2250
    %6133 = vmatpush1.msra.mxu0 %v2249
    %6134 = vmatprep.subr.mxu0 %v2252
    %6135 = vmatpush1.msra.mxu0 %v2251
    %6136 = vmatprep.subr.mxu0 %v2254
    %6137 = vmatpush1.msra.mxu0 %v2253
    %6138 = vmatprep.subr.mxu0 0.0
    %6139 = vmatpush1.msra.mxu0 0.0
    %6140 = vmatprep.subr.mxu0 0.0
    %6141 = vmatpush1.msra.mxu0 0.0
    %6142 = vmatprep.subr.mxu0 0.0
    %6143 = vmatpush1.msra.mxu0 0.0
    %6144 = vmatprep.subr.mxu0 0.0
    %6145 = vmatpush1.msra.mxu0 0.0
    %6146 = vmatprep.subr.mxu0 0.0
    %6147 = vmatpush1.msra.mxu0 0.0
    %6148 = vmatprep.subr.mxu0 0.0
    %6149 = vmatpush1.msra.mxu0 0.0
    %6150 = vmatprep.subr.mxu0 0.0
    %6151 = vmatpush1.msra.mxu0 0.0
    %6152 = vmatprep.subr.mxu0 0.0
    %6153 = vmatpush1.msra.mxu0 0.0
    %6154 = vmatprep.subr.mxu0 0.0
    %6155 = vmatpush1.msra.mxu0 0.0
    %6156 = vmatprep.subr.mxu0 0.0
    %6157 = vmatpush1.msra.mxu0 0.0
    %6158 = vmatprep.subr.mxu0 0.0
    %6159 = vmatpush1.msra.mxu0 0.0
    %6160 = vmatprep.subr.mxu0 0.0
    %6161 = vmatpush1.msra.mxu0 0.0
    %6162 = vmatprep.subr.mxu0 0.0
    %6163 = vmatpush1.msra.mxu0 0.0
    %6164 = vmatprep.subr.mxu0 0.0
    %6165 = vmatpush1.msra.mxu0 0.0
    %6166 = vmatprep.subr.mxu0 0.0
    %6167 = vmatpush1.msra.mxu0 0.0
    %6168 = vmatprep.subr.mxu0 0.0
    %6169 = vmatpush1.msra.mxu0 0.0
    %6170 = vmatprep.subr.mxu0 0.0
    %6171 = vmatpush1.msra.mxu0 0.0
    %6172 = vmatprep.subr.mxu0 0.0
    %6173 = vmatpush1.msra.mxu0 0.0
    %6174 = vmatprep.subr.mxu0 0.0
    %6175 = vmatpush1.msra.mxu0 0.0
    %6176 = vmatprep.subr.mxu0 0.0
    %6177 = vmatpush1.msra.mxu0 0.0
    %6178 = vmatprep.subr.mxu0 0.0
    %6179 = vmatpush1.msra.mxu0 0.0
    %6180 = vmatprep.subr.mxu0 0.0
    %6181 = vmatpush1.msra.mxu0 0.0
    %6182 = vmatprep.subr.mxu0 0.0
    %6183 = vmatpush1.msra.mxu0 0.0
    %6184 = vmatprep.subr.mxu0 0.0
    %6185 = vmatpush1.msra.mxu0 0.0
    %6186 = vmatprep.mubr.f32.mxu0 0.0
    %6187 = vmatmul.mubr.f32.gmra.mrb[0].mxu0 %v6120
    %v6188 = vpop.f32.mrb[0].mxu0
    %v6189 = vadd.f32 0.0, %v6188
    %v6190 = vpop.f32.mrb[0].mxu0
    %v6191 = vadd.f32 0.0, %v6190
    %6192 = vdwg.mxu0
    %v6194 = vsel %vm439, %v6118, 0
    %6196 = vmatprep.subr.mxu0 %v2224
    %6197 = vmatpush1.msra.mxu0 %v2223
    %6198 = vmatprep.subr.mxu0 %v2226
    %6199 = vmatpush1.msra.mxu0 %v2225
    %6200 = vmatprep.subr.mxu0 %v2228
    %6201 = vmatpush1.msra.mxu0 %v2227
    %6202 = vmatprep.subr.mxu0 %v2230
    %6203 = vmatpush1.msra.mxu0 %v2229
    %6204 = vmatprep.subr.mxu0 %v2232
    %6205 = vmatpush1.msra.mxu0 %v2231
    %6206 = vmatprep.subr.mxu0 %v2234
    %6207 = vmatpush1.msra.mxu0 %v2233
    %6208 = vmatprep.subr.mxu0 %v2236
    %6209 = vmatpush1.msra.mxu0 %v2235
    %6210 = vmatprep.subr.mxu0 %v2238
    %6211 = vmatpush1.msra.mxu0 %v2237
    %6212 = vmatprep.subr.mxu0 0.0
    %6213 = vmatpush1.msra.mxu0 0.0
    %6214 = vmatprep.subr.mxu0 0.0
    %6215 = vmatpush1.msra.mxu0 0.0
    %6216 = vmatprep.subr.mxu0 0.0
    %6217 = vmatpush1.msra.mxu0 0.0
    %6218 = vmatprep.subr.mxu0 0.0
    %6219 = vmatpush1.msra.mxu0 0.0
    %6220 = vmatprep.subr.mxu0 0.0
    %6221 = vmatpush1.msra.mxu0 0.0
    %6222 = vmatprep.subr.mxu0 0.0
    %6223 = vmatpush1.msra.mxu0 0.0
    %6224 = vmatprep.subr.mxu0 0.0
    %6225 = vmatpush1.msra.mxu0 0.0
    %6226 = vmatprep.subr.mxu0 0.0
    %6227 = vmatpush1.msra.mxu0 0.0
    %6228 = vmatprep.subr.mxu0 0.0
    %6229 = vmatpush1.msra.mxu0 0.0
    %6230 = vmatprep.subr.mxu0 0.0
    %6231 = vmatpush1.msra.mxu0 0.0
    %6232 = vmatprep.subr.mxu0 0.0
    %6233 = vmatpush1.msra.mxu0 0.0
    %6234 = vmatprep.subr.mxu0 0.0
    %6235 = vmatpush1.msra.mxu0 0.0
    %6236 = vmatprep.subr.mxu0 0.0
    %6237 = vmatpush1.msra.mxu0 0.0
    %6238 = vmatprep.subr.mxu0 0.0
    %6239 = vmatpush1.msra.mxu0 0.0
    %6240 = vmatprep.subr.mxu0 0.0
    %6241 = vmatpush1.msra.mxu0 0.0
    %6242 = vmatprep.subr.mxu0 0.0
    %6243 = vmatpush1.msra.mxu0 0.0
    %6244 = vmatprep.subr.mxu0 0.0
    %6245 = vmatpush1.msra.mxu0 0.0
    %6246 = vmatprep.subr.mxu0 0.0
    %6247 = vmatpush1.msra.mxu0 0.0
    %6248 = vmatprep.subr.mxu0 0.0
    %6249 = vmatpush1.msra.mxu0 0.0
    %6250 = vmatprep.subr.mxu0 0.0
    %6251 = vmatpush1.msra.mxu0 0.0
    %6252 = vmatprep.subr.mxu0 0.0
    %6253 = vmatpush1.msra.mxu0 0.0
    %6254 = vmatprep.subr.mxu0 0.0
    %6255 = vmatpush1.msra.mxu0 0.0
    %6256 = vmatprep.subr.mxu0 0.0
    %6257 = vmatpush1.msra.mxu0 0.0
    %6258 = vmatprep.subr.mxu0 0.0
    %6259 = vmatpush1.msra.mxu0 0.0
    %6260 = vmatprep.mubr.f32.mxu0 0.0
    %6261 = vmatmul.mubr.f32.gmra.mrb[0].mxu0 %v6194
    %v6262 = vpop.f32.mrb[0].mxu0
    %v6263 = vadd.f32 %v6189, %v6262
    %v6264 = vpop.f32.mrb[0].mxu0
    %v6265 = vadd.f32 %v6191, %v6264
    %6266 = vdwg.mxu0
    %v6267 = vadd.f32 %v6263, %v2260
    %v6268 = vadd.f32 %v6265, %v2264
    %v6269 = vxor.u32 %v6267, 2147483648
    %v6270 = vxor.u32 %v6268, 2147483648
    %v6271 = vmul.f32 %v6269, 1.442695
    %v6272 = vpow.pop %v6271
    %v6273 = vmul.f32 %v6270, 1.442695
    %v6274 = vpow.pop %v6273
    %v6275 = vadd.f32 %v6272, 1.0
    %v6276 = vadd.f32 %v6274, 1.0
    %v6277 = vrcp.pop %v6275
    %v6278 = vmul.f32 1.0, %v6277
    %v6279 = vrcp.pop %v6276
    %v6280 = vmul.f32 1.0, %v6279
    %v6281 = vtanh.pop %v6268
    %v6282 = vmul.f32 %v6278, %v6004
    %6284 = vrot.lane.b32.xlu0 %v6281, 64
    %v6285 = vpop.permute.xlu0 %6284
    %v6287 = vmul.f32 %v6278, %v6285
    %6289 = vrot.lane.b32.xlu0 %v6287, 64
    %v6290 = vpop.permute.xlu0 %6289
    %v6292 = vadd.f32 %v6282, %v6290
    %v6293 = vtanh.pop %v6292
    %6295 = vrot.lane.b32.xlu0 %v6293, 64
    %v6296 = vpop.permute.xlu0 %6295
    %v6298 = vmul.f32 %v6280, %v6296
    %s6299 = smul.u32 14, 2
    %s6300 = smul.addr %s6299, 8
    %s6301 = scalar_lea.vmem [#allocation2], %s6300
    %v6302 = vld [vmem:[%s6301] sm:$0xff]
    %v6303 = vld [vmem:[%s6301 + $0x8] sm:$0xff]
    %6304 = vmatprep.subr.mxu0 %v2208
    %6305 = vmatpush1.msra.mxu0 %v2207
    %6306 = vmatprep.subr.mxu0 %v2210
    %6307 = vmatpush1.msra.mxu0 %v2209
    %6308 = vmatprep.subr.mxu0 %v2212
    %6309 = vmatpush1.msra.mxu0 %v2211
    %6310 = vmatprep.subr.mxu0 %v2214
    %6311 = vmatpush1.msra.mxu0 %v2213
    %6312 = vmatprep.subr.mxu0 %v2216
    %6313 = vmatpush1.msra.mxu0 %v2215
    %6314 = vmatprep.subr.mxu0 %v2218
    %6315 = vmatpush1.msra.mxu0 %v2217
    %6316 = vmatprep.subr.mxu0 %v2220
    %6317 = vmatpush1.msra.mxu0 %v2219
    %6318 = vmatprep.subr.mxu0 %v2222
    %6319 = vmatpush1.msra.mxu0 %v2221
    %6320 = vmatprep.subr.mxu0 0.0
    %6321 = vmatpush1.msra.mxu0 0.0
    %6322 = vmatprep.subr.mxu0 0.0
    %6323 = vmatpush1.msra.mxu0 0.0
    %6324 = vmatprep.subr.mxu0 0.0
    %6325 = vmatpush1.msra.mxu0 0.0
    %6326 = vmatprep.subr.mxu0 0.0
    %6327 = vmatpush1.msra.mxu0 0.0
    %6328 = vmatprep.subr.mxu0 0.0
    %6329 = vmatpush1.msra.mxu0 0.0
    %6330 = vmatprep.subr.mxu0 0.0
    %6331 = vmatpush1.msra.mxu0 0.0
    %6332 = vmatprep.subr.mxu0 0.0
    %6333 = vmatpush1.msra.mxu0 0.0
    %6334 = vmatprep.subr.mxu0 0.0
    %6335 = vmatpush1.msra.mxu0 0.0
    %6336 = vmatprep.subr.mxu0 0.0
    %6337 = vmatpush1.msra.mxu0 0.0
    %6338 = vmatprep.subr.mxu0 0.0
    %6339 = vmatpush1.msra.mxu0 0.0
    %6340 = vmatprep.subr.mxu0 0.0
    %6341 = vmatpush1.msra.mxu0 0.0
    %6342 = vmatprep.subr.mxu0 0.0
    %6343 = vmatpush1.msra.mxu0 0.0
    %6344 = vmatprep.subr.mxu0 0.0
    %6345 = vmatpush1.msra.mxu0 0.0
    %6346 = vmatprep.subr.mxu0 0.0
    %6347 = vmatpush1.msra.mxu0 0.0
    %6348 = vmatprep.subr.mxu0 0.0
    %6349 = vmatpush1.msra.mxu0 0.0
    %6350 = vmatprep.subr.mxu0 0.0
    %6351 = vmatpush1.msra.mxu0 0.0
    %6352 = vmatprep.subr.mxu0 0.0
    %6353 = vmatpush1.msra.mxu0 0.0
    %6354 = vmatprep.subr.mxu0 0.0
    %6355 = vmatpush1.msra.mxu0 0.0
    %6356 = vmatprep.subr.mxu0 0.0
    %6357 = vmatpush1.msra.mxu0 0.0
    %6358 = vmatprep.subr.mxu0 0.0
    %6359 = vmatpush1.msra.mxu0 0.0
    %6360 = vmatprep.subr.mxu0 0.0
    %6361 = vmatpush1.msra.mxu0 0.0
    %6362 = vmatprep.subr.mxu0 0.0
    %6363 = vmatpush1.msra.mxu0 0.0
    %6364 = vmatprep.subr.mxu0 0.0
    %6365 = vmatpush1.msra.mxu0 0.0
    %6366 = vmatprep.subr.mxu0 0.0
    %6367 = vmatpush1.msra.mxu0 0.0
    %6368 = vmatprep.mubr.f32.mxu0 0.0
    %6369 = vmatmul.mubr.f32.gmra.mrb[0].mxu0 %v6194
    %v6370 = vpop.f32.mrb[0].mxu0
    %v6371 = vadd.f32 0.0, %v6370
    %v6372 = vpop.f32.mrb[0].mxu0
    %v6373 = vadd.f32 0.0, %v6372
    %6374 = vdwg.mxu0
    %v6375 = vadd.f32 %v6302, %v6371
    %v6376 = vadd.f32 %v6303, %v6373
    %v6377 = vxor.u32 %v6375, 2147483648
    %v6378 = vxor.u32 %v6376, 2147483648
    %v6379 = vmul.f32 %v6377, 1.442695
    %v6380 = vpow.pop %v6379
    %v6381 = vmul.f32 %v6378, 1.442695
    %v6382 = vpow.pop %v6381
    %v6383 = vadd.f32 %v6380, 1.0
    %v6384 = vadd.f32 %v6382, 1.0
    %v6385 = vrcp.pop %v6383
    %v6386 = vmul.f32 1.0, %v6385
    %v6387 = vrcp.pop %v6384
    %v6388 = vmul.f32 1.0, %v6387
    %v6389 = vtanh.pop %v6376
    %v6390 = vmul.f32 %v6386, %v6112
    %6392 = vrot.lane.b32.xlu0 %v6389, 64
    %v6393 = vpop.permute.xlu0 %6392
    %v6395 = vmul.f32 %v6386, %v6393
    %6397 = vrot.lane.b32.xlu0 %v6395, 64
    %v6398 = vpop.permute.xlu0 %6397
    %v6400 = vadd.f32 %v6390, %v6398
    %v6401 = vtanh.pop %v6400
    %6403 = vrot.lane.b32.xlu0 %v6401, 64
    %v6404 = vpop.permute.xlu0 %6403
    %v6406 = vmul.f32 %v6388, %v6404
    %v6408 = vsel %vm439, %v6298, 0
    %6410 = vmatprep.subr.mxu0 %v2240
    %6411 = vmatpush1.msra.mxu0 %v2239
    %6412 = vmatprep.subr.mxu0 %v2242
    %6413 = vmatpush1.msra.mxu0 %v2241
    %6414 = vmatprep.subr.mxu0 %v2244
    %6415 = vmatpush1.msra.mxu0 %v2243
    %6416 = vmatprep.subr.mxu0 %v2246
    %6417 = vmatpush1.msra.mxu0 %v2245
    %6418 = vmatprep.subr.mxu0 %v2248
    %6419 = vmatpush1.msra.mxu0 %v2247
    %6420 = vmatprep.subr.mxu0 %v2250
    %6421 = vmatpush1.msra.mxu0 %v2249
    %6422 = vmatprep.subr.mxu0 %v2252
    %6423 = vmatpush1.msra.mxu0 %v2251
    %6424 = vmatprep.subr.mxu0 %v2254
    %6425 = vmatpush1.msra.mxu0 %v2253
    %6426 = vmatprep.subr.mxu0 0.0
    %6427 = vmatpush1.msra.mxu0 0.0
    %6428 = vmatprep.subr.mxu0 0.0
    %6429 = vmatpush1.msra.mxu0 0.0
    %6430 = vmatprep.subr.mxu0 0.0
    %6431 = vmatpush1.msra.mxu0 0.0
    %6432 = vmatprep.subr.mxu0 0.0
    %6433 = vmatpush1.msra.mxu0 0.0
    %6434 = vmatprep.subr.mxu0 0.0
    %6435 = vmatpush1.msra.mxu0 0.0
    %6436 = vmatprep.subr.mxu0 0.0
    %6437 = vmatpush1.msra.mxu0 0.0
    %6438 = vmatprep.subr.mxu0 0.0
    %6439 = vmatpush1.msra.mxu0 0.0
    %6440 = vmatprep.subr.mxu0 0.0
    %6441 = vmatpush1.msra.mxu0 0.0
    %6442 = vmatprep.subr.mxu0 0.0
    %6443 = vmatpush1.msra.mxu0 0.0
    %6444 = vmatprep.subr.mxu0 0.0
    %6445 = vmatpush1.msra.mxu0 0.0
    %6446 = vmatprep.subr.mxu0 0.0
    %6447 = vmatpush1.msra.mxu0 0.0
    %6448 = vmatprep.subr.mxu0 0.0
    %6449 = vmatpush1.msra.mxu0 0.0
    %6450 = vmatprep.subr.mxu0 0.0
    %6451 = vmatpush1.msra.mxu0 0.0
    %6452 = vmatprep.subr.mxu0 0.0
    %6453 = vmatpush1.msra.mxu0 0.0
    %6454 = vmatprep.subr.mxu0 0.0
    %6455 = vmatpush1.msra.mxu0 0.0
    %6456 = vmatprep.subr.mxu0 0.0
    %6457 = vmatpush1.msra.mxu0 0.0
    %6458 = vmatprep.subr.mxu0 0.0
    %6459 = vmatpush1.msra.mxu0 0.0
    %6460 = vmatprep.subr.mxu0 0.0
    %6461 = vmatpush1.msra.mxu0 0.0
    %6462 = vmatprep.subr.mxu0 0.0
    %6463 = vmatpush1.msra.mxu0 0.0
    %6464 = vmatprep.subr.mxu0 0.0
    %6465 = vmatpush1.msra.mxu0 0.0
    %6466 = vmatprep.subr.mxu0 0.0
    %6467 = vmatpush1.msra.mxu0 0.0
    %6468 = vmatprep.subr.mxu0 0.0
    %6469 = vmatpush1.msra.mxu0 0.0
    %6470 = vmatprep.subr.mxu0 0.0
    %6471 = vmatpush1.msra.mxu0 0.0
    %6472 = vmatprep.subr.mxu0 0.0
    %6473 = vmatpush1.msra.mxu0 0.0
    %6474 = vmatprep.mubr.f32.mxu0 0.0
    %6475 = vmatmul.mubr.f32.gmra.mrb[0].mxu0 %v6408
    %v6476 = vpop.f32.mrb[0].mxu0
    %v6477 = vadd.f32 0.0, %v6476
    %v6478 = vpop.f32.mrb[0].mxu0
    %v6479 = vadd.f32 0.0, %v6478
    %6480 = vdwg.mxu0
    %v6482 = vsel %vm439, %v6406, 0
    %6484 = vmatprep.subr.mxu0 %v2224
    %6485 = vmatpush1.msra.mxu0 %v2223
    %6486 = vmatprep.subr.mxu0 %v2226
    %6487 = vmatpush1.msra.mxu0 %v2225
    %6488 = vmatprep.subr.mxu0 %v2228
    %6489 = vmatpush1.msra.mxu0 %v2227
    %6490 = vmatprep.subr.mxu0 %v2230
    %6491 = vmatpush1.msra.mxu0 %v2229
    %6492 = vmatprep.subr.mxu0 %v2232
    %6493 = vmatpush1.msra.mxu0 %v2231
    %6494 = vmatprep.subr.mxu0 %v2234
    %6495 = vmatpush1.msra.mxu0 %v2233
    %6496 = vmatprep.subr.mxu0 %v2236
    %6497 = vmatpush1.msra.mxu0 %v2235
    %6498 = vmatprep.subr.mxu0 %v2238
    %6499 = vmatpush1.msra.mxu0 %v2237
    %6500 = vmatprep.subr.mxu0 0.0
    %6501 = vmatpush1.msra.mxu0 0.0
    %6502 = vmatprep.subr.mxu0 0.0
    %6503 = vmatpush1.msra.mxu0 0.0
    %6504 = vmatprep.subr.mxu0 0.0
    %6505 = vmatpush1.msra.mxu0 0.0
    %6506 = vmatprep.subr.mxu0 0.0
    %6507 = vmatpush1.msra.mxu0 0.0
    %6508 = vmatprep.subr.mxu0 0.0
    %6509 = vmatpush1.msra.mxu0 0.0
    %6510 = vmatprep.subr.mxu0 0.0
    %6511 = vmatpush1.msra.mxu0 0.0
    %6512 = vmatprep.subr.mxu0 0.0
    %6513 = vmatpush1.msra.mxu0 0.0
    %6514 = vmatprep.subr.mxu0 0.0
    %6515 = vmatpush1.msra.mxu0 0.0
    %6516 = vmatprep.subr.mxu0 0.0
    %6517 = vmatpush1.msra.mxu0 0.0
    %6518 = vmatprep.subr.mxu0 0.0
    %6519 = vmatpush1.msra.mxu0 0.0
    %6520 = vmatprep.subr.mxu0 0.0
    %6521 = vmatpush1.msra.mxu0 0.0
    %6522 = vmatprep.subr.mxu0 0.0
    %6523 = vmatpush1.msra.mxu0 0.0
    %6524 = vmatprep.subr.mxu0 0.0
    %6525 = vmatpush1.msra.mxu0 0.0
    %6526 = vmatprep.subr.mxu0 0.0
    %6527 = vmatpush1.msra.mxu0 0.0
    %6528 = vmatprep.subr.mxu0 0.0
    %6529 = vmatpush1.msra.mxu0 0.0
    %6530 = vmatprep.subr.mxu0 0.0
    %6531 = vmatpush1.msra.mxu0 0.0
    %6532 = vmatprep.subr.mxu0 0.0
    %6533 = vmatpush1.msra.mxu0 0.0
    %6534 = vmatprep.subr.mxu0 0.0
    %6535 = vmatpush1.msra.mxu0 0.0
    %6536 = vmatprep.subr.mxu0 0.0
    %6537 = vmatpush1.msra.mxu0 0.0
    %6538 = vmatprep.subr.mxu0 0.0
    %6539 = vmatpush1.msra.mxu0 0.0
    %6540 = vmatprep.subr.mxu0 0.0
    %6541 = vmatpush1.msra.mxu0 0.0
    %6542 = vmatprep.subr.mxu0 0.0
    %6543 = vmatpush1.msra.mxu0 0.0
    %6544 = vmatprep.subr.mxu0 0.0
    %6545 = vmatpush1.msra.mxu0 0.0
    %6546 = vmatprep.subr.mxu0 0.0
    %6547 = vmatpush1.msra.mxu0 0.0
    %6548 = vmatprep.mubr.f32.mxu0 0.0
    %6549 = vmatmul.mubr.f32.gmra.mrb[0].mxu0 %v6482
    %v6550 = vpop.f32.mrb[0].mxu0
    %v6551 = vadd.f32 %v6477, %v6550
    %v6552 = vpop.f32.mrb[0].mxu0
    %v6553 = vadd.f32 %v6479, %v6552
    %6554 = vdwg.mxu0
    %v6555 = vadd.f32 %v6551, %v2260
    %v6556 = vadd.f32 %v6553, %v2264
    %v6557 = vxor.u32 %v6555, 2147483648
    %v6558 = vxor.u32 %v6556, 2147483648
    %v6559 = vmul.f32 %v6557, 1.442695
    %v6560 = vpow.pop %v6559
    %v6561 = vmul.f32 %v6558, 1.442695
    %v6562 = vpow.pop %v6561
    %v6563 = vadd.f32 %v6560, 1.0
    %v6564 = vadd.f32 %v6562, 1.0
    %v6565 = vrcp.pop %v6563
    %v6566 = vmul.f32 1.0, %v6565
    %v6567 = vrcp.pop %v6564
    %v6568 = vmul.f32 1.0, %v6567
    %v6569 = vtanh.pop %v6556
    %v6570 = vmul.f32 %v6566, %v6292
    %6572 = vrot.lane.b32.xlu0 %v6569, 64
    %v6573 = vpop.permute.xlu0 %6572
    %v6575 = vmul.f32 %v6566, %v6573
    %6577 = vrot.lane.b32.xlu0 %v6575, 64
    %v6578 = vpop.permute.xlu0 %6577
    %v6580 = vadd.f32 %v6570, %v6578
    %v6581 = vtanh.pop %v6580
    %6583 = vrot.lane.b32.xlu0 %v6581, 64
    %v6584 = vpop.permute.xlu0 %6583
    %v6586 = vmul.f32 %v6568, %v6584
    %s6587 = smul.u32 15, 2
    %s6588 = smul.addr %s6587, 8
    %s6589 = scalar_lea.vmem [#allocation2], %s6588
    %v6590 = vld [vmem:[%s6589] sm:$0xff]
    %v6591 = vld [vmem:[%s6589 + $0x8] sm:$0xff]
    %6592 = vmatprep.subr.mxu0 %v2208
    %6593 = vmatpush1.msra.mxu0 %v2207
    %6594 = vmatprep.subr.mxu0 %v2210
    %6595 = vmatpush1.msra.mxu0 %v2209
    %6596 = vmatprep.subr.mxu0 %v2212
    %6597 = vmatpush1.msra.mxu0 %v2211
    %6598 = vmatprep.subr.mxu0 %v2214
    %6599 = vmatpush1.msra.mxu0 %v2213
    %6600 = vmatprep.subr.mxu0 %v2216
    %6601 = vmatpush1.msra.mxu0 %v2215
    %6602 = vmatprep.subr.mxu0 %v2218
    %6603 = vmatpush1.msra.mxu0 %v2217
    %6604 = vmatprep.subr.mxu0 %v2220
    %6605 = vmatpush1.msra.mxu0 %v2219
    %6606 = vmatprep.subr.mxu0 %v2222
    %6607 = vmatpush1.msra.mxu0 %v2221
    %6608 = vmatprep.subr.mxu0 0.0
    %6609 = vmatpush1.msra.mxu0 0.0
    %6610 = vmatprep.subr.mxu0 0.0
    %6611 = vmatpush1.msra.mxu0 0.0
    %6612 = vmatprep.subr.mxu0 0.0
    %6613 = vmatpush1.msra.mxu0 0.0
    %6614 = vmatprep.subr.mxu0 0.0
    %6615 = vmatpush1.msra.mxu0 0.0
    %6616 = vmatprep.subr.mxu0 0.0
    %6617 = vmatpush1.msra.mxu0 0.0
    %6618 = vmatprep.subr.mxu0 0.0
    %6619 = vmatpush1.msra.mxu0 0.0
    %6620 = vmatprep.subr.mxu0 0.0
    %6621 = vmatpush1.msra.mxu0 0.0
    %6622 = vmatprep.subr.mxu0 0.0
    %6623 = vmatpush1.msra.mxu0 0.0
    %6624 = vmatprep.subr.mxu0 0.0
    %6625 = vmatpush1.msra.mxu0 0.0
    %6626 = vmatprep.subr.mxu0 0.0
    %6627 = vmatpush1.msra.mxu0 0.0
    %6628 = vmatprep.subr.mxu0 0.0
    %6629 = vmatpush1.msra.mxu0 0.0
    %6630 = vmatprep.subr.mxu0 0.0
    %6631 = vmatpush1.msra.mxu0 0.0
    %6632 = vmatprep.subr.mxu0 0.0
    %6633 = vmatpush1.msra.mxu0 0.0
    %6634 = vmatprep.subr.mxu0 0.0
    %6635 = vmatpush1.msra.mxu0 0.0
    %6636 = vmatprep.subr.mxu0 0.0
    %6637 = vmatpush1.msra.mxu0 0.0
    %6638 = vmatprep.subr.mxu0 0.0
    %6639 = vmatpush1.msra.mxu0 0.0
    %6640 = vmatprep.subr.mxu0 0.0
    %6641 = vmatpush1.msra.mxu0 0.0
    %6642 = vmatprep.subr.mxu0 0.0
    %6643 = vmatpush1.msra.mxu0 0.0
    %6644 = vmatprep.subr.mxu0 0.0
    %6645 = vmatpush1.msra.mxu0 0.0
    %6646 = vmatprep.subr.mxu0 0.0
    %6647 = vmatpush1.msra.mxu0 0.0
    %6648 = vmatprep.subr.mxu0 0.0
    %6649 = vmatpush1.msra.mxu0 0.0
    %6650 = vmatprep.subr.mxu0 0.0
    %6651 = vmatpush1.msra.mxu0 0.0
    %6652 = vmatprep.subr.mxu0 0.0
    %6653 = vmatpush1.msra.mxu0 0.0
    %6654 = vmatprep.subr.mxu0 0.0
    %6655 = vmatpush1.msra.mxu0 0.0
    %6656 = vmatprep.mubr.f32.mxu0 0.0
    %6657 = vmatmul.mubr.f32.gmra.mrb[0].mxu0 %v6482
    %v6658 = vpop.f32.mrb[0].mxu0
    %v6659 = vadd.f32 0.0, %v6658
    %v6660 = vpop.f32.mrb[0].mxu0
    %v6661 = vadd.f32 0.0, %v6660
    %6662 = vdwg.mxu0
    %v6663 = vadd.f32 %v6590, %v6659
    %v6664 = vadd.f32 %v6591, %v6661
    %v6665 = vxor.u32 %v6663, 2147483648
    %v6666 = vxor.u32 %v6664, 2147483648
    %v6667 = vmul.f32 %v6665, 1.442695
    %v6668 = vpow.pop %v6667
    %v6669 = vmul.f32 %v6666, 1.442695
    %v6670 = vpow.pop %v6669
    %v6671 = vadd.f32 %v6668, 1.0
    %v6672 = vadd.f32 %v6670, 1.0
    %v6673 = vrcp.pop %v6671
    %v6674 = vmul.f32 1.0, %v6673
    %v6675 = vrcp.pop %v6672
    %v6676 = vmul.f32 1.0, %v6675
    %v6677 = vtanh.pop %v6664
    %v6678 = vmul.f32 %v6674, %v6400
    %6680 = vrot.lane.b32.xlu0 %v6677, 64
    %v6681 = vpop.permute.xlu0 %6680
    %v6683 = vmul.f32 %v6674, %v6681
    %6685 = vrot.lane.b32.xlu0 %v6683, 64
    %v6686 = vpop.permute.xlu0 %6685
    %v6688 = vadd.f32 %v6678, %v6686
    %v6689 = vtanh.pop %v6688
    %6691 = vrot.lane.b32.xlu0 %v6689, 64
    %v6692 = vpop.permute.xlu0 %6691
    %v6694 = vmul.f32 %v6676, %v6692
    %v6696 = vsel %vm439, %v6586, 0
    %6698 = vmatprep.subr.mxu0 %v2240
    %6699 = vmatpush1.msra.mxu0 %v2239
    %6700 = vmatprep.subr.mxu0 %v2242
    %6701 = vmatpush1.msra.mxu0 %v2241
    %6702 = vmatprep.subr.mxu0 %v2244
    %6703 = vmatpush1.msra.mxu0 %v2243
    %6704 = vmatprep.subr.mxu0 %v2246
    %6705 = vmatpush1.msra.mxu0 %v2245
    %6706 = vmatprep.subr.mxu0 %v2248
    %6707 = vmatpush1.msra.mxu0 %v2247
    %6708 = vmatprep.subr.mxu0 %v2250
    %6709 = vmatpush1.msra.mxu0 %v2249
    %6710 = vmatprep.subr.mxu0 %v2252
    %6711 = vmatpush1.msra.mxu0 %v2251
    %6712 = vmatprep.subr.mxu0 %v2254
    %6713 = vmatpush1.msra.mxu0 %v2253
    %6714 = vmatprep.subr.mxu0 0.0
    %6715 = vmatpush1.msra.mxu0 0.0
    %6716 = vmatprep.subr.mxu0 0.0
    %6717 = vmatpush1.msra.mxu0 0.0
    %6718 = vmatprep.subr.mxu0 0.0
    %6719 = vmatpush1.msra.mxu0 0.0
    %6720 = vmatprep.subr.mxu0 0.0
    %6721 = vmatpush1.msra.mxu0 0.0
    %6722 = vmatprep.subr.mxu0 0.0
    %6723 = vmatpush1.msra.mxu0 0.0
    %6724 = vmatprep.subr.mxu0 0.0
    %6725 = vmatpush1.msra.mxu0 0.0
    %6726 = vmatprep.subr.mxu0 0.0
    %6727 = vmatpush1.msra.mxu0 0.0
    %6728 = vmatprep.subr.mxu0 0.0
    %6729 = vmatpush1.msra.mxu0 0.0
    %6730 = vmatprep.subr.mxu0 0.0
    %6731 = vmatpush1.msra.mxu0 0.0
    %6732 = vmatprep.subr.mxu0 0.0
    %6733 = vmatpush1.msra.mxu0 0.0
    %6734 = vmatprep.subr.mxu0 0.0
    %6735 = vmatpush1.msra.mxu0 0.0
    %6736 = vmatprep.subr.mxu0 0.0
    %6737 = vmatpush1.msra.mxu0 0.0
    %6738 = vmatprep.subr.mxu0 0.0
    %6739 = vmatpush1.msra.mxu0 0.0
    %6740 = vmatprep.subr.mxu0 0.0
    %6741 = vmatpush1.msra.mxu0 0.0
    %6742 = vmatprep.subr.mxu0 0.0
    %6743 = vmatpush1.msra.mxu0 0.0
    %6744 = vmatprep.subr.mxu0 0.0
    %6745 = vmatpush1.msra.mxu0 0.0
    %6746 = vmatprep.subr.mxu0 0.0
    %6747 = vmatpush1.msra.mxu0 0.0
    %6748 = vmatprep.subr.mxu0 0.0
    %6749 = vmatpush1.msra.mxu0 0.0
    %6750 = vmatprep.subr.mxu0 0.0
    %6751 = vmatpush1.msra.mxu0 0.0
    %6752 = vmatprep.subr.mxu0 0.0
    %6753 = vmatpush1.msra.mxu0 0.0
    %6754 = vmatprep.subr.mxu0 0.0
    %6755 = vmatpush1.msra.mxu0 0.0
    %6756 = vmatprep.subr.mxu0 0.0
    %6757 = vmatpush1.msra.mxu0 0.0
    %6758 = vmatprep.subr.mxu0 0.0
    %6759 = vmatpush1.msra.mxu0 0.0
    %6760 = vmatprep.subr.mxu0 0.0
    %6761 = vmatpush1.msra.mxu0 0.0
    %6762 = vmatprep.mubr.f32.mxu0 0.0
    %6763 = vmatmul.mubr.f32.gmra.mrb[0].mxu0 %v6696
    %v6764 = vpop.f32.mrb[0].mxu0
    %v6765 = vadd.f32 0.0, %v6764
    %v6766 = vpop.f32.mrb[0].mxu0
    %v6767 = vadd.f32 0.0, %v6766
    %6768 = vdwg.mxu0
    %v6770 = vsel %vm439, %v6694, 0
    %6772 = vmatprep.subr.mxu0 %v2224
    %6773 = vmatpush1.msra.mxu0 %v2223
    %6774 = vmatprep.subr.mxu0 %v2226
    %6775 = vmatpush1.msra.mxu0 %v2225
    %6776 = vmatprep.subr.mxu0 %v2228
    %6777 = vmatpush1.msra.mxu0 %v2227
    %6778 = vmatprep.subr.mxu0 %v2230
    %6779 = vmatpush1.msra.mxu0 %v2229
    %6780 = vmatprep.subr.mxu0 %v2232
    %6781 = vmatpush1.msra.mxu0 %v2231
    %6782 = vmatprep.subr.mxu0 %v2234
    %6783 = vmatpush1.msra.mxu0 %v2233
    %6784 = vmatprep.subr.mxu0 %v2236
    %6785 = vmatpush1.msra.mxu0 %v2235
    %6786 = vmatprep.subr.mxu0 %v2238
    %6787 = vmatpush1.msra.mxu0 %v2237
    %6788 = vmatprep.subr.mxu0 0.0
    %6789 = vmatpush1.msra.mxu0 0.0
    %6790 = vmatprep.subr.mxu0 0.0
    %6791 = vmatpush1.msra.mxu0 0.0
    %6792 = vmatprep.subr.mxu0 0.0
    %6793 = vmatpush1.msra.mxu0 0.0
    %6794 = vmatprep.subr.mxu0 0.0
    %6795 = vmatpush1.msra.mxu0 0.0
    %6796 = vmatprep.subr.mxu0 0.0
    %6797 = vmatpush1.msra.mxu0 0.0
    %6798 = vmatprep.subr.mxu0 0.0
    %6799 = vmatpush1.msra.mxu0 0.0
    %6800 = vmatprep.subr.mxu0 0.0
    %6801 = vmatpush1.msra.mxu0 0.0
    %6802 = vmatprep.subr.mxu0 0.0
    %6803 = vmatpush1.msra.mxu0 0.0
    %6804 = vmatprep.subr.mxu0 0.0
    %6805 = vmatpush1.msra.mxu0 0.0
    %6806 = vmatprep.subr.mxu0 0.0
    %6807 = vmatpush1.msra.mxu0 0.0
    %6808 = vmatprep.subr.mxu0 0.0
    %6809 = vmatpush1.msra.mxu0 0.0
    %6810 = vmatprep.subr.mxu0 0.0
    %6811 = vmatpush1.msra.mxu0 0.0
    %6812 = vmatprep.subr.mxu0 0.0
    %6813 = vmatpush1.msra.mxu0 0.0
    %6814 = vmatprep.subr.mxu0 0.0
    %6815 = vmatpush1.msra.mxu0 0.0
    %6816 = vmatprep.subr.mxu0 0.0
    %6817 = vmatpush1.msra.mxu0 0.0
    %6818 = vmatprep.subr.mxu0 0.0
    %6819 = vmatpush1.msra.mxu0 0.0
    %6820 = vmatprep.subr.mxu0 0.0
    %6821 = vmatpush1.msra.mxu0 0.0
    %6822 = vmatprep.subr.mxu0 0.0
    %6823 = vmatpush1.msra.mxu0 0.0
    %6824 = vmatprep.subr.mxu0 0.0
    %6825 = vmatpush1.msra.mxu0 0.0
    %6826 = vmatprep.subr.mxu0 0.0
    %6827 = vmatpush1.msra.mxu0 0.0
    %6828 = vmatprep.subr.mxu0 0.0
    %6829 = vmatpush1.msra.mxu0 0.0
    %6830 = vmatprep.subr.mxu0 0.0
    %6831 = vmatpush1.msra.mxu0 0.0
    %6832 = vmatprep.subr.mxu0 0.0
    %6833 = vmatpush1.msra.mxu0 0.0
    %6834 = vmatprep.subr.mxu0 0.0
    %6835 = vmatpush1.msra.mxu0 0.0
    %6836 = vmatprep.mubr.f32.mxu0 0.0
    %6837 = vmatmul.mubr.f32.gmra.mrb[0].mxu0 %v6770
    %v6838 = vpop.f32.mrb[0].mxu0
    %v6839 = vadd.f32 %v6765, %v6838
    %v6840 = vpop.f32.mrb[0].mxu0
    %v6841 = vadd.f32 %v6767, %v6840
    %6842 = vdwg.mxu0
    %v6843 = vadd.f32 %v6839, %v2260
    %v6844 = vadd.f32 %v6841, %v2264
    %v6845 = vxor.u32 %v6843, 2147483648
    %v6846 = vxor.u32 %v6844, 2147483648
    %v6847 = vmul.f32 %v6845, 1.442695
    %v6848 = vpow.pop %v6847
    %v6849 = vmul.f32 %v6846, 1.442695
    %v6850 = vpow.pop %v6849
    %v6851 = vadd.f32 %v6848, 1.0
    %v6852 = vadd.f32 %v6850, 1.0
    %v6853 = vrcp.pop %v6851
    %v6854 = vmul.f32 1.0, %v6853
    %v6855 = vrcp.pop %v6852
    %v6856 = vmul.f32 1.0, %v6855
    %v6857 = vtanh.pop %v6844
    %v6858 = vmul.f32 %v6854, %v6580
    %6860 = vrot.lane.b32.xlu0 %v6857, 64
    %v6861 = vpop.permute.xlu0 %6860
    %v6863 = vmul.f32 %v6854, %v6861
    %6865 = vrot.lane.b32.xlu0 %v6863, 64
    %v6866 = vpop.permute.xlu0 %6865
    %v6868 = vadd.f32 %v6858, %v6866
    %v6869 = vtanh.pop %v6868
    %6871 = vrot.lane.b32.xlu0 %v6869, 64
    %v6872 = vpop.permute.xlu0 %6871
    %v6874 = vmul.f32 %v6856, %v6872
    %v6875 = vld [vmem:[%s13] sm:$0xff]
    %v6876 = vld [vmem:[%s13 + $0x8] sm:$0xff]
    %v6877 = vld [vmem:[%s13 + $0x10] sm:$0xff]
    %v6878 = vld [vmem:[%s13 + $0x18] sm:$0xff]
    %v6879 = vld [vmem:[%s13 + $0x20] sm:$0xff]
    %v6880 = vld [vmem:[%s13 + $0x28] sm:$0xff]
    %v6881 = vld [vmem:[%s13 + $0x30] sm:$0xff]
    %v6882 = vld [vmem:[%s13 + $0x38] sm:$0xff]
    %v6883 = vld [vmem:[%s14] sm:$0x1]
    %v6885 = vlaneseq
    %v6886 = vshrl.u32 %v6885, 7
    %v6887 = vsub.s32 0, %v6886
    %v6888 = vrot.slane %v6883, %v6887
    %v6891 = vsel %vm439, %v6874, 0
    %6893 = vmatprep.subr.mxu0 0.0
    %6894 = vmatpush1.msra.mxu0 %v6875
    %6895 = vmatprep.subr.mxu0 0.0
    %6896 = vmatpush1.msra.mxu0 %v6876
    %6897 = vmatprep.subr.mxu0 0.0
    %6898 = vmatpush1.msra.mxu0 %v6877
    %6899 = vmatprep.subr.mxu0 0.0
    %6900 = vmatpush1.msra.mxu0 %v6878
    %6901 = vmatprep.subr.mxu0 0.0
    %6902 = vmatpush1.msra.mxu0 %v6879
    %6903 = vmatprep.subr.mxu0 0.0
    %6904 = vmatpush1.msra.mxu0 %v6880
    %6905 = vmatprep.subr.mxu0 0.0
    %6906 = vmatpush1.msra.mxu0 %v6881
    %6907 = vmatprep.subr.mxu0 0.0
    %6908 = vmatpush1.msra.mxu0 %v6882
    %6909 = vmatprep.subr.mxu0 0.0
    %6910 = vmatpush1.msra.mxu0 0.0
    %6911 = vmatprep.subr.mxu0 0.0
    %6912 = vmatpush1.msra.mxu0 0.0
    %6913 = vmatprep.subr.mxu0 0.0
    %6914 = vmatpush1.msra.mxu0 0.0
    %6915 = vmatprep.subr.mxu0 0.0
    %6916 = vmatpush1.msra.mxu0 0.0
    %6917 = vmatprep.subr.mxu0 0.0
    %6918 = vmatpush1.msra.mxu0 0.0
    %6919 = vmatprep.subr.mxu0 0.0
    %6920 = vmatpush1.msra.mxu0 0.0
    %6921 = vmatprep.subr.mxu0 0.0
    %6922 = vmatpush1.msra.mxu0 0.0
    %6923 = vmatprep.subr.mxu0 0.0
    %6924 = vmatpush1.msra.mxu0 0.0
    %6925 = vmatprep.subr.mxu0 0.0
    %6926 = vmatpush1.msra.mxu0 0.0
    %6927 = vmatprep.subr.mxu0 0.0
    %6928 = vmatpush1.msra.mxu0 0.0
    %6929 = vmatprep.subr.mxu0 0.0
    %6930 = vmatpush1.msra.mxu0 0.0
    %6931 = vmatprep.subr.mxu0 0.0
    %6932 = vmatpush1.msra.mxu0 0.0
    %6933 = vmatprep.subr.mxu0 0.0
    %6934 = vmatpush1.msra.mxu0 0.0
    %6935 = vmatprep.subr.mxu0 0.0
    %6936 = vmatpush1.msra.mxu0 0.0
    %6937 = vmatprep.subr.mxu0 0.0
    %6938 = vmatpush1.msra.mxu0 0.0
    %6939 = vmatprep.subr.mxu0 0.0
    %6940 = vmatpush1.msra.mxu0 0.0
    %6941 = vmatprep.subr.mxu0 0.0
    %6942 = vmatpush1.msra.mxu0 0.0
    %6943 = vmatprep.subr.mxu0 0.0
    %6944 = vmatpush1.msra.mxu0 0.0
    %6945 = vmatprep.subr.mxu0 0.0
    %6946 = vmatpush1.msra.mxu0 0.0
    %6947 = vmatprep.subr.mxu0 0.0
    %6948 = vmatpush1.msra.mxu0 0.0
    %6949 = vmatprep.subr.mxu0 0.0
    %6950 = vmatpush1.msra.mxu0 0.0
    %6951 = vmatprep.subr.mxu0 0.0
    %6952 = vmatpush1.msra.mxu0 0.0
    %6953 = vmatprep.subr.mxu0 0.0
    %6954 = vmatpush1.msra.mxu0 0.0
    %6955 = vmatprep.subr.mxu0 0.0
    %6956 = vmatpush1.msra.mxu0 0.0
    %6957 = vmatprep.mubr.f32.mxu0 0.0
    %6958 = vmatmul.mubr.f32.gmra.mrb[0].mxu0 %v6891
    %v6959 = vpop.f32.mrb[0].mxu0
    %v6960 = vadd.f32 %v6888, %v6959
    %v6961 = vpop.f32.mrb[0].mxu0
    %6962 = vdwg.mxu0
    %6963 = vst [vmem:[#allocation20] sm:$0xff] %v6960
    // Predicated region
    $region98: #{tpu_custom_call.1} parent=1 // pred_check
      _
    $region99: #{tpu_custom_call.1} parent=1 // pred_check_branch
      %6965 = sbr.rel (0) target = $region101
    $region100: #{tpu_custom_call.1} parent=1 // pred_region
      %s6967 = ssub.s32 128, 128
      %6968 = vsyncadd [#allocation7], %s6967
      %s6970 = sshll.u32 [#allocation20], 4
      %s6971 = int_to_ptr.vmem [resolvable:$true] %s6970
      %6973 = dma.vmem_to_hbm [thread:$0]  %s6971, 128, %s15, [#allocation7]
    $region101: #{tpu_custom_call.1} parent=1 // pred_fallthru
      _
    // Predicated region
    $region102: #{tpu_custom_call.1} parent=1 // pred_check
      _
    $region103: #{tpu_custom_call.1} parent=1 // pred_check_branch
      %6975 = sbr.rel (0) target = $region105
    $region104: #{tpu_custom_call.1} parent=1 // pred_region
      %6976 = dma.done [#allocation7], 128
    $region105: #{tpu_custom_call.1} parent=1 // pred_fallthru
      _
    %6977 = vsyncpa [#allocation6], 1
    %6978 = vsyncpa [#allocation9], 1
    %6979 = vsyncpa [#allocation12], 1
    %6980 = vsyncpa [#allocation15], 1
    %6981 = vsyncpa [#allocation18], 1
    %6982 = vsyncpa [#allocation7], 1

</llo_original>
